<compile_context>
chip_gen: v7x
topology: tpu7x:2x2x1
jax: 0.10.0
libtpu: 0.0.40
codegen_flags: <defaults>
</compile_context>

<pallas_src>
import jax
import jax.numpy as jnp
from jax import lax
from jax.experimental import pallas as pl
from jax.experimental.pallas import tpu as pltpu


# ----------------------------------------------------------------------------
# helpers
# ----------------------------------------------------------------------------
def _round_up(x, m):
    return (x + m - 1) // m * m


def _vmem_budget():
    """(live-buffer budget, scoped vmem limit) in bytes, per TPU generation."""
    cap = 64 * 1024 * 1024                       # assume tightest (v7x) if unknown
    try:
        cap = int(getattr(pltpu.get_tpu_info(), "vmem_capacity_bytes", cap))
    except Exception:
        pass
    if cap >= 96 * 1024 * 1024:                  # v5e / v6e: 128 MiB VMEM
        return cap // 4, 100 * 1024 * 1024
    return cap // 3, (cap * 3) // 4              # v7x-class: 64 MiB / TensorCore


def _choose_block_rows(N, H, W, Wp, Wh, Cin, Cmid, Cout, out_bytes, budget):
    """Largest row tile (multiple of 4) whose per-step VMEM footprint fits."""
    th_cap = _round_up(max(H, 4), 4)
    if N == 1 and H > 8:
        # v7x shares the 'parallel' grid axes across 2 TensorCores: make sure a
        # batch-1 call still produces at least 2 grid steps.
        th_cap = min(th_cap, max(4, _round_up((H + 1) // 2, 4)))
    w_bytes = 2 * 9 * (Cin * Cmid + Cmid * Cout) * 2   # double-buffered bf16 weights
    # TODO(synk): single-buffer the constant weight blocks (pl.Buffered(1)) to
    # halve w_bytes on 64 MiB v7x parts once buffer_count=1 is verified.

    def fits(th):
        blocks = 2 * (th + 4) * Wp * Cin * 2           # A+B input blocks, 2x buffered
        slab = (th + 4) * Wp * Cin * 2                 # in-kernel halo'd slab scratch
        acc1 = 2 * (th + 2) * Wp * Cmid * 4            # running tap acc + partial h
        hz = (th + 2) * Wh * Cmid * 2                  # bf16 stage-1 output
        acc2 = 2 * th * Wh * Cout * 4                  # stage-2 acc liveness
        outb = 2 * th * W * Cout * out_bytes           # output blocks, 2x buffered
        return blocks + slab + acc1 + hz + acc2 + outb + w_bytes <= budget

    best = 4
    for th in range(4, th_cap + 1, 4):
        if fits(th):
            best = th
    return best


# ----------------------------------------------------------------------------
# Pallas kernel: fused DoubleConv (conv3x3+BN+ReLU twice) on a halo'd row tile
# ----------------------------------------------------------------------------
def _make_double_conv_kernel(TH, H, W, Wp, Wh):
    L2 = TH * Wh

    def kernel(xa_ref, xb_ref, w1_ref, w2_ref, b1_ref, b2_ref, o_ref, xs_ref):
        t = pl.program_id(1)
        Cin = xa_ref.shape[-1]
        Cmid = w1_ref.shape[-1]
        Cout = o_ref.shape[-1]

        # Assemble the (TH+4)-row halo'd slab in VMEM scratch: the TH-row main
        # block plus the 4-row strip starting at the next tile boundary.
        xs_ref[0:TH * Wp, :] = xa_ref[0].reshape(TH * Wp, Cin)
        xs_ref[TH * Wp:(TH + 4) * Wp, :] = xb_ref[0].reshape(4 * Wp, Cin)

        # ---------------- stage 1: conv3x3 + folded BN + ReLU ----------------
        # 9 MXU taps over sublane-aligned row slabs; per-column-tap results are
        # combined with two static offset slices (padding=1 conv).
        hp = None
        for kx in range(3):
            acc = None
            for ky in range(3):
                slab = xs_ref[ky * Wp:(ky + TH + 2) * Wp, :]
                d = jnp.dot(slab, w1_ref[3 * ky + kx],
                            preferred_element_type=jnp.float32)
                acc = d if acc is None else acc + d
            piece = acc.reshape(TH + 2, Wp, Cmid)[:, kx:kx + Wh]
            hp = piece if hp is None else hp + piece

        # Stage 2 consumes the stage-1 output ZERO-padded outside the real
        # image, so mask out halo rows/columns that fall outside [0,H)x[0,W).
        col = lax.broadcasted_iota(jnp.int32, (TH + 2, Wh, 1), 1)
        row = lax.broadcasted_iota(jnp.int32, (TH + 2, Wh, 1), 0)
        grow = t * TH + row - 1                        # global image row of hp[row]
        valid = (col >= 1) & (col <= W) & (grow >= 0) & (grow < H)
        hz = jnp.where(valid, jnp.maximum(hp + b1_ref[...], 0.0), 0.0)
        hz = hz.astype(jnp.bfloat16)                   # (TH+2, Wh, Cmid)

        # ---------------- stage 2: conv3x3 + folded BN + ReLU ----------------
        y = None
        for kx in range(3):
            acc = None
            for ky in range(3):
                slab = hz[ky:ky + TH].reshape(L2, Cmid)
                d = jnp.dot(slab, w2_ref[3 * ky + kx],
                            preferred_element_type=jnp.float32)
                acc = d if acc is None else acc + d
            piece = acc.reshape(TH, Wh, Cout)[:, kx:kx + W]
            y = piece if y is None else y + piece
        y = jnp.maximum(y + b2_ref[...], 0.0)
        # TODO(synk): for Cout < 128 the store below is a lane-masked vst;
        # padding Cout to a multiple of 128 trades HBM bytes for store width.
        o_ref[0] = y.astype(o_ref.dtype)

    return kernel


def double_conv_fused(x, w1, scale1, bias1, w2, scale2, bias2,
                      *, out_dtype=jnp.float32):
    """Fused DoubleConv on an NHWC input.

    x: (N, H, W, Cin); w1: (3,3,Cin,Cmid); w2: (3,3,Cmid,Cout).
    scale*/bias*: folded eval-mode BatchNorm affines (per output channel).
    """
    N, H, W, Cin = x.shape
    Cmid = w1.shape[-1]
    Cout = w2.shape[-1]

    Wh = _round_up(W + 2, 16)        # stage-1 output width (bf16 sublane tile)
    Wp = Wh + 16                     # padded input width (left pad = 2)
    budget, vmem_limit = _vmem_budget()
    TH = _choose_block_rows(N, H, W, Wp, Wh, Cin, Cmid, Cout,
                            jnp.dtype(out_dtype).itemsize, budget)
    T = -(-H // TH)
    Hp = T * TH + 4

    # Single pad + bf16 cast: 2-row/column zero border for the two stacked
    # padding=1 convs, plus alignment padding.  No halo duplication.
    xp = jnp.pad(x, ((0, 0), (2, Hp - H - 2), (2, Wp - W - 2),
                     (0, 0))).astype(jnp.bfloat16)

    # Fold BN scales into the conv weights host-side (free); keep only biases.
    w1f = (w1 * scale1[None, None, None, :]).reshape(9, Cin, Cmid).astype(jnp.bfloat16)
    w2f = (w2 * scale2[None, None, None, :]).reshape(9, Cmid, Cout).astype(jnp.bfloat16)
    b1f = bias1.reshape(1, Cmid).astype(jnp.float32)
    b2f = bias2.reshape(1, Cout).astype(jnp.float32)

    hq = TH // 4                     # halo-strip block index scale (TH % 4 == 0)
    out = pl.pallas_call(
        _make_double_conv_kernel(TH, H, W, Wp, Wh),
        out_shape=jax.ShapeDtypeStruct((N, T * TH, W, Cout), out_dtype),
        grid=(N, T),
        in_specs=[
            pl.BlockSpec((1, TH, Wp, Cin), lambda n, t: (n, t, 0, 0)),
            pl.BlockSpec((1, 4, Wp, Cin), lambda n, t: (n, (t + 1) * hq, 0, 0)),
            pl.BlockSpec((9, Cin, Cmid), lambda n, t: (0, 0, 0)),
            pl.BlockSpec((9, Cmid, Cout), lambda n, t: (0, 0, 0)),
            pl.BlockSpec((1, Cmid), lambda n, t: (0, 0)),
            pl.BlockSpec((1, Cout), lambda n, t: (0, 0)),
        ],
        out_specs=pl.BlockSpec((1, TH, W, Cout), lambda n, t: (n, t, 0, 0)),
        scratch_shapes=[pltpu.VMEM(((TH + 4) * Wp, Cin), jnp.bfloat16)],
        compiler_params=pltpu.CompilerParams(
            dimension_semantics=("parallel", "parallel"),
            vmem_limit_bytes=int(vmem_limit)),
    )(xp, xp, w1f, w2f, b1f, b2f)
    return out[:, :H]


# ----------------------------------------------------------------------------
# JAX glue: bilinear upsample x2 (align_corners=True) and size-matching pad
# ----------------------------------------------------------------------------
# TODO(synk): the upsample/pad could be fused into the kernel's input DMA
# (lerp low-res x1 rows on the VPU) to save one x1-sized HBM materialization.
def upsample2x_bilinear_align_corners(x_nhwc):
    N, H, W, C = x_nhwc.shape
    Ho, Wo = 2 * H, 2 * W

    def axis_coords(n_in, n_out):
        if n_in == 1:
            i0 = jnp.zeros((n_out,), jnp.int32)
            return i0, i0, jnp.zeros((n_out,), jnp.float32)
        s = jnp.arange(n_out, dtype=jnp.float32) * (n_in - 1) / (n_out - 1)
        i0 = jnp.floor(s).astype(jnp.int32)
        i1 = jnp.minimum(i0 + 1, n_in - 1)
        return i0, i1, s - i0.astype(jnp.float32)

    y0, y1, fy = axis_coords(H, Ho)
    x0, x1, fx = axis_coords(W, Wo)

    r0 = x_nhwc[:, y0]
    r1 = x_nhwc[:, y1]
    rows = r0 * (1.0 - fy)[None, :, None, None] + r1 * fy[None, :, None, None]
    c0 = rows[:, :, x0]
    c1 = rows[:, :, x1]
    return c0 * (1.0 - fx)[None, None, :, None] + c1 * fx[None, None, :, None]


def pad_to_match(x1_nhwc, target_h, target_w):
    # Matches F.pad(x1, [diffX//2, diffX-diffX//2, diffY//2, diffY-diffY//2])
    diff_y = target_h - x1_nhwc.shape[1]
    diff_x = target_w - x1_nhwc.shape[2]
    return jnp.pad(
        x1_nhwc,
        ((0, 0),
         (diff_y // 2, diff_y - diff_y // 2),
         (diff_x // 2, diff_x - diff_x // 2),
         (0, 0)))


# ----------------------------------------------------------------------------
# Parameter construction (deterministic, eval-mode BatchNorm folded)
# ----------------------------------------------------------------------------
def make_params(key, in_channels, out_channels):
    mid_channels = in_channels // 2
    eps = 1e-5
    ks = jax.random.split(key, 10)

    def conv_w(k, cin, cout):
        return 0.1 * jax.random.normal(k, (3, 3, cin, cout), jnp.float32)

    def bn(kg, kb, km, kv, c):
        gamma = 1.0 + 0.1 * jax.random.normal(kg, (c,), jnp.float32)
        beta = 0.1 * jax.random.normal(kb, (c,), jnp.float32)
        mean = 0.05 * jax.random.normal(km, (c,), jnp.float32)
        var = 0.5 + jnp.abs(0.2 * jax.random.normal(kv, (c,), jnp.float32))
        scale = gamma / jnp.sqrt(var + eps)
        bias = beta - mean * scale
        return scale, bias

    w1 = conv_w(ks[0], in_channels, mid_channels)
    s1, b1 = bn(ks[1], ks[2], ks[3], ks[4], mid_channels)
    w2 = conv_w(ks[5], mid_channels, out_channels)
    s2, b2 = bn(ks[6], ks[7], ks[8], ks[9], out_channels)
    return dict(w1=w1, s1=s1, b1=b1, w2=w2, s2=s2, b2=b2)


# ----------------------------------------------------------------------------
# Up.forward  (bilinear=True path)
# ----------------------------------------------------------------------------
@jax.jit
def up_forward(params, x1_nchw, x2_nchw):
    # NCHW (PyTorch) -> NHWC (kernel layout)
    x1 = jnp.transpose(x1_nchw, (0, 2, 3, 1)).astype(jnp.float32)
    x2 = jnp.transpose(x2_nchw, (0, 2, 3, 1)).astype(jnp.float32)

    x1 = upsample2x_bilinear_align_corners(x1)
    x1 = pad_to_match(x1, x2.shape[1], x2.shape[2])

    # torch.cat([x2, x1], dim=1): one channel concat straight into the single
    # padded bf16 kernel input (no per-stage re-tiling, merged-K matmuls).
    x = jnp.concatenate([x2, x1], axis=-1)

    y = double_conv_fused(x,
                          params["w1"], params["s1"], params["b1"],
                          params["w2"], params["s2"], params["b2"],
                          out_dtype=jnp.float32)
    return jnp.transpose(y, (0, 3, 1, 2))            # back to NCHW


# ----------------------------------------------------------------------------
# Pure-JAX reference (lax.conv, f32) for a correctness sanity check
# ----------------------------------------------------------------------------
def up_forward_reference(params, x1_nchw, x2_nchw):
    x1 = jnp.transpose(x1_nchw, (0, 2, 3, 1)).astype(jnp.float32)
    x2 = jnp.transpose(x2_nchw, (0, 2, 3, 1)).astype(jnp.float32)
    x1 = upsample2x_bilinear_align_corners(x1)
    x1 = pad_to_match(x1, x2.shape[1], x2.shape[2])
    x = jnp.concatenate([x2, x1], axis=-1)

    def conv_bn_relu(x, w, s, b):
        y = lax.conv_general_dilated(
            x, w, window_strides=(1, 1), padding="SAME",
            dimension_numbers=("NHWC", "HWIO", "NHWC"),
            precision=lax.Precision.HIGHEST)
        return jnp.maximum(y * s + b, 0.0)

    h = conv_bn_relu(x, params["w1"], params["s1"], params["b1"])
    y = conv_bn_relu(h, params["w2"], params["s2"], params["b2"])
    return jnp.transpose(y, (0, 3, 1, 2))


if __name__ == "__main__":
    # cat([x2, x1]) must have `in_channels` channels: in_channels=8,
    # out_channels=4, batch=2, x1 spatial 8x8 (upsampled to 16x16), x2 16x16.
    in_channels, out_channels = 8, 4
    key = jax.random.PRNGKey(0)
    k_p, k_x1, k_x2 = jax.random.split(key, 3)

    params = make_params(k_p, in_channels, out_channels)
    x1 = jax.random.normal(k_x1, (2, in_channels // 2, 8, 8), jnp.float32)    # NCHW
    x2 = jax.random.normal(k_x2, (2, in_channels // 2, 16, 16), jnp.float32)  # NCHW

    out = jax.block_until_ready(up_forward(params, x1, x2))
    ref = jax.block_until_ready(up_forward_reference(params, x1, x2))

    assert out.shape == (2, out_channels, 16, 16), out.shape
    max_err = float(jnp.max(jnp.abs(out - ref)))
    assert jnp.allclose(out, ref, rtol=5e-2, atol=5e-2), max_err

    print("KERNEL_OK")
</pallas_src>

<mosaic_0001>
module attributes {stable_mosaic.version = 11 : i64} {
  func.func @kernel(%arg0: i32, %arg1: i32, %arg2: memref<1x16x48x8xbf16, #tpu.memory_space<vmem>>, %arg3: memref<1x4x48x8xbf16, #tpu.memory_space<vmem>>, %arg4: memref<9x8x4xbf16, #tpu.memory_space<vmem>>, %arg5: memref<9x4x4xbf16, #tpu.memory_space<vmem>>, %arg6: memref<1x4xf32, #tpu.memory_space<vmem>>, %arg7: memref<1x4xf32, #tpu.memory_space<vmem>>, %arg8: memref<1x16x16x4xf32, #tpu.memory_space<vmem>>, %arg9: memref<960x8xbf16, #tpu.memory_space<vmem>>) attributes {dimension_semantics = [#tpu.dimension_semantics<parallel>, #tpu.dimension_semantics<parallel>], iteration_bounds = array<i64: 2, 1>, scalar_prefetch = 0 : i64, scratch_operands = 1 : i64, tpu.core_type = #tpu.core_type<tc>, window_params = [{transform_indices = @transform_0, window_bounds = array<i64: 1, 16, 48, 8>}, {transform_indices = @transform_1, window_bounds = array<i64: 1, 4, 48, 8>}, {pipeline_mode = #tpu.pipeline_mode<synchronous>, transform_indices = @transform_2, window_bounds = array<i64: 9, 8, 4>}, {pipeline_mode = #tpu.pipeline_mode<synchronous>, transform_indices = @transform_3, window_bounds = array<i64: 9, 4, 4>}, {pipeline_mode = #tpu.pipeline_mode<synchronous>, transform_indices = @transform_4, window_bounds = array<i64: 1, 4>}, {pipeline_mode = #tpu.pipeline_mode<synchronous>, transform_indices = @transform_5, window_bounds = array<i64: 1, 4>}, {transform_indices = @transform_6, window_bounds = array<i64: 1, 16, 16, 4>}]} {
    %c0 = arith.constant 0 : index
    %c0_0 = arith.constant 0 : index
    %c0_1 = arith.constant 0 : index
    %c0_2 = arith.constant 0 : index
    %0 = vector.load %arg2[%c0, %c0_0, %c0_1, %c0_2] : memref<1x16x48x8xbf16, #tpu.memory_space<vmem>>, vector<1x16x48x8xbf16>
    %1 = vector.shape_cast %0 : vector<1x16x48x8xbf16> to vector<16x48x8xbf16>
    %2 = vector.shape_cast %1 : vector<16x48x8xbf16> to vector<768x8xbf16>
    %c0_3 = arith.constant 0 : index
    %c0_4 = arith.constant 0 : index
    %3 = vector.load %arg9[%c0_3, %c0_4] : memref<960x8xbf16, #tpu.memory_space<vmem>>, vector<768x8xbf16>
    tpu.vector_store %arg9[%c0_3, %c0_4], %2 {strides = array<i32>} : memref<960x8xbf16, #tpu.memory_space<vmem>>, vector<768x8xbf16>,
    %c0_5 = arith.constant 0 : index
    %c0_6 = arith.constant 0 : index
    %c0_7 = arith.constant 0 : index
    %c0_8 = arith.constant 0 : index
    %4 = vector.load %arg3[%c0_5, %c0_6, %c0_7, %c0_8] : memref<1x4x48x8xbf16, #tpu.memory_space<vmem>>, vector<1x4x48x8xbf16>
    %5 = vector.shape_cast %4 : vector<1x4x48x8xbf16> to vector<4x48x8xbf16>
    %6 = vector.shape_cast %5 : vector<4x48x8xbf16> to vector<192x8xbf16>
    %c768 = arith.constant 768 : index
    %c0_9 = arith.constant 0 : index
    %7 = vector.load %arg9[%c768, %c0_9] : memref<960x8xbf16, #tpu.memory_space<vmem>>, vector<192x8xbf16>
    tpu.vector_store %arg9[%c768, %c0_9], %6 {strides = array<i32>} : memref<960x8xbf16, #tpu.memory_space<vmem>>, vector<192x8xbf16>,
    %c0_10 = arith.constant 0 : index
    %c0_11 = arith.constant 0 : index
    %8 = vector.load %arg9[%c0_10, %c0_11] : memref<960x8xbf16, #tpu.memory_space<vmem>>, vector<864x8xbf16>
    %c0_12 = arith.constant 0 : index
    %c0_13 = arith.constant 0 : index
    %c0_14 = arith.constant 0 : index
    %9 = vector.load %arg4[%c0_12, %c0_13, %c0_14] : memref<9x8x4xbf16, #tpu.memory_space<vmem>>, vector<1x8x4xbf16>
    %10 = vector.shape_cast %9 : vector<1x8x4xbf16> to vector<8x4xbf16>
    %cst = arith.constant dense<0.000000e+00> : vector<864x4xf32>
    %11 = tpu.matmul %8, %10, %cst {dimension_numbers = #tpu.dot_dimension_numbers<[1], [0], [0], [1], [0, 0, 1, 1], [], []>} : vector<864x8xbf16>, vector<8x4xbf16>, vector<864x4xf32> -> vector<864x4xf32>
    %c48 = arith.constant 48 : index
    %c0_15 = arith.constant 0 : index
    %12 = vector.load %arg9[%c48, %c0_15] : memref<960x8xbf16, #tpu.memory_space<vmem>>, vector<864x8xbf16>
    %c3 = arith.constant 3 : index
    %c0_16 = arith.constant 0 : index
    %c0_17 = arith.constant 0 : index
    %13 = vector.load %arg4[%c3, %c0_16, %c0_17] : memref<9x8x4xbf16, #tpu.memory_space<vmem>>, vector<1x8x4xbf16>
    %14 = vector.shape_cast %13 : vector<1x8x4xbf16> to vector<8x4xbf16>
    %cst_18 = arith.constant dense<0.000000e+00> : vector<864x4xf32>
    %15 = tpu.matmul %12, %14, %cst_18 {dimension_numbers = #tpu.dot_dimension_numbers<[1], [0], [0], [1], [0, 0, 1, 1], [], []>} : vector<864x8xbf16>, vector<8x4xbf16>, vector<864x4xf32> -> vector<864x4xf32>
    %16 = arith.addf %11, %15 : vector<864x4xf32>
    %c96 = arith.constant 96 : index
    %c0_19 = arith.constant 0 : index
    %17 = vector.load %arg9[%c96, %c0_19] : memref<960x8xbf16, #tpu.memory_space<vmem>>, vector<864x8xbf16>
    %c6 = arith.constant 6 : index
    %c0_20 = arith.constant 0 : index
    %c0_21 = arith.constant 0 : index
    %18 = vector.load %arg4[%c6, %c0_20, %c0_21] : memref<9x8x4xbf16, #tpu.memory_space<vmem>>, vector<1x8x4xbf16>
    %19 = vector.shape_cast %18 : vector<1x8x4xbf16> to vector<8x4xbf16>
    %cst_22 = arith.constant dense<0.000000e+00> : vector<864x4xf32>
    %20 = tpu.matmul %17, %19, %cst_22 {dimension_numbers = #tpu.dot_dimension_numbers<[1], [0], [0], [1], [0, 0, 1, 1], [], []>} : vector<864x8xbf16>, vector<8x4xbf16>, vector<864x4xf32> -> vector<864x4xf32>
    %21 = arith.addf %16, %20 : vector<864x4xf32>
    %22 = vector.shape_cast %21 : vector<864x4xf32> to vector<18x48x4xf32>
    %23 = vector.extract_strided_slice %22 {offsets = [0, 0, 0], sizes = [18, 32, 4], strides = [1, 1, 1]} : vector<18x48x4xf32> to vector<18x32x4xf32>
    %c0_23 = arith.constant 0 : index
    %c0_24 = arith.constant 0 : index
    %24 = vector.load %arg9[%c0_23, %c0_24] : memref<960x8xbf16, #tpu.memory_space<vmem>>, vector<864x8xbf16>
    %c1 = arith.constant 1 : index
    %c0_25 = arith.constant 0 : index
    %c0_26 = arith.constant 0 : index
    %25 = vector.load %arg4[%c1, %c0_25, %c0_26] : memref<9x8x4xbf16, #tpu.memory_space<vmem>>, vector<1x8x4xbf16>
    %26 = vector.shape_cast %25 : vector<1x8x4xbf16> to vector<8x4xbf16>
    %cst_27 = arith.constant dense<0.000000e+00> : vector<864x4xf32>
    %27 = tpu.matmul %24, %26, %cst_27 {dimension_numbers = #tpu.dot_dimension_numbers<[1], [0], [0], [1], [0, 0, 1, 1], [], []>} : vector<864x8xbf16>, vector<8x4xbf16>, vector<864x4xf32> -> vector<864x4xf32>
    %c48_28 = arith.constant 48 : index
    %c0_29 = arith.constant 0 : index
    %28 = vector.load %arg9[%c48_28, %c0_29] : memref<960x8xbf16, #tpu.memory_space<vmem>>, vector<864x8xbf16>
    %c4 = arith.constant 4 : index
    %c0_30 = arith.constant 0 : index
    %c0_31 = arith.constant 0 : index
    %29 = vector.load %arg4[%c4, %c0_30, %c0_31] : memref<9x8x4xbf16, #tpu.memory_space<vmem>>, vector<1x8x4xbf16>
    %30 = vector.shape_cast %29 : vector<1x8x4xbf16> to vector<8x4xbf16>
    %cst_32 = arith.constant dense<0.000000e+00> : vector<864x4xf32>
    %31 = tpu.matmul %28, %30, %cst_32 {dimension_numbers = #tpu.dot_dimension_numbers<[1], [0], [0], [1], [0, 0, 1, 1], [], []>} : vector<864x8xbf16>, vector<8x4xbf16>, vector<864x4xf32> -> vector<864x4xf32>
    %32 = arith.addf %27, %31 : vector<864x4xf32>
    %c96_33 = arith.constant 96 : index
    %c0_34 = arith.constant 0 : index
    %33 = vector.load %arg9[%c96_33, %c0_34] : memref<960x8xbf16, #tpu.memory_space<vmem>>, vector<864x8xbf16>
    %c7 = arith.constant 7 : index
    %c0_35 = arith.constant 0 : index
    %c0_36 = arith.constant 0 : index
    %34 = vector.load %arg4[%c7, %c0_35, %c0_36] : memref<9x8x4xbf16, #tpu.memory_space<vmem>>, vector<1x8x4xbf16>
    %35 = vector.shape_cast %34 : vector<1x8x4xbf16> to vector<8x4xbf16>
    %cst_37 = arith.constant dense<0.000000e+00> : vector<864x4xf32>
    %36 = tpu.matmul %33, %35, %cst_37 {dimension_numbers = #tpu.dot_dimension_numbers<[1], [0], [0], [1], [0, 0, 1, 1], [], []>} : vector<864x8xbf16>, vector<8x4xbf16>, vector<864x4xf32> -> vector<864x4xf32>
    %37 = arith.addf %32, %36 : vector<864x4xf32>
    %38 = vector.shape_cast %37 : vector<864x4xf32> to vector<18x48x4xf32>
    %39 = vector.extract_strided_slice %38 {offsets = [0, 1, 0], sizes = [18, 32, 4], strides = [1, 1, 1]} : vector<18x48x4xf32> to vector<18x32x4xf32>
    %40 = arith.addf %23, %39 : vector<18x32x4xf32>
    %c0_38 = arith.constant 0 : index
    %c0_39 = arith.constant 0 : index
    %41 = vector.load %arg9[%c0_38, %c0_39] : memref<960x8xbf16, #tpu.memory_space<vmem>>, vector<864x8xbf16>
    %c2 = arith.constant 2 : index
    %c0_40 = arith.constant 0 : index
    %c0_41 = arith.constant 0 : index
    %42 = vector.load %arg4[%c2, %c0_40, %c0_41] : memref<9x8x4xbf16, #tpu.memory_space<vmem>>, vector<1x8x4xbf16>
    %43 = vector.shape_cast %42 : vector<1x8x4xbf16> to vector<8x4xbf16>
    %cst_42 = arith.constant dense<0.000000e+00> : vector<864x4xf32>
    %44 = tpu.matmul %41, %43, %cst_42 {dimension_numbers = #tpu.dot_dimension_numbers<[1], [0], [0], [1], [0, 0, 1, 1], [], []>} : vector<864x8xbf16>, vector<8x4xbf16>, vector<864x4xf32> -> vector<864x4xf32>
    %c48_43 = arith.constant 48 : index
    %c0_44 = arith.constant 0 : index
    %45 = vector.load %arg9[%c48_43, %c0_44] : memref<960x8xbf16, #tpu.memory_space<vmem>>, vector<864x8xbf16>
    %c5 = arith.constant 5 : index
    %c0_45 = arith.constant 0 : index
    %c0_46 = arith.constant 0 : index
    %46 = vector.load %arg4[%c5, %c0_45, %c0_46] : memref<9x8x4xbf16, #tpu.memory_space<vmem>>, vector<1x8x4xbf16>
    %47 = vector.shape_cast %46 : vector<1x8x4xbf16> to vector<8x4xbf16>
    %cst_47 = arith.constant dense<0.000000e+00> : vector<864x4xf32>
    %48 = tpu.matmul %45, %47, %cst_47 {dimension_numbers = #tpu.dot_dimension_numbers<[1], [0], [0], [1], [0, 0, 1, 1], [], []>} : vector<864x8xbf16>, vector<8x4xbf16>, vector<864x4xf32> -> vector<864x4xf32>
    %49 = arith.addf %44, %48 : vector<864x4xf32>
    %c96_48 = arith.constant 96 : index
    %c0_49 = arith.constant 0 : index
    %50 = vector.load %arg9[%c96_48, %c0_49] : memref<960x8xbf16, #tpu.memory_space<vmem>>, vector<864x8xbf16>
    %c8 = arith.constant 8 : index
    %c0_50 = arith.constant 0 : index
    %c0_51 = arith.constant 0 : index
    %51 = vector.load %arg4[%c8, %c0_50, %c0_51] : memref<9x8x4xbf16, #tpu.memory_space<vmem>>, vector<1x8x4xbf16>
    %52 = vector.shape_cast %51 : vector<1x8x4xbf16> to vector<8x4xbf16>
    %cst_52 = arith.constant dense<0.000000e+00> : vector<864x4xf32>
    %53 = tpu.matmul %50, %52, %cst_52 {dimension_numbers = #tpu.dot_dimension_numbers<[1], [0], [0], [1], [0, 0, 1, 1], [], []>} : vector<864x8xbf16>, vector<8x4xbf16>, vector<864x4xf32> -> vector<864x4xf32>
    %54 = arith.addf %49, %53 : vector<864x4xf32>
    %55 = vector.shape_cast %54 : vector<864x4xf32> to vector<18x48x4xf32>
    %56 = vector.extract_strided_slice %55 {offsets = [0, 2, 0], sizes = [18, 32, 4], strides = [1, 1, 1]} : vector<18x48x4xf32> to vector<18x32x4xf32>
    %57 = arith.addf %40, %56 : vector<18x32x4xf32>
    %58 = tpu.iota {dimensions = array<i32: 1>} : vector<18x32x1xi32>
    %59 = tpu.iota {dimensions = array<i32: 0>} : vector<18x32x1xi32>
    %c16_i32 = arith.constant 16 : i32
    %60 = arith.muli %arg1, %c16_i32 : i32
    %61 = vector.broadcast %60 : i32 to vector<18x32x1xi32>
    %62 = arith.addi %61, %59 : vector<18x32x1xi32>
    %c1_i32 = arith.constant 1 : i32
    %63 = vector.broadcast %c1_i32 : i32 to vector<18x32x1xi32>
    %64 = arith.subi %62, %63 : vector<18x32x1xi32>
    %c1_i32_53 = arith.constant 1 : i32
    %65 = vector.broadcast %c1_i32_53 : i32 to vector<18x32x1xi32>
    %66 = arith.cmpi sge, %58, %65 : vector<18x32x1xi32>
    %c16_i32_54 = arith.constant 16 : i32
    %67 = vector.broadcast %c16_i32_54 : i32 to vector<18x32x1xi32>
    %68 = arith.cmpi sle, %58, %67 : vector<18x32x1xi32>
    %69 = arith.andi %66, %68 : vector<18x32x1xi1>
    %c0_i32 = arith.constant 0 : i32
    %70 = vector.broadcast %c0_i32 : i32 to vector<18x32x1xi32>
    %71 = arith.cmpi sge, %64, %70 : vector<18x32x1xi32>
    %72 = arith.andi %69, %71 : vector<18x32x1xi1>
    %c16_i32_55 = arith.constant 16 : i32
    %73 = vector.broadcast %c16_i32_55 : i32 to vector<18x32x1xi32>
    %74 = arith.cmpi slt, %64, %73 : vector<18x32x1xi32>
    %75 = arith.andi %72, %74 : vector<18x32x1xi1>
    %c0_56 = arith.constant 0 : index
    %c0_57 = arith.constant 0 : index
    %76 = vector.load %arg6[%c0_56, %c0_57] : memref<1x4xf32, #tpu.memory_space<vmem>>, vector<1x4xf32>
    %77 = vector.shape_cast %76 : vector<1x4xf32> to vector<1x1x4xf32>
    %78 = vector.broadcast %77 : vector<1x1x4xf32> to vector<18x32x4xf32>
    %79 = arith.addf %57, %78 : vector<18x32x4xf32>
    %cst_58 = arith.constant 0.000000e+00 : f32
    %80 = vector.broadcast %cst_58 : f32 to vector<18x32x4xf32>
    %81 = arith.maximumf %79, %80 : vector<18x32x4xf32>
    %cst_59 = arith.constant 0.000000e+00 : f32
    %82 = vector.shape_cast %75 : vector<18x32x1xi1> to vector<18x32x1xi1>
    %83 = vector.broadcast %82 : vector<18x32x1xi1> to vector<18x32x4xi1>
    %84 = vector.broadcast %cst_59 : f32 to vector<18x32x4xf32>
    %85 = arith.select %83, %81, %84 : vector<18x32x4xi1>, vector<18x32x4xf32>
    %86 = arith.truncf %85 : vector<18x32x4xf32> to vector<18x32x4xbf16>
    %87 = vector.extract_strided_slice %86 {offsets = [0, 0, 0], sizes = [16, 32, 4], strides = [1, 1, 1]} : vector<18x32x4xbf16> to vector<16x32x4xbf16>
    %88 = vector.shape_cast %87 : vector<16x32x4xbf16> to vector<512x4xbf16>
    %c0_60 = arith.constant 0 : index
    %c0_61 = arith.constant 0 : index
    %c0_62 = arith.constant 0 : index
    %89 = vector.load %arg5[%c0_60, %c0_61, %c0_62] : memref<9x4x4xbf16, #tpu.memory_space<vmem>>, vector<1x4x4xbf16>
    %90 = vector.shape_cast %89 : vector<1x4x4xbf16> to vector<4x4xbf16>
    %cst_63 = arith.constant dense<0.000000e+00> : vector<512x4xf32>
    %91 = tpu.matmul %88, %90, %cst_63 {dimension_numbers = #tpu.dot_dimension_numbers<[1], [0], [0], [1], [0, 0, 1, 1], [], []>} : vector<512x4xbf16>, vector<4x4xbf16>, vector<512x4xf32> -> vector<512x4xf32>
    %92 = vector.extract_strided_slice %86 {offsets = [1, 0, 0], sizes = [16, 32, 4], strides = [1, 1, 1]} : vector<18x32x4xbf16> to vector<16x32x4xbf16>
    %93 = vector.shape_cast %92 : vector<16x32x4xbf16> to vector<512x4xbf16>
    %c3_64 = arith.constant 3 : index
    %c0_65 = arith.constant 0 : index
    %c0_66 = arith.constant 0 : index
    %94 = vector.load %arg5[%c3_64, %c0_65, %c0_66] : memref<9x4x4xbf16, #tpu.memory_space<vmem>>, vector<1x4x4xbf16>
    %95 = vector.shape_cast %94 : vector<1x4x4xbf16> to vector<4x4xbf16>
    %cst_67 = arith.constant dense<0.000000e+00> : vector<512x4xf32>
    %96 = tpu.matmul %93, %95, %cst_67 {dimension_numbers = #tpu.dot_dimension_numbers<[1], [0], [0], [1], [0, 0, 1, 1], [], []>} : vector<512x4xbf16>, vector<4x4xbf16>, vector<512x4xf32> -> vector<512x4xf32>
    %97 = arith.addf %91, %96 : vector<512x4xf32>
    %98 = vector.extract_strided_slice %86 {offsets = [2, 0, 0], sizes = [16, 32, 4], strides = [1, 1, 1]} : vector<18x32x4xbf16> to vector<16x32x4xbf16>
    %99 = vector.shape_cast %98 : vector<16x32x4xbf16> to vector<512x4xbf16>
    %c6_68 = arith.constant 6 : index
    %c0_69 = arith.constant 0 : index
    %c0_70 = arith.constant 0 : index
    %100 = vector.load %arg5[%c6_68, %c0_69, %c0_70] : memref<9x4x4xbf16, #tpu.memory_space<vmem>>, vector<1x4x4xbf16>
    %101 = vector.shape_cast %100 : vector<1x4x4xbf16> to vector<4x4xbf16>
    %cst_71 = arith.constant dense<0.000000e+00> : vector<512x4xf32>
    %102 = tpu.matmul %99, %101, %cst_71 {dimension_numbers = #tpu.dot_dimension_numbers<[1], [0], [0], [1], [0, 0, 1, 1], [], []>} : vector<512x4xbf16>, vector<4x4xbf16>, vector<512x4xf32> -> vector<512x4xf32>
    %103 = arith.addf %97, %102 : vector<512x4xf32>
    %104 = vector.shape_cast %103 : vector<512x4xf32> to vector<16x32x4xf32>
    %105 = vector.extract_strided_slice %104 {offsets = [0, 0, 0], sizes = [16, 16, 4], strides = [1, 1, 1]} : vector<16x32x4xf32> to vector<16x16x4xf32>
    %106 = vector.extract_strided_slice %86 {offsets = [0, 0, 0], sizes = [16, 32, 4], strides = [1, 1, 1]} : vector<18x32x4xbf16> to vector<16x32x4xbf16>
    %107 = vector.shape_cast %106 : vector<16x32x4xbf16> to vector<512x4xbf16>
    %c1_72 = arith.constant 1 : index
    %c0_73 = arith.constant 0 : index
    %c0_74 = arith.constant 0 : index
    %108 = vector.load %arg5[%c1_72, %c0_73, %c0_74] : memref<9x4x4xbf16, #tpu.memory_space<vmem>>, vector<1x4x4xbf16>
    %109 = vector.shape_cast %108 : vector<1x4x4xbf16> to vector<4x4xbf16>
    %cst_75 = arith.constant dense<0.000000e+00> : vector<512x4xf32>
    %110 = tpu.matmul %107, %109, %cst_75 {dimension_numbers = #tpu.dot_dimension_numbers<[1], [0], [0], [1], [0, 0, 1, 1], [], []>} : vector<512x4xbf16>, vector<4x4xbf16>, vector<512x4xf32> -> vector<512x4xf32>
    %111 = vector.extract_strided_slice %86 {offsets = [1, 0, 0], sizes = [16, 32, 4], strides = [1, 1, 1]} : vector<18x32x4xbf16> to vector<16x32x4xbf16>
    %112 = vector.shape_cast %111 : vector<16x32x4xbf16> to vector<512x4xbf16>
    %c4_76 = arith.constant 4 : index
    %c0_77 = arith.constant 0 : index
    %c0_78 = arith.constant 0 : index
    %113 = vector.load %arg5[%c4_76, %c0_77, %c0_78] : memref<9x4x4xbf16, #tpu.memory_space<vmem>>, vector<1x4x4xbf16>
    %114 = vector.shape_cast %113 : vector<1x4x4xbf16> to vector<4x4xbf16>
    %cst_79 = arith.constant dense<0.000000e+00> : vector<512x4xf32>
    %115 = tpu.matmul %112, %114, %cst_79 {dimension_numbers = #tpu.dot_dimension_numbers<[1], [0], [0], [1], [0, 0, 1, 1], [], []>} : vector<512x4xbf16>, vector<4x4xbf16>, vector<512x4xf32> -> vector<512x4xf32>
    %116 = arith.addf %110, %115 : vector<512x4xf32>
    %117 = vector.extract_strided_slice %86 {offsets = [2, 0, 0], sizes = [16, 32, 4], strides = [1, 1, 1]} : vector<18x32x4xbf16> to vector<16x32x4xbf16>
    %118 = vector.shape_cast %117 : vector<16x32x4xbf16> to vector<512x4xbf16>
    %c7_80 = arith.constant 7 : index
    %c0_81 = arith.constant 0 : index
    %c0_82 = arith.constant 0 : index
    %119 = vector.load %arg5[%c7_80, %c0_81, %c0_82] : memref<9x4x4xbf16, #tpu.memory_space<vmem>>, vector<1x4x4xbf16>
    %120 = vector.shape_cast %119 : vector<1x4x4xbf16> to vector<4x4xbf16>
    %cst_83 = arith.constant dense<0.000000e+00> : vector<512x4xf32>
    %121 = tpu.matmul %118, %120, %cst_83 {dimension_numbers = #tpu.dot_dimension_numbers<[1], [0], [0], [1], [0, 0, 1, 1], [], []>} : vector<512x4xbf16>, vector<4x4xbf16>, vector<512x4xf32> -> vector<512x4xf32>
    %122 = arith.addf %116, %121 : vector<512x4xf32>
    %123 = vector.shape_cast %122 : vector<512x4xf32> to vector<16x32x4xf32>
    %124 = vector.extract_strided_slice %123 {offsets = [0, 1, 0], sizes = [16, 16, 4], strides = [1, 1, 1]} : vector<16x32x4xf32> to vector<16x16x4xf32>
    %125 = arith.addf %105, %124 : vector<16x16x4xf32>
    %126 = vector.extract_strided_slice %86 {offsets = [0, 0, 0], sizes = [16, 32, 4], strides = [1, 1, 1]} : vector<18x32x4xbf16> to vector<16x32x4xbf16>
    %127 = vector.shape_cast %126 : vector<16x32x4xbf16> to vector<512x4xbf16>
    %c2_84 = arith.constant 2 : index
    %c0_85 = arith.constant 0 : index
    %c0_86 = arith.constant 0 : index
    %128 = vector.load %arg5[%c2_84, %c0_85, %c0_86] : memref<9x4x4xbf16, #tpu.memory_space<vmem>>, vector<1x4x4xbf16>
    %129 = vector.shape_cast %128 : vector<1x4x4xbf16> to vector<4x4xbf16>
    %cst_87 = arith.constant dense<0.000000e+00> : vector<512x4xf32>
    %130 = tpu.matmul %127, %129, %cst_87 {dimension_numbers = #tpu.dot_dimension_numbers<[1], [0], [0], [1], [0, 0, 1, 1], [], []>} : vector<512x4xbf16>, vector<4x4xbf16>, vector<512x4xf32> -> vector<512x4xf32>
    %131 = vector.extract_strided_slice %86 {offsets = [1, 0, 0], sizes = [16, 32, 4], strides = [1, 1, 1]} : vector<18x32x4xbf16> to vector<16x32x4xbf16>
    %132 = vector.shape_cast %131 : vector<16x32x4xbf16> to vector<512x4xbf16>
    %c5_88 = arith.constant 5 : index
    %c0_89 = arith.constant 0 : index
    %c0_90 = arith.constant 0 : index
    %133 = vector.load %arg5[%c5_88, %c0_89, %c0_90] : memref<9x4x4xbf16, #tpu.memory_space<vmem>>, vector<1x4x4xbf16>
    %134 = vector.shape_cast %133 : vector<1x4x4xbf16> to vector<4x4xbf16>
    %cst_91 = arith.constant dense<0.000000e+00> : vector<512x4xf32>
    %135 = tpu.matmul %132, %134, %cst_91 {dimension_numbers = #tpu.dot_dimension_numbers<[1], [0], [0], [1], [0, 0, 1, 1], [], []>} : vector<512x4xbf16>, vector<4x4xbf16>, vector<512x4xf32> -> vector<512x4xf32>
    %136 = arith.addf %130, %135 : vector<512x4xf32>
    %137 = vector.extract_strided_slice %86 {offsets = [2, 0, 0], sizes = [16, 32, 4], strides = [1, 1, 1]} : vector<18x32x4xbf16> to vector<16x32x4xbf16>
    %138 = vector.shape_cast %137 : vector<16x32x4xbf16> to vector<512x4xbf16>
    %c8_92 = arith.constant 8 : index
    %c0_93 = arith.constant 0 : index
    %c0_94 = arith.constant 0 : index
    %139 = vector.load %arg5[%c8_92, %c0_93, %c0_94] : memref<9x4x4xbf16, #tpu.memory_space<vmem>>, vector<1x4x4xbf16>
    %140 = vector.shape_cast %139 : vector<1x4x4xbf16> to vector<4x4xbf16>
    %cst_95 = arith.constant dense<0.000000e+00> : vector<512x4xf32>
    %141 = tpu.matmul %138, %140, %cst_95 {dimension_numbers = #tpu.dot_dimension_numbers<[1], [0], [0], [1], [0, 0, 1, 1], [], []>} : vector<512x4xbf16>, vector<4x4xbf16>, vector<512x4xf32> -> vector<512x4xf32>
    %142 = arith.addf %136, %141 : vector<512x4xf32>
    %143 = vector.shape_cast %142 : vector<512x4xf32> to vector<16x32x4xf32>
    %144 = vector.extract_strided_slice %143 {offsets = [0, 2, 0], sizes = [16, 16, 4], strides = [1, 1, 1]} : vector<16x32x4xf32> to vector<16x16x4xf32>
    %145 = arith.addf %125, %144 : vector<16x16x4xf32>
    %c0_96 = arith.constant 0 : index
    %c0_97 = arith.constant 0 : index
    %146 = vector.load %arg7[%c0_96, %c0_97] : memref<1x4xf32, #tpu.memory_space<vmem>>, vector<1x4xf32>
    %147 = vector.shape_cast %146 : vector<1x4xf32> to vector<1x1x4xf32>
    %148 = vector.broadcast %147 : vector<1x1x4xf32> to vector<16x16x4xf32>
    %149 = arith.addf %145, %148 : vector<16x16x4xf32>
    %cst_98 = arith.constant 0.000000e+00 : f32
    %150 = vector.broadcast %cst_98 : f32 to vector<16x16x4xf32>
    %151 = arith.maximumf %149, %150 : vector<16x16x4xf32>
    %c0_99 = arith.constant 0 : index
    %c0_100 = arith.constant 0 : index
    %c0_101 = arith.constant 0 : index
    %c0_102 = arith.constant 0 : index
    %152 = vector.load %arg8[%c0_99, %c0_100, %c0_101, %c0_102] : memref<1x16x16x4xf32, #tpu.memory_space<vmem>>, vector<1x16x16x4xf32>
    %153 = vector.shape_cast %152 : vector<1x16x16x4xf32> to vector<16x16x4xf32>
    %154 = vector.shape_cast %151 : vector<16x16x4xf32> to vector<1x16x16x4xf32>
    tpu.vector_store %arg8[%c0_99, %c0_100, %c0_101, %c0_102], %154 {strides = array<i32>} : memref<1x16x16x4xf32, #tpu.memory_space<vmem>>, vector<1x16x16x4xf32>,
    return
  }
  func.func @transform_0(%arg0: i32, %arg1: i32) -> (i32, i32, i32, i32) {
    %c0_i32 = arith.constant 0 : i32
    %c0_i32_0 = arith.constant 0 : i32
    %c0_i32_1 = arith.constant 0 : i32
    return %arg0, %arg1, %c0_i32, %c0_i32_0 : i32, i32, i32, i32
  }
  func.func @transform_1(%arg0: i32, %arg1: i32) -> (i32, i32, i32, i32) {
    %c1_i32 = arith.constant 1 : i32
    %0 = arith.addi %arg1, %c1_i32 : i32
    %c4_i32 = arith.constant 4 : i32
    %1 = arith.muli %0, %c4_i32 : i32
    %c0_i32 = arith.constant 0 : i32
    %c0_i32_0 = arith.constant 0 : i32
    %c0_i32_1 = arith.constant 0 : i32
    return %arg0, %1, %c0_i32, %c0_i32_0 : i32, i32, i32, i32
  }
  func.func @transform_2(%arg0: i32, %arg1: i32) -> (i32, i32, i32) {
    %c0_i32 = arith.constant 0 : i32
    %c0_i32_0 = arith.constant 0 : i32
    %c0_i32_1 = arith.constant 0 : i32
    %c0_i32_2 = arith.constant 0 : i32
    return %c0_i32, %c0_i32_0, %c0_i32_1 : i32, i32, i32
  }
  func.func @transform_3(%arg0: i32, %arg1: i32) -> (i32, i32, i32) {
    %c0_i32 = arith.constant 0 : i32
    %c0_i32_0 = arith.constant 0 : i32
    %c0_i32_1 = arith.constant 0 : i32
    %c0_i32_2 = arith.constant 0 : i32
    return %c0_i32, %c0_i32_0, %c0_i32_1 : i32, i32, i32
  }
  func.func @transform_4(%arg0: i32, %arg1: i32) -> (i32, i32) {
    %c0_i32 = arith.constant 0 : i32
    %c0_i32_0 = arith.constant 0 : i32
    %c0_i32_1 = arith.constant 0 : i32
    return %c0_i32, %c0_i32_0 : i32, i32
  }
  func.func @transform_5(%arg0: i32, %arg1: i32) -> (i32, i32) {
    %c0_i32 = arith.constant 0 : i32
    %c0_i32_0 = arith.constant 0 : i32
    %c0_i32_1 = arith.constant 0 : i32
    return %c0_i32, %c0_i32_0 : i32, i32
  }
  func.func @transform_6(%arg0: i32, %arg1: i32) -> (i32, i32, i32, i32) {
    %c0_i32 = arith.constant 0 : i32
    %c0_i32_0 = arith.constant 0 : i32
    %c0_i32_1 = arith.constant 0 : i32
    return %arg0, %arg1, %c0_i32, %c0_i32_0 : i32, i32, i32, i32
  }
}

</mosaic_0001>

<llo_original>
// kernel: up_forward.1
$region0: #{up_forward.1}
  #allocation0 [shape = 'u32[]', space=smem, size = 0x4, offset = 0x4, fixed_abs, tag = 'smem constant byte address 0x4 - core index']
  #allocation1 [shape = 'u32[144,128]{1,0:T(1,128)}', space=vmem, size = 0x12000, scoped, tag = 'internal scratch']
  #allocation2 [shape = 'bf16[960,8]{1,0:T(16,128)(2,1)}', space=vmem, size = 0x3c000, scoped, tag = 'scratch operand']
  %s0 = inlined_call_operand.vmem [shape: bf16[2,20,48,8], index: 0, kind: input, shape index: {}, may-alias: {0,1}]
  %s1 = inlined_call_operand.vmem [shape: bf16[2,20,48,8], index: 1, kind: input, shape index: {}, may-alias: {0,1}]
  %s2 = inlined_call_operand.vmem [shape: bf16[9,8,4], index: 2, kind: input, shape index: {}]
  %s3 = inlined_call_operand.vmem [shape: bf16[9,4,4], index: 3, kind: input, shape index: {}]
  %s4 = inlined_call_operand.vmem [shape: f32[1,4], index: 4, kind: input, shape index: {}]
  %s5 = inlined_call_operand.vmem [shape: f32[1,4], index: 5, kind: input, shape index: {}]
  %s6 = inlined_call_operand.vmem [shape: f32[2,16,16,4], index: 6, kind: output, shape index: {}]
  %s7 = sld [smem:[#allocation0]]
  $region57: #{up_forward.1} parent=0
    _
  %s9 = ssub.s32 1, %s7
  %s10 = scalar_select 0, %s9, %s7
  loop: start=0, step=1, limit=4
  $region2: #{up_forward.1} parent=0 // loop_pre_header
    _
  $region3: #{up_forward.1} parent=0 // loop_header
    %s12 = sphi 0, %s16
    %p13 = scmp.ge.s32.totalorder %s12, 4
    %s19 = sphi 0, %s31
    %s20 = sphi 0, %s27
    %s21 = sphi 0, %s19
    %s22 = sphi 0, %s20
    %s23 = sphi 0, %s21
    %s24 = sphi 0, %s22
    %s36 = sphi 0, %s38
    %s39 = sphi 0, %s36
    %s40 = sphi 0, %s39
    %s56 = sphi 0, %s40
    %s68 = sphi 0, %s70
    %s71 = sphi 0, %s68
    %s72 = sphi 0, %s71
    %s88 = sphi 0, %s72
    %s92 = sphi 0, %s92
    %s94 = sphi 0, %s92
    %s95 = sphi 0, %s94
    %s109 = sphi 0, %s95
    %s113 = sphi 0, %s113
    %s115 = sphi 0, %s113
    %s116 = sphi 0, %s115
    %s130 = sphi 0, %s116
    %s134 = sphi 0, %s134
    %s136 = sphi 0, %s134
    %s137 = sphi 0, %s136
    %s151 = sphi 0, %s137
    %s155 = sphi 0, %s155
    %s157 = sphi 0, %s155
    %s158 = sphi 0, %s157
    %s172 = sphi 0, %s158
    %s180 = sphi 0, %s182
    %s183 = sphi 0, %s180
    %s184 = sphi 0, %s183
    %s200 = sphi 0, %s184
  $region4: #{up_forward.1} parent=0 // loop_header_branch
    %15 = sbr.rel (%p13) target = $region8
  $region5: #{up_forward.1} parent=0 // loop_body
    %s17 = ssub.s32 %s12, 1
    %s18 = ssub.s32 %s12, 2
    %s25 = sadd.s32 1, %s20
    %p26 = scmp.ge.s32.totalorder %s25, 1
    %s27 = scalar_select %p26, 0, %s25
    %s28 = sadd.s32 1, %s19
    %s29 = scalar_select %p26, %s28, %s19
    %p30 = scmp.ge.s32.totalorder %s29, 2
    %s31 = scalar_select %p30, 0, %s29
    %s32 = ssub.s32 %s19, %s31
    %s33 = ssub.s32 %s20, %s27
    %s34 = sor.u32 %s32, %s33
    %p35 = scmp.eq.s32.totalorder %s34, 0
    %s37 = sadd.s32 %s36, 1
    %s38 = scalar_select %p35, %s36, %s37
    %p41 = pneg %p35
    %p42 = scmp.eq.s32.totalorder %s12, 1
    %p43 = por %p41, %p42
    %p44 = scmp.ne.s32.totalorder %s36, %s39
    %p45 = scmp.eq.s32.totalorder %s12, 0
    %p46 = por %p44, %p45
    %p47 = scmp.ne.s32.totalorder %s36, %s39
    %p48 = scmp.eq.s32.totalorder %s17, 1
    %p49 = por %p47, %p48
    %p50 = scmp.ne.s32.totalorder %s39, %s40
    %p51 = scmp.eq.s32.totalorder %s17, 0
    %p52 = por %p50, %p51
    %p53 = scmp.ne.s32.totalorder %s39, %s40
    %p54 = scmp.eq.s32.totalorder %s18, 1
    %p55 = por %p53, %p54
    %p57 = scmp.ne.s32.totalorder %s40, %s56
    %p58 = scmp.eq.s32.totalorder %s18, 0
    %p59 = por %p57, %p58
    %s60 = sadd.s32 %s20, 1
    %s61 = smul.u32 %s60, 4
    %s62 = sadd.s32 %s27, 1
    %s63 = smul.u32 %s62, 4
    %s64 = ssub.s32 %s19, %s31
    %s65 = ssub.s32 %s61, %s63
    %s66 = sor.u32 %s64, %s65
    %p67 = scmp.eq.s32.totalorder %s66, 0
    %s69 = sadd.s32 %s68, 1
    %s70 = scalar_select %p67, %s68, %s69
    %p73 = pneg %p67
    %p74 = scmp.eq.s32.totalorder %s12, 1
    %p75 = por %p73, %p74
    %p76 = scmp.ne.s32.totalorder %s68, %s71
    %p77 = scmp.eq.s32.totalorder %s12, 0
    %p78 = por %p76, %p77
    %p79 = scmp.ne.s32.totalorder %s68, %s71
    %p80 = scmp.eq.s32.totalorder %s17, 1
    %p81 = por %p79, %p80
    %p82 = scmp.ne.s32.totalorder %s71, %s72
    %p83 = scmp.eq.s32.totalorder %s17, 0
    %p84 = por %p82, %p83
    %p85 = scmp.ne.s32.totalorder %s71, %s72
    %p86 = scmp.eq.s32.totalorder %s18, 1
    %p87 = por %p85, %p86
    %p89 = scmp.ne.s32.totalorder %s72, %s88
    %p90 = scmp.eq.s32.totalorder %s18, 0
    %p91 = por %p89, %p90
    %s93 = sadd.s32 %s92, 1
    %p96 = scmp.eq.s32.totalorder %s12, 1
    %p97 = scmp.ne.s32.totalorder %s92, %s94
    %p98 = scmp.eq.s32.totalorder %s12, 0
    %p99 = por %p97, %p98
    %p100 = scmp.ne.s32.totalorder %s92, %s94
    %p101 = scmp.eq.s32.totalorder %s17, 1
    %p102 = por %p100, %p101
    %p103 = scmp.ne.s32.totalorder %s94, %s95
    %p104 = scmp.eq.s32.totalorder %s17, 0
    %p105 = por %p103, %p104
    %p106 = scmp.ne.s32.totalorder %s94, %s95
    %p107 = scmp.eq.s32.totalorder %s18, 1
    %p108 = por %p106, %p107
    %p110 = scmp.ne.s32.totalorder %s95, %s109
    %p111 = scmp.eq.s32.totalorder %s18, 0
    %p112 = por %p110, %p111
    %s114 = sadd.s32 %s113, 1
    %p117 = scmp.eq.s32.totalorder %s12, 1
    %p118 = scmp.ne.s32.totalorder %s113, %s115
    %p119 = scmp.eq.s32.totalorder %s12, 0
    %p120 = por %p118, %p119
    %p121 = scmp.ne.s32.totalorder %s113, %s115
    %p122 = scmp.eq.s32.totalorder %s17, 1
    %p123 = por %p121, %p122
    %p124 = scmp.ne.s32.totalorder %s115, %s116
    %p125 = scmp.eq.s32.totalorder %s17, 0
    %p126 = por %p124, %p125
    %p127 = scmp.ne.s32.totalorder %s115, %s116
    %p128 = scmp.eq.s32.totalorder %s18, 1
    %p129 = por %p127, %p128
    %p131 = scmp.ne.s32.totalorder %s116, %s130
    %p132 = scmp.eq.s32.totalorder %s18, 0
    %p133 = por %p131, %p132
    %s135 = sadd.s32 %s134, 1
    %p138 = scmp.eq.s32.totalorder %s12, 1
    %p139 = scmp.ne.s32.totalorder %s134, %s136
    %p140 = scmp.eq.s32.totalorder %s12, 0
    %p141 = por %p139, %p140
    %p142 = scmp.ne.s32.totalorder %s134, %s136
    %p143 = scmp.eq.s32.totalorder %s17, 1
    %p144 = por %p142, %p143
    %p145 = scmp.ne.s32.totalorder %s136, %s137
    %p146 = scmp.eq.s32.totalorder %s17, 0
    %p147 = por %p145, %p146
    %p148 = scmp.ne.s32.totalorder %s136, %s137
    %p149 = scmp.eq.s32.totalorder %s18, 1
    %p150 = por %p148, %p149
    %p152 = scmp.ne.s32.totalorder %s137, %s151
    %p153 = scmp.eq.s32.totalorder %s18, 0
    %p154 = por %p152, %p153
    %s156 = sadd.s32 %s155, 1
    %p159 = scmp.eq.s32.totalorder %s12, 1
    %p160 = scmp.ne.s32.totalorder %s155, %s157
    %p161 = scmp.eq.s32.totalorder %s12, 0
    %p162 = por %p160, %p161
    %p163 = scmp.ne.s32.totalorder %s155, %s157
    %p164 = scmp.eq.s32.totalorder %s17, 1
    %p165 = por %p163, %p164
    %p166 = scmp.ne.s32.totalorder %s157, %s158
    %p167 = scmp.eq.s32.totalorder %s17, 0
    %p168 = por %p166, %p167
    %p169 = scmp.ne.s32.totalorder %s157, %s158
    %p170 = scmp.eq.s32.totalorder %s18, 1
    %p171 = por %p169, %p170
    %p173 = scmp.ne.s32.totalorder %s158, %s172
    %p174 = scmp.eq.s32.totalorder %s18, 0
    %p175 = por %p173, %p174
    %s176 = ssub.s32 %s19, %s31
    %s177 = ssub.s32 %s20, %s27
    %s178 = sor.u32 %s176, %s177
    %p179 = scmp.eq.s32.totalorder %s178, 0
    %s181 = sadd.s32 %s180, 1
    %s182 = scalar_select %p179, %s180, %s181
    %p185 = pneg %p179
    %p186 = scmp.eq.s32.totalorder %s12, 1
    %p187 = por %p185, %p186
    %p188 = scmp.ne.s32.totalorder %s180, %s183
    %p189 = scmp.eq.s32.totalorder %s12, 0
    %p190 = por %p188, %p189
    %p191 = scmp.ne.s32.totalorder %s180, %s183
    %p192 = scmp.eq.s32.totalorder %s17, 1
    %p193 = por %p191, %p192
    %p194 = scmp.ne.s32.totalorder %s183, %s184
    %p195 = scmp.eq.s32.totalorder %s17, 0
    %p196 = por %p194, %p195
    %p197 = scmp.ne.s32.totalorder %s183, %s184
    %p198 = scmp.eq.s32.totalorder %s18, 1
    %p199 = por %p197, %p198
    %p201 = scmp.ne.s32.totalorder %s184, %s200
    %p202 = scmp.eq.s32.totalorder %s18, 0
    %p203 = por %p201, %p202
    %p204 = scmp.le.s32.totalorder 1, %s12
    %p205 = scmp.lt.s32.totalorder %s12, 3
    %p206 = pnand %p204, %p205
    %p207 = pneg %p206
    // Predicated region
    $region9: #{up_forward.1} parent=5 // pred_check
      _
    $region10: #{up_forward.1} parent=5 // pred_check_branch
      %209 = sbr.rel (%p206) target = $region12
    $region11: #{up_forward.1} parent=5 // pred_region
      %s210 = ssub.s32 %s12, 1
      // Predicated region
      $region13: #{up_forward.1} parent=11 // pred_check
        %p211 = pneg %p105
      $region14: #{up_forward.1} parent=11 // pred_check_branch
        %213 = sbr.rel (%p211) target = $region16
      $region15: #{up_forward.1} parent=11 // pred_region
        _
      $region16: #{up_forward.1} parent=11 // pred_fallthru
        _
      // Predicated region
      $region17: #{up_forward.1} parent=11 // pred_check
        %p214 = pneg %p126
      $region18: #{up_forward.1} parent=11 // pred_check_branch
        %216 = sbr.rel (%p214) target = $region20
      $region19: #{up_forward.1} parent=11 // pred_region
        _
      $region20: #{up_forward.1} parent=11 // pred_fallthru
        _
      // Predicated region
      $region21: #{up_forward.1} parent=11 // pred_check
        %p217 = pneg %p147
      $region22: #{up_forward.1} parent=11 // pred_check_branch
        %219 = sbr.rel (%p217) target = $region24
      $region23: #{up_forward.1} parent=11 // pred_region
        _
      $region24: #{up_forward.1} parent=11 // pred_fallthru
        _
      // Predicated region
      $region25: #{up_forward.1} parent=11 // pred_check
        %p220 = pneg %p168
      $region26: #{up_forward.1} parent=11 // pred_check_branch
        %222 = sbr.rel (%p220) target = $region28
      $region27: #{up_forward.1} parent=11 // pred_region
        _
      $region28: #{up_forward.1} parent=11 // pred_fallthru
        _
    $region12: #{up_forward.1} parent=5 // pred_fallthru
      _
    %p223 = scmp.lt.s32.totalorder %s12, 2
    // Predicated region
    $region29: #{up_forward.1} parent=5 // pred_check
      %p224 = pneg %p223
    $region30: #{up_forward.1} parent=5 // pred_check_branch
      %226 = sbr.rel (%p224) target = $region32
    $region31: #{up_forward.1} parent=5 // pred_region
      // Predicated region
      $region33: #{up_forward.1} parent=31 // pred_check
        %p227 = pneg %p46
      $region34: #{up_forward.1} parent=31 // pred_check_branch
        %229 = sbr.rel (%p227) target = $region36
      $region35: #{up_forward.1} parent=31 // pred_region
        %s230 = smul.u32 16, %s20
        %s231 = ssub.s32 20, %s230
        %p232 = scmp.lt.s32.totalorder %s231, 16
        %s233 = scalar_select %p232, %s231, 16
        %s234 = smul.u32 64, %s233
        %s235 = smul.u32 %s234, 6
        %p236 = scmp.lt.s32.totalorder %s19, 1
        %s237 = scalar_select %p236, %s19, 1
        %p238 = scmp.lt.s32.totalorder %s230, 19
        %s239 = scalar_select %p238, %s230, 19
        %s240 = smul.addr %s239, 6
        %s241 = smul.addr %s237, 120
        %s242 = sadd.s32 %s240, %s241
        %s243 = smul.addr %s242, 4
        %s244 = scalar_lea.vmem %s0, %s243
        %s245 = smul.u32 16, %s20
        %s246 = ssub.s32 20, %s245
        %p247 = scmp.lt.s32.totalorder %s246, 16
        %s248 = scalar_select %p247, %s246, 16
        %s249 = smul.u32 64, %s248
        %s250 = smul.u32 %s249, 6
      $region36: #{up_forward.1} parent=31 // pred_fallthru
        _
      // Predicated region
      $region37: #{up_forward.1} parent=31 // pred_check
        %p251 = pneg %p78
      $region38: #{up_forward.1} parent=31 // pred_check_branch
        %253 = sbr.rel (%p251) target = $region40
      $region39: #{up_forward.1} parent=31 // pred_region
        %s254 = sadd.s32 %s20, 1
        %s255 = smul.u32 %s254, 4
        %s256 = smul.u32 4, %s255
        %p257 = scmp.lt.s32.totalorder %s19, 1
        %s258 = scalar_select %p257, %s19, 1
        %p259 = scmp.lt.s32.totalorder %s256, 19
        %s260 = scalar_select %p259, %s256, 19
        %s261 = smul.addr %s260, 6
        %s262 = smul.addr %s258, 120
        %s263 = sadd.s32 %s261, %s262
        %s264 = smul.addr %s263, 4
        %s265 = scalar_lea.vmem %s1, %s264
        %s266 = sadd.s32 %s20, 1
        %s267 = smul.u32 %s266, 4
        %s268 = smul.u32 4, %s267
      $region40: #{up_forward.1} parent=31 // pred_fallthru
        _
    $region32: #{up_forward.1} parent=5 // pred_fallthru
      _
    %p269 = scmp.le.s32.totalorder 1, %s12
    %p270 = scmp.lt.s32.totalorder %s12, 3
    %p271 = pnand %p269, %p270
    %p272 = pneg %p271
    // Predicated region
    $region41: #{up_forward.1} parent=5 // pred_check
      _
    $region42: #{up_forward.1} parent=5 // pred_check_branch
      %274 = sbr.rel (%p271) target = $region44
    $region43: #{up_forward.1} parent=5 // pred_region
      %s275 = ssub.s32 %s12, 1
      %s276 = smul.u32 16, %s22
      %s277 = ssub.s32 20, %s276
      %p278 = scmp.lt.s32.totalorder %s277, 16
      %s279 = scalar_select %p278, %s277, 16
      %s280 = smul.u32 64, %s279
      %s281 = smul.u32 %s280, 6
      %p282 = scmp.lt.s32.totalorder %s21, 1
      %s283 = scalar_select %p282, %s21, 1
      %p284 = scmp.lt.s32.totalorder %s276, 19
      %s285 = scalar_select %p284, %s276, 19
      %s286 = smul.addr %s285, 6
      %s287 = smul.addr %s283, 120
      %s288 = sadd.s32 %s286, %s287
      %s289 = smul.addr %s288, 4
      %s290 = scalar_lea.vmem %s0, %s289
      %p291 = pneg %p52
      %p292 = pneg %p49
      %s293 = sadd.s32 %s22, 1
      %s294 = smul.u32 %s293, 4
      %s295 = smul.u32 4, %s294
      %p296 = scmp.lt.s32.totalorder %s21, 1
      %s297 = scalar_select %p296, %s21, 1
      %p298 = scmp.lt.s32.totalorder %s295, 19
      %s299 = scalar_select %p298, %s295, 19
      %s300 = smul.addr %s299, 6
      %s301 = smul.addr %s297, 120
      %s302 = sadd.s32 %s300, %s301
      %s303 = smul.addr %s302, 4
      %s304 = scalar_lea.vmem %s1, %s303
      %p305 = pneg %p84
      %p306 = pneg %p81
      %p307 = pneg %p105
      %p308 = pneg %p102
      %p309 = pneg %p126
      %p310 = pneg %p123
      %p311 = pneg %p147
      %p312 = pneg %p144
      %p313 = pneg %p168
      %p314 = pneg %p165
      %p315 = pneg %p196
      %p316 = pneg %p193
      %s317 = smul.u32 16, %s22
      %p318 = scmp.lt.s32.totalorder %s21, 1
      %s319 = scalar_select %p318, %s21, 1
      %p320 = scmp.lt.s32.totalorder %s317, 15
      %s321 = scalar_select %p320, %s317, 15
      %s322 = smul.addr %s321, 2
      %s323 = smul.addr %s319, 32
      %s324 = sadd.s32 %s322, %s323
      %s325 = smul.addr %s324, 8
      %s326 = scalar_lea.vmem %s6, %s325
      %s327 = smul.u32 16, %s22
      %s328 = ssub.s32 20, %s327
      %p329 = scmp.lt.s32.totalorder %s328, 16
      %s330 = scalar_select %p329, %s328, 16
      %s331 = smul.u32 64, %s330
      %s332 = smul.u32 %s331, 6
      %p333 = scmp.lt.s32.totalorder %s21, 1
      %s334 = scalar_select %p333, %s21, 1
      %p335 = scmp.lt.s32.totalorder %s327, 19
      %s336 = scalar_select %p335, %s327, 19
      %s337 = smul.addr %s336, 6
      %s338 = smul.addr %s334, 120
      %s339 = sadd.s32 %s337, %s338
      %s340 = smul.addr %s339, 4
      %s341 = scalar_lea.vmem %s0, %s340
      %s342 = smul.u32 16, %s22
      %s343 = ssub.s32 20, %s342
      %p344 = scmp.lt.s32.totalorder %s343, 16
      %s345 = scalar_select %p344, %s343, 16
      %s346 = smul.u32 64, %s345
      %s347 = smul.u32 %s346, 6
      %s348 = sadd.s32 %s22, 1
      %s349 = smul.u32 %s348, 4
      %s350 = smul.u32 4, %s349
      %p351 = scmp.lt.s32.totalorder %s21, 1
      %s352 = scalar_select %p351, %s21, 1
      %p353 = scmp.lt.s32.totalorder %s350, 19
      %s354 = scalar_select %p353, %s350, 19
      %s355 = smul.addr %s354, 6
      %s356 = smul.addr %s352, 120
      %s357 = sadd.s32 %s355, %s356
      %s358 = smul.addr %s357, 4
      %s359 = scalar_lea.vmem %s1, %s358
      %s360 = sadd.s32 %s22, 1
      %s361 = smul.u32 %s360, 4
      %s362 = smul.u32 4, %s361
      %s363 = smul.u32 16, %s22
      %p364 = scmp.lt.s32.totalorder %s21, 1
      %s365 = scalar_select %p364, %s21, 1
      %p366 = scmp.lt.s32.totalorder %s363, 15
      %s367 = scalar_select %p366, %s363, 15
      %s368 = smul.addr %s367, 2
      %s369 = smul.addr %s365, 32
      %s370 = sadd.s32 %s368, %s369
      %s371 = smul.addr %s370, 8
      %s372 = scalar_lea.vmem %s6, %s371
      %s373 = smul.u32 16, %s22
      %v375 = vld [vmem:[%s341] sm:$0xf]
      %v376 = vld [vmem:[%s341 + $0x4] sm:$0xf]
      %v377 = vld [vmem:[%s341 + $0x8] sm:$0xf]
      %v378 = vld [vmem:[%s341 + $0xc] sm:$0xf]
      %v379 = vld [vmem:[%s341 + $0x10] sm:$0xf]
      %v380 = vld [vmem:[%s341 + $0x14] sm:$0xf]
      %v381 = vld [vmem:[%s341 + $0x18] sm:$0xf]
      %v382 = vld [vmem:[%s341 + $0x1c] sm:$0xf]
      %v383 = vld [vmem:[%s341 + $0x20] sm:$0xf]
      %v384 = vld [vmem:[%s341 + $0x24] sm:$0xf]
      %v385 = vld [vmem:[%s341 + $0x28] sm:$0xf]
      %v386 = vld [vmem:[%s341 + $0x2c] sm:$0xf]
      %v387 = vld [vmem:[%s341 + $0x30] sm:$0xf]
      %v388 = vld [vmem:[%s341 + $0x34] sm:$0xf]
      %v389 = vld [vmem:[%s341 + $0x38] sm:$0xf]
      %v390 = vld [vmem:[%s341 + $0x3c] sm:$0xf]
      %v391 = vld [vmem:[%s341 + $0x40] sm:$0xf]
      %v392 = vld [vmem:[%s341 + $0x44] sm:$0xf]
      %v393 = vld [vmem:[%s341 + $0x48] sm:$0xf]
      %v394 = vld [vmem:[%s341 + $0x4c] sm:$0xf]
      %v395 = vld [vmem:[%s341 + $0x50] sm:$0xf]
      %v396 = vld [vmem:[%s341 + $0x54] sm:$0xf]
      %v397 = vld [vmem:[%s341 + $0x58] sm:$0xf]
      %v398 = vld [vmem:[%s341 + $0x5c] sm:$0xf]
      %v399 = vld [vmem:[%s341 + $0x60] sm:$0xf]
      %v400 = vld [vmem:[%s341 + $0x64] sm:$0xf]
      %v401 = vld [vmem:[%s341 + $0x68] sm:$0xf]
      %v402 = vld [vmem:[%s341 + $0x6c] sm:$0xf]
      %v403 = vld [vmem:[%s341 + $0x70] sm:$0xf]
      %v404 = vld [vmem:[%s341 + $0x74] sm:$0xf]
      %v405 = vld [vmem:[%s341 + $0x78] sm:$0xf]
      %v406 = vld [vmem:[%s341 + $0x7c] sm:$0xf]
      %v407 = vld [vmem:[%s341 + $0x80] sm:$0xf]
      %v408 = vld [vmem:[%s341 + $0x84] sm:$0xf]
      %v409 = vld [vmem:[%s341 + $0x88] sm:$0xf]
      %v410 = vld [vmem:[%s341 + $0x8c] sm:$0xf]
      %v411 = vld [vmem:[%s341 + $0x90] sm:$0xf]
      %v412 = vld [vmem:[%s341 + $0x94] sm:$0xf]
      %v413 = vld [vmem:[%s341 + $0x98] sm:$0xf]
      %v414 = vld [vmem:[%s341 + $0x9c] sm:$0xf]
      %v415 = vld [vmem:[%s341 + $0xa0] sm:$0xf]
      %v416 = vld [vmem:[%s341 + $0xa4] sm:$0xf]
      %v417 = vld [vmem:[%s341 + $0xa8] sm:$0xf]
      %v418 = vld [vmem:[%s341 + $0xac] sm:$0xf]
      %v419 = vld [vmem:[%s341 + $0xb0] sm:$0xf]
      %v420 = vld [vmem:[%s341 + $0xb4] sm:$0xf]
      %v421 = vld [vmem:[%s341 + $0xb8] sm:$0xf]
      %v422 = vld [vmem:[%s341 + $0xbc] sm:$0xf]
      %v423 = vld [vmem:[%s341 + $0xc0] sm:$0xf]
      %v424 = vld [vmem:[%s341 + $0xc4] sm:$0xf]
      %v425 = vld [vmem:[%s341 + $0xc8] sm:$0xf]
      %v426 = vld [vmem:[%s341 + $0xcc] sm:$0xf]
      %v427 = vld [vmem:[%s341 + $0xd0] sm:$0xf]
      %v428 = vld [vmem:[%s341 + $0xd4] sm:$0xf]
      %v429 = vld [vmem:[%s341 + $0xd8] sm:$0xf]
      %v430 = vld [vmem:[%s341 + $0xdc] sm:$0xf]
      %v431 = vld [vmem:[%s341 + $0xe0] sm:$0xf]
      %v432 = vld [vmem:[%s341 + $0xe4] sm:$0xf]
      %v433 = vld [vmem:[%s341 + $0xe8] sm:$0xf]
      %v434 = vld [vmem:[%s341 + $0xec] sm:$0xf]
      %v435 = vld [vmem:[%s341 + $0xf0] sm:$0xf]
      %v436 = vld [vmem:[%s341 + $0xf4] sm:$0xf]
      %v437 = vld [vmem:[%s341 + $0xf8] sm:$0xf]
      %v438 = vld [vmem:[%s341 + $0xfc] sm:$0xf]
      %v439 = vld [vmem:[%s341 + $0x100] sm:$0xf]
      %v440 = vld [vmem:[%s341 + $0x104] sm:$0xf]
      %v441 = vld [vmem:[%s341 + $0x108] sm:$0xf]
      %v442 = vld [vmem:[%s341 + $0x10c] sm:$0xf]
      %v443 = vld [vmem:[%s341 + $0x110] sm:$0xf]
      %v444 = vld [vmem:[%s341 + $0x114] sm:$0xf]
      %v445 = vld [vmem:[%s341 + $0x118] sm:$0xf]
      %v446 = vld [vmem:[%s341 + $0x11c] sm:$0xf]
      %v447 = vld [vmem:[%s341 + $0x120] sm:$0xf]
      %v448 = vld [vmem:[%s341 + $0x124] sm:$0xf]
      %v449 = vld [vmem:[%s341 + $0x128] sm:$0xf]
      %v450 = vld [vmem:[%s341 + $0x12c] sm:$0xf]
      %v451 = vld [vmem:[%s341 + $0x130] sm:$0xf]
      %v452 = vld [vmem:[%s341 + $0x134] sm:$0xf]
      %v453 = vld [vmem:[%s341 + $0x138] sm:$0xf]
      %v454 = vld [vmem:[%s341 + $0x13c] sm:$0xf]
      %v455 = vld [vmem:[%s341 + $0x140] sm:$0xf]
      %v456 = vld [vmem:[%s341 + $0x144] sm:$0xf]
      %v457 = vld [vmem:[%s341 + $0x148] sm:$0xf]
      %v458 = vld [vmem:[%s341 + $0x14c] sm:$0xf]
      %v459 = vld [vmem:[%s341 + $0x150] sm:$0xf]
      %v460 = vld [vmem:[%s341 + $0x154] sm:$0xf]
      %v461 = vld [vmem:[%s341 + $0x158] sm:$0xf]
      %v462 = vld [vmem:[%s341 + $0x15c] sm:$0xf]
      %v463 = vld [vmem:[%s341 + $0x160] sm:$0xf]
      %v464 = vld [vmem:[%s341 + $0x164] sm:$0xf]
      %v465 = vld [vmem:[%s341 + $0x168] sm:$0xf]
      %v466 = vld [vmem:[%s341 + $0x16c] sm:$0xf]
      %v467 = vld [vmem:[%s341 + $0x170] sm:$0xf]
      %v468 = vld [vmem:[%s341 + $0x174] sm:$0xf]
      %v469 = vld [vmem:[%s341 + $0x178] sm:$0xf]
      %v470 = vld [vmem:[%s341 + $0x17c] sm:$0xf]
      %v567 = vunpack.c.l.b16 %v375
      %v568 = vunpack.c.l.b16 %v376
      %v569 = vunpack.c.l.b16 %v377
      %v570 = vunpack.c.l.b16 %v378
      %v571 = vunpack.c.l.b16 %v379
      %v572 = vunpack.c.l.b16 %v380
      %v573 = vunpack.c.l.b16 %v381
      %v574 = vunpack.c.l.b16 %v382
      %v575 = vunpack.c.l.b16 %v383
      %v576 = vunpack.c.l.b16 %v384
      %v577 = vunpack.c.l.b16 %v385
      %v578 = vunpack.c.l.b16 %v386
      %v579 = vunpack.c.l.b16 %v387
      %v580 = vunpack.c.l.b16 %v388
      %v581 = vunpack.c.l.b16 %v389
      %v582 = vunpack.c.l.b16 %v390
      %v583 = vunpack.c.l.b16 %v391
      %v584 = vunpack.c.l.b16 %v392
      %v585 = vunpack.c.l.b16 %v393
      %v586 = vunpack.c.l.b16 %v394
      %v587 = vunpack.c.l.b16 %v395
      %v588 = vunpack.c.l.b16 %v396
      %v589 = vunpack.c.l.b16 %v397
      %v590 = vunpack.c.l.b16 %v398
      %v591 = vunpack.c.l.b16 %v399
      %v592 = vunpack.c.l.b16 %v400
      %v593 = vunpack.c.l.b16 %v401
      %v594 = vunpack.c.l.b16 %v402
      %v595 = vunpack.c.l.b16 %v403
      %v596 = vunpack.c.l.b16 %v404
      %v597 = vunpack.c.l.b16 %v405
      %v598 = vunpack.c.l.b16 %v406
      %v599 = vunpack.c.l.b16 %v407
      %v600 = vunpack.c.l.b16 %v408
      %v601 = vunpack.c.l.b16 %v409
      %v602 = vunpack.c.l.b16 %v410
      %v603 = vunpack.c.l.b16 %v411
      %v604 = vunpack.c.l.b16 %v412
      %v605 = vunpack.c.l.b16 %v413
      %v606 = vunpack.c.l.b16 %v414
      %v607 = vunpack.c.l.b16 %v415
      %v608 = vunpack.c.l.b16 %v416
      %v609 = vunpack.c.l.b16 %v417
      %v610 = vunpack.c.l.b16 %v418
      %v611 = vunpack.c.l.b16 %v419
      %v612 = vunpack.c.l.b16 %v420
      %v613 = vunpack.c.l.b16 %v421
      %v614 = vunpack.c.l.b16 %v422
      %v615 = vunpack.c.l.b16 %v423
      %v616 = vunpack.c.l.b16 %v424
      %v617 = vunpack.c.l.b16 %v425
      %v618 = vunpack.c.l.b16 %v426
      %v619 = vunpack.c.l.b16 %v427
      %v620 = vunpack.c.l.b16 %v428
      %v621 = vunpack.c.l.b16 %v429
      %v622 = vunpack.c.l.b16 %v430
      %v623 = vunpack.c.l.b16 %v431
      %v624 = vunpack.c.l.b16 %v432
      %v625 = vunpack.c.l.b16 %v433
      %v626 = vunpack.c.l.b16 %v434
      %v627 = vunpack.c.l.b16 %v435
      %v628 = vunpack.c.l.b16 %v436
      %v629 = vunpack.c.l.b16 %v437
      %v630 = vunpack.c.l.b16 %v438
      %v631 = vunpack.c.l.b16 %v439
      %v632 = vunpack.c.l.b16 %v440
      %v633 = vunpack.c.l.b16 %v441
      %v634 = vunpack.c.l.b16 %v442
      %v635 = vunpack.c.l.b16 %v443
      %v636 = vunpack.c.l.b16 %v444
      %v637 = vunpack.c.l.b16 %v445
      %v638 = vunpack.c.l.b16 %v446
      %v639 = vunpack.c.l.b16 %v447
      %v640 = vunpack.c.l.b16 %v448
      %v641 = vunpack.c.l.b16 %v449
      %v642 = vunpack.c.l.b16 %v450
      %v643 = vunpack.c.l.b16 %v451
      %v644 = vunpack.c.l.b16 %v452
      %v645 = vunpack.c.l.b16 %v453
      %v646 = vunpack.c.l.b16 %v454
      %v647 = vunpack.c.l.b16 %v455
      %v648 = vunpack.c.l.b16 %v456
      %v649 = vunpack.c.l.b16 %v457
      %v650 = vunpack.c.l.b16 %v458
      %v651 = vunpack.c.l.b16 %v459
      %v652 = vunpack.c.l.b16 %v460
      %v653 = vunpack.c.l.b16 %v461
      %v654 = vunpack.c.l.b16 %v462
      %v655 = vunpack.c.l.b16 %v463
      %v656 = vunpack.c.l.b16 %v464
      %v657 = vunpack.c.l.b16 %v465
      %v658 = vunpack.c.l.b16 %v466
      %v659 = vunpack.c.l.b16 %v467
      %v660 = vunpack.c.l.b16 %v468
      %v661 = vunpack.c.l.b16 %v469
      %v662 = vunpack.c.l.b16 %v470
      %v663 = vpack.c.b16 %v568, %v567
      %v664 = vpack.c.b16 %v570, %v569
      %v665 = vpack.c.b16 %v572, %v571
      %v666 = vpack.c.b16 %v574, %v573
      %v667 = vpack.c.b16 %v576, %v575
      %v668 = vpack.c.b16 %v578, %v577
      %v669 = vpack.c.b16 %v580, %v579
      %v670 = vpack.c.b16 %v582, %v581
      %v671 = vpack.c.b16 %v584, %v583
      %v672 = vpack.c.b16 %v586, %v585
      %v673 = vpack.c.b16 %v588, %v587
      %v674 = vpack.c.b16 %v590, %v589
      %v675 = vpack.c.b16 %v592, %v591
      %v676 = vpack.c.b16 %v594, %v593
      %v677 = vpack.c.b16 %v596, %v595
      %v678 = vpack.c.b16 %v598, %v597
      %v679 = vpack.c.b16 %v600, %v599
      %v680 = vpack.c.b16 %v602, %v601
      %v681 = vpack.c.b16 %v604, %v603
      %v682 = vpack.c.b16 %v606, %v605
      %v683 = vpack.c.b16 %v608, %v607
      %v684 = vpack.c.b16 %v610, %v609
      %v685 = vpack.c.b16 %v612, %v611
      %v686 = vpack.c.b16 %v614, %v613
      %v687 = vpack.c.b16 %v616, %v615
      %v688 = vpack.c.b16 %v618, %v617
      %v689 = vpack.c.b16 %v620, %v619
      %v690 = vpack.c.b16 %v622, %v621
      %v691 = vpack.c.b16 %v624, %v623
      %v692 = vpack.c.b16 %v626, %v625
      %v693 = vpack.c.b16 %v628, %v627
      %v694 = vpack.c.b16 %v630, %v629
      %v695 = vpack.c.b16 %v632, %v631
      %v696 = vpack.c.b16 %v634, %v633
      %v697 = vpack.c.b16 %v636, %v635
      %v698 = vpack.c.b16 %v638, %v637
      %v699 = vpack.c.b16 %v640, %v639
      %v700 = vpack.c.b16 %v642, %v641
      %v701 = vpack.c.b16 %v644, %v643
      %v702 = vpack.c.b16 %v646, %v645
      %v703 = vpack.c.b16 %v648, %v647
      %v704 = vpack.c.b16 %v650, %v649
      %v705 = vpack.c.b16 %v652, %v651
      %v706 = vpack.c.b16 %v654, %v653
      %v707 = vpack.c.b16 %v656, %v655
      %v708 = vpack.c.b16 %v658, %v657
      %v709 = vpack.c.b16 %v660, %v659
      %v710 = vpack.c.b16 %v662, %v661
      %vm759 = vcmask 64512
      %760 = vst.msk [vmem:[#allocation2] sm:$0xff] %vm759, %v663
      %761 = vst.msk [vmem:[#allocation2 + $0x8] sm:$0xff] %vm759, %v664
      %762 = vst.msk [vmem:[#allocation2 + $0x10] sm:$0xff] %vm759, %v665
      %763 = vst.msk [vmem:[#allocation2 + $0x18] sm:$0xff] %vm759, %v666
      %764 = vst.msk [vmem:[#allocation2 + $0x20] sm:$0xff] %vm759, %v667
      %765 = vst.msk [vmem:[#allocation2 + $0x28] sm:$0xff] %vm759, %v668
      %766 = vst.msk [vmem:[#allocation2 + $0x30] sm:$0xff] %vm759, %v669
      %767 = vst.msk [vmem:[#allocation2 + $0x38] sm:$0xff] %vm759, %v670
      %768 = vst.msk [vmem:[#allocation2 + $0x40] sm:$0xff] %vm759, %v671
      %769 = vst.msk [vmem:[#allocation2 + $0x48] sm:$0xff] %vm759, %v672
      %770 = vst.msk [vmem:[#allocation2 + $0x50] sm:$0xff] %vm759, %v673
      %771 = vst.msk [vmem:[#allocation2 + $0x58] sm:$0xff] %vm759, %v674
      %772 = vst.msk [vmem:[#allocation2 + $0x60] sm:$0xff] %vm759, %v675
      %773 = vst.msk [vmem:[#allocation2 + $0x68] sm:$0xff] %vm759, %v676
      %774 = vst.msk [vmem:[#allocation2 + $0x70] sm:$0xff] %vm759, %v677
      %775 = vst.msk [vmem:[#allocation2 + $0x78] sm:$0xff] %vm759, %v678
      %776 = vst.msk [vmem:[#allocation2 + $0x80] sm:$0xff] %vm759, %v679
      %777 = vst.msk [vmem:[#allocation2 + $0x88] sm:$0xff] %vm759, %v680
      %778 = vst.msk [vmem:[#allocation2 + $0x90] sm:$0xff] %vm759, %v681
      %779 = vst.msk [vmem:[#allocation2 + $0x98] sm:$0xff] %vm759, %v682
      %780 = vst.msk [vmem:[#allocation2 + $0xa0] sm:$0xff] %vm759, %v683
      %781 = vst.msk [vmem:[#allocation2 + $0xa8] sm:$0xff] %vm759, %v684
      %782 = vst.msk [vmem:[#allocation2 + $0xb0] sm:$0xff] %vm759, %v685
      %783 = vst.msk [vmem:[#allocation2 + $0xb8] sm:$0xff] %vm759, %v686
      %784 = vst.msk [vmem:[#allocation2 + $0xc0] sm:$0xff] %vm759, %v687
      %785 = vst.msk [vmem:[#allocation2 + $0xc8] sm:$0xff] %vm759, %v688
      %786 = vst.msk [vmem:[#allocation2 + $0xd0] sm:$0xff] %vm759, %v689
      %787 = vst.msk [vmem:[#allocation2 + $0xd8] sm:$0xff] %vm759, %v690
      %788 = vst.msk [vmem:[#allocation2 + $0xe0] sm:$0xff] %vm759, %v691
      %789 = vst.msk [vmem:[#allocation2 + $0xe8] sm:$0xff] %vm759, %v692
      %790 = vst.msk [vmem:[#allocation2 + $0xf0] sm:$0xff] %vm759, %v693
      %791 = vst.msk [vmem:[#allocation2 + $0xf8] sm:$0xff] %vm759, %v694
      %792 = vst.msk [vmem:[#allocation2 + $0x100] sm:$0xff] %vm759, %v695
      %793 = vst.msk [vmem:[#allocation2 + $0x108] sm:$0xff] %vm759, %v696
      %794 = vst.msk [vmem:[#allocation2 + $0x110] sm:$0xff] %vm759, %v697
      %795 = vst.msk [vmem:[#allocation2 + $0x118] sm:$0xff] %vm759, %v698
      %796 = vst.msk [vmem:[#allocation2 + $0x120] sm:$0xff] %vm759, %v699
      %797 = vst.msk [vmem:[#allocation2 + $0x128] sm:$0xff] %vm759, %v700
      %798 = vst.msk [vmem:[#allocation2 + $0x130] sm:$0xff] %vm759, %v701
      %799 = vst.msk [vmem:[#allocation2 + $0x138] sm:$0xff] %vm759, %v702
      %800 = vst.msk [vmem:[#allocation2 + $0x140] sm:$0xff] %vm759, %v703
      %801 = vst.msk [vmem:[#allocation2 + $0x148] sm:$0xff] %vm759, %v704
      %802 = vst.msk [vmem:[#allocation2 + $0x150] sm:$0xff] %vm759, %v705
      %803 = vst.msk [vmem:[#allocation2 + $0x158] sm:$0xff] %vm759, %v706
      %804 = vst.msk [vmem:[#allocation2 + $0x160] sm:$0xff] %vm759, %v707
      %805 = vst.msk [vmem:[#allocation2 + $0x168] sm:$0xff] %vm759, %v708
      %806 = vst.msk [vmem:[#allocation2 + $0x170] sm:$0xff] %vm759, %v709
      %807 = vst.msk [vmem:[#allocation2 + $0x178] sm:$0xff] %vm759, %v710
      %v808 = vld [vmem:[%s359] sm:$0xf]
      %v809 = vld [vmem:[%s359 + $0x4] sm:$0xf]
      %v810 = vld [vmem:[%s359 + $0x8] sm:$0xf]
      %v811 = vld [vmem:[%s359 + $0xc] sm:$0xf]
      %v812 = vld [vmem:[%s359 + $0x10] sm:$0xf]
      %v813 = vld [vmem:[%s359 + $0x14] sm:$0xf]
      %v814 = vld [vmem:[%s359 + $0x18] sm:$0xf]
      %v815 = vld [vmem:[%s359 + $0x1c] sm:$0xf]
      %v816 = vld [vmem:[%s359 + $0x20] sm:$0xf]
      %v817 = vld [vmem:[%s359 + $0x24] sm:$0xf]
      %v818 = vld [vmem:[%s359 + $0x28] sm:$0xf]
      %v819 = vld [vmem:[%s359 + $0x2c] sm:$0xf]
      %v820 = vld [vmem:[%s359 + $0x30] sm:$0xf]
      %v821 = vld [vmem:[%s359 + $0x34] sm:$0xf]
      %v822 = vld [vmem:[%s359 + $0x38] sm:$0xf]
      %v823 = vld [vmem:[%s359 + $0x3c] sm:$0xf]
      %v824 = vld [vmem:[%s359 + $0x40] sm:$0xf]
      %v825 = vld [vmem:[%s359 + $0x44] sm:$0xf]
      %v826 = vld [vmem:[%s359 + $0x48] sm:$0xf]
      %v827 = vld [vmem:[%s359 + $0x4c] sm:$0xf]
      %v828 = vld [vmem:[%s359 + $0x50] sm:$0xf]
      %v829 = vld [vmem:[%s359 + $0x54] sm:$0xf]
      %v830 = vld [vmem:[%s359 + $0x58] sm:$0xf]
      %v831 = vld [vmem:[%s359 + $0x5c] sm:$0xf]
      %v856 = vunpack.c.l.b16 %v808
      %v857 = vunpack.c.l.b16 %v809
      %v858 = vunpack.c.l.b16 %v810
      %v859 = vunpack.c.l.b16 %v811
      %v860 = vunpack.c.l.b16 %v812
      %v861 = vunpack.c.l.b16 %v813
      %v862 = vunpack.c.l.b16 %v814
      %v863 = vunpack.c.l.b16 %v815
      %v864 = vunpack.c.l.b16 %v816
      %v865 = vunpack.c.l.b16 %v817
      %v866 = vunpack.c.l.b16 %v818
      %v867 = vunpack.c.l.b16 %v819
      %v868 = vunpack.c.l.b16 %v820
      %v869 = vunpack.c.l.b16 %v821
      %v870 = vunpack.c.l.b16 %v822
      %v871 = vunpack.c.l.b16 %v823
      %v872 = vunpack.c.l.b16 %v824
      %v873 = vunpack.c.l.b16 %v825
      %v874 = vunpack.c.l.b16 %v826
      %v875 = vunpack.c.l.b16 %v827
      %v876 = vunpack.c.l.b16 %v828
      %v877 = vunpack.c.l.b16 %v829
      %v878 = vunpack.c.l.b16 %v830
      %v879 = vunpack.c.l.b16 %v831
      %v880 = vpack.c.b16 %v857, %v856
      %v881 = vpack.c.b16 %v859, %v858
      %v882 = vpack.c.b16 %v861, %v860
      %v883 = vpack.c.b16 %v863, %v862
      %v884 = vpack.c.b16 %v865, %v864
      %v885 = vpack.c.b16 %v867, %v866
      %v886 = vpack.c.b16 %v869, %v868
      %v887 = vpack.c.b16 %v871, %v870
      %v888 = vpack.c.b16 %v873, %v872
      %v889 = vpack.c.b16 %v875, %v874
      %v890 = vpack.c.b16 %v877, %v876
      %v891 = vpack.c.b16 %v879, %v878
      %904 = vst.msk [vmem:[#allocation2 + $0x180] sm:$0xff] %vm759, %v880
      %905 = vst.msk [vmem:[#allocation2 + $0x188] sm:$0xff] %vm759, %v881
      %906 = vst.msk [vmem:[#allocation2 + $0x190] sm:$0xff] %vm759, %v882
      %907 = vst.msk [vmem:[#allocation2 + $0x198] sm:$0xff] %vm759, %v883
      %908 = vst.msk [vmem:[#allocation2 + $0x1a0] sm:$0xff] %vm759, %v884
      %909 = vst.msk [vmem:[#allocation2 + $0x1a8] sm:$0xff] %vm759, %v885
      %910 = vst.msk [vmem:[#allocation2 + $0x1b0] sm:$0xff] %vm759, %v886
      %911 = vst.msk [vmem:[#allocation2 + $0x1b8] sm:$0xff] %vm759, %v887
      %912 = vst.msk [vmem:[#allocation2 + $0x1c0] sm:$0xff] %vm759, %v888
      %913 = vst.msk [vmem:[#allocation2 + $0x1c8] sm:$0xff] %vm759, %v889
      %914 = vst.msk [vmem:[#allocation2 + $0x1d0] sm:$0xff] %vm759, %v890
      %915 = vst.msk [vmem:[#allocation2 + $0x1d8] sm:$0xff] %vm759, %v891
      %v916 = vld [vmem:[#allocation2] sm:$0xff]
      %v917 = vld [vmem:[#allocation2 + $0x8] sm:$0xff]
      %v918 = vld [vmem:[#allocation2 + $0x10] sm:$0xff]
      %v919 = vld [vmem:[#allocation2 + $0x18] sm:$0xff]
      %v920 = vld [vmem:[#allocation2 + $0x20] sm:$0xff]
      %v921 = vld [vmem:[#allocation2 + $0x28] sm:$0xff]
      %v922 = vld [vmem:[#allocation2 + $0x30] sm:$0xff]
      %v923 = vld [vmem:[#allocation2 + $0x38] sm:$0xff]
      %v924 = vld [vmem:[#allocation2 + $0x40] sm:$0xff]
      %v925 = vld [vmem:[#allocation2 + $0x48] sm:$0xff]
      %v926 = vld [vmem:[#allocation2 + $0x50] sm:$0xff]
      %v927 = vld [vmem:[#allocation2 + $0x58] sm:$0xff]
      %v928 = vld [vmem:[#allocation2 + $0x60] sm:$0xff]
      %v929 = vld [vmem:[#allocation2 + $0x68] sm:$0xff]
      %v930 = vld [vmem:[#allocation2 + $0x70] sm:$0xff]
      %v931 = vld [vmem:[#allocation2 + $0x78] sm:$0xff]
      %v932 = vld [vmem:[#allocation2 + $0x80] sm:$0xff]
      %v933 = vld [vmem:[#allocation2 + $0x88] sm:$0xff]
      %v934 = vld [vmem:[#allocation2 + $0x90] sm:$0xff]
      %v935 = vld [vmem:[#allocation2 + $0x98] sm:$0xff]
      %v936 = vld [vmem:[#allocation2 + $0xa0] sm:$0xff]
      %v937 = vld [vmem:[#allocation2 + $0xa8] sm:$0xff]
      %v938 = vld [vmem:[#allocation2 + $0xb0] sm:$0xff]
      %v939 = vld [vmem:[#allocation2 + $0xb8] sm:$0xff]
      %v940 = vld [vmem:[#allocation2 + $0xc0] sm:$0xff]
      %v941 = vld [vmem:[#allocation2 + $0xc8] sm:$0xff]
      %v942 = vld [vmem:[#allocation2 + $0xd0] sm:$0xff]
      %v943 = vld [vmem:[#allocation2 + $0xd8] sm:$0xff]
      %v944 = vld [vmem:[#allocation2 + $0xe0] sm:$0xff]
      %v945 = vld [vmem:[#allocation2 + $0xe8] sm:$0xff]
      %v946 = vld [vmem:[#allocation2 + $0xf0] sm:$0xff]
      %v947 = vld [vmem:[#allocation2 + $0xf8] sm:$0xff]
      %v948 = vld [vmem:[#allocation2 + $0x100] sm:$0xff]
      %v949 = vld [vmem:[#allocation2 + $0x108] sm:$0xff]
      %v950 = vld [vmem:[#allocation2 + $0x110] sm:$0xff]
      %v951 = vld [vmem:[#allocation2 + $0x118] sm:$0xff]
      %v952 = vld [vmem:[#allocation2 + $0x120] sm:$0xff]
      %v953 = vld [vmem:[#allocation2 + $0x128] sm:$0xff]
      %v954 = vld [vmem:[#allocation2 + $0x130] sm:$0xff]
      %v955 = vld [vmem:[#allocation2 + $0x138] sm:$0xff]
      %v956 = vld [vmem:[#allocation2 + $0x140] sm:$0xff]
      %v957 = vld [vmem:[#allocation2 + $0x148] sm:$0xff]
      %v958 = vld [vmem:[#allocation2 + $0x150] sm:$0xff]
      %v959 = vld [vmem:[#allocation2 + $0x158] sm:$0xff]
      %v960 = vld [vmem:[#allocation2 + $0x160] sm:$0xff]
      %v961 = vld [vmem:[#allocation2 + $0x168] sm:$0xff]
      %v962 = vld [vmem:[#allocation2 + $0x170] sm:$0xff]
      %v963 = vld [vmem:[#allocation2 + $0x178] sm:$0xff]
      %v964 = vld [vmem:[#allocation2 + $0x180] sm:$0xff]
      %v965 = vld [vmem:[#allocation2 + $0x188] sm:$0xff]
      %v966 = vld [vmem:[#allocation2 + $0x190] sm:$0xff]
      %v967 = vld [vmem:[#allocation2 + $0x198] sm:$0xff]
      %v968 = vld [vmem:[#allocation2 + $0x1a0] sm:$0xff]
      %v969 = vld [vmem:[#allocation2 + $0x1a8] sm:$0xff]
      %v970 = vld [vmem:[%s2] sm:$0xf]
      %v971 = vld [vmem:[#allocation2 + $0x1b0] sm:$0xff]
      %v972 = vld [vmem:[#allocation2 + $0x1b8] sm:$0xff]
      %v973 = vld [vmem:[#allocation2 + $0x1c0] sm:$0xff]
      %s974 = scalar_lea.vmem %s2, 12
      %v975 = vld [vmem:[%s974] sm:$0xf]
      %v977 = vsel %vm759, %v919, 0
      %v980 = vsel %vm759, %v920, 0
      %v983 = vsel %vm759, %v921, 0
      %v986 = vsel %vm759, %v922, 0
      %v989 = vsel %vm759, %v923, 0
      %v992 = vsel %vm759, %v924, 0
      %v995 = vsel %vm759, %v925, 0
      %v998 = vsel %vm759, %v926, 0
      %v1001 = vsel %vm759, %v927, 0
      %v1004 = vsel %vm759, %v928, 0
      %v1007 = vsel %vm759, %v929, 0
      %v1010 = vsel %vm759, %v930, 0
      %v1013 = vsel %vm759, %v931, 0
      %v1016 = vsel %vm759, %v932, 0
      %v1019 = vsel %vm759, %v933, 0
      %v1022 = vsel %vm759, %v934, 0
      %v1025 = vsel %vm759, %v935, 0
      %v1028 = vsel %vm759, %v936, 0
      %v1031 = vsel %vm759, %v937, 0
      %v1034 = vsel %vm759, %v938, 0
      %v1037 = vsel %vm759, %v939, 0
      %v1040 = vsel %vm759, %v940, 0
      %v1043 = vsel %vm759, %v941, 0
      %v1046 = vsel %vm759, %v942, 0
      %v1049 = vsel %vm759, %v943, 0
      %v1052 = vsel %vm759, %v944, 0
      %v1055 = vsel %vm759, %v945, 0
      %v1058 = vsel %vm759, %v946, 0
      %v1061 = vsel %vm759, %v947, 0
      %v1064 = vsel %vm759, %v948, 0
      %v1067 = vsel %vm759, %v949, 0
      %v1070 = vsel %vm759, %v950, 0
      %v1073 = vsel %vm759, %v951, 0
      %v1076 = vsel %vm759, %v952, 0
      %v1079 = vsel %vm759, %v953, 0
      %v1082 = vsel %vm759, %v954, 0
      %v1085 = vsel %vm759, %v955, 0
      %v1088 = vsel %vm759, %v956, 0
      %v1091 = vsel %vm759, %v957, 0
      %v1094 = vsel %vm759, %v958, 0
      %v1097 = vsel %vm759, %v959, 0
      %v1100 = vsel %vm759, %v960, 0
      %v1103 = vsel %vm759, %v961, 0
      %v1106 = vsel %vm759, %v962, 0
      %v1109 = vsel %vm759, %v963, 0
      %v1112 = vsel %vm759, %v964, 0
      %v1115 = vsel %vm759, %v965, 0
      %v1118 = vsel %vm759, %v966, 0
      %v1121 = vsel %vm759, %v967, 0
      %v1124 = vsel %vm759, %v968, 0
      %v1127 = vsel %vm759, %v969, 0
      %v1130 = vsel %vm759, %v971, 0
      %v1133 = vsel %vm759, %v972, 0
      %v1136 = vsel %vm759, %v973, 0
      %vm1138 = vcmask 1043456
      %v1140 = vsel %vm1138, %v975, 0
      %1142 = vmatprep.subr.bf16.mxu0 0
      %1143 = vmatpush1.bf16.msra.mxu0 %v1140
      %1144 = vmatprep.subr.bf16.mxu0 0
      %1145 = vmatpush1.bf16.msra.mxu0 0
      %1146 = vmatprep.subr.bf16.mxu0 0
      %1147 = vmatpush1.bf16.msra.mxu0 0
      %1148 = vmatprep.subr.bf16.mxu0 0
      %1149 = vmatpush1.bf16.msra.mxu0 0
      %1150 = vmatprep.subr.bf16.mxu0 0
      %1151 = vmatpush1.bf16.msra.mxu0 0
      %1152 = vmatprep.subr.bf16.mxu0 0
      %1153 = vmatpush1.bf16.msra.mxu0 0
      %1154 = vmatprep.subr.bf16.mxu0 0
      %1155 = vmatpush1.bf16.msra.mxu0 0
      %1156 = vmatprep.subr.bf16.mxu0 0
      %1157 = vmatpush1.bf16.msra.mxu0 0
      %1158 = vmatprep.subr.bf16.mxu0 0
      %1159 = vmatpush1.bf16.msra.mxu0 0
      %1160 = vmatprep.subr.bf16.mxu0 0
      %1161 = vmatpush1.bf16.msra.mxu0 0
      %1162 = vmatprep.subr.bf16.mxu0 0
      %1163 = vmatpush1.bf16.msra.mxu0 0
      %1164 = vmatprep.subr.bf16.mxu0 0
      %1165 = vmatpush1.bf16.msra.mxu0 0
      %1166 = vmatprep.subr.bf16.mxu0 0
      %1167 = vmatpush1.bf16.msra.mxu0 0
      %1168 = vmatprep.subr.bf16.mxu0 0
      %1169 = vmatpush1.bf16.msra.mxu0 0
      %1170 = vmatprep.subr.bf16.mxu0 0
      %1171 = vmatpush1.bf16.msra.mxu0 0
      %1172 = vmatprep.subr.bf16.mxu0 0
      %1173 = vmatpush1.bf16.msra.mxu0 0
      %1174 = vmatprep.mubr.bf16.mxu0 0
      %1175 = vmatmul.mubr.bf16.gmra.mrb[0].mxu0 %v977
      %v1176 = vpop.f32.mrb[0].mxu0
      %v1177 = vadd.f32 0.0, %v1176
      %v1178 = vpop.f32.mrb[0].mxu0
      %v1179 = vpop.f32.mrb[0].mxu0
      %v1180 = vadd.f32 0.0, %v1179
      %v1181 = vpop.f32.mrb[0].mxu0
      %1182 = vmatprep.mubr.bf16.mxu0 0
      %1183 = vmatmul.mubr.bf16.gmra.mrb[0].mxu0 %v980
      %v1184 = vpop.f32.mrb[0].mxu0
      %v1185 = vadd.f32 0.0, %v1184
      %v1186 = vpop.f32.mrb[0].mxu0
      %v1187 = vpop.f32.mrb[0].mxu0
      %v1188 = vadd.f32 0.0, %v1187
      %v1189 = vpop.f32.mrb[0].mxu0
      %1190 = vmatprep.mubr.bf16.mxu0 0
      %1191 = vmatmul.mubr.bf16.gmra.mrb[0].mxu0 %v983
      %v1192 = vpop.f32.mrb[0].mxu0
      %v1193 = vpop.f32.mrb[0].mxu0
      %v1194 = vpop.f32.mrb[0].mxu0
      %v1195 = vpop.f32.mrb[0].mxu0
      %1196 = vmatprep.mubr.bf16.mxu0 0
      %1197 = vmatmul.mubr.bf16.gmra.mrb[0].mxu0 %v986
      %v1198 = vpop.f32.mrb[0].mxu0
      %v1199 = vadd.f32 0.0, %v1198
      %v1200 = vpop.f32.mrb[0].mxu0
      %v1201 = vpop.f32.mrb[0].mxu0
      %v1202 = vadd.f32 0.0, %v1201
      %v1203 = vpop.f32.mrb[0].mxu0
      %1204 = vmatprep.mubr.bf16.mxu0 0
      %1205 = vmatmul.mubr.bf16.gmra.mrb[0].mxu0 %v989
      %v1206 = vpop.f32.mrb[0].mxu0
      %v1207 = vadd.f32 0.0, %v1206
      %v1208 = vpop.f32.mrb[0].mxu0
      %v1209 = vpop.f32.mrb[0].mxu0
      %v1210 = vadd.f32 0.0, %v1209
      %v1211 = vpop.f32.mrb[0].mxu0
      %1212 = vmatprep.mubr.bf16.mxu0 0
      %1213 = vmatmul.mubr.bf16.gmra.mrb[0].mxu0 %v992
      %v1214 = vpop.f32.mrb[0].mxu0
      %v1215 = vpop.f32.mrb[0].mxu0
      %v1216 = vpop.f32.mrb[0].mxu0
      %v1217 = vpop.f32.mrb[0].mxu0
      %1218 = vmatprep.mubr.bf16.mxu0 0
      %1219 = vmatmul.mubr.bf16.gmra.mrb[0].mxu0 %v995
      %v1220 = vpop.f32.mrb[0].mxu0
      %v1221 = vadd.f32 0.0, %v1220
      %v1222 = vpop.f32.mrb[0].mxu0
      %v1223 = vpop.f32.mrb[0].mxu0
      %v1224 = vadd.f32 0.0, %v1223
      %v1225 = vpop.f32.mrb[0].mxu0
      %1226 = vmatprep.mubr.bf16.mxu0 0
      %1227 = vmatmul.mubr.bf16.gmra.mrb[0].mxu0 %v998
      %v1228 = vpop.f32.mrb[0].mxu0
      %v1229 = vadd.f32 0.0, %v1228
      %v1230 = vpop.f32.mrb[0].mxu0
      %v1231 = vpop.f32.mrb[0].mxu0
      %v1232 = vadd.f32 0.0, %v1231
      %v1233 = vpop.f32.mrb[0].mxu0
      %1234 = vmatprep.mubr.bf16.mxu0 0
      %1235 = vmatmul.mubr.bf16.gmra.mrb[0].mxu0 %v1001
      %v1236 = vpop.f32.mrb[0].mxu0
      %v1237 = vpop.f32.mrb[0].mxu0
      %v1238 = vpop.f32.mrb[0].mxu0
      %v1239 = vpop.f32.mrb[0].mxu0
      %1240 = vmatprep.mubr.bf16.mxu0 0
      %1241 = vmatmul.mubr.bf16.gmra.mrb[0].mxu0 %v1004
      %v1242 = vpop.f32.mrb[0].mxu0
      %v1243 = vadd.f32 0.0, %v1242
      %v1244 = vpop.f32.mrb[0].mxu0
      %v1245 = vpop.f32.mrb[0].mxu0
      %v1246 = vadd.f32 0.0, %v1245
      %v1247 = vpop.f32.mrb[0].mxu0
      %1248 = vmatprep.mubr.bf16.mxu0 0
      %1249 = vmatmul.mubr.bf16.gmra.mrb[0].mxu0 %v1007
      %v1250 = vpop.f32.mrb[0].mxu0
      %v1251 = vadd.f32 0.0, %v1250
      %v1252 = vpop.f32.mrb[0].mxu0
      %v1253 = vpop.f32.mrb[0].mxu0
      %v1254 = vadd.f32 0.0, %v1253
      %v1255 = vpop.f32.mrb[0].mxu0
      %1256 = vmatprep.mubr.bf16.mxu0 0
      %1257 = vmatmul.mubr.bf16.gmra.mrb[0].mxu0 %v1010
      %v1258 = vpop.f32.mrb[0].mxu0
      %v1259 = vpop.f32.mrb[0].mxu0
      %v1260 = vpop.f32.mrb[0].mxu0
      %v1261 = vpop.f32.mrb[0].mxu0
      %1262 = vmatprep.mubr.bf16.mxu0 0
      %1263 = vmatmul.mubr.bf16.gmra.mrb[0].mxu0 %v1013
      %v1264 = vpop.f32.mrb[0].mxu0
      %v1265 = vadd.f32 0.0, %v1264
      %v1266 = vpop.f32.mrb[0].mxu0
      %v1267 = vpop.f32.mrb[0].mxu0
      %v1268 = vadd.f32 0.0, %v1267
      %v1269 = vpop.f32.mrb[0].mxu0
      %1270 = vmatprep.mubr.bf16.mxu0 0
      %1271 = vmatmul.mubr.bf16.gmra.mrb[0].mxu0 %v1016
      %v1272 = vpop.f32.mrb[0].mxu0
      %v1273 = vadd.f32 0.0, %v1272
      %v1274 = vpop.f32.mrb[0].mxu0
      %v1275 = vpop.f32.mrb[0].mxu0
      %v1276 = vadd.f32 0.0, %v1275
      %v1277 = vpop.f32.mrb[0].mxu0
      %1278 = vmatprep.mubr.bf16.mxu0 0
      %1279 = vmatmul.mubr.bf16.gmra.mrb[0].mxu0 %v1019
      %v1280 = vpop.f32.mrb[0].mxu0
      %v1281 = vpop.f32.mrb[0].mxu0
      %v1282 = vpop.f32.mrb[0].mxu0
      %v1283 = vpop.f32.mrb[0].mxu0
      %1284 = vmatprep.mubr.bf16.mxu0 0
      %1285 = vmatmul.mubr.bf16.gmra.mrb[0].mxu0 %v1022
      %v1286 = vpop.f32.mrb[0].mxu0
      %v1287 = vadd.f32 0.0, %v1286
      %v1288 = vpop.f32.mrb[0].mxu0
      %v1289 = vpop.f32.mrb[0].mxu0
      %v1290 = vadd.f32 0.0, %v1289
      %v1291 = vpop.f32.mrb[0].mxu0
      %1292 = vmatprep.mubr.bf16.mxu0 0
      %1293 = vmatmul.mubr.bf16.gmra.mrb[0].mxu0 %v1025
      %v1294 = vpop.f32.mrb[0].mxu0
      %v1295 = vadd.f32 0.0, %v1294
      %v1296 = vpop.f32.mrb[0].mxu0
      %v1297 = vpop.f32.mrb[0].mxu0
      %v1298 = vadd.f32 0.0, %v1297
      %v1299 = vpop.f32.mrb[0].mxu0
      %1300 = vmatprep.mubr.bf16.mxu0 0
      %1301 = vmatmul.mubr.bf16.gmra.mrb[0].mxu0 %v1028
      %v1302 = vpop.f32.mrb[0].mxu0
      %v1303 = vpop.f32.mrb[0].mxu0
      %v1304 = vpop.f32.mrb[0].mxu0
      %v1305 = vpop.f32.mrb[0].mxu0
      %1306 = vmatprep.mubr.bf16.mxu0 0
      %1307 = vmatmul.mubr.bf16.gmra.mrb[0].mxu0 %v1031
      %v1308 = vpop.f32.mrb[0].mxu0
      %v1309 = vadd.f32 0.0, %v1308
      %v1310 = vpop.f32.mrb[0].mxu0
      %v1311 = vpop.f32.mrb[0].mxu0
      %v1312 = vadd.f32 0.0, %v1311
      %v1313 = vpop.f32.mrb[0].mxu0
      %1314 = vmatprep.mubr.bf16.mxu0 0
      %1315 = vmatmul.mubr.bf16.gmra.mrb[0].mxu0 %v1034
      %v1316 = vpop.f32.mrb[0].mxu0
      %v1317 = vadd.f32 0.0, %v1316
      %v1318 = vpop.f32.mrb[0].mxu0
      %v1319 = vpop.f32.mrb[0].mxu0
      %v1320 = vadd.f32 0.0, %v1319
      %v1321 = vpop.f32.mrb[0].mxu0
      %1322 = vmatprep.mubr.bf16.mxu0 0
      %1323 = vmatmul.mubr.bf16.gmra.mrb[0].mxu0 %v1037
      %v1324 = vpop.f32.mrb[0].mxu0
      %v1325 = vpop.f32.mrb[0].mxu0
      %v1326 = vpop.f32.mrb[0].mxu0
      %v1327 = vpop.f32.mrb[0].mxu0
      %1328 = vmatprep.mubr.bf16.mxu0 0
      %1329 = vmatmul.mubr.bf16.gmra.mrb[0].mxu0 %v1040
      %v1330 = vpop.f32.mrb[0].mxu0
      %v1331 = vadd.f32 0.0, %v1330
      %v1332 = vpop.f32.mrb[0].mxu0
      %v1333 = vpop.f32.mrb[0].mxu0
      %v1334 = vadd.f32 0.0, %v1333
      %v1335 = vpop.f32.mrb[0].mxu0
      %1336 = vmatprep.mubr.bf16.mxu0 0
      %1337 = vmatmul.mubr.bf16.gmra.mrb[0].mxu0 %v1043
      %v1338 = vpop.f32.mrb[0].mxu0
      %v1339 = vadd.f32 0.0, %v1338
      %v1340 = vpop.f32.mrb[0].mxu0
      %v1341 = vpop.f32.mrb[0].mxu0
      %v1342 = vadd.f32 0.0, %v1341
      %v1343 = vpop.f32.mrb[0].mxu0
      %1344 = vmatprep.mubr.bf16.mxu0 0
      %1345 = vmatmul.mubr.bf16.gmra.mrb[0].mxu0 %v1046
      %v1346 = vpop.f32.mrb[0].mxu0
      %v1347 = vpop.f32.mrb[0].mxu0
      %v1348 = vpop.f32.mrb[0].mxu0
      %v1349 = vpop.f32.mrb[0].mxu0
      %1350 = vmatprep.mubr.bf16.mxu0 0
      %1351 = vmatmul.mubr.bf16.gmra.mrb[0].mxu0 %v1049
      %v1352 = vpop.f32.mrb[0].mxu0
      %v1353 = vadd.f32 0.0, %v1352
      %v1354 = vpop.f32.mrb[0].mxu0
      %v1355 = vpop.f32.mrb[0].mxu0
      %v1356 = vadd.f32 0.0, %v1355
      %v1357 = vpop.f32.mrb[0].mxu0
      %1358 = vmatprep.mubr.bf16.mxu0 0
      %1359 = vmatmul.mubr.bf16.gmra.mrb[0].mxu0 %v1052
      %v1360 = vpop.f32.mrb[0].mxu0
      %v1361 = vadd.f32 0.0, %v1360
      %v1362 = vpop.f32.mrb[0].mxu0
      %v1363 = vpop.f32.mrb[0].mxu0
      %v1364 = vadd.f32 0.0, %v1363
      %v1365 = vpop.f32.mrb[0].mxu0
      %1366 = vmatprep.mubr.bf16.mxu0 0
      %1367 = vmatmul.mubr.bf16.gmra.mrb[0].mxu0 %v1055
      %v1368 = vpop.f32.mrb[0].mxu0
      %v1369 = vpop.f32.mrb[0].mxu0
      %v1370 = vpop.f32.mrb[0].mxu0
      %v1371 = vpop.f32.mrb[0].mxu0
      %1372 = vmatprep.mubr.bf16.mxu0 0
      %1373 = vmatmul.mubr.bf16.gmra.mrb[0].mxu0 %v1058
      %v1374 = vpop.f32.mrb[0].mxu0
      %v1375 = vadd.f32 0.0, %v1374
      %v1376 = vpop.f32.mrb[0].mxu0
      %v1377 = vpop.f32.mrb[0].mxu0
      %v1378 = vadd.f32 0.0, %v1377
      %v1379 = vpop.f32.mrb[0].mxu0
      %1380 = vmatprep.mubr.bf16.mxu0 0
      %1381 = vmatmul.mubr.bf16.gmra.mrb[0].mxu0 %v1061
      %v1382 = vpop.f32.mrb[0].mxu0
      %v1383 = vadd.f32 0.0, %v1382
      %v1384 = vpop.f32.mrb[0].mxu0
      %v1385 = vpop.f32.mrb[0].mxu0
      %v1386 = vadd.f32 0.0, %v1385
      %v1387 = vpop.f32.mrb[0].mxu0
      %1388 = vmatprep.mubr.bf16.mxu0 0
      %1389 = vmatmul.mubr.bf16.gmra.mrb[0].mxu0 %v1064
      %v1390 = vpop.f32.mrb[0].mxu0
      %v1391 = vpop.f32.mrb[0].mxu0
      %v1392 = vpop.f32.mrb[0].mxu0
      %v1393 = vpop.f32.mrb[0].mxu0
      %1394 = vmatprep.mubr.bf16.mxu0 0
      %1395 = vmatmul.mubr.bf16.gmra.mrb[0].mxu0 %v1067
      %v1396 = vpop.f32.mrb[0].mxu0
      %v1397 = vadd.f32 0.0, %v1396
      %v1398 = vpop.f32.mrb[0].mxu0
      %v1399 = vpop.f32.mrb[0].mxu0
      %v1400 = vadd.f32 0.0, %v1399
      %v1401 = vpop.f32.mrb[0].mxu0
      %1402 = vmatprep.mubr.bf16.mxu0 0
      %1403 = vmatmul.mubr.bf16.gmra.mrb[0].mxu0 %v1070
      %v1404 = vpop.f32.mrb[0].mxu0
      %v1405 = vadd.f32 0.0, %v1404
      %v1406 = vpop.f32.mrb[0].mxu0
      %v1407 = vpop.f32.mrb[0].mxu0
      %v1408 = vadd.f32 0.0, %v1407
      %v1409 = vpop.f32.mrb[0].mxu0
      %1410 = vmatprep.mubr.bf16.mxu0 0
      %1411 = vmatmul.mubr.bf16.gmra.mrb[0].mxu0 %v1073
      %v1412 = vpop.f32.mrb[0].mxu0
      %v1413 = vpop.f32.mrb[0].mxu0
      %v1414 = vpop.f32.mrb[0].mxu0
      %v1415 = vpop.f32.mrb[0].mxu0
      %1416 = vmatprep.mubr.bf16.mxu0 0
      %1417 = vmatmul.mubr.bf16.gmra.mrb[0].mxu0 %v1076
      %v1418 = vpop.f32.mrb[0].mxu0
      %v1419 = vadd.f32 0.0, %v1418
      %v1420 = vpop.f32.mrb[0].mxu0
      %v1421 = vpop.f32.mrb[0].mxu0
      %v1422 = vadd.f32 0.0, %v1421
      %v1423 = vpop.f32.mrb[0].mxu0
      %1424 = vmatprep.mubr.bf16.mxu0 0
      %1425 = vmatmul.mubr.bf16.gmra.mrb[0].mxu0 %v1079
      %v1426 = vpop.f32.mrb[0].mxu0
      %v1427 = vadd.f32 0.0, %v1426
      %v1428 = vpop.f32.mrb[0].mxu0
      %v1429 = vpop.f32.mrb[0].mxu0
      %v1430 = vadd.f32 0.0, %v1429
      %v1431 = vpop.f32.mrb[0].mxu0
      %1432 = vmatprep.mubr.bf16.mxu0 0
      %1433 = vmatmul.mubr.bf16.gmra.mrb[0].mxu0 %v1082
      %v1434 = vpop.f32.mrb[0].mxu0
      %v1435 = vpop.f32.mrb[0].mxu0
      %v1436 = vpop.f32.mrb[0].mxu0
      %v1437 = vpop.f32.mrb[0].mxu0
      %1438 = vmatprep.mubr.bf16.mxu0 0
      %1439 = vmatmul.mubr.bf16.gmra.mrb[0].mxu0 %v1085
      %v1440 = vpop.f32.mrb[0].mxu0
      %v1441 = vadd.f32 0.0, %v1440
      %v1442 = vpop.f32.mrb[0].mxu0
      %v1443 = vpop.f32.mrb[0].mxu0
      %v1444 = vadd.f32 0.0, %v1443
      %v1445 = vpop.f32.mrb[0].mxu0
      %1446 = vmatprep.mubr.bf16.mxu0 0
      %1447 = vmatmul.mubr.bf16.gmra.mrb[0].mxu0 %v1088
      %v1448 = vpop.f32.mrb[0].mxu0
      %v1449 = vadd.f32 0.0, %v1448
      %v1450 = vpop.f32.mrb[0].mxu0
      %v1451 = vpop.f32.mrb[0].mxu0
      %v1452 = vadd.f32 0.0, %v1451
      %v1453 = vpop.f32.mrb[0].mxu0
      %1454 = vmatprep.mubr.bf16.mxu0 0
      %1455 = vmatmul.mubr.bf16.gmra.mrb[0].mxu0 %v1091
      %v1456 = vpop.f32.mrb[0].mxu0
      %v1457 = vpop.f32.mrb[0].mxu0
      %v1458 = vpop.f32.mrb[0].mxu0
      %v1459 = vpop.f32.mrb[0].mxu0
      %1460 = vmatprep.mubr.bf16.mxu0 0
      %1461 = vmatmul.mubr.bf16.gmra.mrb[0].mxu0 %v1094
      %v1462 = vpop.f32.mrb[0].mxu0
      %v1463 = vadd.f32 0.0, %v1462
      %v1464 = vpop.f32.mrb[0].mxu0
      %v1465 = vpop.f32.mrb[0].mxu0
      %v1466 = vadd.f32 0.0, %v1465
      %v1467 = vpop.f32.mrb[0].mxu0
      %1468 = vmatprep.mubr.bf16.mxu0 0
      %1469 = vmatmul.mubr.bf16.gmra.mrb[0].mxu0 %v1097
      %v1470 = vpop.f32.mrb[0].mxu0
      %v1471 = vadd.f32 0.0, %v1470
      %v1472 = vpop.f32.mrb[0].mxu0
      %v1473 = vpop.f32.mrb[0].mxu0
      %v1474 = vadd.f32 0.0, %v1473
      %v1475 = vpop.f32.mrb[0].mxu0
      %1476 = vmatprep.mubr.bf16.mxu0 0
      %1477 = vmatmul.mubr.bf16.gmra.mrb[0].mxu0 %v1100
      %v1478 = vpop.f32.mrb[0].mxu0
      %v1479 = vpop.f32.mrb[0].mxu0
      %v1480 = vpop.f32.mrb[0].mxu0
      %v1481 = vpop.f32.mrb[0].mxu0
      %1482 = vmatprep.mubr.bf16.mxu0 0
      %1483 = vmatmul.mubr.bf16.gmra.mrb[0].mxu0 %v1103
      %v1484 = vpop.f32.mrb[0].mxu0
      %v1485 = vadd.f32 0.0, %v1484
      %v1486 = vpop.f32.mrb[0].mxu0
      %v1487 = vpop.f32.mrb[0].mxu0
      %v1488 = vadd.f32 0.0, %v1487
      %v1489 = vpop.f32.mrb[0].mxu0
      %1490 = vmatprep.mubr.bf16.mxu0 0
      %1491 = vmatmul.mubr.bf16.gmra.mrb[0].mxu0 %v1106
      %v1492 = vpop.f32.mrb[0].mxu0
      %v1493 = vadd.f32 0.0, %v1492
      %v1494 = vpop.f32.mrb[0].mxu0
      %v1495 = vpop.f32.mrb[0].mxu0
      %v1496 = vadd.f32 0.0, %v1495
      %v1497 = vpop.f32.mrb[0].mxu0
      %1498 = vmatprep.mubr.bf16.mxu0 0
      %1499 = vmatmul.mubr.bf16.gmra.mrb[0].mxu0 %v1109
      %v1500 = vpop.f32.mrb[0].mxu0
      %v1501 = vpop.f32.mrb[0].mxu0
      %v1502 = vpop.f32.mrb[0].mxu0
      %v1503 = vpop.f32.mrb[0].mxu0
      %1504 = vmatprep.mubr.bf16.mxu0 0
      %1505 = vmatmul.mubr.bf16.gmra.mrb[0].mxu0 %v1112
      %v1506 = vpop.f32.mrb[0].mxu0
      %v1507 = vadd.f32 0.0, %v1506
      %v1508 = vpop.f32.mrb[0].mxu0
      %v1509 = vpop.f32.mrb[0].mxu0
      %v1510 = vadd.f32 0.0, %v1509
      %v1511 = vpop.f32.mrb[0].mxu0
      %1512 = vmatprep.mubr.bf16.mxu0 0
      %1513 = vmatmul.mubr.bf16.gmra.mrb[0].mxu0 %v1115
      %v1514 = vpop.f32.mrb[0].mxu0
      %v1515 = vadd.f32 0.0, %v1514
      %v1516 = vpop.f32.mrb[0].mxu0
      %v1517 = vpop.f32.mrb[0].mxu0
      %v1518 = vadd.f32 0.0, %v1517
      %v1519 = vpop.f32.mrb[0].mxu0
      %1520 = vmatprep.mubr.bf16.mxu0 0
      %1521 = vmatmul.mubr.bf16.gmra.mrb[0].mxu0 %v1118
      %v1522 = vpop.f32.mrb[0].mxu0
      %v1523 = vpop.f32.mrb[0].mxu0
      %v1524 = vpop.f32.mrb[0].mxu0
      %v1525 = vpop.f32.mrb[0].mxu0
      %1526 = vmatprep.mubr.bf16.mxu0 0
      %1527 = vmatmul.mubr.bf16.gmra.mrb[0].mxu0 %v1121
      %v1528 = vpop.f32.mrb[0].mxu0
      %v1529 = vadd.f32 0.0, %v1528
      %v1530 = vpop.f32.mrb[0].mxu0
      %v1531 = vpop.f32.mrb[0].mxu0
      %v1532 = vadd.f32 0.0, %v1531
      %v1533 = vpop.f32.mrb[0].mxu0
      %1534 = vmatprep.mubr.bf16.mxu0 0
      %1535 = vmatmul.mubr.bf16.gmra.mrb[0].mxu0 %v1124
      %v1536 = vpop.f32.mrb[0].mxu0
      %v1537 = vadd.f32 0.0, %v1536
      %v1538 = vpop.f32.mrb[0].mxu0
      %v1539 = vpop.f32.mrb[0].mxu0
      %v1540 = vadd.f32 0.0, %v1539
      %v1541 = vpop.f32.mrb[0].mxu0
      %1542 = vmatprep.mubr.bf16.mxu0 0
      %1543 = vmatmul.mubr.bf16.gmra.mrb[0].mxu0 %v1127
      %v1544 = vpop.f32.mrb[0].mxu0
      %v1545 = vpop.f32.mrb[0].mxu0
      %v1546 = vpop.f32.mrb[0].mxu0
      %v1547 = vpop.f32.mrb[0].mxu0
      %1548 = vmatprep.mubr.bf16.mxu0 0
      %1549 = vmatmul.mubr.bf16.gmra.mrb[0].mxu0 %v1130
      %v1550 = vpop.f32.mrb[0].mxu0
      %v1551 = vadd.f32 0.0, %v1550
      %v1552 = vpop.f32.mrb[0].mxu0
      %v1553 = vpop.f32.mrb[0].mxu0
      %v1554 = vadd.f32 0.0, %v1553
      %v1555 = vpop.f32.mrb[0].mxu0
      %1556 = vmatprep.mubr.bf16.mxu0 0
      %1557 = vmatmul.mubr.bf16.gmra.mrb[0].mxu0 %v1133
      %v1558 = vpop.f32.mrb[0].mxu0
      %v1559 = vadd.f32 0.0, %v1558
      %v1560 = vpop.f32.mrb[0].mxu0
      %v1561 = vpop.f32.mrb[0].mxu0
      %v1562 = vadd.f32 0.0, %v1561
      %v1563 = vpop.f32.mrb[0].mxu0
      %1564 = vmatprep.mubr.bf16.mxu0 0
      %1565 = vmatmul.mubr.bf16.gmra.mrb[0].mxu0 %v1136
      %v1566 = vpop.f32.mrb[0].mxu0
      %v1567 = vpop.f32.mrb[0].mxu0
      %v1568 = vpop.f32.mrb[0].mxu0
      %v1569 = vpop.f32.mrb[0].mxu0
      %1570 = vdwg.mxu0
      %v1572 = vsel %vm759, %v916, 0
      %v1575 = vsel %vm759, %v917, 0
      %v1578 = vsel %vm759, %v918, 0
      %v1581 = vsel %vm1138, %v970, 0
      %1583 = vmatprep.subr.bf16.mxu0 0
      %1584 = vmatpush1.bf16.msra.mxu0 %v1581
      %1585 = vmatprep.subr.bf16.mxu0 0
      %1586 = vmatpush1.bf16.msra.mxu0 0
      %1587 = vmatprep.subr.bf16.mxu0 0
      %1588 = vmatpush1.bf16.msra.mxu0 0
      %1589 = vmatprep.subr.bf16.mxu0 0
      %1590 = vmatpush1.bf16.msra.mxu0 0
      %1591 = vmatprep.subr.bf16.mxu0 0
      %1592 = vmatpush1.bf16.msra.mxu0 0
      %1593 = vmatprep.subr.bf16.mxu0 0
      %1594 = vmatpush1.bf16.msra.mxu0 0
      %1595 = vmatprep.subr.bf16.mxu0 0
      %1596 = vmatpush1.bf16.msra.mxu0 0
      %1597 = vmatprep.subr.bf16.mxu0 0
      %1598 = vmatpush1.bf16.msra.mxu0 0
      %1599 = vmatprep.subr.bf16.mxu0 0
      %1600 = vmatpush1.bf16.msra.mxu0 0
      %1601 = vmatprep.subr.bf16.mxu0 0
      %1602 = vmatpush1.bf16.msra.mxu0 0
      %1603 = vmatprep.subr.bf16.mxu0 0
      %1604 = vmatpush1.bf16.msra.mxu0 0
      %1605 = vmatprep.subr.bf16.mxu0 0
      %1606 = vmatpush1.bf16.msra.mxu0 0
      %1607 = vmatprep.subr.bf16.mxu0 0
      %1608 = vmatpush1.bf16.msra.mxu0 0
      %1609 = vmatprep.subr.bf16.mxu0 0
      %1610 = vmatpush1.bf16.msra.mxu0 0
      %1611 = vmatprep.subr.bf16.mxu0 0
      %1612 = vmatpush1.bf16.msra.mxu0 0
      %1613 = vmatprep.subr.bf16.mxu0 0
      %1614 = vmatpush1.bf16.msra.mxu0 0
      %1615 = vmatprep.mubr.bf16.mxu0 0
      %1616 = vmatmul.mubr.bf16.gmra.mrb[0].mxu0 %v1572
      %v1617 = vpop.f32.mrb[0].mxu0
      %v1618 = vadd.f32 %v1177, %v1617
      %v1619 = vpop.f32.mrb[0].mxu0
      %v1620 = vpop.f32.mrb[0].mxu0
      %v1621 = vadd.f32 %v1180, %v1620
      %v1622 = vpop.f32.mrb[0].mxu0
      %1623 = vmatprep.mubr.bf16.mxu0 0
      %1624 = vmatmul.mubr.bf16.gmra.mrb[0].mxu0 %v1575
      %v1625 = vpop.f32.mrb[0].mxu0
      %v1626 = vadd.f32 %v1185, %v1625
      %v1627 = vpop.f32.mrb[0].mxu0
      %v1628 = vpop.f32.mrb[0].mxu0
      %v1629 = vadd.f32 %v1188, %v1628
      %v1630 = vpop.f32.mrb[0].mxu0
      %1631 = vmatprep.mubr.bf16.mxu0 0
      %1632 = vmatmul.mubr.bf16.gmra.mrb[0].mxu0 %v1578
      %v1633 = vpop.f32.mrb[0].mxu0
      %v1634 = vpop.f32.mrb[0].mxu0
      %v1635 = vpop.f32.mrb[0].mxu0
      %v1636 = vpop.f32.mrb[0].mxu0
      %1637 = vmatprep.mubr.bf16.mxu0 0
      %1638 = vmatmul.mubr.bf16.gmra.mrb[0].mxu0 %v977
      %v1639 = vpop.f32.mrb[0].mxu0
      %v1640 = vadd.f32 %v1199, %v1639
      %v1641 = vpop.f32.mrb[0].mxu0
      %v1642 = vpop.f32.mrb[0].mxu0
      %v1643 = vadd.f32 %v1202, %v1642
      %v1644 = vpop.f32.mrb[0].mxu0
      %1645 = vmatprep.mubr.bf16.mxu0 0
      %1646 = vmatmul.mubr.bf16.gmra.mrb[0].mxu0 %v980
      %v1647 = vpop.f32.mrb[0].mxu0
      %v1648 = vadd.f32 %v1207, %v1647
      %v1649 = vpop.f32.mrb[0].mxu0
      %v1650 = vpop.f32.mrb[0].mxu0
      %v1651 = vadd.f32 %v1210, %v1650
      %v1652 = vpop.f32.mrb[0].mxu0
      %1653 = vmatprep.mubr.bf16.mxu0 0
      %1654 = vmatmul.mubr.bf16.gmra.mrb[0].mxu0 %v983
      %v1655 = vpop.f32.mrb[0].mxu0
      %v1656 = vpop.f32.mrb[0].mxu0
      %v1657 = vpop.f32.mrb[0].mxu0
      %v1658 = vpop.f32.mrb[0].mxu0
      %1659 = vmatprep.mubr.bf16.mxu0 0
      %1660 = vmatmul.mubr.bf16.gmra.mrb[0].mxu0 %v986
      %v1661 = vpop.f32.mrb[0].mxu0
      %v1662 = vadd.f32 %v1221, %v1661
      %v1663 = vpop.f32.mrb[0].mxu0
      %v1664 = vpop.f32.mrb[0].mxu0
      %v1665 = vadd.f32 %v1224, %v1664
      %v1666 = vpop.f32.mrb[0].mxu0
      %1667 = vmatprep.mubr.bf16.mxu0 0
      %1668 = vmatmul.mubr.bf16.gmra.mrb[0].mxu0 %v989
      %v1669 = vpop.f32.mrb[0].mxu0
      %v1670 = vadd.f32 %v1229, %v1669
      %v1671 = vpop.f32.mrb[0].mxu0
      %v1672 = vpop.f32.mrb[0].mxu0
      %v1673 = vadd.f32 %v1232, %v1672
      %v1674 = vpop.f32.mrb[0].mxu0
      %1675 = vmatprep.mubr.bf16.mxu0 0
      %1676 = vmatmul.mubr.bf16.gmra.mrb[0].mxu0 %v992
      %v1677 = vpop.f32.mrb[0].mxu0
      %v1678 = vpop.f32.mrb[0].mxu0
      %v1679 = vpop.f32.mrb[0].mxu0
      %v1680 = vpop.f32.mrb[0].mxu0
      %1681 = vmatprep.mubr.bf16.mxu0 0
      %1682 = vmatmul.mubr.bf16.gmra.mrb[0].mxu0 %v995
      %v1683 = vpop.f32.mrb[0].mxu0
      %v1684 = vadd.f32 %v1243, %v1683
      %v1685 = vpop.f32.mrb[0].mxu0
      %v1686 = vpop.f32.mrb[0].mxu0
      %v1687 = vadd.f32 %v1246, %v1686
      %v1688 = vpop.f32.mrb[0].mxu0
      %1689 = vmatprep.mubr.bf16.mxu0 0
      %1690 = vmatmul.mubr.bf16.gmra.mrb[0].mxu0 %v998
      %v1691 = vpop.f32.mrb[0].mxu0
      %v1692 = vadd.f32 %v1251, %v1691
      %v1693 = vpop.f32.mrb[0].mxu0
      %v1694 = vpop.f32.mrb[0].mxu0
      %v1695 = vadd.f32 %v1254, %v1694
      %v1696 = vpop.f32.mrb[0].mxu0
      %1697 = vmatprep.mubr.bf16.mxu0 0
      %1698 = vmatmul.mubr.bf16.gmra.mrb[0].mxu0 %v1001
      %v1699 = vpop.f32.mrb[0].mxu0
      %v1700 = vpop.f32.mrb[0].mxu0
      %v1701 = vpop.f32.mrb[0].mxu0
      %v1702 = vpop.f32.mrb[0].mxu0
      %1703 = vmatprep.mubr.bf16.mxu0 0
      %1704 = vmatmul.mubr.bf16.gmra.mrb[0].mxu0 %v1004
      %v1705 = vpop.f32.mrb[0].mxu0
      %v1706 = vadd.f32 %v1265, %v1705
      %v1707 = vpop.f32.mrb[0].mxu0
      %v1708 = vpop.f32.mrb[0].mxu0
      %v1709 = vadd.f32 %v1268, %v1708
      %v1710 = vpop.f32.mrb[0].mxu0
      %1711 = vmatprep.mubr.bf16.mxu0 0
      %1712 = vmatmul.mubr.bf16.gmra.mrb[0].mxu0 %v1007
      %v1713 = vpop.f32.mrb[0].mxu0
      %v1714 = vadd.f32 %v1273, %v1713
      %v1715 = vpop.f32.mrb[0].mxu0
      %v1716 = vpop.f32.mrb[0].mxu0
      %v1717 = vadd.f32 %v1276, %v1716
      %v1718 = vpop.f32.mrb[0].mxu0
      %1719 = vmatprep.mubr.bf16.mxu0 0
      %1720 = vmatmul.mubr.bf16.gmra.mrb[0].mxu0 %v1010
      %v1721 = vpop.f32.mrb[0].mxu0
      %v1722 = vpop.f32.mrb[0].mxu0
      %v1723 = vpop.f32.mrb[0].mxu0
      %v1724 = vpop.f32.mrb[0].mxu0
      %1725 = vmatprep.mubr.bf16.mxu0 0
      %1726 = vmatmul.mubr.bf16.gmra.mrb[0].mxu0 %v1013
      %v1727 = vpop.f32.mrb[0].mxu0
      %v1728 = vadd.f32 %v1287, %v1727
      %v1729 = vpop.f32.mrb[0].mxu0
      %v1730 = vpop.f32.mrb[0].mxu0
      %v1731 = vadd.f32 %v1290, %v1730
      %v1732 = vpop.f32.mrb[0].mxu0
      %1733 = vmatprep.mubr.bf16.mxu0 0
      %1734 = vmatmul.mubr.bf16.gmra.mrb[0].mxu0 %v1016
      %v1735 = vpop.f32.mrb[0].mxu0
      %v1736 = vadd.f32 %v1295, %v1735
      %v1737 = vpop.f32.mrb[0].mxu0
      %v1738 = vpop.f32.mrb[0].mxu0
      %v1739 = vadd.f32 %v1298, %v1738
      %v1740 = vpop.f32.mrb[0].mxu0
      %1741 = vmatprep.mubr.bf16.mxu0 0
      %1742 = vmatmul.mubr.bf16.gmra.mrb[0].mxu0 %v1019
      %v1743 = vpop.f32.mrb[0].mxu0
      %v1744 = vpop.f32.mrb[0].mxu0
      %v1745 = vpop.f32.mrb[0].mxu0
      %v1746 = vpop.f32.mrb[0].mxu0
      %1747 = vmatprep.mubr.bf16.mxu0 0
      %1748 = vmatmul.mubr.bf16.gmra.mrb[0].mxu0 %v1022
      %v1749 = vpop.f32.mrb[0].mxu0
      %v1750 = vadd.f32 %v1309, %v1749
      %v1751 = vpop.f32.mrb[0].mxu0
      %v1752 = vpop.f32.mrb[0].mxu0
      %v1753 = vadd.f32 %v1312, %v1752
      %v1754 = vpop.f32.mrb[0].mxu0
      %1755 = vmatprep.mubr.bf16.mxu0 0
      %1756 = vmatmul.mubr.bf16.gmra.mrb[0].mxu0 %v1025
      %v1757 = vpop.f32.mrb[0].mxu0
      %v1758 = vadd.f32 %v1317, %v1757
      %v1759 = vpop.f32.mrb[0].mxu0
      %v1760 = vpop.f32.mrb[0].mxu0
      %v1761 = vadd.f32 %v1320, %v1760
      %v1762 = vpop.f32.mrb[0].mxu0
      %1763 = vmatprep.mubr.bf16.mxu0 0
      %1764 = vmatmul.mubr.bf16.gmra.mrb[0].mxu0 %v1028
      %v1765 = vpop.f32.mrb[0].mxu0
      %v1766 = vpop.f32.mrb[0].mxu0
      %v1767 = vpop.f32.mrb[0].mxu0
      %v1768 = vpop.f32.mrb[0].mxu0
      %1769 = vmatprep.mubr.bf16.mxu0 0
      %1770 = vmatmul.mubr.bf16.gmra.mrb[0].mxu0 %v1031
      %v1771 = vpop.f32.mrb[0].mxu0
      %v1772 = vadd.f32 %v1331, %v1771
      %v1773 = vpop.f32.mrb[0].mxu0
      %v1774 = vpop.f32.mrb[0].mxu0
      %v1775 = vadd.f32 %v1334, %v1774
      %v1776 = vpop.f32.mrb[0].mxu0
      %1777 = vmatprep.mubr.bf16.mxu0 0
      %1778 = vmatmul.mubr.bf16.gmra.mrb[0].mxu0 %v1034
      %v1779 = vpop.f32.mrb[0].mxu0
      %v1780 = vadd.f32 %v1339, %v1779
      %v1781 = vpop.f32.mrb[0].mxu0
      %v1782 = vpop.f32.mrb[0].mxu0
      %v1783 = vadd.f32 %v1342, %v1782
      %v1784 = vpop.f32.mrb[0].mxu0
      %1785 = vmatprep.mubr.bf16.mxu0 0
      %1786 = vmatmul.mubr.bf16.gmra.mrb[0].mxu0 %v1037
      %v1787 = vpop.f32.mrb[0].mxu0
      %v1788 = vpop.f32.mrb[0].mxu0
      %v1789 = vpop.f32.mrb[0].mxu0
      %v1790 = vpop.f32.mrb[0].mxu0
      %1791 = vmatprep.mubr.bf16.mxu0 0
      %1792 = vmatmul.mubr.bf16.gmra.mrb[0].mxu0 %v1040
      %v1793 = vpop.f32.mrb[0].mxu0
      %v1794 = vadd.f32 %v1353, %v1793
      %v1795 = vpop.f32.mrb[0].mxu0
      %v1796 = vpop.f32.mrb[0].mxu0
      %v1797 = vadd.f32 %v1356, %v1796
      %v1798 = vpop.f32.mrb[0].mxu0
      %1799 = vmatprep.mubr.bf16.mxu0 0
      %1800 = vmatmul.mubr.bf16.gmra.mrb[0].mxu0 %v1043
      %v1801 = vpop.f32.mrb[0].mxu0
      %v1802 = vadd.f32 %v1361, %v1801
      %v1803 = vpop.f32.mrb[0].mxu0
      %v1804 = vpop.f32.mrb[0].mxu0
      %v1805 = vadd.f32 %v1364, %v1804
      %v1806 = vpop.f32.mrb[0].mxu0
      %1807 = vmatprep.mubr.bf16.mxu0 0
      %1808 = vmatmul.mubr.bf16.gmra.mrb[0].mxu0 %v1046
      %v1809 = vpop.f32.mrb[0].mxu0
      %v1810 = vpop.f32.mrb[0].mxu0
      %v1811 = vpop.f32.mrb[0].mxu0
      %v1812 = vpop.f32.mrb[0].mxu0
      %1813 = vmatprep.mubr.bf16.mxu0 0
      %1814 = vmatmul.mubr.bf16.gmra.mrb[0].mxu0 %v1049
      %v1815 = vpop.f32.mrb[0].mxu0
      %v1816 = vadd.f32 %v1375, %v1815
      %v1817 = vpop.f32.mrb[0].mxu0
      %v1818 = vpop.f32.mrb[0].mxu0
      %v1819 = vadd.f32 %v1378, %v1818
      %v1820 = vpop.f32.mrb[0].mxu0
      %1821 = vmatprep.mubr.bf16.mxu0 0
      %1822 = vmatmul.mubr.bf16.gmra.mrb[0].mxu0 %v1052
      %v1823 = vpop.f32.mrb[0].mxu0
      %v1824 = vadd.f32 %v1383, %v1823
      %v1825 = vpop.f32.mrb[0].mxu0
      %v1826 = vpop.f32.mrb[0].mxu0
      %v1827 = vadd.f32 %v1386, %v1826
      %v1828 = vpop.f32.mrb[0].mxu0
      %1829 = vmatprep.mubr.bf16.mxu0 0
      %1830 = vmatmul.mubr.bf16.gmra.mrb[0].mxu0 %v1055
      %v1831 = vpop.f32.mrb[0].mxu0
      %v1832 = vpop.f32.mrb[0].mxu0
      %v1833 = vpop.f32.mrb[0].mxu0
      %v1834 = vpop.f32.mrb[0].mxu0
      %1835 = vmatprep.mubr.bf16.mxu0 0
      %1836 = vmatmul.mubr.bf16.gmra.mrb[0].mxu0 %v1058
      %v1837 = vpop.f32.mrb[0].mxu0
      %v1838 = vadd.f32 %v1397, %v1837
      %v1839 = vpop.f32.mrb[0].mxu0
      %v1840 = vpop.f32.mrb[0].mxu0
      %v1841 = vadd.f32 %v1400, %v1840
      %v1842 = vpop.f32.mrb[0].mxu0
      %1843 = vmatprep.mubr.bf16.mxu0 0
      %1844 = vmatmul.mubr.bf16.gmra.mrb[0].mxu0 %v1061
      %v1845 = vpop.f32.mrb[0].mxu0
      %v1846 = vadd.f32 %v1405, %v1845
      %v1847 = vpop.f32.mrb[0].mxu0
      %v1848 = vpop.f32.mrb[0].mxu0
      %v1849 = vadd.f32 %v1408, %v1848
      %v1850 = vpop.f32.mrb[0].mxu0
      %1851 = vmatprep.mubr.bf16.mxu0 0
      %1852 = vmatmul.mubr.bf16.gmra.mrb[0].mxu0 %v1064
      %v1853 = vpop.f32.mrb[0].mxu0
      %v1854 = vpop.f32.mrb[0].mxu0
      %v1855 = vpop.f32.mrb[0].mxu0
      %v1856 = vpop.f32.mrb[0].mxu0
      %1857 = vmatprep.mubr.bf16.mxu0 0
      %1858 = vmatmul.mubr.bf16.gmra.mrb[0].mxu0 %v1067
      %v1859 = vpop.f32.mrb[0].mxu0
      %v1860 = vadd.f32 %v1419, %v1859
      %v1861 = vpop.f32.mrb[0].mxu0
      %v1862 = vpop.f32.mrb[0].mxu0
      %v1863 = vadd.f32 %v1422, %v1862
      %v1864 = vpop.f32.mrb[0].mxu0
      %1865 = vmatprep.mubr.bf16.mxu0 0
      %1866 = vmatmul.mubr.bf16.gmra.mrb[0].mxu0 %v1070
      %v1867 = vpop.f32.mrb[0].mxu0
      %v1868 = vadd.f32 %v1427, %v1867
      %v1869 = vpop.f32.mrb[0].mxu0
      %v1870 = vpop.f32.mrb[0].mxu0
      %v1871 = vadd.f32 %v1430, %v1870
      %v1872 = vpop.f32.mrb[0].mxu0
      %1873 = vmatprep.mubr.bf16.mxu0 0
      %1874 = vmatmul.mubr.bf16.gmra.mrb[0].mxu0 %v1073
      %v1875 = vpop.f32.mrb[0].mxu0
      %v1876 = vpop.f32.mrb[0].mxu0
      %v1877 = vpop.f32.mrb[0].mxu0
      %v1878 = vpop.f32.mrb[0].mxu0
      %1879 = vmatprep.mubr.bf16.mxu0 0
      %1880 = vmatmul.mubr.bf16.gmra.mrb[0].mxu0 %v1076
      %v1881 = vpop.f32.mrb[0].mxu0
      %v1882 = vadd.f32 %v1441, %v1881
      %v1883 = vpop.f32.mrb[0].mxu0
      %v1884 = vpop.f32.mrb[0].mxu0
      %v1885 = vadd.f32 %v1444, %v1884
      %v1886 = vpop.f32.mrb[0].mxu0
      %1887 = vmatprep.mubr.bf16.mxu0 0
      %1888 = vmatmul.mubr.bf16.gmra.mrb[0].mxu0 %v1079
      %v1889 = vpop.f32.mrb[0].mxu0
      %v1890 = vadd.f32 %v1449, %v1889
      %v1891 = vpop.f32.mrb[0].mxu0
      %v1892 = vpop.f32.mrb[0].mxu0
      %v1893 = vadd.f32 %v1452, %v1892
      %v1894 = vpop.f32.mrb[0].mxu0
      %1895 = vmatprep.mubr.bf16.mxu0 0
      %1896 = vmatmul.mubr.bf16.gmra.mrb[0].mxu0 %v1082
      %v1897 = vpop.f32.mrb[0].mxu0
      %v1898 = vpop.f32.mrb[0].mxu0
      %v1899 = vpop.f32.mrb[0].mxu0
      %v1900 = vpop.f32.mrb[0].mxu0
      %1901 = vmatprep.mubr.bf16.mxu0 0
      %1902 = vmatmul.mubr.bf16.gmra.mrb[0].mxu0 %v1085
      %v1903 = vpop.f32.mrb[0].mxu0
      %v1904 = vadd.f32 %v1463, %v1903
      %v1905 = vpop.f32.mrb[0].mxu0
      %v1906 = vpop.f32.mrb[0].mxu0
      %v1907 = vadd.f32 %v1466, %v1906
      %v1908 = vpop.f32.mrb[0].mxu0
      %1909 = vmatprep.mubr.bf16.mxu0 0
      %1910 = vmatmul.mubr.bf16.gmra.mrb[0].mxu0 %v1088
      %v1911 = vpop.f32.mrb[0].mxu0
      %v1912 = vadd.f32 %v1471, %v1911
      %v1913 = vpop.f32.mrb[0].mxu0
      %v1914 = vpop.f32.mrb[0].mxu0
      %v1915 = vadd.f32 %v1474, %v1914
      %v1916 = vpop.f32.mrb[0].mxu0
      %1917 = vmatprep.mubr.bf16.mxu0 0
      %1918 = vmatmul.mubr.bf16.gmra.mrb[0].mxu0 %v1091
      %v1919 = vpop.f32.mrb[0].mxu0
      %v1920 = vpop.f32.mrb[0].mxu0
      %v1921 = vpop.f32.mrb[0].mxu0
      %v1922 = vpop.f32.mrb[0].mxu0
      %1923 = vmatprep.mubr.bf16.mxu0 0
      %1924 = vmatmul.mubr.bf16.gmra.mrb[0].mxu0 %v1094
      %v1925 = vpop.f32.mrb[0].mxu0
      %v1926 = vadd.f32 %v1485, %v1925
      %v1927 = vpop.f32.mrb[0].mxu0
      %v1928 = vpop.f32.mrb[0].mxu0
      %v1929 = vadd.f32 %v1488, %v1928
      %v1930 = vpop.f32.mrb[0].mxu0
      %1931 = vmatprep.mubr.bf16.mxu0 0
      %1932 = vmatmul.mubr.bf16.gmra.mrb[0].mxu0 %v1097
      %v1933 = vpop.f32.mrb[0].mxu0
      %v1934 = vadd.f32 %v1493, %v1933
      %v1935 = vpop.f32.mrb[0].mxu0
      %v1936 = vpop.f32.mrb[0].mxu0
      %v1937 = vadd.f32 %v1496, %v1936
      %v1938 = vpop.f32.mrb[0].mxu0
      %1939 = vmatprep.mubr.bf16.mxu0 0
      %1940 = vmatmul.mubr.bf16.gmra.mrb[0].mxu0 %v1100
      %v1941 = vpop.f32.mrb[0].mxu0
      %v1942 = vpop.f32.mrb[0].mxu0
      %v1943 = vpop.f32.mrb[0].mxu0
      %v1944 = vpop.f32.mrb[0].mxu0
      %1945 = vmatprep.mubr.bf16.mxu0 0
      %1946 = vmatmul.mubr.bf16.gmra.mrb[0].mxu0 %v1103
      %v1947 = vpop.f32.mrb[0].mxu0
      %v1948 = vadd.f32 %v1507, %v1947
      %v1949 = vpop.f32.mrb[0].mxu0
      %v1950 = vpop.f32.mrb[0].mxu0
      %v1951 = vadd.f32 %v1510, %v1950
      %v1952 = vpop.f32.mrb[0].mxu0
      %1953 = vmatprep.mubr.bf16.mxu0 0
      %1954 = vmatmul.mubr.bf16.gmra.mrb[0].mxu0 %v1106
      %v1955 = vpop.f32.mrb[0].mxu0
      %v1956 = vadd.f32 %v1515, %v1955
      %v1957 = vpop.f32.mrb[0].mxu0
      %v1958 = vpop.f32.mrb[0].mxu0
      %v1959 = vadd.f32 %v1518, %v1958
      %v1960 = vpop.f32.mrb[0].mxu0
      %1961 = vmatprep.mubr.bf16.mxu0 0
      %1962 = vmatmul.mubr.bf16.gmra.mrb[0].mxu0 %v1109
      %v1963 = vpop.f32.mrb[0].mxu0
      %v1964 = vpop.f32.mrb[0].mxu0
      %v1965 = vpop.f32.mrb[0].mxu0
      %v1966 = vpop.f32.mrb[0].mxu0
      %1967 = vmatprep.mubr.bf16.mxu0 0
      %1968 = vmatmul.mubr.bf16.gmra.mrb[0].mxu0 %v1112
      %v1969 = vpop.f32.mrb[0].mxu0
      %v1970 = vadd.f32 %v1529, %v1969
      %v1971 = vpop.f32.mrb[0].mxu0
      %v1972 = vpop.f32.mrb[0].mxu0
      %v1973 = vadd.f32 %v1532, %v1972
      %v1974 = vpop.f32.mrb[0].mxu0
      %1975 = vmatprep.mubr.bf16.mxu0 0
      %1976 = vmatmul.mubr.bf16.gmra.mrb[0].mxu0 %v1115
      %v1977 = vpop.f32.mrb[0].mxu0
      %v1978 = vadd.f32 %v1537, %v1977
      %v1979 = vpop.f32.mrb[0].mxu0
      %v1980 = vpop.f32.mrb[0].mxu0
      %v1981 = vadd.f32 %v1540, %v1980
      %v1982 = vpop.f32.mrb[0].mxu0
      %1983 = vmatprep.mubr.bf16.mxu0 0
      %1984 = vmatmul.mubr.bf16.gmra.mrb[0].mxu0 %v1118
      %v1985 = vpop.f32.mrb[0].mxu0
      %v1986 = vpop.f32.mrb[0].mxu0
      %v1987 = vpop.f32.mrb[0].mxu0
      %v1988 = vpop.f32.mrb[0].mxu0
      %1989 = vmatprep.mubr.bf16.mxu0 0
      %1990 = vmatmul.mubr.bf16.gmra.mrb[0].mxu0 %v1121
      %v1991 = vpop.f32.mrb[0].mxu0
      %v1992 = vadd.f32 %v1551, %v1991
      %v1993 = vpop.f32.mrb[0].mxu0
      %v1994 = vpop.f32.mrb[0].mxu0
      %v1995 = vadd.f32 %v1554, %v1994
      %v1996 = vpop.f32.mrb[0].mxu0
      %1997 = vmatprep.mubr.bf16.mxu0 0
      %1998 = vmatmul.mubr.bf16.gmra.mrb[0].mxu0 %v1124
      %v1999 = vpop.f32.mrb[0].mxu0
      %v2000 = vadd.f32 %v1559, %v1999
      %v2001 = vpop.f32.mrb[0].mxu0
      %v2002 = vpop.f32.mrb[0].mxu0
      %v2003 = vadd.f32 %v1562, %v2002
      %v2004 = vpop.f32.mrb[0].mxu0
      %2005 = vmatprep.mubr.bf16.mxu0 0
      %2006 = vmatmul.mubr.bf16.gmra.mrb[0].mxu0 %v1127
      %v2007 = vpop.f32.mrb[0].mxu0
      %v2008 = vpop.f32.mrb[0].mxu0
      %v2009 = vpop.f32.mrb[0].mxu0
      %v2010 = vpop.f32.mrb[0].mxu0
      %2011 = vdwg.mxu0
      %v2012 = vld [vmem:[#allocation2 + $0x30] sm:$0xff]
      %v2013 = vld [vmem:[#allocation2 + $0x38] sm:$0xff]
      %v2014 = vld [vmem:[#allocation2 + $0x40] sm:$0xff]
      %v2015 = vld [vmem:[#allocation2 + $0x48] sm:$0xff]
      %v2016 = vld [vmem:[#allocation2 + $0x50] sm:$0xff]
      %v2017 = vld [vmem:[#allocation2 + $0x58] sm:$0xff]
      %v2018 = vld [vmem:[#allocation2 + $0x60] sm:$0xff]
      %v2019 = vld [vmem:[#allocation2 + $0x68] sm:$0xff]
      %v2020 = vld [vmem:[#allocation2 + $0x70] sm:$0xff]
      %v2021 = vld [vmem:[#allocation2 + $0x78] sm:$0xff]
      %v2022 = vld [vmem:[#allocation2 + $0x80] sm:$0xff]
      %v2023 = vld [vmem:[#allocation2 + $0x88] sm:$0xff]
      %v2024 = vld [vmem:[#allocation2 + $0x90] sm:$0xff]
      %v2025 = vld [vmem:[#allocation2 + $0x98] sm:$0xff]
      %v2026 = vld [vmem:[#allocation2 + $0xa0] sm:$0xff]
      %v2027 = vld [vmem:[#allocation2 + $0xa8] sm:$0xff]
      %v2028 = vld [vmem:[#allocation2 + $0xb0] sm:$0xff]
      %v2029 = vld [vmem:[#allocation2 + $0xb8] sm:$0xff]
      %v2030 = vld [vmem:[#allocation2 + $0xc0] sm:$0xff]
      %v2031 = vld [vmem:[#allocation2 + $0xc8] sm:$0xff]
      %v2032 = vld [vmem:[#allocation2 + $0xd0] sm:$0xff]
      %v2033 = vld [vmem:[#allocation2 + $0xd8] sm:$0xff]
      %v2034 = vld [vmem:[#allocation2 + $0xe0] sm:$0xff]
      %v2035 = vld [vmem:[#allocation2 + $0xe8] sm:$0xff]
      %v2036 = vld [vmem:[#allocation2 + $0xf0] sm:$0xff]
      %v2037 = vld [vmem:[#allocation2 + $0xf8] sm:$0xff]
      %v2038 = vld [vmem:[#allocation2 + $0x100] sm:$0xff]
      %v2039 = vld [vmem:[#allocation2 + $0x108] sm:$0xff]
      %v2040 = vld [vmem:[#allocation2 + $0x110] sm:$0xff]
      %v2041 = vld [vmem:[#allocation2 + $0x118] sm:$0xff]
      %v2042 = vld [vmem:[#allocation2 + $0x120] sm:$0xff]
      %v2043 = vld [vmem:[#allocation2 + $0x128] sm:$0xff]
      %v2044 = vld [vmem:[#allocation2 + $0x130] sm:$0xff]
      %v2045 = vld [vmem:[#allocation2 + $0x138] sm:$0xff]
      %v2046 = vld [vmem:[#allocation2 + $0x140] sm:$0xff]
      %v2047 = vld [vmem:[#allocation2 + $0x148] sm:$0xff]
      %v2048 = vld [vmem:[#allocation2 + $0x150] sm:$0xff]
      %v2049 = vld [vmem:[#allocation2 + $0x158] sm:$0xff]
      %v2050 = vld [vmem:[#allocation2 + $0x160] sm:$0xff]
      %v2051 = vld [vmem:[#allocation2 + $0x168] sm:$0xff]
      %v2052 = vld [vmem:[#allocation2 + $0x170] sm:$0xff]
      %v2053 = vld [vmem:[#allocation2 + $0x178] sm:$0xff]
      %v2054 = vld [vmem:[#allocation2 + $0x180] sm:$0xff]
      %v2055 = vld [vmem:[#allocation2 + $0x188] sm:$0xff]
      %v2056 = vld [vmem:[#allocation2 + $0x190] sm:$0xff]
      %v2057 = vld [vmem:[#allocation2 + $0x198] sm:$0xff]
      %v2058 = vld [vmem:[#allocation2 + $0x1a0] sm:$0xff]
      %v2059 = vld [vmem:[#allocation2 + $0x1a8] sm:$0xff]
      %v2060 = vld [vmem:[#allocation2 + $0x1b0] sm:$0xff]
      %v2061 = vld [vmem:[#allocation2 + $0x1b8] sm:$0xff]
      %v2062 = vld [vmem:[#allocation2 + $0x1c0] sm:$0xff]
      %v2063 = vld [vmem:[#allocation2 + $0x1c8] sm:$0xff]
      %v2064 = vld [vmem:[#allocation2 + $0x1d0] sm:$0xff]
      %v2065 = vld [vmem:[#allocation2 + $0x1d8] sm:$0xff]
      %s2066 = scalar_lea.vmem %s2, 24
      %v2067 = vld [vmem:[%s2066] sm:$0xf]
      %v2069 = vsel %vm759, %v2012, 0
      %v2072 = vsel %vm759, %v2013, 0
      %v2075 = vsel %vm759, %v2014, 0
      %v2078 = vsel %vm759, %v2015, 0
      %v2081 = vsel %vm759, %v2016, 0
      %v2084 = vsel %vm759, %v2017, 0
      %v2087 = vsel %vm759, %v2018, 0
      %v2090 = vsel %vm759, %v2019, 0
      %v2093 = vsel %vm759, %v2020, 0
      %v2096 = vsel %vm759, %v2021, 0
      %v2099 = vsel %vm759, %v2022, 0
      %v2102 = vsel %vm759, %v2023, 0
      %v2105 = vsel %vm759, %v2024, 0
      %v2108 = vsel %vm759, %v2025, 0
      %v2111 = vsel %vm759, %v2026, 0
      %v2114 = vsel %vm759, %v2027, 0
      %v2117 = vsel %vm759, %v2028, 0
      %v2120 = vsel %vm759, %v2029, 0
      %v2123 = vsel %vm759, %v2030, 0
      %v2126 = vsel %vm759, %v2031, 0
      %v2129 = vsel %vm759, %v2032, 0
      %v2132 = vsel %vm759, %v2033, 0
      %v2135 = vsel %vm759, %v2034, 0
      %v2138 = vsel %vm759, %v2035, 0
      %v2141 = vsel %vm759, %v2036, 0
      %v2144 = vsel %vm759, %v2037, 0
      %v2147 = vsel %vm759, %v2038, 0
      %v2150 = vsel %vm759, %v2039, 0
      %v2153 = vsel %vm759, %v2040, 0
      %v2156 = vsel %vm759, %v2041, 0
      %v2159 = vsel %vm759, %v2042, 0
      %v2162 = vsel %vm759, %v2043, 0
      %v2165 = vsel %vm759, %v2044, 0
      %v2168 = vsel %vm759, %v2045, 0
      %v2171 = vsel %vm759, %v2046, 0
      %v2174 = vsel %vm759, %v2047, 0
      %v2177 = vsel %vm759, %v2048, 0
      %v2180 = vsel %vm759, %v2049, 0
      %v2183 = vsel %vm759, %v2050, 0
      %v2186 = vsel %vm759, %v2051, 0
      %v2189 = vsel %vm759, %v2052, 0
      %v2192 = vsel %vm759, %v2053, 0
      %v2195 = vsel %vm759, %v2054, 0
      %v2198 = vsel %vm759, %v2055, 0
      %v2201 = vsel %vm759, %v2056, 0
      %v2204 = vsel %vm759, %v2057, 0
      %v2207 = vsel %vm759, %v2058, 0
      %v2210 = vsel %vm759, %v2059, 0
      %v2213 = vsel %vm759, %v2060, 0
      %v2216 = vsel %vm759, %v2061, 0
      %v2219 = vsel %vm759, %v2062, 0
      %v2222 = vsel %vm759, %v2063, 0
      %v2225 = vsel %vm759, %v2064, 0
      %v2228 = vsel %vm759, %v2065, 0
      %v2231 = vsel %vm1138, %v2067, 0
      %2233 = vmatprep.subr.bf16.mxu0 0
      %2234 = vmatpush1.bf16.msra.mxu0 %v2231
      %2235 = vmatprep.subr.bf16.mxu0 0
      %2236 = vmatpush1.bf16.msra.mxu0 0
      %2237 = vmatprep.subr.bf16.mxu0 0
      %2238 = vmatpush1.bf16.msra.mxu0 0
      %2239 = vmatprep.subr.bf16.mxu0 0
      %2240 = vmatpush1.bf16.msra.mxu0 0
      %2241 = vmatprep.subr.bf16.mxu0 0
      %2242 = vmatpush1.bf16.msra.mxu0 0
      %2243 = vmatprep.subr.bf16.mxu0 0
      %2244 = vmatpush1.bf16.msra.mxu0 0
      %2245 = vmatprep.subr.bf16.mxu0 0
      %2246 = vmatpush1.bf16.msra.mxu0 0
      %2247 = vmatprep.subr.bf16.mxu0 0
      %2248 = vmatpush1.bf16.msra.mxu0 0
      %2249 = vmatprep.subr.bf16.mxu0 0
      %2250 = vmatpush1.bf16.msra.mxu0 0
      %2251 = vmatprep.subr.bf16.mxu0 0
      %2252 = vmatpush1.bf16.msra.mxu0 0
      %2253 = vmatprep.subr.bf16.mxu0 0
      %2254 = vmatpush1.bf16.msra.mxu0 0
      %2255 = vmatprep.subr.bf16.mxu0 0
      %2256 = vmatpush1.bf16.msra.mxu0 0
      %2257 = vmatprep.subr.bf16.mxu0 0
      %2258 = vmatpush1.bf16.msra.mxu0 0
      %2259 = vmatprep.subr.bf16.mxu0 0
      %2260 = vmatpush1.bf16.msra.mxu0 0
      %2261 = vmatprep.subr.bf16.mxu0 0
      %2262 = vmatpush1.bf16.msra.mxu0 0
      %2263 = vmatprep.subr.bf16.mxu0 0
      %2264 = vmatpush1.bf16.msra.mxu0 0
      %2265 = vmatprep.mubr.bf16.mxu0 0
      %2266 = vmatmul.mubr.bf16.gmra.mrb[0].mxu0 %v2069
      %v2267 = vpop.f32.mrb[0].mxu0
      %v2268 = vadd.f32 0.0, %v2267
      %v2269 = vpop.f32.mrb[0].mxu0
      %v2270 = vpop.f32.mrb[0].mxu0
      %v2271 = vadd.f32 0.0, %v2270
      %v2272 = vpop.f32.mrb[0].mxu0
      %2273 = vmatprep.mubr.bf16.mxu0 0
      %2274 = vmatmul.mubr.bf16.gmra.mrb[0].mxu0 %v2072
      %v2275 = vpop.f32.mrb[0].mxu0
      %v2276 = vadd.f32 0.0, %v2275
      %v2277 = vpop.f32.mrb[0].mxu0
      %v2278 = vpop.f32.mrb[0].mxu0
      %v2279 = vadd.f32 0.0, %v2278
      %v2280 = vpop.f32.mrb[0].mxu0
      %2281 = vmatprep.mubr.bf16.mxu0 0
      %2282 = vmatmul.mubr.bf16.gmra.mrb[0].mxu0 %v2075
      %v2283 = vpop.f32.mrb[0].mxu0
      %v2284 = vpop.f32.mrb[0].mxu0
      %v2285 = vpop.f32.mrb[0].mxu0
      %v2286 = vpop.f32.mrb[0].mxu0
      %2287 = vmatprep.mubr.bf16.mxu0 0
      %2288 = vmatmul.mubr.bf16.gmra.mrb[0].mxu0 %v2078
      %v2289 = vpop.f32.mrb[0].mxu0
      %v2290 = vadd.f32 0.0, %v2289
      %v2291 = vpop.f32.mrb[0].mxu0
      %v2292 = vpop.f32.mrb[0].mxu0
      %v2293 = vadd.f32 0.0, %v2292
      %v2294 = vpop.f32.mrb[0].mxu0
      %2295 = vmatprep.mubr.bf16.mxu0 0
      %2296 = vmatmul.mubr.bf16.gmra.mrb[0].mxu0 %v2081
      %v2297 = vpop.f32.mrb[0].mxu0
      %v2298 = vadd.f32 0.0, %v2297
      %v2299 = vpop.f32.mrb[0].mxu0
      %v2300 = vpop.f32.mrb[0].mxu0
      %v2301 = vadd.f32 0.0, %v2300
      %v2302 = vpop.f32.mrb[0].mxu0
      %2303 = vmatprep.mubr.bf16.mxu0 0
      %2304 = vmatmul.mubr.bf16.gmra.mrb[0].mxu0 %v2084
      %v2305 = vpop.f32.mrb[0].mxu0
      %v2306 = vpop.f32.mrb[0].mxu0
      %v2307 = vpop.f32.mrb[0].mxu0
      %v2308 = vpop.f32.mrb[0].mxu0
      %2309 = vmatprep.mubr.bf16.mxu0 0
      %2310 = vmatmul.mubr.bf16.gmra.mrb[0].mxu0 %v2087
      %v2311 = vpop.f32.mrb[0].mxu0
      %v2312 = vadd.f32 0.0, %v2311
      %v2313 = vpop.f32.mrb[0].mxu0
      %v2314 = vpop.f32.mrb[0].mxu0
      %v2315 = vadd.f32 0.0, %v2314
      %v2316 = vpop.f32.mrb[0].mxu0
      %2317 = vmatprep.mubr.bf16.mxu0 0
      %2318 = vmatmul.mubr.bf16.gmra.mrb[0].mxu0 %v2090
      %v2319 = vpop.f32.mrb[0].mxu0
      %v2320 = vadd.f32 0.0, %v2319
      %v2321 = vpop.f32.mrb[0].mxu0
      %v2322 = vpop.f32.mrb[0].mxu0
      %v2323 = vadd.f32 0.0, %v2322
      %v2324 = vpop.f32.mrb[0].mxu0
      %2325 = vmatprep.mubr.bf16.mxu0 0
      %2326 = vmatmul.mubr.bf16.gmra.mrb[0].mxu0 %v2093
      %v2327 = vpop.f32.mrb[0].mxu0
      %v2328 = vpop.f32.mrb[0].mxu0
      %v2329 = vpop.f32.mrb[0].mxu0
      %v2330 = vpop.f32.mrb[0].mxu0
      %2331 = vmatprep.mubr.bf16.mxu0 0
      %2332 = vmatmul.mubr.bf16.gmra.mrb[0].mxu0 %v2096
      %v2333 = vpop.f32.mrb[0].mxu0
      %v2334 = vadd.f32 0.0, %v2333
      %v2335 = vpop.f32.mrb[0].mxu0
      %v2336 = vpop.f32.mrb[0].mxu0
      %v2337 = vadd.f32 0.0, %v2336
      %v2338 = vpop.f32.mrb[0].mxu0
      %2339 = vmatprep.mubr.bf16.mxu0 0
      %2340 = vmatmul.mubr.bf16.gmra.mrb[0].mxu0 %v2099
      %v2341 = vpop.f32.mrb[0].mxu0
      %v2342 = vadd.f32 0.0, %v2341
      %v2343 = vpop.f32.mrb[0].mxu0
      %v2344 = vpop.f32.mrb[0].mxu0
      %v2345 = vadd.f32 0.0, %v2344
      %v2346 = vpop.f32.mrb[0].mxu0
      %2347 = vmatprep.mubr.bf16.mxu0 0
      %2348 = vmatmul.mubr.bf16.gmra.mrb[0].mxu0 %v2102
      %v2349 = vpop.f32.mrb[0].mxu0
      %v2350 = vpop.f32.mrb[0].mxu0
      %v2351 = vpop.f32.mrb[0].mxu0
      %v2352 = vpop.f32.mrb[0].mxu0
      %2353 = vmatprep.mubr.bf16.mxu0 0
      %2354 = vmatmul.mubr.bf16.gmra.mrb[0].mxu0 %v2105
      %v2355 = vpop.f32.mrb[0].mxu0
      %v2356 = vadd.f32 0.0, %v2355
      %v2357 = vpop.f32.mrb[0].mxu0
      %v2358 = vpop.f32.mrb[0].mxu0
      %v2359 = vadd.f32 0.0, %v2358
      %v2360 = vpop.f32.mrb[0].mxu0
      %2361 = vmatprep.mubr.bf16.mxu0 0
      %2362 = vmatmul.mubr.bf16.gmra.mrb[0].mxu0 %v2108
      %v2363 = vpop.f32.mrb[0].mxu0
      %v2364 = vadd.f32 0.0, %v2363
      %v2365 = vpop.f32.mrb[0].mxu0
      %v2366 = vpop.f32.mrb[0].mxu0
      %v2367 = vadd.f32 0.0, %v2366
      %v2368 = vpop.f32.mrb[0].mxu0
      %2369 = vmatprep.mubr.bf16.mxu0 0
      %2370 = vmatmul.mubr.bf16.gmra.mrb[0].mxu0 %v2111
      %v2371 = vpop.f32.mrb[0].mxu0
      %v2372 = vpop.f32.mrb[0].mxu0
      %v2373 = vpop.f32.mrb[0].mxu0
      %v2374 = vpop.f32.mrb[0].mxu0
      %2375 = vmatprep.mubr.bf16.mxu0 0
      %2376 = vmatmul.mubr.bf16.gmra.mrb[0].mxu0 %v2114
      %v2377 = vpop.f32.mrb[0].mxu0
      %v2378 = vadd.f32 0.0, %v2377
      %v2379 = vpop.f32.mrb[0].mxu0
      %v2380 = vpop.f32.mrb[0].mxu0
      %v2381 = vadd.f32 0.0, %v2380
      %v2382 = vpop.f32.mrb[0].mxu0
      %2383 = vmatprep.mubr.bf16.mxu0 0
      %2384 = vmatmul.mubr.bf16.gmra.mrb[0].mxu0 %v2117
      %v2385 = vpop.f32.mrb[0].mxu0
      %v2386 = vadd.f32 0.0, %v2385
      %v2387 = vpop.f32.mrb[0].mxu0
      %v2388 = vpop.f32.mrb[0].mxu0
      %v2389 = vadd.f32 0.0, %v2388
      %v2390 = vpop.f32.mrb[0].mxu0
      %2391 = vmatprep.mubr.bf16.mxu0 0
      %2392 = vmatmul.mubr.bf16.gmra.mrb[0].mxu0 %v2120
      %v2393 = vpop.f32.mrb[0].mxu0
      %v2394 = vpop.f32.mrb[0].mxu0
      %v2395 = vpop.f32.mrb[0].mxu0
      %v2396 = vpop.f32.mrb[0].mxu0
      %2397 = vmatprep.mubr.bf16.mxu0 0
      %2398 = vmatmul.mubr.bf16.gmra.mrb[0].mxu0 %v2123
      %v2399 = vpop.f32.mrb[0].mxu0
      %v2400 = vadd.f32 0.0, %v2399
      %v2401 = vpop.f32.mrb[0].mxu0
      %v2402 = vpop.f32.mrb[0].mxu0
      %v2403 = vadd.f32 0.0, %v2402
      %v2404 = vpop.f32.mrb[0].mxu0
      %2405 = vmatprep.mubr.bf16.mxu0 0
      %2406 = vmatmul.mubr.bf16.gmra.mrb[0].mxu0 %v2126
      %v2407 = vpop.f32.mrb[0].mxu0
      %v2408 = vadd.f32 0.0, %v2407
      %v2409 = vpop.f32.mrb[0].mxu0
      %v2410 = vpop.f32.mrb[0].mxu0
      %v2411 = vadd.f32 0.0, %v2410
      %v2412 = vpop.f32.mrb[0].mxu0
      %2413 = vmatprep.mubr.bf16.mxu0 0
      %2414 = vmatmul.mubr.bf16.gmra.mrb[0].mxu0 %v2129
      %v2415 = vpop.f32.mrb[0].mxu0
      %v2416 = vpop.f32.mrb[0].mxu0
      %v2417 = vpop.f32.mrb[0].mxu0
      %v2418 = vpop.f32.mrb[0].mxu0
      %2419 = vmatprep.mubr.bf16.mxu0 0
      %2420 = vmatmul.mubr.bf16.gmra.mrb[0].mxu0 %v2132
      %v2421 = vpop.f32.mrb[0].mxu0
      %v2422 = vadd.f32 0.0, %v2421
      %v2423 = vpop.f32.mrb[0].mxu0
      %v2424 = vpop.f32.mrb[0].mxu0
      %v2425 = vadd.f32 0.0, %v2424
      %v2426 = vpop.f32.mrb[0].mxu0
      %2427 = vmatprep.mubr.bf16.mxu0 0
      %2428 = vmatmul.mubr.bf16.gmra.mrb[0].mxu0 %v2135
      %v2429 = vpop.f32.mrb[0].mxu0
      %v2430 = vadd.f32 0.0, %v2429
      %v2431 = vpop.f32.mrb[0].mxu0
      %v2432 = vpop.f32.mrb[0].mxu0
      %v2433 = vadd.f32 0.0, %v2432
      %v2434 = vpop.f32.mrb[0].mxu0
      %2435 = vmatprep.mubr.bf16.mxu0 0
      %2436 = vmatmul.mubr.bf16.gmra.mrb[0].mxu0 %v2138
      %v2437 = vpop.f32.mrb[0].mxu0
      %v2438 = vpop.f32.mrb[0].mxu0
      %v2439 = vpop.f32.mrb[0].mxu0
      %v2440 = vpop.f32.mrb[0].mxu0
      %2441 = vmatprep.mubr.bf16.mxu0 0
      %2442 = vmatmul.mubr.bf16.gmra.mrb[0].mxu0 %v2141
      %v2443 = vpop.f32.mrb[0].mxu0
      %v2444 = vadd.f32 0.0, %v2443
      %v2445 = vpop.f32.mrb[0].mxu0
      %v2446 = vpop.f32.mrb[0].mxu0
      %v2447 = vadd.f32 0.0, %v2446
      %v2448 = vpop.f32.mrb[0].mxu0
      %2449 = vmatprep.mubr.bf16.mxu0 0
      %2450 = vmatmul.mubr.bf16.gmra.mrb[0].mxu0 %v2144
      %v2451 = vpop.f32.mrb[0].mxu0
      %v2452 = vadd.f32 0.0, %v2451
      %v2453 = vpop.f32.mrb[0].mxu0
      %v2454 = vpop.f32.mrb[0].mxu0
      %v2455 = vadd.f32 0.0, %v2454
      %v2456 = vpop.f32.mrb[0].mxu0
      %2457 = vmatprep.mubr.bf16.mxu0 0
      %2458 = vmatmul.mubr.bf16.gmra.mrb[0].mxu0 %v2147
      %v2459 = vpop.f32.mrb[0].mxu0
      %v2460 = vpop.f32.mrb[0].mxu0
      %v2461 = vpop.f32.mrb[0].mxu0
      %v2462 = vpop.f32.mrb[0].mxu0
      %2463 = vmatprep.mubr.bf16.mxu0 0
      %2464 = vmatmul.mubr.bf16.gmra.mrb[0].mxu0 %v2150
      %v2465 = vpop.f32.mrb[0].mxu0
      %v2466 = vadd.f32 0.0, %v2465
      %v2467 = vpop.f32.mrb[0].mxu0
      %v2468 = vpop.f32.mrb[0].mxu0
      %v2469 = vadd.f32 0.0, %v2468
      %v2470 = vpop.f32.mrb[0].mxu0
      %2471 = vmatprep.mubr.bf16.mxu0 0
      %2472 = vmatmul.mubr.bf16.gmra.mrb[0].mxu0 %v2153
      %v2473 = vpop.f32.mrb[0].mxu0
      %v2474 = vadd.f32 0.0, %v2473
      %v2475 = vpop.f32.mrb[0].mxu0
      %v2476 = vpop.f32.mrb[0].mxu0
      %v2477 = vadd.f32 0.0, %v2476
      %v2478 = vpop.f32.mrb[0].mxu0
      %2479 = vmatprep.mubr.bf16.mxu0 0
      %2480 = vmatmul.mubr.bf16.gmra.mrb[0].mxu0 %v2156
      %v2481 = vpop.f32.mrb[0].mxu0
      %v2482 = vpop.f32.mrb[0].mxu0
      %v2483 = vpop.f32.mrb[0].mxu0
      %v2484 = vpop.f32.mrb[0].mxu0
      %2485 = vmatprep.mubr.bf16.mxu0 0
      %2486 = vmatmul.mubr.bf16.gmra.mrb[0].mxu0 %v2159
      %v2487 = vpop.f32.mrb[0].mxu0
      %v2488 = vadd.f32 0.0, %v2487
      %v2489 = vpop.f32.mrb[0].mxu0
      %v2490 = vpop.f32.mrb[0].mxu0
      %v2491 = vadd.f32 0.0, %v2490
      %v2492 = vpop.f32.mrb[0].mxu0
      %2493 = vmatprep.mubr.bf16.mxu0 0
      %2494 = vmatmul.mubr.bf16.gmra.mrb[0].mxu0 %v2162
      %v2495 = vpop.f32.mrb[0].mxu0
      %v2496 = vadd.f32 0.0, %v2495
      %v2497 = vpop.f32.mrb[0].mxu0
      %v2498 = vpop.f32.mrb[0].mxu0
      %v2499 = vadd.f32 0.0, %v2498
      %v2500 = vpop.f32.mrb[0].mxu0
      %2501 = vmatprep.mubr.bf16.mxu0 0
      %2502 = vmatmul.mubr.bf16.gmra.mrb[0].mxu0 %v2165
      %v2503 = vpop.f32.mrb[0].mxu0
      %v2504 = vpop.f32.mrb[0].mxu0
      %v2505 = vpop.f32.mrb[0].mxu0
      %v2506 = vpop.f32.mrb[0].mxu0
      %2507 = vmatprep.mubr.bf16.mxu0 0
      %2508 = vmatmul.mubr.bf16.gmra.mrb[0].mxu0 %v2168
      %v2509 = vpop.f32.mrb[0].mxu0
      %v2510 = vadd.f32 0.0, %v2509
      %v2511 = vpop.f32.mrb[0].mxu0
      %v2512 = vpop.f32.mrb[0].mxu0
      %v2513 = vadd.f32 0.0, %v2512
      %v2514 = vpop.f32.mrb[0].mxu0
      %2515 = vmatprep.mubr.bf16.mxu0 0
      %2516 = vmatmul.mubr.bf16.gmra.mrb[0].mxu0 %v2171
      %v2517 = vpop.f32.mrb[0].mxu0
      %v2518 = vadd.f32 0.0, %v2517
      %v2519 = vpop.f32.mrb[0].mxu0
      %v2520 = vpop.f32.mrb[0].mxu0
      %v2521 = vadd.f32 0.0, %v2520
      %v2522 = vpop.f32.mrb[0].mxu0
      %2523 = vmatprep.mubr.bf16.mxu0 0
      %2524 = vmatmul.mubr.bf16.gmra.mrb[0].mxu0 %v2174
      %v2525 = vpop.f32.mrb[0].mxu0
      %v2526 = vpop.f32.mrb[0].mxu0
      %v2527 = vpop.f32.mrb[0].mxu0
      %v2528 = vpop.f32.mrb[0].mxu0
      %2529 = vmatprep.mubr.bf16.mxu0 0
      %2530 = vmatmul.mubr.bf16.gmra.mrb[0].mxu0 %v2177
      %v2531 = vpop.f32.mrb[0].mxu0
      %v2532 = vadd.f32 0.0, %v2531
      %v2533 = vpop.f32.mrb[0].mxu0
      %v2534 = vpop.f32.mrb[0].mxu0
      %v2535 = vadd.f32 0.0, %v2534
      %v2536 = vpop.f32.mrb[0].mxu0
      %2537 = vmatprep.mubr.bf16.mxu0 0
      %2538 = vmatmul.mubr.bf16.gmra.mrb[0].mxu0 %v2180
      %v2539 = vpop.f32.mrb[0].mxu0
      %v2540 = vadd.f32 0.0, %v2539
      %v2541 = vpop.f32.mrb[0].mxu0
      %v2542 = vpop.f32.mrb[0].mxu0
      %v2543 = vadd.f32 0.0, %v2542
      %v2544 = vpop.f32.mrb[0].mxu0
      %2545 = vmatprep.mubr.bf16.mxu0 0
      %2546 = vmatmul.mubr.bf16.gmra.mrb[0].mxu0 %v2183
      %v2547 = vpop.f32.mrb[0].mxu0
      %v2548 = vpop.f32.mrb[0].mxu0
      %v2549 = vpop.f32.mrb[0].mxu0
      %v2550 = vpop.f32.mrb[0].mxu0
      %2551 = vmatprep.mubr.bf16.mxu0 0
      %2552 = vmatmul.mubr.bf16.gmra.mrb[0].mxu0 %v2186
      %v2553 = vpop.f32.mrb[0].mxu0
      %v2554 = vadd.f32 0.0, %v2553
      %v2555 = vpop.f32.mrb[0].mxu0
      %v2556 = vpop.f32.mrb[0].mxu0
      %v2557 = vadd.f32 0.0, %v2556
      %v2558 = vpop.f32.mrb[0].mxu0
      %2559 = vmatprep.mubr.bf16.mxu0 0
      %2560 = vmatmul.mubr.bf16.gmra.mrb[0].mxu0 %v2189
      %v2561 = vpop.f32.mrb[0].mxu0
      %v2562 = vadd.f32 0.0, %v2561
      %v2563 = vpop.f32.mrb[0].mxu0
      %v2564 = vpop.f32.mrb[0].mxu0
      %v2565 = vadd.f32 0.0, %v2564
      %v2566 = vpop.f32.mrb[0].mxu0
      %2567 = vmatprep.mubr.bf16.mxu0 0
      %2568 = vmatmul.mubr.bf16.gmra.mrb[0].mxu0 %v2192
      %v2569 = vpop.f32.mrb[0].mxu0
      %v2570 = vpop.f32.mrb[0].mxu0
      %v2571 = vpop.f32.mrb[0].mxu0
      %v2572 = vpop.f32.mrb[0].mxu0
      %2573 = vmatprep.mubr.bf16.mxu0 0
      %2574 = vmatmul.mubr.bf16.gmra.mrb[0].mxu0 %v2195
      %v2575 = vpop.f32.mrb[0].mxu0
      %v2576 = vadd.f32 0.0, %v2575
      %v2577 = vpop.f32.mrb[0].mxu0
      %v2578 = vpop.f32.mrb[0].mxu0
      %v2579 = vadd.f32 0.0, %v2578
      %v2580 = vpop.f32.mrb[0].mxu0
      %2581 = vmatprep.mubr.bf16.mxu0 0
      %2582 = vmatmul.mubr.bf16.gmra.mrb[0].mxu0 %v2198
      %v2583 = vpop.f32.mrb[0].mxu0
      %v2584 = vadd.f32 0.0, %v2583
      %v2585 = vpop.f32.mrb[0].mxu0
      %v2586 = vpop.f32.mrb[0].mxu0
      %v2587 = vadd.f32 0.0, %v2586
      %v2588 = vpop.f32.mrb[0].mxu0
      %2589 = vmatprep.mubr.bf16.mxu0 0
      %2590 = vmatmul.mubr.bf16.gmra.mrb[0].mxu0 %v2201
      %v2591 = vpop.f32.mrb[0].mxu0
      %v2592 = vpop.f32.mrb[0].mxu0
      %v2593 = vpop.f32.mrb[0].mxu0
      %v2594 = vpop.f32.mrb[0].mxu0
      %2595 = vmatprep.mubr.bf16.mxu0 0
      %2596 = vmatmul.mubr.bf16.gmra.mrb[0].mxu0 %v2204
      %v2597 = vpop.f32.mrb[0].mxu0
      %v2598 = vadd.f32 0.0, %v2597
      %v2599 = vpop.f32.mrb[0].mxu0
      %v2600 = vpop.f32.mrb[0].mxu0
      %v2601 = vadd.f32 0.0, %v2600
      %v2602 = vpop.f32.mrb[0].mxu0
      %2603 = vmatprep.mubr.bf16.mxu0 0
      %2604 = vmatmul.mubr.bf16.gmra.mrb[0].mxu0 %v2207
      %v2605 = vpop.f32.mrb[0].mxu0
      %v2606 = vadd.f32 0.0, %v2605
      %v2607 = vpop.f32.mrb[0].mxu0
      %v2608 = vpop.f32.mrb[0].mxu0
      %v2609 = vadd.f32 0.0, %v2608
      %v2610 = vpop.f32.mrb[0].mxu0
      %2611 = vmatprep.mubr.bf16.mxu0 0
      %2612 = vmatmul.mubr.bf16.gmra.mrb[0].mxu0 %v2210
      %v2613 = vpop.f32.mrb[0].mxu0
      %v2614 = vpop.f32.mrb[0].mxu0
      %v2615 = vpop.f32.mrb[0].mxu0
      %v2616 = vpop.f32.mrb[0].mxu0
      %2617 = vmatprep.mubr.bf16.mxu0 0
      %2618 = vmatmul.mubr.bf16.gmra.mrb[0].mxu0 %v2213
      %v2619 = vpop.f32.mrb[0].mxu0
      %v2620 = vadd.f32 0.0, %v2619
      %v2621 = vpop.f32.mrb[0].mxu0
      %v2622 = vpop.f32.mrb[0].mxu0
      %v2623 = vadd.f32 0.0, %v2622
      %v2624 = vpop.f32.mrb[0].mxu0
      %2625 = vmatprep.mubr.bf16.mxu0 0
      %2626 = vmatmul.mubr.bf16.gmra.mrb[0].mxu0 %v2216
      %v2627 = vpop.f32.mrb[0].mxu0
      %v2628 = vadd.f32 0.0, %v2627
      %v2629 = vpop.f32.mrb[0].mxu0
      %v2630 = vpop.f32.mrb[0].mxu0
      %v2631 = vadd.f32 0.0, %v2630
      %v2632 = vpop.f32.mrb[0].mxu0
      %2633 = vmatprep.mubr.bf16.mxu0 0
      %2634 = vmatmul.mubr.bf16.gmra.mrb[0].mxu0 %v2219
      %v2635 = vpop.f32.mrb[0].mxu0
      %v2636 = vpop.f32.mrb[0].mxu0
      %v2637 = vpop.f32.mrb[0].mxu0
      %v2638 = vpop.f32.mrb[0].mxu0
      %2639 = vmatprep.mubr.bf16.mxu0 0
      %2640 = vmatmul.mubr.bf16.gmra.mrb[0].mxu0 %v2222
      %v2641 = vpop.f32.mrb[0].mxu0
      %v2642 = vadd.f32 0.0, %v2641
      %v2643 = vpop.f32.mrb[0].mxu0
      %v2644 = vpop.f32.mrb[0].mxu0
      %v2645 = vadd.f32 0.0, %v2644
      %v2646 = vpop.f32.mrb[0].mxu0
      %2647 = vmatprep.mubr.bf16.mxu0 0
      %2648 = vmatmul.mubr.bf16.gmra.mrb[0].mxu0 %v2225
      %v2649 = vpop.f32.mrb[0].mxu0
      %v2650 = vadd.f32 0.0, %v2649
      %v2651 = vpop.f32.mrb[0].mxu0
      %v2652 = vpop.f32.mrb[0].mxu0
      %v2653 = vadd.f32 0.0, %v2652
      %v2654 = vpop.f32.mrb[0].mxu0
      %2655 = vmatprep.mubr.bf16.mxu0 0
      %2656 = vmatmul.mubr.bf16.gmra.mrb[0].mxu0 %v2228
      %v2657 = vpop.f32.mrb[0].mxu0
      %v2658 = vpop.f32.mrb[0].mxu0
      %v2659 = vpop.f32.mrb[0].mxu0
      %v2660 = vpop.f32.mrb[0].mxu0
      %2661 = vdwg.mxu0
      %v2662 = vadd.f32 %v1618, %v2268
      %v2663 = vadd.f32 %v1621, %v2271
      %v2664 = vadd.f32 %v1626, %v2276
      %v2665 = vadd.f32 %v1629, %v2279
      %v2666 = vadd.f32 %v1640, %v2290
      %v2667 = vadd.f32 %v1643, %v2293
      %v2668 = vadd.f32 %v1648, %v2298
      %v2669 = vadd.f32 %v1651, %v2301
      %v2670 = vadd.f32 %v1662, %v2312
      %v2671 = vadd.f32 %v1665, %v2315
      %v2672 = vadd.f32 %v1670, %v2320
      %v2673 = vadd.f32 %v1673, %v2323
      %v2674 = vadd.f32 %v1684, %v2334
      %v2675 = vadd.f32 %v1687, %v2337
      %v2676 = vadd.f32 %v1692, %v2342
      %v2677 = vadd.f32 %v1695, %v2345
      %v2678 = vadd.f32 %v1706, %v2356
      %v2679 = vadd.f32 %v1709, %v2359
      %v2680 = vadd.f32 %v1714, %v2364
      %v2681 = vadd.f32 %v1717, %v2367
      %v2682 = vadd.f32 %v1728, %v2378
      %v2683 = vadd.f32 %v1731, %v2381
      %v2684 = vadd.f32 %v1736, %v2386
      %v2685 = vadd.f32 %v1739, %v2389
      %v2686 = vadd.f32 %v1750, %v2400
      %v2687 = vadd.f32 %v1753, %v2403
      %v2688 = vadd.f32 %v1758, %v2408
      %v2689 = vadd.f32 %v1761, %v2411
      %v2690 = vadd.f32 %v1772, %v2422
      %v2691 = vadd.f32 %v1775, %v2425
      %v2692 = vadd.f32 %v1780, %v2430
      %v2693 = vadd.f32 %v1783, %v2433
      %v2694 = vadd.f32 %v1794, %v2444
      %v2695 = vadd.f32 %v1797, %v2447
      %v2696 = vadd.f32 %v1802, %v2452
      %v2697 = vadd.f32 %v1805, %v2455
      %v2698 = vadd.f32 %v1816, %v2466
      %v2699 = vadd.f32 %v1819, %v2469
      %v2700 = vadd.f32 %v1824, %v2474
      %v2701 = vadd.f32 %v1827, %v2477
      %v2702 = vadd.f32 %v1838, %v2488
      %v2703 = vadd.f32 %v1841, %v2491
      %v2704 = vadd.f32 %v1846, %v2496
      %v2705 = vadd.f32 %v1849, %v2499
      %v2706 = vadd.f32 %v1860, %v2510
      %v2707 = vadd.f32 %v1863, %v2513
      %v2708 = vadd.f32 %v1868, %v2518
      %v2709 = vadd.f32 %v1871, %v2521
      %v2710 = vadd.f32 %v1882, %v2532
      %v2711 = vadd.f32 %v1885, %v2535
      %v2712 = vadd.f32 %v1890, %v2540
      %v2713 = vadd.f32 %v1893, %v2543
      %v2714 = vadd.f32 %v1904, %v2554
      %v2715 = vadd.f32 %v1907, %v2557
      %v2716 = vadd.f32 %v1912, %v2562
      %v2717 = vadd.f32 %v1915, %v2565
      %v2718 = vadd.f32 %v1926, %v2576
      %v2719 = vadd.f32 %v1929, %v2579
      %v2720 = vadd.f32 %v1934, %v2584
      %v2721 = vadd.f32 %v1937, %v2587
      %v2722 = vadd.f32 %v1948, %v2598
      %v2723 = vadd.f32 %v1951, %v2601
      %v2724 = vadd.f32 %v1956, %v2606
      %v2725 = vadd.f32 %v1959, %v2609
      %v2726 = vadd.f32 %v1970, %v2620
      %v2727 = vadd.f32 %v1973, %v2623
      %v2728 = vadd.f32 %v1978, %v2628
      %v2729 = vadd.f32 %v1981, %v2631
      %v2730 = vadd.f32 %v1992, %v2642
      %v2731 = vadd.f32 %v1995, %v2645
      %v2732 = vadd.f32 %v2000, %v2650
      %v2733 = vadd.f32 %v2003, %v2653
      %s2734 = scalar_lea.vmem %s2, 4
      %v2735 = vld [vmem:[%s2734] sm:$0xf]
      %s2736 = scalar_lea.vmem %s2, 16
      %v2737 = vld [vmem:[%s2736] sm:$0xf]
      %v2739 = vsel %vm1138, %v2737, 0
      %2741 = vmatprep.subr.bf16.mxu0 0
      %2742 = vmatpush1.bf16.msra.mxu0 %v2739
      %2743 = vmatprep.subr.bf16.mxu0 0
      %2744 = vmatpush1.bf16.msra.mxu0 0
      %2745 = vmatprep.subr.bf16.mxu0 0
      %2746 = vmatpush1.bf16.msra.mxu0 0
      %2747 = vmatprep.subr.bf16.mxu0 0
      %2748 = vmatpush1.bf16.msra.mxu0 0
      %2749 = vmatprep.subr.bf16.mxu0 0
      %2750 = vmatpush1.bf16.msra.mxu0 0
      %2751 = vmatprep.subr.bf16.mxu0 0
      %2752 = vmatpush1.bf16.msra.mxu0 0
      %2753 = vmatprep.subr.bf16.mxu0 0
      %2754 = vmatpush1.bf16.msra.mxu0 0
      %2755 = vmatprep.subr.bf16.mxu0 0
      %2756 = vmatpush1.bf16.msra.mxu0 0
      %2757 = vmatprep.subr.bf16.mxu0 0
      %2758 = vmatpush1.bf16.msra.mxu0 0
      %2759 = vmatprep.subr.bf16.mxu0 0
      %2760 = vmatpush1.bf16.msra.mxu0 0
      %2761 = vmatprep.subr.bf16.mxu0 0
      %2762 = vmatpush1.bf16.msra.mxu0 0
      %2763 = vmatprep.subr.bf16.mxu0 0
      %2764 = vmatpush1.bf16.msra.mxu0 0
      %2765 = vmatprep.subr.bf16.mxu0 0
      %2766 = vmatpush1.bf16.msra.mxu0 0
      %2767 = vmatprep.subr.bf16.mxu0 0
      %2768 = vmatpush1.bf16.msra.mxu0 0
      %2769 = vmatprep.subr.bf16.mxu0 0
      %2770 = vmatpush1.bf16.msra.mxu0 0
      %2771 = vmatprep.subr.bf16.mxu0 0
      %2772 = vmatpush1.bf16.msra.mxu0 0
      %2773 = vmatprep.mubr.bf16.mxu0 0
      %2774 = vmatmul.mubr.bf16.gmra.mrb[0].mxu0 %v977
      %v2775 = vpop.f32.mrb[0].mxu0
      %v2776 = vadd.f32 0.0, %v2775
      %v2777 = vpop.f32.mrb[0].mxu0
      %v2778 = vpop.f32.mrb[0].mxu0
      %v2779 = vadd.f32 0.0, %v2778
      %v2780 = vpop.f32.mrb[0].mxu0
      %2781 = vmatprep.mubr.bf16.mxu0 0
      %2782 = vmatmul.mubr.bf16.gmra.mrb[0].mxu0 %v980
      %v2783 = vpop.f32.mrb[0].mxu0
      %v2784 = vadd.f32 0.0, %v2783
      %v2785 = vpop.f32.mrb[0].mxu0
      %v2786 = vpop.f32.mrb[0].mxu0
      %v2787 = vadd.f32 0.0, %v2786
      %v2788 = vpop.f32.mrb[0].mxu0
      %2789 = vmatprep.mubr.bf16.mxu0 0
      %2790 = vmatmul.mubr.bf16.gmra.mrb[0].mxu0 %v983
      %v2791 = vpop.f32.mrb[0].mxu0
      %v2792 = vadd.f32 0.0, %v2791
      %v2793 = vpop.f32.mrb[0].mxu0
      %v2794 = vpop.f32.mrb[0].mxu0
      %v2795 = vpop.f32.mrb[0].mxu0
      %2796 = vmatprep.mubr.bf16.mxu0 0
      %2797 = vmatmul.mubr.bf16.gmra.mrb[0].mxu0 %v986
      %v2798 = vpop.f32.mrb[0].mxu0
      %v2799 = vadd.f32 0.0, %v2798
      %v2800 = vpop.f32.mrb[0].mxu0
      %v2801 = vpop.f32.mrb[0].mxu0
      %v2802 = vadd.f32 0.0, %v2801
      %v2803 = vpop.f32.mrb[0].mxu0
      %2804 = vmatprep.mubr.bf16.mxu0 0
      %2805 = vmatmul.mubr.bf16.gmra.mrb[0].mxu0 %v989
      %v2806 = vpop.f32.mrb[0].mxu0
      %v2807 = vadd.f32 0.0, %v2806
      %v2808 = vpop.f32.mrb[0].mxu0
      %v2809 = vpop.f32.mrb[0].mxu0
      %v2810 = vadd.f32 0.0, %v2809
      %v2811 = vpop.f32.mrb[0].mxu0
      %2812 = vmatprep.mubr.bf16.mxu0 0
      %2813 = vmatmul.mubr.bf16.gmra.mrb[0].mxu0 %v992
      %v2814 = vpop.f32.mrb[0].mxu0
      %v2815 = vadd.f32 0.0, %v2814
      %v2816 = vpop.f32.mrb[0].mxu0
      %v2817 = vpop.f32.mrb[0].mxu0
      %v2818 = vpop.f32.mrb[0].mxu0
      %2819 = vmatprep.mubr.bf16.mxu0 0
      %2820 = vmatmul.mubr.bf16.gmra.mrb[0].mxu0 %v995
      %v2821 = vpop.f32.mrb[0].mxu0
      %v2822 = vadd.f32 0.0, %v2821
      %v2823 = vpop.f32.mrb[0].mxu0
      %v2824 = vpop.f32.mrb[0].mxu0
      %v2825 = vadd.f32 0.0, %v2824
      %v2826 = vpop.f32.mrb[0].mxu0
      %2827 = vmatprep.mubr.bf16.mxu0 0
      %2828 = vmatmul.mubr.bf16.gmra.mrb[0].mxu0 %v998
      %v2829 = vpop.f32.mrb[0].mxu0
      %v2830 = vadd.f32 0.0, %v2829
      %v2831 = vpop.f32.mrb[0].mxu0
      %v2832 = vpop.f32.mrb[0].mxu0
      %v2833 = vadd.f32 0.0, %v2832
      %v2834 = vpop.f32.mrb[0].mxu0
      %2835 = vmatprep.mubr.bf16.mxu0 0
      %2836 = vmatmul.mubr.bf16.gmra.mrb[0].mxu0 %v1001
      %v2837 = vpop.f32.mrb[0].mxu0
      %v2838 = vadd.f32 0.0, %v2837
      %v2839 = vpop.f32.mrb[0].mxu0
      %v2840 = vpop.f32.mrb[0].mxu0
      %v2841 = vpop.f32.mrb[0].mxu0
      %2842 = vmatprep.mubr.bf16.mxu0 0
      %2843 = vmatmul.mubr.bf16.gmra.mrb[0].mxu0 %v1004
      %v2844 = vpop.f32.mrb[0].mxu0
      %v2845 = vadd.f32 0.0, %v2844
      %v2846 = vpop.f32.mrb[0].mxu0
      %v2847 = vpop.f32.mrb[0].mxu0
      %v2848 = vadd.f32 0.0, %v2847
      %v2849 = vpop.f32.mrb[0].mxu0
      %2850 = vmatprep.mubr.bf16.mxu0 0
      %2851 = vmatmul.mubr.bf16.gmra.mrb[0].mxu0 %v1007
      %v2852 = vpop.f32.mrb[0].mxu0
      %v2853 = vadd.f32 0.0, %v2852
      %v2854 = vpop.f32.mrb[0].mxu0
      %v2855 = vpop.f32.mrb[0].mxu0
      %v2856 = vadd.f32 0.0, %v2855
      %v2857 = vpop.f32.mrb[0].mxu0
      %2858 = vmatprep.mubr.bf16.mxu0 0
      %2859 = vmatmul.mubr.bf16.gmra.mrb[0].mxu0 %v1010
      %v2860 = vpop.f32.mrb[0].mxu0
      %v2861 = vadd.f32 0.0, %v2860
      %v2862 = vpop.f32.mrb[0].mxu0
      %v2863 = vpop.f32.mrb[0].mxu0
      %v2864 = vpop.f32.mrb[0].mxu0
      %2865 = vmatprep.mubr.bf16.mxu0 0
      %2866 = vmatmul.mubr.bf16.gmra.mrb[0].mxu0 %v1013
      %v2867 = vpop.f32.mrb[0].mxu0
      %v2868 = vadd.f32 0.0, %v2867
      %v2869 = vpop.f32.mrb[0].mxu0
      %v2870 = vpop.f32.mrb[0].mxu0
      %v2871 = vadd.f32 0.0, %v2870
      %v2872 = vpop.f32.mrb[0].mxu0
      %2873 = vmatprep.mubr.bf16.mxu0 0
      %2874 = vmatmul.mubr.bf16.gmra.mrb[0].mxu0 %v1016
      %v2875 = vpop.f32.mrb[0].mxu0
      %v2876 = vadd.f32 0.0, %v2875
      %v2877 = vpop.f32.mrb[0].mxu0
      %v2878 = vpop.f32.mrb[0].mxu0
      %v2879 = vadd.f32 0.0, %v2878
      %v2880 = vpop.f32.mrb[0].mxu0
      %2881 = vmatprep.mubr.bf16.mxu0 0
      %2882 = vmatmul.mubr.bf16.gmra.mrb[0].mxu0 %v1019
      %v2883 = vpop.f32.mrb[0].mxu0
      %v2884 = vadd.f32 0.0, %v2883
      %v2885 = vpop.f32.mrb[0].mxu0
      %v2886 = vpop.f32.mrb[0].mxu0
      %v2887 = vpop.f32.mrb[0].mxu0
      %2888 = vmatprep.mubr.bf16.mxu0 0
      %2889 = vmatmul.mubr.bf16.gmra.mrb[0].mxu0 %v1022
      %v2890 = vpop.f32.mrb[0].mxu0
      %v2891 = vadd.f32 0.0, %v2890
      %v2892 = vpop.f32.mrb[0].mxu0
      %v2893 = vpop.f32.mrb[0].mxu0
      %v2894 = vadd.f32 0.0, %v2893
      %v2895 = vpop.f32.mrb[0].mxu0
      %2896 = vmatprep.mubr.bf16.mxu0 0
      %2897 = vmatmul.mubr.bf16.gmra.mrb[0].mxu0 %v1025
      %v2898 = vpop.f32.mrb[0].mxu0
      %v2899 = vadd.f32 0.0, %v2898
      %v2900 = vpop.f32.mrb[0].mxu0
      %v2901 = vpop.f32.mrb[0].mxu0
      %v2902 = vadd.f32 0.0, %v2901
      %v2903 = vpop.f32.mrb[0].mxu0
      %2904 = vmatprep.mubr.bf16.mxu0 0
      %2905 = vmatmul.mubr.bf16.gmra.mrb[0].mxu0 %v1028
      %v2906 = vpop.f32.mrb[0].mxu0
      %v2907 = vadd.f32 0.0, %v2906
      %v2908 = vpop.f32.mrb[0].mxu0
      %v2909 = vpop.f32.mrb[0].mxu0
      %v2910 = vpop.f32.mrb[0].mxu0
      %2911 = vmatprep.mubr.bf16.mxu0 0
      %2912 = vmatmul.mubr.bf16.gmra.mrb[0].mxu0 %v1031
      %v2913 = vpop.f32.mrb[0].mxu0
      %v2914 = vadd.f32 0.0, %v2913
      %v2915 = vpop.f32.mrb[0].mxu0
      %v2916 = vpop.f32.mrb[0].mxu0
      %v2917 = vadd.f32 0.0, %v2916
      %v2918 = vpop.f32.mrb[0].mxu0
      %2919 = vmatprep.mubr.bf16.mxu0 0
      %2920 = vmatmul.mubr.bf16.gmra.mrb[0].mxu0 %v1034
      %v2921 = vpop.f32.mrb[0].mxu0
      %v2922 = vadd.f32 0.0, %v2921
      %v2923 = vpop.f32.mrb[0].mxu0
      %v2924 = vpop.f32.mrb[0].mxu0
      %v2925 = vadd.f32 0.0, %v2924
      %v2926 = vpop.f32.mrb[0].mxu0
      %2927 = vmatprep.mubr.bf16.mxu0 0
      %2928 = vmatmul.mubr.bf16.gmra.mrb[0].mxu0 %v1037
      %v2929 = vpop.f32.mrb[0].mxu0
      %v2930 = vadd.f32 0.0, %v2929
      %v2931 = vpop.f32.mrb[0].mxu0
      %v2932 = vpop.f32.mrb[0].mxu0
      %v2933 = vpop.f32.mrb[0].mxu0
      %2934 = vmatprep.mubr.bf16.mxu0 0
      %2935 = vmatmul.mubr.bf16.gmra.mrb[0].mxu0 %v1040
      %v2936 = vpop.f32.mrb[0].mxu0
      %v2937 = vadd.f32 0.0, %v2936
      %v2938 = vpop.f32.mrb[0].mxu0
      %v2939 = vpop.f32.mrb[0].mxu0
      %v2940 = vadd.f32 0.0, %v2939
      %v2941 = vpop.f32.mrb[0].mxu0
      %2942 = vmatprep.mubr.bf16.mxu0 0
      %2943 = vmatmul.mubr.bf16.gmra.mrb[0].mxu0 %v1043
      %v2944 = vpop.f32.mrb[0].mxu0
      %v2945 = vadd.f32 0.0, %v2944
      %v2946 = vpop.f32.mrb[0].mxu0
      %v2947 = vpop.f32.mrb[0].mxu0
      %v2948 = vadd.f32 0.0, %v2947
      %v2949 = vpop.f32.mrb[0].mxu0
      %2950 = vmatprep.mubr.bf16.mxu0 0
      %2951 = vmatmul.mubr.bf16.gmra.mrb[0].mxu0 %v1046
      %v2952 = vpop.f32.mrb[0].mxu0
      %v2953 = vadd.f32 0.0, %v2952
      %v2954 = vpop.f32.mrb[0].mxu0
      %v2955 = vpop.f32.mrb[0].mxu0
      %v2956 = vpop.f32.mrb[0].mxu0
      %2957 = vmatprep.mubr.bf16.mxu0 0
      %2958 = vmatmul.mubr.bf16.gmra.mrb[0].mxu0 %v1049
      %v2959 = vpop.f32.mrb[0].mxu0
      %v2960 = vadd.f32 0.0, %v2959
      %v2961 = vpop.f32.mrb[0].mxu0
      %v2962 = vpop.f32.mrb[0].mxu0
      %v2963 = vadd.f32 0.0, %v2962
      %v2964 = vpop.f32.mrb[0].mxu0
      %2965 = vmatprep.mubr.bf16.mxu0 0
      %2966 = vmatmul.mubr.bf16.gmra.mrb[0].mxu0 %v1052
      %v2967 = vpop.f32.mrb[0].mxu0
      %v2968 = vadd.f32 0.0, %v2967
      %v2969 = vpop.f32.mrb[0].mxu0
      %v2970 = vpop.f32.mrb[0].mxu0
      %v2971 = vadd.f32 0.0, %v2970
      %v2972 = vpop.f32.mrb[0].mxu0
      %2973 = vmatprep.mubr.bf16.mxu0 0
      %2974 = vmatmul.mubr.bf16.gmra.mrb[0].mxu0 %v1055
      %v2975 = vpop.f32.mrb[0].mxu0
      %v2976 = vadd.f32 0.0, %v2975
      %v2977 = vpop.f32.mrb[0].mxu0
      %v2978 = vpop.f32.mrb[0].mxu0
      %v2979 = vpop.f32.mrb[0].mxu0
      %2980 = vmatprep.mubr.bf16.mxu0 0
      %2981 = vmatmul.mubr.bf16.gmra.mrb[0].mxu0 %v1058
      %v2982 = vpop.f32.mrb[0].mxu0
      %v2983 = vadd.f32 0.0, %v2982
      %v2984 = vpop.f32.mrb[0].mxu0
      %v2985 = vpop.f32.mrb[0].mxu0
      %v2986 = vadd.f32 0.0, %v2985
      %v2987 = vpop.f32.mrb[0].mxu0
      %2988 = vmatprep.mubr.bf16.mxu0 0
      %2989 = vmatmul.mubr.bf16.gmra.mrb[0].mxu0 %v1061
      %v2990 = vpop.f32.mrb[0].mxu0
      %v2991 = vadd.f32 0.0, %v2990
      %v2992 = vpop.f32.mrb[0].mxu0
      %v2993 = vpop.f32.mrb[0].mxu0
      %v2994 = vadd.f32 0.0, %v2993
      %v2995 = vpop.f32.mrb[0].mxu0
      %2996 = vmatprep.mubr.bf16.mxu0 0
      %2997 = vmatmul.mubr.bf16.gmra.mrb[0].mxu0 %v1064
      %v2998 = vpop.f32.mrb[0].mxu0
      %v2999 = vadd.f32 0.0, %v2998
      %v3000 = vpop.f32.mrb[0].mxu0
      %v3001 = vpop.f32.mrb[0].mxu0
      %v3002 = vpop.f32.mrb[0].mxu0
      %3003 = vmatprep.mubr.bf16.mxu0 0
      %3004 = vmatmul.mubr.bf16.gmra.mrb[0].mxu0 %v1067
      %v3005 = vpop.f32.mrb[0].mxu0
      %v3006 = vadd.f32 0.0, %v3005
      %v3007 = vpop.f32.mrb[0].mxu0
      %v3008 = vpop.f32.mrb[0].mxu0
      %v3009 = vadd.f32 0.0, %v3008
      %v3010 = vpop.f32.mrb[0].mxu0
      %3011 = vmatprep.mubr.bf16.mxu0 0
      %3012 = vmatmul.mubr.bf16.gmra.mrb[0].mxu0 %v1070
      %v3013 = vpop.f32.mrb[0].mxu0
      %v3014 = vadd.f32 0.0, %v3013
      %v3015 = vpop.f32.mrb[0].mxu0
      %v3016 = vpop.f32.mrb[0].mxu0
      %v3017 = vadd.f32 0.0, %v3016
      %v3018 = vpop.f32.mrb[0].mxu0
      %3019 = vmatprep.mubr.bf16.mxu0 0
      %3020 = vmatmul.mubr.bf16.gmra.mrb[0].mxu0 %v1073
      %v3021 = vpop.f32.mrb[0].mxu0
      %v3022 = vadd.f32 0.0, %v3021
      %v3023 = vpop.f32.mrb[0].mxu0
      %v3024 = vpop.f32.mrb[0].mxu0
      %v3025 = vpop.f32.mrb[0].mxu0
      %3026 = vmatprep.mubr.bf16.mxu0 0
      %3027 = vmatmul.mubr.bf16.gmra.mrb[0].mxu0 %v1076
      %v3028 = vpop.f32.mrb[0].mxu0
      %v3029 = vadd.f32 0.0, %v3028
      %v3030 = vpop.f32.mrb[0].mxu0
      %v3031 = vpop.f32.mrb[0].mxu0
      %v3032 = vadd.f32 0.0, %v3031
      %v3033 = vpop.f32.mrb[0].mxu0
      %3034 = vmatprep.mubr.bf16.mxu0 0
      %3035 = vmatmul.mubr.bf16.gmra.mrb[0].mxu0 %v1079
      %v3036 = vpop.f32.mrb[0].mxu0
      %v3037 = vadd.f32 0.0, %v3036
      %v3038 = vpop.f32.mrb[0].mxu0
      %v3039 = vpop.f32.mrb[0].mxu0
      %v3040 = vadd.f32 0.0, %v3039
      %v3041 = vpop.f32.mrb[0].mxu0
      %3042 = vmatprep.mubr.bf16.mxu0 0
      %3043 = vmatmul.mubr.bf16.gmra.mrb[0].mxu0 %v1082
      %v3044 = vpop.f32.mrb[0].mxu0
      %v3045 = vadd.f32 0.0, %v3044
      %v3046 = vpop.f32.mrb[0].mxu0
      %v3047 = vpop.f32.mrb[0].mxu0
      %v3048 = vpop.f32.mrb[0].mxu0
      %3049 = vmatprep.mubr.bf16.mxu0 0
      %3050 = vmatmul.mubr.bf16.gmra.mrb[0].mxu0 %v1085
      %v3051 = vpop.f32.mrb[0].mxu0
      %v3052 = vadd.f32 0.0, %v3051
      %v3053 = vpop.f32.mrb[0].mxu0
      %v3054 = vpop.f32.mrb[0].mxu0
      %v3055 = vadd.f32 0.0, %v3054
      %v3056 = vpop.f32.mrb[0].mxu0
      %3057 = vmatprep.mubr.bf16.mxu0 0
      %3058 = vmatmul.mubr.bf16.gmra.mrb[0].mxu0 %v1088
      %v3059 = vpop.f32.mrb[0].mxu0
      %v3060 = vadd.f32 0.0, %v3059
      %v3061 = vpop.f32.mrb[0].mxu0
      %v3062 = vpop.f32.mrb[0].mxu0
      %v3063 = vadd.f32 0.0, %v3062
      %v3064 = vpop.f32.mrb[0].mxu0
      %3065 = vmatprep.mubr.bf16.mxu0 0
      %3066 = vmatmul.mubr.bf16.gmra.mrb[0].mxu0 %v1091
      %v3067 = vpop.f32.mrb[0].mxu0
      %v3068 = vadd.f32 0.0, %v3067
      %v3069 = vpop.f32.mrb[0].mxu0
      %v3070 = vpop.f32.mrb[0].mxu0
      %v3071 = vpop.f32.mrb[0].mxu0
      %3072 = vmatprep.mubr.bf16.mxu0 0
      %3073 = vmatmul.mubr.bf16.gmra.mrb[0].mxu0 %v1094
      %v3074 = vpop.f32.mrb[0].mxu0
      %v3075 = vadd.f32 0.0, %v3074
      %v3076 = vpop.f32.mrb[0].mxu0
      %v3077 = vpop.f32.mrb[0].mxu0
      %v3078 = vadd.f32 0.0, %v3077
      %v3079 = vpop.f32.mrb[0].mxu0
      %3080 = vmatprep.mubr.bf16.mxu0 0
      %3081 = vmatmul.mubr.bf16.gmra.mrb[0].mxu0 %v1097
      %v3082 = vpop.f32.mrb[0].mxu0
      %v3083 = vadd.f32 0.0, %v3082
      %v3084 = vpop.f32.mrb[0].mxu0
      %v3085 = vpop.f32.mrb[0].mxu0
      %v3086 = vadd.f32 0.0, %v3085
      %v3087 = vpop.f32.mrb[0].mxu0
      %3088 = vmatprep.mubr.bf16.mxu0 0
      %3089 = vmatmul.mubr.bf16.gmra.mrb[0].mxu0 %v1100
      %v3090 = vpop.f32.mrb[0].mxu0
      %v3091 = vadd.f32 0.0, %v3090
      %v3092 = vpop.f32.mrb[0].mxu0
      %v3093 = vpop.f32.mrb[0].mxu0
      %v3094 = vpop.f32.mrb[0].mxu0
      %3095 = vmatprep.mubr.bf16.mxu0 0
      %3096 = vmatmul.mubr.bf16.gmra.mrb[0].mxu0 %v1103
      %v3097 = vpop.f32.mrb[0].mxu0
      %v3098 = vadd.f32 0.0, %v3097
      %v3099 = vpop.f32.mrb[0].mxu0
      %v3100 = vpop.f32.mrb[0].mxu0
      %v3101 = vadd.f32 0.0, %v3100
      %v3102 = vpop.f32.mrb[0].mxu0
      %3103 = vmatprep.mubr.bf16.mxu0 0
      %3104 = vmatmul.mubr.bf16.gmra.mrb[0].mxu0 %v1106
      %v3105 = vpop.f32.mrb[0].mxu0
      %v3106 = vadd.f32 0.0, %v3105
      %v3107 = vpop.f32.mrb[0].mxu0
      %v3108 = vpop.f32.mrb[0].mxu0
      %v3109 = vadd.f32 0.0, %v3108
      %v3110 = vpop.f32.mrb[0].mxu0
      %3111 = vmatprep.mubr.bf16.mxu0 0
      %3112 = vmatmul.mubr.bf16.gmra.mrb[0].mxu0 %v1109
      %v3113 = vpop.f32.mrb[0].mxu0
      %v3114 = vadd.f32 0.0, %v3113
      %v3115 = vpop.f32.mrb[0].mxu0
      %v3116 = vpop.f32.mrb[0].mxu0
      %v3117 = vpop.f32.mrb[0].mxu0
      %3118 = vmatprep.mubr.bf16.mxu0 0
      %3119 = vmatmul.mubr.bf16.gmra.mrb[0].mxu0 %v1112
      %v3120 = vpop.f32.mrb[0].mxu0
      %v3121 = vadd.f32 0.0, %v3120
      %v3122 = vpop.f32.mrb[0].mxu0
      %v3123 = vpop.f32.mrb[0].mxu0
      %v3124 = vadd.f32 0.0, %v3123
      %v3125 = vpop.f32.mrb[0].mxu0
      %3126 = vmatprep.mubr.bf16.mxu0 0
      %3127 = vmatmul.mubr.bf16.gmra.mrb[0].mxu0 %v1115
      %v3128 = vpop.f32.mrb[0].mxu0
      %v3129 = vadd.f32 0.0, %v3128
      %v3130 = vpop.f32.mrb[0].mxu0
      %v3131 = vpop.f32.mrb[0].mxu0
      %v3132 = vadd.f32 0.0, %v3131
      %v3133 = vpop.f32.mrb[0].mxu0
      %3134 = vmatprep.mubr.bf16.mxu0 0
      %3135 = vmatmul.mubr.bf16.gmra.mrb[0].mxu0 %v1118
      %v3136 = vpop.f32.mrb[0].mxu0
      %v3137 = vadd.f32 0.0, %v3136
      %v3138 = vpop.f32.mrb[0].mxu0
      %v3139 = vpop.f32.mrb[0].mxu0
      %v3140 = vpop.f32.mrb[0].mxu0
      %3141 = vmatprep.mubr.bf16.mxu0 0
      %3142 = vmatmul.mubr.bf16.gmra.mrb[0].mxu0 %v1121
      %v3143 = vpop.f32.mrb[0].mxu0
      %v3144 = vadd.f32 0.0, %v3143
      %v3145 = vpop.f32.mrb[0].mxu0
      %v3146 = vpop.f32.mrb[0].mxu0
      %v3147 = vadd.f32 0.0, %v3146
      %v3148 = vpop.f32.mrb[0].mxu0
      %3149 = vmatprep.mubr.bf16.mxu0 0
      %3150 = vmatmul.mubr.bf16.gmra.mrb[0].mxu0 %v1124
      %v3151 = vpop.f32.mrb[0].mxu0
      %v3152 = vadd.f32 0.0, %v3151
      %v3153 = vpop.f32.mrb[0].mxu0
      %v3154 = vpop.f32.mrb[0].mxu0
      %v3155 = vadd.f32 0.0, %v3154
      %v3156 = vpop.f32.mrb[0].mxu0
      %3157 = vmatprep.mubr.bf16.mxu0 0
      %3158 = vmatmul.mubr.bf16.gmra.mrb[0].mxu0 %v1127
      %v3159 = vpop.f32.mrb[0].mxu0
      %v3160 = vadd.f32 0.0, %v3159
      %v3161 = vpop.f32.mrb[0].mxu0
      %v3162 = vpop.f32.mrb[0].mxu0
      %v3163 = vpop.f32.mrb[0].mxu0
      %3164 = vmatprep.mubr.bf16.mxu0 0
      %3165 = vmatmul.mubr.bf16.gmra.mrb[0].mxu0 %v1130
      %v3166 = vpop.f32.mrb[0].mxu0
      %v3167 = vadd.f32 0.0, %v3166
      %v3168 = vpop.f32.mrb[0].mxu0
      %v3169 = vpop.f32.mrb[0].mxu0
      %v3170 = vadd.f32 0.0, %v3169
      %v3171 = vpop.f32.mrb[0].mxu0
      %3172 = vmatprep.mubr.bf16.mxu0 0
      %3173 = vmatmul.mubr.bf16.gmra.mrb[0].mxu0 %v1133
      %v3174 = vpop.f32.mrb[0].mxu0
      %v3175 = vadd.f32 0.0, %v3174
      %v3176 = vpop.f32.mrb[0].mxu0
      %v3177 = vpop.f32.mrb[0].mxu0
      %v3178 = vadd.f32 0.0, %v3177
      %v3179 = vpop.f32.mrb[0].mxu0
      %3180 = vmatprep.mubr.bf16.mxu0 0
      %3181 = vmatmul.mubr.bf16.gmra.mrb[0].mxu0 %v1136
      %v3182 = vpop.f32.mrb[0].mxu0
      %v3183 = vadd.f32 0.0, %v3182
      %v3184 = vpop.f32.mrb[0].mxu0
      %v3185 = vpop.f32.mrb[0].mxu0
      %v3186 = vpop.f32.mrb[0].mxu0
      %3187 = vdwg.mxu0
      %v3189 = vsel %vm1138, %v2735, 0
      %3191 = vmatprep.subr.bf16.mxu0 0
      %3192 = vmatpush1.bf16.msra.mxu0 %v3189
      %3193 = vmatprep.subr.bf16.mxu0 0
      %3194 = vmatpush1.bf16.msra.mxu0 0
      %3195 = vmatprep.subr.bf16.mxu0 0
      %3196 = vmatpush1.bf16.msra.mxu0 0
      %3197 = vmatprep.subr.bf16.mxu0 0
      %3198 = vmatpush1.bf16.msra.mxu0 0
      %3199 = vmatprep.subr.bf16.mxu0 0
      %3200 = vmatpush1.bf16.msra.mxu0 0
      %3201 = vmatprep.subr.bf16.mxu0 0
      %3202 = vmatpush1.bf16.msra.mxu0 0
      %3203 = vmatprep.subr.bf16.mxu0 0
      %3204 = vmatpush1.bf16.msra.mxu0 0
      %3205 = vmatprep.subr.bf16.mxu0 0
      %3206 = vmatpush1.bf16.msra.mxu0 0
      %3207 = vmatprep.subr.bf16.mxu0 0
      %3208 = vmatpush1.bf16.msra.mxu0 0
      %3209 = vmatprep.subr.bf16.mxu0 0
      %3210 = vmatpush1.bf16.msra.mxu0 0
      %3211 = vmatprep.subr.bf16.mxu0 0
      %3212 = vmatpush1.bf16.msra.mxu0 0
      %3213 = vmatprep.subr.bf16.mxu0 0
      %3214 = vmatpush1.bf16.msra.mxu0 0
      %3215 = vmatprep.subr.bf16.mxu0 0
      %3216 = vmatpush1.bf16.msra.mxu0 0
      %3217 = vmatprep.subr.bf16.mxu0 0
      %3218 = vmatpush1.bf16.msra.mxu0 0
      %3219 = vmatprep.subr.bf16.mxu0 0
      %3220 = vmatpush1.bf16.msra.mxu0 0
      %3221 = vmatprep.subr.bf16.mxu0 0
      %3222 = vmatpush1.bf16.msra.mxu0 0
      %3223 = vmatprep.mubr.bf16.mxu0 0
      %3224 = vmatmul.mubr.bf16.gmra.mrb[0].mxu0 %v1572
      %v3225 = vpop.f32.mrb[0].mxu0
      %v3226 = vadd.f32 %v2776, %v3225
      %v3227 = vpop.f32.mrb[0].mxu0
      %v3228 = vpop.f32.mrb[0].mxu0
      %v3229 = vadd.f32 %v2779, %v3228
      %v3230 = vpop.f32.mrb[0].mxu0
      %3231 = vmatprep.mubr.bf16.mxu0 0
      %3232 = vmatmul.mubr.bf16.gmra.mrb[0].mxu0 %v1575
      %v3233 = vpop.f32.mrb[0].mxu0
      %v3234 = vadd.f32 %v2784, %v3233
      %v3235 = vpop.f32.mrb[0].mxu0
      %v3236 = vpop.f32.mrb[0].mxu0
      %v3237 = vadd.f32 %v2787, %v3236
      %v3238 = vpop.f32.mrb[0].mxu0
      %3239 = vmatprep.mubr.bf16.mxu0 0
      %3240 = vmatmul.mubr.bf16.gmra.mrb[0].mxu0 %v1578
      %v3241 = vpop.f32.mrb[0].mxu0
      %v3242 = vadd.f32 %v2792, %v3241
      %v3243 = vpop.f32.mrb[0].mxu0
      %v3244 = vpop.f32.mrb[0].mxu0
      %v3245 = vpop.f32.mrb[0].mxu0
      %3246 = vmatprep.mubr.bf16.mxu0 0
      %3247 = vmatmul.mubr.bf16.gmra.mrb[0].mxu0 %v977
      %v3248 = vpop.f32.mrb[0].mxu0
      %v3249 = vadd.f32 %v2799, %v3248
      %v3250 = vpop.f32.mrb[0].mxu0
      %v3251 = vpop.f32.mrb[0].mxu0
      %v3252 = vadd.f32 %v2802, %v3251
      %v3253 = vpop.f32.mrb[0].mxu0
      %3254 = vmatprep.mubr.bf16.mxu0 0
      %3255 = vmatmul.mubr.bf16.gmra.mrb[0].mxu0 %v980
      %v3256 = vpop.f32.mrb[0].mxu0
      %v3257 = vadd.f32 %v2807, %v3256
      %v3258 = vpop.f32.mrb[0].mxu0
      %v3259 = vpop.f32.mrb[0].mxu0
      %v3260 = vadd.f32 %v2810, %v3259
      %v3261 = vpop.f32.mrb[0].mxu0
      %3262 = vmatprep.mubr.bf16.mxu0 0
      %3263 = vmatmul.mubr.bf16.gmra.mrb[0].mxu0 %v983
      %v3264 = vpop.f32.mrb[0].mxu0
      %v3265 = vadd.f32 %v2815, %v3264
      %v3266 = vpop.f32.mrb[0].mxu0
      %v3267 = vpop.f32.mrb[0].mxu0
      %v3268 = vpop.f32.mrb[0].mxu0
      %3269 = vmatprep.mubr.bf16.mxu0 0
      %3270 = vmatmul.mubr.bf16.gmra.mrb[0].mxu0 %v986
      %v3271 = vpop.f32.mrb[0].mxu0
      %v3272 = vadd.f32 %v2822, %v3271
      %v3273 = vpop.f32.mrb[0].mxu0
      %v3274 = vpop.f32.mrb[0].mxu0
      %v3275 = vadd.f32 %v2825, %v3274
      %v3276 = vpop.f32.mrb[0].mxu0
      %3277 = vmatprep.mubr.bf16.mxu0 0
      %3278 = vmatmul.mubr.bf16.gmra.mrb[0].mxu0 %v989
      %v3279 = vpop.f32.mrb[0].mxu0
      %v3280 = vadd.f32 %v2830, %v3279
      %v3281 = vpop.f32.mrb[0].mxu0
      %v3282 = vpop.f32.mrb[0].mxu0
      %v3283 = vadd.f32 %v2833, %v3282
      %v3284 = vpop.f32.mrb[0].mxu0
      %3285 = vmatprep.mubr.bf16.mxu0 0
      %3286 = vmatmul.mubr.bf16.gmra.mrb[0].mxu0 %v992
      %v3287 = vpop.f32.mrb[0].mxu0
      %v3288 = vadd.f32 %v2838, %v3287
      %v3289 = vpop.f32.mrb[0].mxu0
      %v3290 = vpop.f32.mrb[0].mxu0
      %v3291 = vpop.f32.mrb[0].mxu0
      %3292 = vmatprep.mubr.bf16.mxu0 0
      %3293 = vmatmul.mubr.bf16.gmra.mrb[0].mxu0 %v995
      %v3294 = vpop.f32.mrb[0].mxu0
      %v3295 = vadd.f32 %v2845, %v3294
      %v3296 = vpop.f32.mrb[0].mxu0
      %v3297 = vpop.f32.mrb[0].mxu0
      %v3298 = vadd.f32 %v2848, %v3297
      %v3299 = vpop.f32.mrb[0].mxu0
      %3300 = vmatprep.mubr.bf16.mxu0 0
      %3301 = vmatmul.mubr.bf16.gmra.mrb[0].mxu0 %v998
      %v3302 = vpop.f32.mrb[0].mxu0
      %v3303 = vadd.f32 %v2853, %v3302
      %v3304 = vpop.f32.mrb[0].mxu0
      %v3305 = vpop.f32.mrb[0].mxu0
      %v3306 = vadd.f32 %v2856, %v3305
      %v3307 = vpop.f32.mrb[0].mxu0
      %3308 = vmatprep.mubr.bf16.mxu0 0
      %3309 = vmatmul.mubr.bf16.gmra.mrb[0].mxu0 %v1001
      %v3310 = vpop.f32.mrb[0].mxu0
      %v3311 = vadd.f32 %v2861, %v3310
      %v3312 = vpop.f32.mrb[0].mxu0
      %v3313 = vpop.f32.mrb[0].mxu0
      %v3314 = vpop.f32.mrb[0].mxu0
      %3315 = vmatprep.mubr.bf16.mxu0 0
      %3316 = vmatmul.mubr.bf16.gmra.mrb[0].mxu0 %v1004
      %v3317 = vpop.f32.mrb[0].mxu0
      %v3318 = vadd.f32 %v2868, %v3317
      %v3319 = vpop.f32.mrb[0].mxu0
      %v3320 = vpop.f32.mrb[0].mxu0
      %v3321 = vadd.f32 %v2871, %v3320
      %v3322 = vpop.f32.mrb[0].mxu0
      %3323 = vmatprep.mubr.bf16.mxu0 0
      %3324 = vmatmul.mubr.bf16.gmra.mrb[0].mxu0 %v1007
      %v3325 = vpop.f32.mrb[0].mxu0
      %v3326 = vadd.f32 %v2876, %v3325
      %v3327 = vpop.f32.mrb[0].mxu0
      %v3328 = vpop.f32.mrb[0].mxu0
      %v3329 = vadd.f32 %v2879, %v3328
      %v3330 = vpop.f32.mrb[0].mxu0
      %3331 = vmatprep.mubr.bf16.mxu0 0
      %3332 = vmatmul.mubr.bf16.gmra.mrb[0].mxu0 %v1010
      %v3333 = vpop.f32.mrb[0].mxu0
      %v3334 = vadd.f32 %v2884, %v3333
      %v3335 = vpop.f32.mrb[0].mxu0
      %v3336 = vpop.f32.mrb[0].mxu0
      %v3337 = vpop.f32.mrb[0].mxu0
      %3338 = vmatprep.mubr.bf16.mxu0 0
      %3339 = vmatmul.mubr.bf16.gmra.mrb[0].mxu0 %v1013
      %v3340 = vpop.f32.mrb[0].mxu0
      %v3341 = vadd.f32 %v2891, %v3340
      %v3342 = vpop.f32.mrb[0].mxu0
      %v3343 = vpop.f32.mrb[0].mxu0
      %v3344 = vadd.f32 %v2894, %v3343
      %v3345 = vpop.f32.mrb[0].mxu0
      %3346 = vmatprep.mubr.bf16.mxu0 0
      %3347 = vmatmul.mubr.bf16.gmra.mrb[0].mxu0 %v1016
      %v3348 = vpop.f32.mrb[0].mxu0
      %v3349 = vadd.f32 %v2899, %v3348
      %v3350 = vpop.f32.mrb[0].mxu0
      %v3351 = vpop.f32.mrb[0].mxu0
      %v3352 = vadd.f32 %v2902, %v3351
      %v3353 = vpop.f32.mrb[0].mxu0
      %3354 = vmatprep.mubr.bf16.mxu0 0
      %3355 = vmatmul.mubr.bf16.gmra.mrb[0].mxu0 %v1019
      %v3356 = vpop.f32.mrb[0].mxu0
      %v3357 = vadd.f32 %v2907, %v3356
      %v3358 = vpop.f32.mrb[0].mxu0
      %v3359 = vpop.f32.mrb[0].mxu0
      %v3360 = vpop.f32.mrb[0].mxu0
      %3361 = vmatprep.mubr.bf16.mxu0 0
      %3362 = vmatmul.mubr.bf16.gmra.mrb[0].mxu0 %v1022
      %v3363 = vpop.f32.mrb[0].mxu0
      %v3364 = vadd.f32 %v2914, %v3363
      %v3365 = vpop.f32.mrb[0].mxu0
      %v3366 = vpop.f32.mrb[0].mxu0
      %v3367 = vadd.f32 %v2917, %v3366
      %v3368 = vpop.f32.mrb[0].mxu0
      %3369 = vmatprep.mubr.bf16.mxu0 0
      %3370 = vmatmul.mubr.bf16.gmra.mrb[0].mxu0 %v1025
      %v3371 = vpop.f32.mrb[0].mxu0
      %v3372 = vadd.f32 %v2922, %v3371
      %v3373 = vpop.f32.mrb[0].mxu0
      %v3374 = vpop.f32.mrb[0].mxu0
      %v3375 = vadd.f32 %v2925, %v3374
      %v3376 = vpop.f32.mrb[0].mxu0
      %3377 = vmatprep.mubr.bf16.mxu0 0
      %3378 = vmatmul.mubr.bf16.gmra.mrb[0].mxu0 %v1028
      %v3379 = vpop.f32.mrb[0].mxu0
      %v3380 = vadd.f32 %v2930, %v3379
      %v3381 = vpop.f32.mrb[0].mxu0
      %v3382 = vpop.f32.mrb[0].mxu0
      %v3383 = vpop.f32.mrb[0].mxu0
      %3384 = vmatprep.mubr.bf16.mxu0 0
      %3385 = vmatmul.mubr.bf16.gmra.mrb[0].mxu0 %v1031
      %v3386 = vpop.f32.mrb[0].mxu0
      %v3387 = vadd.f32 %v2937, %v3386
      %v3388 = vpop.f32.mrb[0].mxu0
      %v3389 = vpop.f32.mrb[0].mxu0
      %v3390 = vadd.f32 %v2940, %v3389
      %v3391 = vpop.f32.mrb[0].mxu0
      %3392 = vmatprep.mubr.bf16.mxu0 0
      %3393 = vmatmul.mubr.bf16.gmra.mrb[0].mxu0 %v1034
      %v3394 = vpop.f32.mrb[0].mxu0
      %v3395 = vadd.f32 %v2945, %v3394
      %v3396 = vpop.f32.mrb[0].mxu0
      %v3397 = vpop.f32.mrb[0].mxu0
      %v3398 = vadd.f32 %v2948, %v3397
      %v3399 = vpop.f32.mrb[0].mxu0
      %3400 = vmatprep.mubr.bf16.mxu0 0
      %3401 = vmatmul.mubr.bf16.gmra.mrb[0].mxu0 %v1037
      %v3402 = vpop.f32.mrb[0].mxu0
      %v3403 = vadd.f32 %v2953, %v3402
      %v3404 = vpop.f32.mrb[0].mxu0
      %v3405 = vpop.f32.mrb[0].mxu0
      %v3406 = vpop.f32.mrb[0].mxu0
      %3407 = vmatprep.mubr.bf16.mxu0 0
      %3408 = vmatmul.mubr.bf16.gmra.mrb[0].mxu0 %v1040
      %v3409 = vpop.f32.mrb[0].mxu0
      %v3410 = vadd.f32 %v2960, %v3409
      %v3411 = vpop.f32.mrb[0].mxu0
      %v3412 = vpop.f32.mrb[0].mxu0
      %v3413 = vadd.f32 %v2963, %v3412
      %v3414 = vpop.f32.mrb[0].mxu0
      %3415 = vmatprep.mubr.bf16.mxu0 0
      %3416 = vmatmul.mubr.bf16.gmra.mrb[0].mxu0 %v1043
      %v3417 = vpop.f32.mrb[0].mxu0
      %v3418 = vadd.f32 %v2968, %v3417
      %v3419 = vpop.f32.mrb[0].mxu0
      %v3420 = vpop.f32.mrb[0].mxu0
      %v3421 = vadd.f32 %v2971, %v3420
      %v3422 = vpop.f32.mrb[0].mxu0
      %3423 = vmatprep.mubr.bf16.mxu0 0
      %3424 = vmatmul.mubr.bf16.gmra.mrb[0].mxu0 %v1046
      %v3425 = vpop.f32.mrb[0].mxu0
      %v3426 = vadd.f32 %v2976, %v3425
      %v3427 = vpop.f32.mrb[0].mxu0
      %v3428 = vpop.f32.mrb[0].mxu0
      %v3429 = vpop.f32.mrb[0].mxu0
      %3430 = vmatprep.mubr.bf16.mxu0 0
      %3431 = vmatmul.mubr.bf16.gmra.mrb[0].mxu0 %v1049
      %v3432 = vpop.f32.mrb[0].mxu0
      %v3433 = vadd.f32 %v2983, %v3432
      %v3434 = vpop.f32.mrb[0].mxu0
      %v3435 = vpop.f32.mrb[0].mxu0
      %v3436 = vadd.f32 %v2986, %v3435
      %v3437 = vpop.f32.mrb[0].mxu0
      %3438 = vmatprep.mubr.bf16.mxu0 0
      %3439 = vmatmul.mubr.bf16.gmra.mrb[0].mxu0 %v1052
      %v3440 = vpop.f32.mrb[0].mxu0
      %v3441 = vadd.f32 %v2991, %v3440
      %v3442 = vpop.f32.mrb[0].mxu0
      %v3443 = vpop.f32.mrb[0].mxu0
      %v3444 = vadd.f32 %v2994, %v3443
      %v3445 = vpop.f32.mrb[0].mxu0
      %3446 = vmatprep.mubr.bf16.mxu0 0
      %3447 = vmatmul.mubr.bf16.gmra.mrb[0].mxu0 %v1055
      %v3448 = vpop.f32.mrb[0].mxu0
      %v3449 = vadd.f32 %v2999, %v3448
      %v3450 = vpop.f32.mrb[0].mxu0
      %v3451 = vpop.f32.mrb[0].mxu0
      %v3452 = vpop.f32.mrb[0].mxu0
      %3453 = vmatprep.mubr.bf16.mxu0 0
      %3454 = vmatmul.mubr.bf16.gmra.mrb[0].mxu0 %v1058
      %v3455 = vpop.f32.mrb[0].mxu0
      %v3456 = vadd.f32 %v3006, %v3455
      %v3457 = vpop.f32.mrb[0].mxu0
      %v3458 = vpop.f32.mrb[0].mxu0
      %v3459 = vadd.f32 %v3009, %v3458
      %v3460 = vpop.f32.mrb[0].mxu0
      %3461 = vmatprep.mubr.bf16.mxu0 0
      %3462 = vmatmul.mubr.bf16.gmra.mrb[0].mxu0 %v1061
      %v3463 = vpop.f32.mrb[0].mxu0
      %v3464 = vadd.f32 %v3014, %v3463
      %v3465 = vpop.f32.mrb[0].mxu0
      %v3466 = vpop.f32.mrb[0].mxu0
      %v3467 = vadd.f32 %v3017, %v3466
      %v3468 = vpop.f32.mrb[0].mxu0
      %3469 = vmatprep.mubr.bf16.mxu0 0
      %3470 = vmatmul.mubr.bf16.gmra.mrb[0].mxu0 %v1064
      %v3471 = vpop.f32.mrb[0].mxu0
      %v3472 = vadd.f32 %v3022, %v3471
      %v3473 = vpop.f32.mrb[0].mxu0
      %v3474 = vpop.f32.mrb[0].mxu0
      %v3475 = vpop.f32.mrb[0].mxu0
      %3476 = vmatprep.mubr.bf16.mxu0 0
      %3477 = vmatmul.mubr.bf16.gmra.mrb[0].mxu0 %v1067
      %v3478 = vpop.f32.mrb[0].mxu0
      %v3479 = vadd.f32 %v3029, %v3478
      %v3480 = vpop.f32.mrb[0].mxu0
      %v3481 = vpop.f32.mrb[0].mxu0
      %v3482 = vadd.f32 %v3032, %v3481
      %v3483 = vpop.f32.mrb[0].mxu0
      %3484 = vmatprep.mubr.bf16.mxu0 0
      %3485 = vmatmul.mubr.bf16.gmra.mrb[0].mxu0 %v1070
      %v3486 = vpop.f32.mrb[0].mxu0
      %v3487 = vadd.f32 %v3037, %v3486
      %v3488 = vpop.f32.mrb[0].mxu0
      %v3489 = vpop.f32.mrb[0].mxu0
      %v3490 = vadd.f32 %v3040, %v3489
      %v3491 = vpop.f32.mrb[0].mxu0
      %3492 = vmatprep.mubr.bf16.mxu0 0
      %3493 = vmatmul.mubr.bf16.gmra.mrb[0].mxu0 %v1073
      %v3494 = vpop.f32.mrb[0].mxu0
      %v3495 = vadd.f32 %v3045, %v3494
      %v3496 = vpop.f32.mrb[0].mxu0
      %v3497 = vpop.f32.mrb[0].mxu0
      %v3498 = vpop.f32.mrb[0].mxu0
      %3499 = vmatprep.mubr.bf16.mxu0 0
      %3500 = vmatmul.mubr.bf16.gmra.mrb[0].mxu0 %v1076
      %v3501 = vpop.f32.mrb[0].mxu0
      %v3502 = vadd.f32 %v3052, %v3501
      %v3503 = vpop.f32.mrb[0].mxu0
      %v3504 = vpop.f32.mrb[0].mxu0
      %v3505 = vadd.f32 %v3055, %v3504
      %v3506 = vpop.f32.mrb[0].mxu0
      %3507 = vmatprep.mubr.bf16.mxu0 0
      %3508 = vmatmul.mubr.bf16.gmra.mrb[0].mxu0 %v1079
      %v3509 = vpop.f32.mrb[0].mxu0
      %v3510 = vadd.f32 %v3060, %v3509
      %v3511 = vpop.f32.mrb[0].mxu0
      %v3512 = vpop.f32.mrb[0].mxu0
      %v3513 = vadd.f32 %v3063, %v3512
      %v3514 = vpop.f32.mrb[0].mxu0
      %3515 = vmatprep.mubr.bf16.mxu0 0
      %3516 = vmatmul.mubr.bf16.gmra.mrb[0].mxu0 %v1082
      %v3517 = vpop.f32.mrb[0].mxu0
      %v3518 = vadd.f32 %v3068, %v3517
      %v3519 = vpop.f32.mrb[0].mxu0
      %v3520 = vpop.f32.mrb[0].mxu0
      %v3521 = vpop.f32.mrb[0].mxu0
      %3522 = vmatprep.mubr.bf16.mxu0 0
      %3523 = vmatmul.mubr.bf16.gmra.mrb[0].mxu0 %v1085
      %v3524 = vpop.f32.mrb[0].mxu0
      %v3525 = vadd.f32 %v3075, %v3524
      %v3526 = vpop.f32.mrb[0].mxu0
      %v3527 = vpop.f32.mrb[0].mxu0
      %v3528 = vadd.f32 %v3078, %v3527
      %v3529 = vpop.f32.mrb[0].mxu0
      %3530 = vmatprep.mubr.bf16.mxu0 0
      %3531 = vmatmul.mubr.bf16.gmra.mrb[0].mxu0 %v1088
      %v3532 = vpop.f32.mrb[0].mxu0
      %v3533 = vadd.f32 %v3083, %v3532
      %v3534 = vpop.f32.mrb[0].mxu0
      %v3535 = vpop.f32.mrb[0].mxu0
      %v3536 = vadd.f32 %v3086, %v3535
      %v3537 = vpop.f32.mrb[0].mxu0
      %3538 = vmatprep.mubr.bf16.mxu0 0
      %3539 = vmatmul.mubr.bf16.gmra.mrb[0].mxu0 %v1091
      %v3540 = vpop.f32.mrb[0].mxu0
      %v3541 = vadd.f32 %v3091, %v3540
      %v3542 = vpop.f32.mrb[0].mxu0
      %v3543 = vpop.f32.mrb[0].mxu0
      %v3544 = vpop.f32.mrb[0].mxu0
      %3545 = vmatprep.mubr.bf16.mxu0 0
      %3546 = vmatmul.mubr.bf16.gmra.mrb[0].mxu0 %v1094
      %v3547 = vpop.f32.mrb[0].mxu0
      %v3548 = vadd.f32 %v3098, %v3547
      %v3549 = vpop.f32.mrb[0].mxu0
      %v3550 = vpop.f32.mrb[0].mxu0
      %v3551 = vadd.f32 %v3101, %v3550
      %v3552 = vpop.f32.mrb[0].mxu0
      %3553 = vmatprep.mubr.bf16.mxu0 0
      %3554 = vmatmul.mubr.bf16.gmra.mrb[0].mxu0 %v1097
      %v3555 = vpop.f32.mrb[0].mxu0
      %v3556 = vadd.f32 %v3106, %v3555
      %v3557 = vpop.f32.mrb[0].mxu0
      %v3558 = vpop.f32.mrb[0].mxu0
      %v3559 = vadd.f32 %v3109, %v3558
      %v3560 = vpop.f32.mrb[0].mxu0
      %3561 = vmatprep.mubr.bf16.mxu0 0
      %3562 = vmatmul.mubr.bf16.gmra.mrb[0].mxu0 %v1100
      %v3563 = vpop.f32.mrb[0].mxu0
      %v3564 = vadd.f32 %v3114, %v3563
      %v3565 = vpop.f32.mrb[0].mxu0
      %v3566 = vpop.f32.mrb[0].mxu0
      %v3567 = vpop.f32.mrb[0].mxu0
      %3568 = vmatprep.mubr.bf16.mxu0 0
      %3569 = vmatmul.mubr.bf16.gmra.mrb[0].mxu0 %v1103
      %v3570 = vpop.f32.mrb[0].mxu0
      %v3571 = vadd.f32 %v3121, %v3570
      %v3572 = vpop.f32.mrb[0].mxu0
      %v3573 = vpop.f32.mrb[0].mxu0
      %v3574 = vadd.f32 %v3124, %v3573
      %v3575 = vpop.f32.mrb[0].mxu0
      %3576 = vmatprep.mubr.bf16.mxu0 0
      %3577 = vmatmul.mubr.bf16.gmra.mrb[0].mxu0 %v1106
      %v3578 = vpop.f32.mrb[0].mxu0
      %v3579 = vadd.f32 %v3129, %v3578
      %v3580 = vpop.f32.mrb[0].mxu0
      %v3581 = vpop.f32.mrb[0].mxu0
      %v3582 = vadd.f32 %v3132, %v3581
      %v3583 = vpop.f32.mrb[0].mxu0
      %3584 = vmatprep.mubr.bf16.mxu0 0
      %3585 = vmatmul.mubr.bf16.gmra.mrb[0].mxu0 %v1109
      %v3586 = vpop.f32.mrb[0].mxu0
      %v3587 = vadd.f32 %v3137, %v3586
      %v3588 = vpop.f32.mrb[0].mxu0
      %v3589 = vpop.f32.mrb[0].mxu0
      %v3590 = vpop.f32.mrb[0].mxu0
      %3591 = vmatprep.mubr.bf16.mxu0 0
      %3592 = vmatmul.mubr.bf16.gmra.mrb[0].mxu0 %v1112
      %v3593 = vpop.f32.mrb[0].mxu0
      %v3594 = vadd.f32 %v3144, %v3593
      %v3595 = vpop.f32.mrb[0].mxu0
      %v3596 = vpop.f32.mrb[0].mxu0
      %v3597 = vadd.f32 %v3147, %v3596
      %v3598 = vpop.f32.mrb[0].mxu0
      %3599 = vmatprep.mubr.bf16.mxu0 0
      %3600 = vmatmul.mubr.bf16.gmra.mrb[0].mxu0 %v1115
      %v3601 = vpop.f32.mrb[0].mxu0
      %v3602 = vadd.f32 %v3152, %v3601
      %v3603 = vpop.f32.mrb[0].mxu0
      %v3604 = vpop.f32.mrb[0].mxu0
      %v3605 = vadd.f32 %v3155, %v3604
      %v3606 = vpop.f32.mrb[0].mxu0
      %3607 = vmatprep.mubr.bf16.mxu0 0
      %3608 = vmatmul.mubr.bf16.gmra.mrb[0].mxu0 %v1118
      %v3609 = vpop.f32.mrb[0].mxu0
      %v3610 = vadd.f32 %v3160, %v3609
      %v3611 = vpop.f32.mrb[0].mxu0
      %v3612 = vpop.f32.mrb[0].mxu0
      %v3613 = vpop.f32.mrb[0].mxu0
      %3614 = vmatprep.mubr.bf16.mxu0 0
      %3615 = vmatmul.mubr.bf16.gmra.mrb[0].mxu0 %v1121
      %v3616 = vpop.f32.mrb[0].mxu0
      %v3617 = vadd.f32 %v3167, %v3616
      %v3618 = vpop.f32.mrb[0].mxu0
      %v3619 = vpop.f32.mrb[0].mxu0
      %v3620 = vadd.f32 %v3170, %v3619
      %v3621 = vpop.f32.mrb[0].mxu0
      %3622 = vmatprep.mubr.bf16.mxu0 0
      %3623 = vmatmul.mubr.bf16.gmra.mrb[0].mxu0 %v1124
      %v3624 = vpop.f32.mrb[0].mxu0
      %v3625 = vadd.f32 %v3175, %v3624
      %v3626 = vpop.f32.mrb[0].mxu0
      %v3627 = vpop.f32.mrb[0].mxu0
      %v3628 = vadd.f32 %v3178, %v3627
      %v3629 = vpop.f32.mrb[0].mxu0
      %3630 = vmatprep.mubr.bf16.mxu0 0
      %3631 = vmatmul.mubr.bf16.gmra.mrb[0].mxu0 %v1127
      %v3632 = vpop.f32.mrb[0].mxu0
      %v3633 = vadd.f32 %v3183, %v3632
      %v3634 = vpop.f32.mrb[0].mxu0
      %v3635 = vpop.f32.mrb[0].mxu0
      %v3636 = vpop.f32.mrb[0].mxu0
      %3637 = vdwg.mxu0
      %s3638 = scalar_lea.vmem %s2, 28
      %v3639 = vld [vmem:[%s3638] sm:$0xf]
      %v3641 = vsel %vm1138, %v3639, 0
      %3643 = vmatprep.subr.bf16.mxu0 0
      %3644 = vmatpush1.bf16.msra.mxu0 %v3641
      %3645 = vmatprep.subr.bf16.mxu0 0
      %3646 = vmatpush1.bf16.msra.mxu0 0
      %3647 = vmatprep.subr.bf16.mxu0 0
      %3648 = vmatpush1.bf16.msra.mxu0 0
      %3649 = vmatprep.subr.bf16.mxu0 0
      %3650 = vmatpush1.bf16.msra.mxu0 0
      %3651 = vmatprep.subr.bf16.mxu0 0
      %3652 = vmatpush1.bf16.msra.mxu0 0
      %3653 = vmatprep.subr.bf16.mxu0 0
      %3654 = vmatpush1.bf16.msra.mxu0 0
      %3655 = vmatprep.subr.bf16.mxu0 0
      %3656 = vmatpush1.bf16.msra.mxu0 0
      %3657 = vmatprep.subr.bf16.mxu0 0
      %3658 = vmatpush1.bf16.msra.mxu0 0
      %3659 = vmatprep.subr.bf16.mxu0 0
      %3660 = vmatpush1.bf16.msra.mxu0 0
      %3661 = vmatprep.subr.bf16.mxu0 0
      %3662 = vmatpush1.bf16.msra.mxu0 0
      %3663 = vmatprep.subr.bf16.mxu0 0
      %3664 = vmatpush1.bf16.msra.mxu0 0
      %3665 = vmatprep.subr.bf16.mxu0 0
      %3666 = vmatpush1.bf16.msra.mxu0 0
      %3667 = vmatprep.subr.bf16.mxu0 0
      %3668 = vmatpush1.bf16.msra.mxu0 0
      %3669 = vmatprep.subr.bf16.mxu0 0
      %3670 = vmatpush1.bf16.msra.mxu0 0
      %3671 = vmatprep.subr.bf16.mxu0 0
      %3672 = vmatpush1.bf16.msra.mxu0 0
      %3673 = vmatprep.subr.bf16.mxu0 0
      %3674 = vmatpush1.bf16.msra.mxu0 0
      %3675 = vmatprep.mubr.bf16.mxu0 0
      %3676 = vmatmul.mubr.bf16.gmra.mrb[0].mxu0 %v2069
      %v3677 = vpop.f32.mrb[0].mxu0
      %v3678 = vadd.f32 0.0, %v3677
      %v3679 = vpop.f32.mrb[0].mxu0
      %v3680 = vpop.f32.mrb[0].mxu0
      %v3681 = vadd.f32 0.0, %v3680
      %v3682 = vpop.f32.mrb[0].mxu0
      %3683 = vmatprep.mubr.bf16.mxu0 0
      %3684 = vmatmul.mubr.bf16.gmra.mrb[0].mxu0 %v2072
      %v3685 = vpop.f32.mrb[0].mxu0
      %v3686 = vadd.f32 0.0, %v3685
      %v3687 = vpop.f32.mrb[0].mxu0
      %v3688 = vpop.f32.mrb[0].mxu0
      %v3689 = vadd.f32 0.0, %v3688
      %v3690 = vpop.f32.mrb[0].mxu0
      %3691 = vmatprep.mubr.bf16.mxu0 0
      %3692 = vmatmul.mubr.bf16.gmra.mrb[0].mxu0 %v2075
      %v3693 = vpop.f32.mrb[0].mxu0
      %v3694 = vadd.f32 0.0, %v3693
      %v3695 = vpop.f32.mrb[0].mxu0
      %v3696 = vpop.f32.mrb[0].mxu0
      %v3697 = vpop.f32.mrb[0].mxu0
      %3698 = vmatprep.mubr.bf16.mxu0 0
      %3699 = vmatmul.mubr.bf16.gmra.mrb[0].mxu0 %v2078
      %v3700 = vpop.f32.mrb[0].mxu0
      %v3701 = vadd.f32 0.0, %v3700
      %v3702 = vpop.f32.mrb[0].mxu0
      %v3703 = vpop.f32.mrb[0].mxu0
      %v3704 = vadd.f32 0.0, %v3703
      %v3705 = vpop.f32.mrb[0].mxu0
      %3706 = vmatprep.mubr.bf16.mxu0 0
      %3707 = vmatmul.mubr.bf16.gmra.mrb[0].mxu0 %v2081
      %v3708 = vpop.f32.mrb[0].mxu0
      %v3709 = vadd.f32 0.0, %v3708
      %v3710 = vpop.f32.mrb[0].mxu0
      %v3711 = vpop.f32.mrb[0].mxu0
      %v3712 = vadd.f32 0.0, %v3711
      %v3713 = vpop.f32.mrb[0].mxu0
      %3714 = vmatprep.mubr.bf16.mxu0 0
      %3715 = vmatmul.mubr.bf16.gmra.mrb[0].mxu0 %v2084
      %v3716 = vpop.f32.mrb[0].mxu0
      %v3717 = vadd.f32 0.0, %v3716
      %v3718 = vpop.f32.mrb[0].mxu0
      %v3719 = vpop.f32.mrb[0].mxu0
      %v3720 = vpop.f32.mrb[0].mxu0
      %3721 = vmatprep.mubr.bf16.mxu0 0
      %3722 = vmatmul.mubr.bf16.gmra.mrb[0].mxu0 %v2087
      %v3723 = vpop.f32.mrb[0].mxu0
      %v3724 = vadd.f32 0.0, %v3723
      %v3725 = vpop.f32.mrb[0].mxu0
      %v3726 = vpop.f32.mrb[0].mxu0
      %v3727 = vadd.f32 0.0, %v3726
      %v3728 = vpop.f32.mrb[0].mxu0
      %3729 = vmatprep.mubr.bf16.mxu0 0
      %3730 = vmatmul.mubr.bf16.gmra.mrb[0].mxu0 %v2090
      %v3731 = vpop.f32.mrb[0].mxu0
      %v3732 = vadd.f32 0.0, %v3731
      %v3733 = vpop.f32.mrb[0].mxu0
      %v3734 = vpop.f32.mrb[0].mxu0
      %v3735 = vadd.f32 0.0, %v3734
      %v3736 = vpop.f32.mrb[0].mxu0
      %3737 = vmatprep.mubr.bf16.mxu0 0
      %3738 = vmatmul.mubr.bf16.gmra.mrb[0].mxu0 %v2093
      %v3739 = vpop.f32.mrb[0].mxu0
      %v3740 = vadd.f32 0.0, %v3739
      %v3741 = vpop.f32.mrb[0].mxu0
      %v3742 = vpop.f32.mrb[0].mxu0
      %v3743 = vpop.f32.mrb[0].mxu0
      %3744 = vmatprep.mubr.bf16.mxu0 0
      %3745 = vmatmul.mubr.bf16.gmra.mrb[0].mxu0 %v2096
      %v3746 = vpop.f32.mrb[0].mxu0
      %v3747 = vadd.f32 0.0, %v3746
      %v3748 = vpop.f32.mrb[0].mxu0
      %v3749 = vpop.f32.mrb[0].mxu0
      %v3750 = vadd.f32 0.0, %v3749
      %v3751 = vpop.f32.mrb[0].mxu0
      %3752 = vmatprep.mubr.bf16.mxu0 0
      %3753 = vmatmul.mubr.bf16.gmra.mrb[0].mxu0 %v2099
      %v3754 = vpop.f32.mrb[0].mxu0
      %v3755 = vadd.f32 0.0, %v3754
      %v3756 = vpop.f32.mrb[0].mxu0
      %v3757 = vpop.f32.mrb[0].mxu0
      %v3758 = vadd.f32 0.0, %v3757
      %v3759 = vpop.f32.mrb[0].mxu0
      %3760 = vmatprep.mubr.bf16.mxu0 0
      %3761 = vmatmul.mubr.bf16.gmra.mrb[0].mxu0 %v2102
      %v3762 = vpop.f32.mrb[0].mxu0
      %v3763 = vadd.f32 0.0, %v3762
      %v3764 = vpop.f32.mrb[0].mxu0
      %v3765 = vpop.f32.mrb[0].mxu0
      %v3766 = vpop.f32.mrb[0].mxu0
      %3767 = vmatprep.mubr.bf16.mxu0 0
      %3768 = vmatmul.mubr.bf16.gmra.mrb[0].mxu0 %v2105
      %v3769 = vpop.f32.mrb[0].mxu0
      %v3770 = vadd.f32 0.0, %v3769
      %v3771 = vpop.f32.mrb[0].mxu0
      %v3772 = vpop.f32.mrb[0].mxu0
      %v3773 = vadd.f32 0.0, %v3772
      %v3774 = vpop.f32.mrb[0].mxu0
      %3775 = vmatprep.mubr.bf16.mxu0 0
      %3776 = vmatmul.mubr.bf16.gmra.mrb[0].mxu0 %v2108
      %v3777 = vpop.f32.mrb[0].mxu0
      %v3778 = vadd.f32 0.0, %v3777
      %v3779 = vpop.f32.mrb[0].mxu0
      %v3780 = vpop.f32.mrb[0].mxu0
      %v3781 = vadd.f32 0.0, %v3780
      %v3782 = vpop.f32.mrb[0].mxu0
      %3783 = vmatprep.mubr.bf16.mxu0 0
      %3784 = vmatmul.mubr.bf16.gmra.mrb[0].mxu0 %v2111
      %v3785 = vpop.f32.mrb[0].mxu0
      %v3786 = vadd.f32 0.0, %v3785
      %v3787 = vpop.f32.mrb[0].mxu0
      %v3788 = vpop.f32.mrb[0].mxu0
      %v3789 = vpop.f32.mrb[0].mxu0
      %3790 = vmatprep.mubr.bf16.mxu0 0
      %3791 = vmatmul.mubr.bf16.gmra.mrb[0].mxu0 %v2114
      %v3792 = vpop.f32.mrb[0].mxu0
      %v3793 = vadd.f32 0.0, %v3792
      %v3794 = vpop.f32.mrb[0].mxu0
      %v3795 = vpop.f32.mrb[0].mxu0
      %v3796 = vadd.f32 0.0, %v3795
      %v3797 = vpop.f32.mrb[0].mxu0
      %3798 = vmatprep.mubr.bf16.mxu0 0
      %3799 = vmatmul.mubr.bf16.gmra.mrb[0].mxu0 %v2117
      %v3800 = vpop.f32.mrb[0].mxu0
      %v3801 = vadd.f32 0.0, %v3800
      %v3802 = vpop.f32.mrb[0].mxu0
      %v3803 = vpop.f32.mrb[0].mxu0
      %v3804 = vadd.f32 0.0, %v3803
      %v3805 = vpop.f32.mrb[0].mxu0
      %3806 = vmatprep.mubr.bf16.mxu0 0
      %3807 = vmatmul.mubr.bf16.gmra.mrb[0].mxu0 %v2120
      %v3808 = vpop.f32.mrb[0].mxu0
      %v3809 = vadd.f32 0.0, %v3808
      %v3810 = vpop.f32.mrb[0].mxu0
      %v3811 = vpop.f32.mrb[0].mxu0
      %v3812 = vpop.f32.mrb[0].mxu0
      %3813 = vmatprep.mubr.bf16.mxu0 0
      %3814 = vmatmul.mubr.bf16.gmra.mrb[0].mxu0 %v2123
      %v3815 = vpop.f32.mrb[0].mxu0
      %v3816 = vadd.f32 0.0, %v3815
      %v3817 = vpop.f32.mrb[0].mxu0
      %v3818 = vpop.f32.mrb[0].mxu0
      %v3819 = vadd.f32 0.0, %v3818
      %v3820 = vpop.f32.mrb[0].mxu0
      %3821 = vmatprep.mubr.bf16.mxu0 0
      %3822 = vmatmul.mubr.bf16.gmra.mrb[0].mxu0 %v2126
      %v3823 = vpop.f32.mrb[0].mxu0
      %v3824 = vadd.f32 0.0, %v3823
      %v3825 = vpop.f32.mrb[0].mxu0
      %v3826 = vpop.f32.mrb[0].mxu0
      %v3827 = vadd.f32 0.0, %v3826
      %v3828 = vpop.f32.mrb[0].mxu0
      %3829 = vmatprep.mubr.bf16.mxu0 0
      %3830 = vmatmul.mubr.bf16.gmra.mrb[0].mxu0 %v2129
      %v3831 = vpop.f32.mrb[0].mxu0
      %v3832 = vadd.f32 0.0, %v3831
      %v3833 = vpop.f32.mrb[0].mxu0
      %v3834 = vpop.f32.mrb[0].mxu0
      %v3835 = vpop.f32.mrb[0].mxu0
      %3836 = vmatprep.mubr.bf16.mxu0 0
      %3837 = vmatmul.mubr.bf16.gmra.mrb[0].mxu0 %v2132
      %v3838 = vpop.f32.mrb[0].mxu0
      %v3839 = vadd.f32 0.0, %v3838
      %v3840 = vpop.f32.mrb[0].mxu0
      %v3841 = vpop.f32.mrb[0].mxu0
      %v3842 = vadd.f32 0.0, %v3841
      %v3843 = vpop.f32.mrb[0].mxu0
      %3844 = vmatprep.mubr.bf16.mxu0 0
      %3845 = vmatmul.mubr.bf16.gmra.mrb[0].mxu0 %v2135
      %v3846 = vpop.f32.mrb[0].mxu0
      %v3847 = vadd.f32 0.0, %v3846
      %v3848 = vpop.f32.mrb[0].mxu0
      %v3849 = vpop.f32.mrb[0].mxu0
      %v3850 = vadd.f32 0.0, %v3849
      %v3851 = vpop.f32.mrb[0].mxu0
      %3852 = vmatprep.mubr.bf16.mxu0 0
      %3853 = vmatmul.mubr.bf16.gmra.mrb[0].mxu0 %v2138
      %v3854 = vpop.f32.mrb[0].mxu0
      %v3855 = vadd.f32 0.0, %v3854
      %v3856 = vpop.f32.mrb[0].mxu0
      %v3857 = vpop.f32.mrb[0].mxu0
      %v3858 = vpop.f32.mrb[0].mxu0
      %3859 = vmatprep.mubr.bf16.mxu0 0
      %3860 = vmatmul.mubr.bf16.gmra.mrb[0].mxu0 %v2141
      %v3861 = vpop.f32.mrb[0].mxu0
      %v3862 = vadd.f32 0.0, %v3861
      %v3863 = vpop.f32.mrb[0].mxu0
      %v3864 = vpop.f32.mrb[0].mxu0
      %v3865 = vadd.f32 0.0, %v3864
      %v3866 = vpop.f32.mrb[0].mxu0
      %3867 = vmatprep.mubr.bf16.mxu0 0
      %3868 = vmatmul.mubr.bf16.gmra.mrb[0].mxu0 %v2144
      %v3869 = vpop.f32.mrb[0].mxu0
      %v3870 = vadd.f32 0.0, %v3869
      %v3871 = vpop.f32.mrb[0].mxu0
      %v3872 = vpop.f32.mrb[0].mxu0
      %v3873 = vadd.f32 0.0, %v3872
      %v3874 = vpop.f32.mrb[0].mxu0
      %3875 = vmatprep.mubr.bf16.mxu0 0
      %3876 = vmatmul.mubr.bf16.gmra.mrb[0].mxu0 %v2147
      %v3877 = vpop.f32.mrb[0].mxu0
      %v3878 = vadd.f32 0.0, %v3877
      %v3879 = vpop.f32.mrb[0].mxu0
      %v3880 = vpop.f32.mrb[0].mxu0
      %v3881 = vpop.f32.mrb[0].mxu0
      %3882 = vmatprep.mubr.bf16.mxu0 0
      %3883 = vmatmul.mubr.bf16.gmra.mrb[0].mxu0 %v2150
      %v3884 = vpop.f32.mrb[0].mxu0
      %v3885 = vadd.f32 0.0, %v3884
      %v3886 = vpop.f32.mrb[0].mxu0
      %v3887 = vpop.f32.mrb[0].mxu0
      %v3888 = vadd.f32 0.0, %v3887
      %v3889 = vpop.f32.mrb[0].mxu0
      %3890 = vmatprep.mubr.bf16.mxu0 0
      %3891 = vmatmul.mubr.bf16.gmra.mrb[0].mxu0 %v2153
      %v3892 = vpop.f32.mrb[0].mxu0
      %v3893 = vadd.f32 0.0, %v3892
      %v3894 = vpop.f32.mrb[0].mxu0
      %v3895 = vpop.f32.mrb[0].mxu0
      %v3896 = vadd.f32 0.0, %v3895
      %v3897 = vpop.f32.mrb[0].mxu0
      %3898 = vmatprep.mubr.bf16.mxu0 0
      %3899 = vmatmul.mubr.bf16.gmra.mrb[0].mxu0 %v2156
      %v3900 = vpop.f32.mrb[0].mxu0
      %v3901 = vadd.f32 0.0, %v3900
      %v3902 = vpop.f32.mrb[0].mxu0
      %v3903 = vpop.f32.mrb[0].mxu0
      %v3904 = vpop.f32.mrb[0].mxu0
      %3905 = vmatprep.mubr.bf16.mxu0 0
      %3906 = vmatmul.mubr.bf16.gmra.mrb[0].mxu0 %v2159
      %v3907 = vpop.f32.mrb[0].mxu0
      %v3908 = vadd.f32 0.0, %v3907
      %v3909 = vpop.f32.mrb[0].mxu0
      %v3910 = vpop.f32.mrb[0].mxu0
      %v3911 = vadd.f32 0.0, %v3910
      %v3912 = vpop.f32.mrb[0].mxu0
      %3913 = vmatprep.mubr.bf16.mxu0 0
      %3914 = vmatmul.mubr.bf16.gmra.mrb[0].mxu0 %v2162
      %v3915 = vpop.f32.mrb[0].mxu0
      %v3916 = vadd.f32 0.0, %v3915
      %v3917 = vpop.f32.mrb[0].mxu0
      %v3918 = vpop.f32.mrb[0].mxu0
      %v3919 = vadd.f32 0.0, %v3918
      %v3920 = vpop.f32.mrb[0].mxu0
      %3921 = vmatprep.mubr.bf16.mxu0 0
      %3922 = vmatmul.mubr.bf16.gmra.mrb[0].mxu0 %v2165
      %v3923 = vpop.f32.mrb[0].mxu0
      %v3924 = vadd.f32 0.0, %v3923
      %v3925 = vpop.f32.mrb[0].mxu0
      %v3926 = vpop.f32.mrb[0].mxu0
      %v3927 = vpop.f32.mrb[0].mxu0
      %3928 = vmatprep.mubr.bf16.mxu0 0
      %3929 = vmatmul.mubr.bf16.gmra.mrb[0].mxu0 %v2168
      %v3930 = vpop.f32.mrb[0].mxu0
      %v3931 = vadd.f32 0.0, %v3930
      %v3932 = vpop.f32.mrb[0].mxu0
      %v3933 = vpop.f32.mrb[0].mxu0
      %v3934 = vadd.f32 0.0, %v3933
      %v3935 = vpop.f32.mrb[0].mxu0
      %3936 = vmatprep.mubr.bf16.mxu0 0
      %3937 = vmatmul.mubr.bf16.gmra.mrb[0].mxu0 %v2171
      %v3938 = vpop.f32.mrb[0].mxu0
      %v3939 = vadd.f32 0.0, %v3938
      %v3940 = vpop.f32.mrb[0].mxu0
      %v3941 = vpop.f32.mrb[0].mxu0
      %v3942 = vadd.f32 0.0, %v3941
      %v3943 = vpop.f32.mrb[0].mxu0
      %3944 = vmatprep.mubr.bf16.mxu0 0
      %3945 = vmatmul.mubr.bf16.gmra.mrb[0].mxu0 %v2174
      %v3946 = vpop.f32.mrb[0].mxu0
      %v3947 = vadd.f32 0.0, %v3946
      %v3948 = vpop.f32.mrb[0].mxu0
      %v3949 = vpop.f32.mrb[0].mxu0
      %v3950 = vpop.f32.mrb[0].mxu0
      %3951 = vmatprep.mubr.bf16.mxu0 0
      %3952 = vmatmul.mubr.bf16.gmra.mrb[0].mxu0 %v2177
      %v3953 = vpop.f32.mrb[0].mxu0
      %v3954 = vadd.f32 0.0, %v3953
      %v3955 = vpop.f32.mrb[0].mxu0
      %v3956 = vpop.f32.mrb[0].mxu0
      %v3957 = vadd.f32 0.0, %v3956
      %v3958 = vpop.f32.mrb[0].mxu0
      %3959 = vmatprep.mubr.bf16.mxu0 0
      %3960 = vmatmul.mubr.bf16.gmra.mrb[0].mxu0 %v2180
      %v3961 = vpop.f32.mrb[0].mxu0
      %v3962 = vadd.f32 0.0, %v3961
      %v3963 = vpop.f32.mrb[0].mxu0
      %v3964 = vpop.f32.mrb[0].mxu0
      %v3965 = vadd.f32 0.0, %v3964
      %v3966 = vpop.f32.mrb[0].mxu0
      %3967 = vmatprep.mubr.bf16.mxu0 0
      %3968 = vmatmul.mubr.bf16.gmra.mrb[0].mxu0 %v2183
      %v3969 = vpop.f32.mrb[0].mxu0
      %v3970 = vadd.f32 0.0, %v3969
      %v3971 = vpop.f32.mrb[0].mxu0
      %v3972 = vpop.f32.mrb[0].mxu0
      %v3973 = vpop.f32.mrb[0].mxu0
      %3974 = vmatprep.mubr.bf16.mxu0 0
      %3975 = vmatmul.mubr.bf16.gmra.mrb[0].mxu0 %v2186
      %v3976 = vpop.f32.mrb[0].mxu0
      %v3977 = vadd.f32 0.0, %v3976
      %v3978 = vpop.f32.mrb[0].mxu0
      %v3979 = vpop.f32.mrb[0].mxu0
      %v3980 = vadd.f32 0.0, %v3979
      %v3981 = vpop.f32.mrb[0].mxu0
      %3982 = vmatprep.mubr.bf16.mxu0 0
      %3983 = vmatmul.mubr.bf16.gmra.mrb[0].mxu0 %v2189
      %v3984 = vpop.f32.mrb[0].mxu0
      %v3985 = vadd.f32 0.0, %v3984
      %v3986 = vpop.f32.mrb[0].mxu0
      %v3987 = vpop.f32.mrb[0].mxu0
      %v3988 = vadd.f32 0.0, %v3987
      %v3989 = vpop.f32.mrb[0].mxu0
      %3990 = vmatprep.mubr.bf16.mxu0 0
      %3991 = vmatmul.mubr.bf16.gmra.mrb[0].mxu0 %v2192
      %v3992 = vpop.f32.mrb[0].mxu0
      %v3993 = vadd.f32 0.0, %v3992
      %v3994 = vpop.f32.mrb[0].mxu0
      %v3995 = vpop.f32.mrb[0].mxu0
      %v3996 = vpop.f32.mrb[0].mxu0
      %3997 = vmatprep.mubr.bf16.mxu0 0
      %3998 = vmatmul.mubr.bf16.gmra.mrb[0].mxu0 %v2195
      %v3999 = vpop.f32.mrb[0].mxu0
      %v4000 = vadd.f32 0.0, %v3999
      %v4001 = vpop.f32.mrb[0].mxu0
      %v4002 = vpop.f32.mrb[0].mxu0
      %v4003 = vadd.f32 0.0, %v4002
      %v4004 = vpop.f32.mrb[0].mxu0
      %4005 = vmatprep.mubr.bf16.mxu0 0
      %4006 = vmatmul.mubr.bf16.gmra.mrb[0].mxu0 %v2198
      %v4007 = vpop.f32.mrb[0].mxu0
      %v4008 = vadd.f32 0.0, %v4007
      %v4009 = vpop.f32.mrb[0].mxu0
      %v4010 = vpop.f32.mrb[0].mxu0
      %v4011 = vadd.f32 0.0, %v4010
      %v4012 = vpop.f32.mrb[0].mxu0
      %4013 = vmatprep.mubr.bf16.mxu0 0
      %4014 = vmatmul.mubr.bf16.gmra.mrb[0].mxu0 %v2201
      %v4015 = vpop.f32.mrb[0].mxu0
      %v4016 = vadd.f32 0.0, %v4015
      %v4017 = vpop.f32.mrb[0].mxu0
      %v4018 = vpop.f32.mrb[0].mxu0
      %v4019 = vpop.f32.mrb[0].mxu0
      %4020 = vmatprep.mubr.bf16.mxu0 0
      %4021 = vmatmul.mubr.bf16.gmra.mrb[0].mxu0 %v2204
      %v4022 = vpop.f32.mrb[0].mxu0
      %v4023 = vadd.f32 0.0, %v4022
      %v4024 = vpop.f32.mrb[0].mxu0
      %v4025 = vpop.f32.mrb[0].mxu0
      %v4026 = vadd.f32 0.0, %v4025
      %v4027 = vpop.f32.mrb[0].mxu0
      %4028 = vmatprep.mubr.bf16.mxu0 0
      %4029 = vmatmul.mubr.bf16.gmra.mrb[0].mxu0 %v2207
      %v4030 = vpop.f32.mrb[0].mxu0
      %v4031 = vadd.f32 0.0, %v4030
      %v4032 = vpop.f32.mrb[0].mxu0
      %v4033 = vpop.f32.mrb[0].mxu0
      %v4034 = vadd.f32 0.0, %v4033
      %v4035 = vpop.f32.mrb[0].mxu0
      %4036 = vmatprep.mubr.bf16.mxu0 0
      %4037 = vmatmul.mubr.bf16.gmra.mrb[0].mxu0 %v2210
      %v4038 = vpop.f32.mrb[0].mxu0
      %v4039 = vadd.f32 0.0, %v4038
      %v4040 = vpop.f32.mrb[0].mxu0
      %v4041 = vpop.f32.mrb[0].mxu0
      %v4042 = vpop.f32.mrb[0].mxu0
      %4043 = vmatprep.mubr.bf16.mxu0 0
      %4044 = vmatmul.mubr.bf16.gmra.mrb[0].mxu0 %v2213
      %v4045 = vpop.f32.mrb[0].mxu0
      %v4046 = vadd.f32 0.0, %v4045
      %v4047 = vpop.f32.mrb[0].mxu0
      %v4048 = vpop.f32.mrb[0].mxu0
      %v4049 = vadd.f32 0.0, %v4048
      %v4050 = vpop.f32.mrb[0].mxu0
      %4051 = vmatprep.mubr.bf16.mxu0 0
      %4052 = vmatmul.mubr.bf16.gmra.mrb[0].mxu0 %v2216
      %v4053 = vpop.f32.mrb[0].mxu0
      %v4054 = vadd.f32 0.0, %v4053
      %v4055 = vpop.f32.mrb[0].mxu0
      %v4056 = vpop.f32.mrb[0].mxu0
      %v4057 = vadd.f32 0.0, %v4056
      %v4058 = vpop.f32.mrb[0].mxu0
      %4059 = vmatprep.mubr.bf16.mxu0 0
      %4060 = vmatmul.mubr.bf16.gmra.mrb[0].mxu0 %v2219
      %v4061 = vpop.f32.mrb[0].mxu0
      %v4062 = vadd.f32 0.0, %v4061
      %v4063 = vpop.f32.mrb[0].mxu0
      %v4064 = vpop.f32.mrb[0].mxu0
      %v4065 = vpop.f32.mrb[0].mxu0
      %4066 = vmatprep.mubr.bf16.mxu0 0
      %4067 = vmatmul.mubr.bf16.gmra.mrb[0].mxu0 %v2222
      %v4068 = vpop.f32.mrb[0].mxu0
      %v4069 = vadd.f32 0.0, %v4068
      %v4070 = vpop.f32.mrb[0].mxu0
      %v4071 = vpop.f32.mrb[0].mxu0
      %v4072 = vadd.f32 0.0, %v4071
      %v4073 = vpop.f32.mrb[0].mxu0
      %4074 = vmatprep.mubr.bf16.mxu0 0
      %4075 = vmatmul.mubr.bf16.gmra.mrb[0].mxu0 %v2225
      %v4076 = vpop.f32.mrb[0].mxu0
      %v4077 = vadd.f32 0.0, %v4076
      %v4078 = vpop.f32.mrb[0].mxu0
      %v4079 = vpop.f32.mrb[0].mxu0
      %v4080 = vadd.f32 0.0, %v4079
      %v4081 = vpop.f32.mrb[0].mxu0
      %4082 = vmatprep.mubr.bf16.mxu0 0
      %4083 = vmatmul.mubr.bf16.gmra.mrb[0].mxu0 %v2228
      %v4084 = vpop.f32.mrb[0].mxu0
      %v4085 = vadd.f32 0.0, %v4084
      %v4086 = vpop.f32.mrb[0].mxu0
      %v4087 = vpop.f32.mrb[0].mxu0
      %v4088 = vpop.f32.mrb[0].mxu0
      %4089 = vdwg.mxu0
      %v4090 = vadd.f32 %v3226, %v3678
      %v4091 = vadd.f32 %v3229, %v3681
      %v4092 = vadd.f32 %v3234, %v3686
      %v4093 = vadd.f32 %v3237, %v3689
      %v4094 = vadd.f32 %v3242, %v3694
      %v4095 = vadd.f32 %v3249, %v3701
      %v4096 = vadd.f32 %v3252, %v3704
      %v4097 = vadd.f32 %v3257, %v3709
      %v4098 = vadd.f32 %v3260, %v3712
      %v4099 = vadd.f32 %v3265, %v3717
      %v4100 = vadd.f32 %v3272, %v3724
      %v4101 = vadd.f32 %v3275, %v3727
      %v4102 = vadd.f32 %v3280, %v3732
      %v4103 = vadd.f32 %v3283, %v3735
      %v4104 = vadd.f32 %v3288, %v3740
      %v4105 = vadd.f32 %v3295, %v3747
      %v4106 = vadd.f32 %v3298, %v3750
      %v4107 = vadd.f32 %v3303, %v3755
      %v4108 = vadd.f32 %v3306, %v3758
      %v4109 = vadd.f32 %v3311, %v3763
      %v4110 = vadd.f32 %v3318, %v3770
      %v4111 = vadd.f32 %v3321, %v3773
      %v4112 = vadd.f32 %v3326, %v3778
      %v4113 = vadd.f32 %v3329, %v3781
      %v4114 = vadd.f32 %v3334, %v3786
      %v4115 = vadd.f32 %v3341, %v3793
      %v4116 = vadd.f32 %v3344, %v3796
      %v4117 = vadd.f32 %v3349, %v3801
      %v4118 = vadd.f32 %v3352, %v3804
      %v4119 = vadd.f32 %v3357, %v3809
      %v4120 = vadd.f32 %v3364, %v3816
      %v4121 = vadd.f32 %v3367, %v3819
      %v4122 = vadd.f32 %v3372, %v3824
      %v4123 = vadd.f32 %v3375, %v3827
      %v4124 = vadd.f32 %v3380, %v3832
      %v4125 = vadd.f32 %v3387, %v3839
      %v4126 = vadd.f32 %v3390, %v3842
      %v4127 = vadd.f32 %v3395, %v3847
      %v4128 = vadd.f32 %v3398, %v3850
      %v4129 = vadd.f32 %v3403, %v3855
      %v4130 = vadd.f32 %v3410, %v3862
      %v4131 = vadd.f32 %v3413, %v3865
      %v4132 = vadd.f32 %v3418, %v3870
      %v4133 = vadd.f32 %v3421, %v3873
      %v4134 = vadd.f32 %v3426, %v3878
      %v4135 = vadd.f32 %v3433, %v3885
      %v4136 = vadd.f32 %v3436, %v3888
      %v4137 = vadd.f32 %v3441, %v3893
      %v4138 = vadd.f32 %v3444, %v3896
      %v4139 = vadd.f32 %v3449, %v3901
      %v4140 = vadd.f32 %v3456, %v3908
      %v4141 = vadd.f32 %v3459, %v3911
      %v4142 = vadd.f32 %v3464, %v3916
      %v4143 = vadd.f32 %v3467, %v3919
      %v4144 = vadd.f32 %v3472, %v3924
      %v4145 = vadd.f32 %v3479, %v3931
      %v4146 = vadd.f32 %v3482, %v3934
      %v4147 = vadd.f32 %v3487, %v3939
      %v4148 = vadd.f32 %v3490, %v3942
      %v4149 = vadd.f32 %v3495, %v3947
      %v4150 = vadd.f32 %v3502, %v3954
      %v4151 = vadd.f32 %v3505, %v3957
      %v4152 = vadd.f32 %v3510, %v3962
      %v4153 = vadd.f32 %v3513, %v3965
      %v4154 = vadd.f32 %v3518, %v3970
      %v4155 = vadd.f32 %v3525, %v3977
      %v4156 = vadd.f32 %v3528, %v3980
      %v4157 = vadd.f32 %v3533, %v3985
      %v4158 = vadd.f32 %v3536, %v3988
      %v4159 = vadd.f32 %v3541, %v3993
      %v4160 = vadd.f32 %v3548, %v4000
      %v4161 = vadd.f32 %v3551, %v4003
      %v4162 = vadd.f32 %v3556, %v4008
      %v4163 = vadd.f32 %v3559, %v4011
      %v4164 = vadd.f32 %v3564, %v4016
      %v4165 = vadd.f32 %v3571, %v4023
      %v4166 = vadd.f32 %v3574, %v4026
      %v4167 = vadd.f32 %v3579, %v4031
      %v4168 = vadd.f32 %v3582, %v4034
      %v4169 = vadd.f32 %v3587, %v4039
      %v4170 = vadd.f32 %v3594, %v4046
      %v4171 = vadd.f32 %v3597, %v4049
      %v4172 = vadd.f32 %v3602, %v4054
      %v4173 = vadd.f32 %v3605, %v4057
      %v4174 = vadd.f32 %v3610, %v4062
      %v4175 = vadd.f32 %v3617, %v4069
      %v4176 = vadd.f32 %v3620, %v4072
      %v4177 = vadd.f32 %v3625, %v4077
      %v4178 = vadd.f32 %v3628, %v4080
      %v4179 = vadd.f32 %v3633, %v4085
      %vm4270 = vcmask 1046528
      %v4271 = vrot.slane %v4090, 1
      %v4272 = vrot.slane %v4091, 1
      %v4273 = vsel %vm4270, %v4271, %v4272
      %v4274 = vrot.slane %v4092, 1
      %v4275 = vsel %vm4270, %v4272, %v4274
      %v4276 = vrot.slane %v4093, 1
      %v4277 = vsel %vm4270, %v4274, %v4276
      %v4278 = vrot.slane %v4094, 1
      %v4279 = vsel %vm4270, %v4276, %v4278
      %v4280 = vrot.slane %v4095, 1
      %v4281 = vrot.slane %v4096, 1
      %v4282 = vsel %vm4270, %v4280, %v4281
      %v4283 = vrot.slane %v4097, 1
      %v4284 = vsel %vm4270, %v4281, %v4283
      %v4285 = vrot.slane %v4098, 1
      %v4286 = vsel %vm4270, %v4283, %v4285
      %v4287 = vrot.slane %v4099, 1
      %v4288 = vsel %vm4270, %v4285, %v4287
      %v4289 = vrot.slane %v4100, 1
      %v4290 = vrot.slane %v4101, 1
      %v4291 = vsel %vm4270, %v4289, %v4290
      %v4292 = vrot.slane %v4102, 1
      %v4293 = vsel %vm4270, %v4290, %v4292
      %v4294 = vrot.slane %v4103, 1
      %v4295 = vsel %vm4270, %v4292, %v4294
      %v4296 = vrot.slane %v4104, 1
      %v4297 = vsel %vm4270, %v4294, %v4296
      %v4298 = vrot.slane %v4105, 1
      %v4299 = vrot.slane %v4106, 1
      %v4300 = vsel %vm4270, %v4298, %v4299
      %v4301 = vrot.slane %v4107, 1
      %v4302 = vsel %vm4270, %v4299, %v4301
      %v4303 = vrot.slane %v4108, 1
      %v4304 = vsel %vm4270, %v4301, %v4303
      %v4305 = vrot.slane %v4109, 1
      %v4306 = vsel %vm4270, %v4303, %v4305
      %v4307 = vrot.slane %v4110, 1
      %v4308 = vrot.slane %v4111, 1
      %v4309 = vsel %vm4270, %v4307, %v4308
      %v4310 = vrot.slane %v4112, 1
      %v4311 = vsel %vm4270, %v4308, %v4310
      %v4312 = vrot.slane %v4113, 1
      %v4313 = vsel %vm4270, %v4310, %v4312
      %v4314 = vrot.slane %v4114, 1
      %v4315 = vsel %vm4270, %v4312, %v4314
      %v4316 = vrot.slane %v4115, 1
      %v4317 = vrot.slane %v4116, 1
      %v4318 = vsel %vm4270, %v4316, %v4317
      %v4319 = vrot.slane %v4117, 1
      %v4320 = vsel %vm4270, %v4317, %v4319
      %v4321 = vrot.slane %v4118, 1
      %v4322 = vsel %vm4270, %v4319, %v4321
      %v4323 = vrot.slane %v4119, 1
      %v4324 = vsel %vm4270, %v4321, %v4323
      %v4325 = vrot.slane %v4120, 1
      %v4326 = vrot.slane %v4121, 1
      %v4327 = vsel %vm4270, %v4325, %v4326
      %v4328 = vrot.slane %v4122, 1
      %v4329 = vsel %vm4270, %v4326, %v4328
      %v4330 = vrot.slane %v4123, 1
      %v4331 = vsel %vm4270, %v4328, %v4330
      %v4332 = vrot.slane %v4124, 1
      %v4333 = vsel %vm4270, %v4330, %v4332
      %v4334 = vrot.slane %v4125, 1
      %v4335 = vrot.slane %v4126, 1
      %v4336 = vsel %vm4270, %v4334, %v4335
      %v4337 = vrot.slane %v4127, 1
      %v4338 = vsel %vm4270, %v4335, %v4337
      %v4339 = vrot.slane %v4128, 1
      %v4340 = vsel %vm4270, %v4337, %v4339
      %v4341 = vrot.slane %v4129, 1
      %v4342 = vsel %vm4270, %v4339, %v4341
      %v4343 = vrot.slane %v4130, 1
      %v4344 = vrot.slane %v4131, 1
      %v4345 = vsel %vm4270, %v4343, %v4344
      %v4346 = vrot.slane %v4132, 1
      %v4347 = vsel %vm4270, %v4344, %v4346
      %v4348 = vrot.slane %v4133, 1
      %v4349 = vsel %vm4270, %v4346, %v4348
      %v4350 = vrot.slane %v4134, 1
      %v4351 = vsel %vm4270, %v4348, %v4350
      %v4352 = vrot.slane %v4135, 1
      %v4353 = vrot.slane %v4136, 1
      %v4354 = vsel %vm4270, %v4352, %v4353
      %v4355 = vrot.slane %v4137, 1
      %v4356 = vsel %vm4270, %v4353, %v4355
      %v4357 = vrot.slane %v4138, 1
      %v4358 = vsel %vm4270, %v4355, %v4357
      %v4359 = vrot.slane %v4139, 1
      %v4360 = vsel %vm4270, %v4357, %v4359
      %v4361 = vrot.slane %v4140, 1
      %v4362 = vrot.slane %v4141, 1
      %v4363 = vsel %vm4270, %v4361, %v4362
      %v4364 = vrot.slane %v4142, 1
      %v4365 = vsel %vm4270, %v4362, %v4364
      %v4366 = vrot.slane %v4143, 1
      %v4367 = vsel %vm4270, %v4364, %v4366
      %v4368 = vrot.slane %v4144, 1
      %v4369 = vsel %vm4270, %v4366, %v4368
      %v4370 = vrot.slane %v4145, 1
      %v4371 = vrot.slane %v4146, 1
      %v4372 = vsel %vm4270, %v4370, %v4371
      %v4373 = vrot.slane %v4147, 1
      %v4374 = vsel %vm4270, %v4371, %v4373
      %v4375 = vrot.slane %v4148, 1
      %v4376 = vsel %vm4270, %v4373, %v4375
      %v4377 = vrot.slane %v4149, 1
      %v4378 = vsel %vm4270, %v4375, %v4377
      %v4379 = vrot.slane %v4150, 1
      %v4380 = vrot.slane %v4151, 1
      %v4381 = vsel %vm4270, %v4379, %v4380
      %v4382 = vrot.slane %v4152, 1
      %v4383 = vsel %vm4270, %v4380, %v4382
      %v4384 = vrot.slane %v4153, 1
      %v4385 = vsel %vm4270, %v4382, %v4384
      %v4386 = vrot.slane %v4154, 1
      %v4387 = vsel %vm4270, %v4384, %v4386
      %v4388 = vrot.slane %v4155, 1
      %v4389 = vrot.slane %v4156, 1
      %v4390 = vsel %vm4270, %v4388, %v4389
      %v4391 = vrot.slane %v4157, 1
      %v4392 = vsel %vm4270, %v4389, %v4391
      %v4393 = vrot.slane %v4158, 1
      %v4394 = vsel %vm4270, %v4391, %v4393
      %v4395 = vrot.slane %v4159, 1
      %v4396 = vsel %vm4270, %v4393, %v4395
      %v4397 = vrot.slane %v4160, 1
      %v4398 = vrot.slane %v4161, 1
      %v4399 = vsel %vm4270, %v4397, %v4398
      %v4400 = vrot.slane %v4162, 1
      %v4401 = vsel %vm4270, %v4398, %v4400
      %v4402 = vrot.slane %v4163, 1
      %v4403 = vsel %vm4270, %v4400, %v4402
      %v4404 = vrot.slane %v4164, 1
      %v4405 = vsel %vm4270, %v4402, %v4404
      %v4406 = vrot.slane %v4165, 1
      %v4407 = vrot.slane %v4166, 1
      %v4408 = vsel %vm4270, %v4406, %v4407
      %v4409 = vrot.slane %v4167, 1
      %v4410 = vsel %vm4270, %v4407, %v4409
      %v4411 = vrot.slane %v4168, 1
      %v4412 = vsel %vm4270, %v4409, %v4411
      %v4413 = vrot.slane %v4169, 1
      %v4414 = vsel %vm4270, %v4411, %v4413
      %v4415 = vrot.slane %v4170, 1
      %v4416 = vrot.slane %v4171, 1
      %v4417 = vsel %vm4270, %v4415, %v4416
      %v4418 = vrot.slane %v4172, 1
      %v4419 = vsel %vm4270, %v4416, %v4418
      %v4420 = vrot.slane %v4173, 1
      %v4421 = vsel %vm4270, %v4418, %v4420
      %v4422 = vrot.slane %v4174, 1
      %v4423 = vsel %vm4270, %v4420, %v4422
      %v4424 = vrot.slane %v4175, 1
      %v4425 = vrot.slane %v4176, 1
      %v4426 = vsel %vm4270, %v4424, %v4425
      %v4427 = vrot.slane %v4177, 1
      %v4428 = vsel %vm4270, %v4425, %v4427
      %v4429 = vrot.slane %v4178, 1
      %v4430 = vsel %vm4270, %v4427, %v4429
      %v4431 = vrot.slane %v4179, 1
      %v4432 = vsel %vm4270, %v4429, %v4431
      %v4505 = vadd.f32 %v2662, %v4273
      %v4506 = vadd.f32 %v2663, %v4275
      %v4507 = vadd.f32 %v2664, %v4277
      %v4508 = vadd.f32 %v2665, %v4279
      %v4509 = vadd.f32 %v2666, %v4282
      %v4510 = vadd.f32 %v2667, %v4284
      %v4511 = vadd.f32 %v2668, %v4286
      %v4512 = vadd.f32 %v2669, %v4288
      %v4513 = vadd.f32 %v2670, %v4291
      %v4514 = vadd.f32 %v2671, %v4293
      %v4515 = vadd.f32 %v2672, %v4295
      %v4516 = vadd.f32 %v2673, %v4297
      %v4517 = vadd.f32 %v2674, %v4300
      %v4518 = vadd.f32 %v2675, %v4302
      %v4519 = vadd.f32 %v2676, %v4304
      %v4520 = vadd.f32 %v2677, %v4306
      %v4521 = vadd.f32 %v2678, %v4309
      %v4522 = vadd.f32 %v2679, %v4311
      %v4523 = vadd.f32 %v2680, %v4313
      %v4524 = vadd.f32 %v2681, %v4315
      %v4525 = vadd.f32 %v2682, %v4318
      %v4526 = vadd.f32 %v2683, %v4320
      %v4527 = vadd.f32 %v2684, %v4322
      %v4528 = vadd.f32 %v2685, %v4324
      %v4529 = vadd.f32 %v2686, %v4327
      %v4530 = vadd.f32 %v2687, %v4329
      %v4531 = vadd.f32 %v2688, %v4331
      %v4532 = vadd.f32 %v2689, %v4333
      %v4533 = vadd.f32 %v2690, %v4336
      %v4534 = vadd.f32 %v2691, %v4338
      %v4535 = vadd.f32 %v2692, %v4340
      %v4536 = vadd.f32 %v2693, %v4342
      %v4537 = vadd.f32 %v2694, %v4345
      %v4538 = vadd.f32 %v2695, %v4347
      %v4539 = vadd.f32 %v2696, %v4349
      %v4540 = vadd.f32 %v2697, %v4351
      %v4541 = vadd.f32 %v2698, %v4354
      %v4542 = vadd.f32 %v2699, %v4356
      %v4543 = vadd.f32 %v2700, %v4358
      %v4544 = vadd.f32 %v2701, %v4360
      %v4545 = vadd.f32 %v2702, %v4363
      %v4546 = vadd.f32 %v2703, %v4365
      %v4547 = vadd.f32 %v2704, %v4367
      %v4548 = vadd.f32 %v2705, %v4369
      %v4549 = vadd.f32 %v2706, %v4372
      %v4550 = vadd.f32 %v2707, %v4374
      %v4551 = vadd.f32 %v2708, %v4376
      %v4552 = vadd.f32 %v2709, %v4378
      %v4553 = vadd.f32 %v2710, %v4381
      %v4554 = vadd.f32 %v2711, %v4383
      %v4555 = vadd.f32 %v2712, %v4385
      %v4556 = vadd.f32 %v2713, %v4387
      %v4557 = vadd.f32 %v2714, %v4390
      %v4558 = vadd.f32 %v2715, %v4392
      %v4559 = vadd.f32 %v2716, %v4394
      %v4560 = vadd.f32 %v2717, %v4396
      %v4561 = vadd.f32 %v2718, %v4399
      %v4562 = vadd.f32 %v2719, %v4401
      %v4563 = vadd.f32 %v2720, %v4403
      %v4564 = vadd.f32 %v2721, %v4405
      %v4565 = vadd.f32 %v2722, %v4408
      %v4566 = vadd.f32 %v2723, %v4410
      %v4567 = vadd.f32 %v2724, %v4412
      %v4568 = vadd.f32 %v2725, %v4414
      %v4569 = vadd.f32 %v2726, %v4417
      %v4570 = vadd.f32 %v2727, %v4419
      %v4571 = vadd.f32 %v2728, %v4421
      %v4572 = vadd.f32 %v2729, %v4423
      %v4573 = vadd.f32 %v2730, %v4426
      %v4574 = vadd.f32 %v2731, %v4428
      %v4575 = vadd.f32 %v2732, %v4430
      %v4576 = vadd.f32 %v2733, %v4432
      %s4577 = scalar_lea.vmem %s2, 8
      %v4578 = vld [vmem:[%s4577] sm:$0xf]
      %s4579 = scalar_lea.vmem %s2, 20
      %v4580 = vld [vmem:[%s4579] sm:$0xf]
      %v4582 = vsel %vm1138, %v4580, 0
      %4584 = vmatprep.subr.bf16.mxu0 0
      %4585 = vmatpush1.bf16.msra.mxu0 %v4582
      %4586 = vmatprep.subr.bf16.mxu0 0
      %4587 = vmatpush1.bf16.msra.mxu0 0
      %4588 = vmatprep.subr.bf16.mxu0 0
      %4589 = vmatpush1.bf16.msra.mxu0 0
      %4590 = vmatprep.subr.bf16.mxu0 0
      %4591 = vmatpush1.bf16.msra.mxu0 0
      %4592 = vmatprep.subr.bf16.mxu0 0
      %4593 = vmatpush1.bf16.msra.mxu0 0
      %4594 = vmatprep.subr.bf16.mxu0 0
      %4595 = vmatpush1.bf16.msra.mxu0 0
      %4596 = vmatprep.subr.bf16.mxu0 0
      %4597 = vmatpush1.bf16.msra.mxu0 0
      %4598 = vmatprep.subr.bf16.mxu0 0
      %4599 = vmatpush1.bf16.msra.mxu0 0
      %4600 = vmatprep.subr.bf16.mxu0 0
      %4601 = vmatpush1.bf16.msra.mxu0 0
      %4602 = vmatprep.subr.bf16.mxu0 0
      %4603 = vmatpush1.bf16.msra.mxu0 0
      %4604 = vmatprep.subr.bf16.mxu0 0
      %4605 = vmatpush1.bf16.msra.mxu0 0
      %4606 = vmatprep.subr.bf16.mxu0 0
      %4607 = vmatpush1.bf16.msra.mxu0 0
      %4608 = vmatprep.subr.bf16.mxu0 0
      %4609 = vmatpush1.bf16.msra.mxu0 0
      %4610 = vmatprep.subr.bf16.mxu0 0
      %4611 = vmatpush1.bf16.msra.mxu0 0
      %4612 = vmatprep.subr.bf16.mxu0 0
      %4613 = vmatpush1.bf16.msra.mxu0 0
      %4614 = vmatprep.subr.bf16.mxu0 0
      %4615 = vmatpush1.bf16.msra.mxu0 0
      %4616 = vmatprep.mubr.bf16.mxu0 0
      %4617 = vmatmul.mubr.bf16.gmra.mrb[0].mxu0 %v977
      %v4618 = vpop.f32.mrb[0].mxu0
      %v4619 = vadd.f32 0.0, %v4618
      %v4620 = vpop.f32.mrb[0].mxu0
      %v4621 = vpop.f32.mrb[0].mxu0
      %v4622 = vadd.f32 0.0, %v4621
      %v4623 = vpop.f32.mrb[0].mxu0
      %4624 = vmatprep.mubr.bf16.mxu0 0
      %4625 = vmatmul.mubr.bf16.gmra.mrb[0].mxu0 %v980
      %v4626 = vpop.f32.mrb[0].mxu0
      %v4627 = vadd.f32 0.0, %v4626
      %v4628 = vpop.f32.mrb[0].mxu0
      %v4629 = vpop.f32.mrb[0].mxu0
      %v4630 = vadd.f32 0.0, %v4629
      %v4631 = vpop.f32.mrb[0].mxu0
      %4632 = vmatprep.mubr.bf16.mxu0 0
      %4633 = vmatmul.mubr.bf16.gmra.mrb[0].mxu0 %v983
      %v4634 = vpop.f32.mrb[0].mxu0
      %v4635 = vadd.f32 0.0, %v4634
      %v4636 = vpop.f32.mrb[0].mxu0
      %v4637 = vpop.f32.mrb[0].mxu0
      %v4638 = vpop.f32.mrb[0].mxu0
      %4639 = vmatprep.mubr.bf16.mxu0 0
      %4640 = vmatmul.mubr.bf16.gmra.mrb[0].mxu0 %v986
      %v4641 = vpop.f32.mrb[0].mxu0
      %v4642 = vadd.f32 0.0, %v4641
      %v4643 = vpop.f32.mrb[0].mxu0
      %v4644 = vpop.f32.mrb[0].mxu0
      %v4645 = vadd.f32 0.0, %v4644
      %v4646 = vpop.f32.mrb[0].mxu0
      %4647 = vmatprep.mubr.bf16.mxu0 0
      %4648 = vmatmul.mubr.bf16.gmra.mrb[0].mxu0 %v989
      %v4649 = vpop.f32.mrb[0].mxu0
      %v4650 = vadd.f32 0.0, %v4649
      %v4651 = vpop.f32.mrb[0].mxu0
      %v4652 = vpop.f32.mrb[0].mxu0
      %v4653 = vadd.f32 0.0, %v4652
      %v4654 = vpop.f32.mrb[0].mxu0
      %4655 = vmatprep.mubr.bf16.mxu0 0
      %4656 = vmatmul.mubr.bf16.gmra.mrb[0].mxu0 %v992
      %v4657 = vpop.f32.mrb[0].mxu0
      %v4658 = vadd.f32 0.0, %v4657
      %v4659 = vpop.f32.mrb[0].mxu0
      %v4660 = vpop.f32.mrb[0].mxu0
      %v4661 = vpop.f32.mrb[0].mxu0
      %4662 = vmatprep.mubr.bf16.mxu0 0
      %4663 = vmatmul.mubr.bf16.gmra.mrb[0].mxu0 %v995
      %v4664 = vpop.f32.mrb[0].mxu0
      %v4665 = vadd.f32 0.0, %v4664
      %v4666 = vpop.f32.mrb[0].mxu0
      %v4667 = vpop.f32.mrb[0].mxu0
      %v4668 = vadd.f32 0.0, %v4667
      %v4669 = vpop.f32.mrb[0].mxu0
      %4670 = vmatprep.mubr.bf16.mxu0 0
      %4671 = vmatmul.mubr.bf16.gmra.mrb[0].mxu0 %v998
      %v4672 = vpop.f32.mrb[0].mxu0
      %v4673 = vadd.f32 0.0, %v4672
      %v4674 = vpop.f32.mrb[0].mxu0
      %v4675 = vpop.f32.mrb[0].mxu0
      %v4676 = vadd.f32 0.0, %v4675
      %v4677 = vpop.f32.mrb[0].mxu0
      %4678 = vmatprep.mubr.bf16.mxu0 0
      %4679 = vmatmul.mubr.bf16.gmra.mrb[0].mxu0 %v1001
      %v4680 = vpop.f32.mrb[0].mxu0
      %v4681 = vadd.f32 0.0, %v4680
      %v4682 = vpop.f32.mrb[0].mxu0
      %v4683 = vpop.f32.mrb[0].mxu0
      %v4684 = vpop.f32.mrb[0].mxu0
      %4685 = vmatprep.mubr.bf16.mxu0 0
      %4686 = vmatmul.mubr.bf16.gmra.mrb[0].mxu0 %v1004
      %v4687 = vpop.f32.mrb[0].mxu0
      %v4688 = vadd.f32 0.0, %v4687
      %v4689 = vpop.f32.mrb[0].mxu0
      %v4690 = vpop.f32.mrb[0].mxu0
      %v4691 = vadd.f32 0.0, %v4690
      %v4692 = vpop.f32.mrb[0].mxu0
      %4693 = vmatprep.mubr.bf16.mxu0 0
      %4694 = vmatmul.mubr.bf16.gmra.mrb[0].mxu0 %v1007
      %v4695 = vpop.f32.mrb[0].mxu0
      %v4696 = vadd.f32 0.0, %v4695
      %v4697 = vpop.f32.mrb[0].mxu0
      %v4698 = vpop.f32.mrb[0].mxu0
      %v4699 = vadd.f32 0.0, %v4698
      %v4700 = vpop.f32.mrb[0].mxu0
      %4701 = vmatprep.mubr.bf16.mxu0 0
      %4702 = vmatmul.mubr.bf16.gmra.mrb[0].mxu0 %v1010
      %v4703 = vpop.f32.mrb[0].mxu0
      %v4704 = vadd.f32 0.0, %v4703
      %v4705 = vpop.f32.mrb[0].mxu0
      %v4706 = vpop.f32.mrb[0].mxu0
      %v4707 = vpop.f32.mrb[0].mxu0
      %4708 = vmatprep.mubr.bf16.mxu0 0
      %4709 = vmatmul.mubr.bf16.gmra.mrb[0].mxu0 %v1013
      %v4710 = vpop.f32.mrb[0].mxu0
      %v4711 = vadd.f32 0.0, %v4710
      %v4712 = vpop.f32.mrb[0].mxu0
      %v4713 = vpop.f32.mrb[0].mxu0
      %v4714 = vadd.f32 0.0, %v4713
      %v4715 = vpop.f32.mrb[0].mxu0
      %4716 = vmatprep.mubr.bf16.mxu0 0
      %4717 = vmatmul.mubr.bf16.gmra.mrb[0].mxu0 %v1016
      %v4718 = vpop.f32.mrb[0].mxu0
      %v4719 = vadd.f32 0.0, %v4718
      %v4720 = vpop.f32.mrb[0].mxu0
      %v4721 = vpop.f32.mrb[0].mxu0
      %v4722 = vadd.f32 0.0, %v4721
      %v4723 = vpop.f32.mrb[0].mxu0
      %4724 = vmatprep.mubr.bf16.mxu0 0
      %4725 = vmatmul.mubr.bf16.gmra.mrb[0].mxu0 %v1019
      %v4726 = vpop.f32.mrb[0].mxu0
      %v4727 = vadd.f32 0.0, %v4726
      %v4728 = vpop.f32.mrb[0].mxu0
      %v4729 = vpop.f32.mrb[0].mxu0
      %v4730 = vpop.f32.mrb[0].mxu0
      %4731 = vmatprep.mubr.bf16.mxu0 0
      %4732 = vmatmul.mubr.bf16.gmra.mrb[0].mxu0 %v1022
      %v4733 = vpop.f32.mrb[0].mxu0
      %v4734 = vadd.f32 0.0, %v4733
      %v4735 = vpop.f32.mrb[0].mxu0
      %v4736 = vpop.f32.mrb[0].mxu0
      %v4737 = vadd.f32 0.0, %v4736
      %v4738 = vpop.f32.mrb[0].mxu0
      %4739 = vmatprep.mubr.bf16.mxu0 0
      %4740 = vmatmul.mubr.bf16.gmra.mrb[0].mxu0 %v1025
      %v4741 = vpop.f32.mrb[0].mxu0
      %v4742 = vadd.f32 0.0, %v4741
      %v4743 = vpop.f32.mrb[0].mxu0
      %v4744 = vpop.f32.mrb[0].mxu0
      %v4745 = vadd.f32 0.0, %v4744
      %v4746 = vpop.f32.mrb[0].mxu0
      %4747 = vmatprep.mubr.bf16.mxu0 0
      %4748 = vmatmul.mubr.bf16.gmra.mrb[0].mxu0 %v1028
      %v4749 = vpop.f32.mrb[0].mxu0
      %v4750 = vadd.f32 0.0, %v4749
      %v4751 = vpop.f32.mrb[0].mxu0
      %v4752 = vpop.f32.mrb[0].mxu0
      %v4753 = vpop.f32.mrb[0].mxu0
      %4754 = vmatprep.mubr.bf16.mxu0 0
      %4755 = vmatmul.mubr.bf16.gmra.mrb[0].mxu0 %v1031
      %v4756 = vpop.f32.mrb[0].mxu0
      %v4757 = vadd.f32 0.0, %v4756
      %v4758 = vpop.f32.mrb[0].mxu0
      %v4759 = vpop.f32.mrb[0].mxu0
      %v4760 = vadd.f32 0.0, %v4759
      %v4761 = vpop.f32.mrb[0].mxu0
      %4762 = vmatprep.mubr.bf16.mxu0 0
      %4763 = vmatmul.mubr.bf16.gmra.mrb[0].mxu0 %v1034
      %v4764 = vpop.f32.mrb[0].mxu0
      %v4765 = vadd.f32 0.0, %v4764
      %v4766 = vpop.f32.mrb[0].mxu0
      %v4767 = vpop.f32.mrb[0].mxu0
      %v4768 = vadd.f32 0.0, %v4767
      %v4769 = vpop.f32.mrb[0].mxu0
      %4770 = vmatprep.mubr.bf16.mxu0 0
      %4771 = vmatmul.mubr.bf16.gmra.mrb[0].mxu0 %v1037
      %v4772 = vpop.f32.mrb[0].mxu0
      %v4773 = vadd.f32 0.0, %v4772
      %v4774 = vpop.f32.mrb[0].mxu0
      %v4775 = vpop.f32.mrb[0].mxu0
      %v4776 = vpop.f32.mrb[0].mxu0
      %4777 = vmatprep.mubr.bf16.mxu0 0
      %4778 = vmatmul.mubr.bf16.gmra.mrb[0].mxu0 %v1040
      %v4779 = vpop.f32.mrb[0].mxu0
      %v4780 = vadd.f32 0.0, %v4779
      %v4781 = vpop.f32.mrb[0].mxu0
      %v4782 = vpop.f32.mrb[0].mxu0
      %v4783 = vadd.f32 0.0, %v4782
      %v4784 = vpop.f32.mrb[0].mxu0
      %4785 = vmatprep.mubr.bf16.mxu0 0
      %4786 = vmatmul.mubr.bf16.gmra.mrb[0].mxu0 %v1043
      %v4787 = vpop.f32.mrb[0].mxu0
      %v4788 = vadd.f32 0.0, %v4787
      %v4789 = vpop.f32.mrb[0].mxu0
      %v4790 = vpop.f32.mrb[0].mxu0
      %v4791 = vadd.f32 0.0, %v4790
      %v4792 = vpop.f32.mrb[0].mxu0
      %4793 = vmatprep.mubr.bf16.mxu0 0
      %4794 = vmatmul.mubr.bf16.gmra.mrb[0].mxu0 %v1046
      %v4795 = vpop.f32.mrb[0].mxu0
      %v4796 = vadd.f32 0.0, %v4795
      %v4797 = vpop.f32.mrb[0].mxu0
      %v4798 = vpop.f32.mrb[0].mxu0
      %v4799 = vpop.f32.mrb[0].mxu0
      %4800 = vmatprep.mubr.bf16.mxu0 0
      %4801 = vmatmul.mubr.bf16.gmra.mrb[0].mxu0 %v1049
      %v4802 = vpop.f32.mrb[0].mxu0
      %v4803 = vadd.f32 0.0, %v4802
      %v4804 = vpop.f32.mrb[0].mxu0
      %v4805 = vpop.f32.mrb[0].mxu0
      %v4806 = vadd.f32 0.0, %v4805
      %v4807 = vpop.f32.mrb[0].mxu0
      %4808 = vmatprep.mubr.bf16.mxu0 0
      %4809 = vmatmul.mubr.bf16.gmra.mrb[0].mxu0 %v1052
      %v4810 = vpop.f32.mrb[0].mxu0
      %v4811 = vadd.f32 0.0, %v4810
      %v4812 = vpop.f32.mrb[0].mxu0
      %v4813 = vpop.f32.mrb[0].mxu0
      %v4814 = vadd.f32 0.0, %v4813
      %v4815 = vpop.f32.mrb[0].mxu0
      %4816 = vmatprep.mubr.bf16.mxu0 0
      %4817 = vmatmul.mubr.bf16.gmra.mrb[0].mxu0 %v1055
      %v4818 = vpop.f32.mrb[0].mxu0
      %v4819 = vadd.f32 0.0, %v4818
      %v4820 = vpop.f32.mrb[0].mxu0
      %v4821 = vpop.f32.mrb[0].mxu0
      %v4822 = vpop.f32.mrb[0].mxu0
      %4823 = vmatprep.mubr.bf16.mxu0 0
      %4824 = vmatmul.mubr.bf16.gmra.mrb[0].mxu0 %v1058
      %v4825 = vpop.f32.mrb[0].mxu0
      %v4826 = vadd.f32 0.0, %v4825
      %v4827 = vpop.f32.mrb[0].mxu0
      %v4828 = vpop.f32.mrb[0].mxu0
      %v4829 = vadd.f32 0.0, %v4828
      %v4830 = vpop.f32.mrb[0].mxu0
      %4831 = vmatprep.mubr.bf16.mxu0 0
      %4832 = vmatmul.mubr.bf16.gmra.mrb[0].mxu0 %v1061
      %v4833 = vpop.f32.mrb[0].mxu0
      %v4834 = vadd.f32 0.0, %v4833
      %v4835 = vpop.f32.mrb[0].mxu0
      %v4836 = vpop.f32.mrb[0].mxu0
      %v4837 = vadd.f32 0.0, %v4836
      %v4838 = vpop.f32.mrb[0].mxu0
      %4839 = vmatprep.mubr.bf16.mxu0 0
      %4840 = vmatmul.mubr.bf16.gmra.mrb[0].mxu0 %v1064
      %v4841 = vpop.f32.mrb[0].mxu0
      %v4842 = vadd.f32 0.0, %v4841
      %v4843 = vpop.f32.mrb[0].mxu0
      %v4844 = vpop.f32.mrb[0].mxu0
      %v4845 = vpop.f32.mrb[0].mxu0
      %4846 = vmatprep.mubr.bf16.mxu0 0
      %4847 = vmatmul.mubr.bf16.gmra.mrb[0].mxu0 %v1067
      %v4848 = vpop.f32.mrb[0].mxu0
      %v4849 = vadd.f32 0.0, %v4848
      %v4850 = vpop.f32.mrb[0].mxu0
      %v4851 = vpop.f32.mrb[0].mxu0
      %v4852 = vadd.f32 0.0, %v4851
      %v4853 = vpop.f32.mrb[0].mxu0
      %4854 = vmatprep.mubr.bf16.mxu0 0
      %4855 = vmatmul.mubr.bf16.gmra.mrb[0].mxu0 %v1070
      %v4856 = vpop.f32.mrb[0].mxu0
      %v4857 = vadd.f32 0.0, %v4856
      %v4858 = vpop.f32.mrb[0].mxu0
      %v4859 = vpop.f32.mrb[0].mxu0
      %v4860 = vadd.f32 0.0, %v4859
      %v4861 = vpop.f32.mrb[0].mxu0
      %4862 = vmatprep.mubr.bf16.mxu0 0
      %4863 = vmatmul.mubr.bf16.gmra.mrb[0].mxu0 %v1073
      %v4864 = vpop.f32.mrb[0].mxu0
      %v4865 = vadd.f32 0.0, %v4864
      %v4866 = vpop.f32.mrb[0].mxu0
      %v4867 = vpop.f32.mrb[0].mxu0
      %v4868 = vpop.f32.mrb[0].mxu0
      %4869 = vmatprep.mubr.bf16.mxu0 0
      %4870 = vmatmul.mubr.bf16.gmra.mrb[0].mxu0 %v1076
      %v4871 = vpop.f32.mrb[0].mxu0
      %v4872 = vadd.f32 0.0, %v4871
      %v4873 = vpop.f32.mrb[0].mxu0
      %v4874 = vpop.f32.mrb[0].mxu0
      %v4875 = vadd.f32 0.0, %v4874
      %v4876 = vpop.f32.mrb[0].mxu0
      %4877 = vmatprep.mubr.bf16.mxu0 0
      %4878 = vmatmul.mubr.bf16.gmra.mrb[0].mxu0 %v1079
      %v4879 = vpop.f32.mrb[0].mxu0
      %v4880 = vadd.f32 0.0, %v4879
      %v4881 = vpop.f32.mrb[0].mxu0
      %v4882 = vpop.f32.mrb[0].mxu0
      %v4883 = vadd.f32 0.0, %v4882
      %v4884 = vpop.f32.mrb[0].mxu0
      %4885 = vmatprep.mubr.bf16.mxu0 0
      %4886 = vmatmul.mubr.bf16.gmra.mrb[0].mxu0 %v1082
      %v4887 = vpop.f32.mrb[0].mxu0
      %v4888 = vadd.f32 0.0, %v4887
      %v4889 = vpop.f32.mrb[0].mxu0
      %v4890 = vpop.f32.mrb[0].mxu0
      %v4891 = vpop.f32.mrb[0].mxu0
      %4892 = vmatprep.mubr.bf16.mxu0 0
      %4893 = vmatmul.mubr.bf16.gmra.mrb[0].mxu0 %v1085
      %v4894 = vpop.f32.mrb[0].mxu0
      %v4895 = vadd.f32 0.0, %v4894
      %v4896 = vpop.f32.mrb[0].mxu0
      %v4897 = vpop.f32.mrb[0].mxu0
      %v4898 = vadd.f32 0.0, %v4897
      %v4899 = vpop.f32.mrb[0].mxu0
      %4900 = vmatprep.mubr.bf16.mxu0 0
      %4901 = vmatmul.mubr.bf16.gmra.mrb[0].mxu0 %v1088
      %v4902 = vpop.f32.mrb[0].mxu0
      %v4903 = vadd.f32 0.0, %v4902
      %v4904 = vpop.f32.mrb[0].mxu0
      %v4905 = vpop.f32.mrb[0].mxu0
      %v4906 = vadd.f32 0.0, %v4905
      %v4907 = vpop.f32.mrb[0].mxu0
      %4908 = vmatprep.mubr.bf16.mxu0 0
      %4909 = vmatmul.mubr.bf16.gmra.mrb[0].mxu0 %v1091
      %v4910 = vpop.f32.mrb[0].mxu0
      %v4911 = vadd.f32 0.0, %v4910
      %v4912 = vpop.f32.mrb[0].mxu0
      %v4913 = vpop.f32.mrb[0].mxu0
      %v4914 = vpop.f32.mrb[0].mxu0
      %4915 = vmatprep.mubr.bf16.mxu0 0
      %4916 = vmatmul.mubr.bf16.gmra.mrb[0].mxu0 %v1094
      %v4917 = vpop.f32.mrb[0].mxu0
      %v4918 = vadd.f32 0.0, %v4917
      %v4919 = vpop.f32.mrb[0].mxu0
      %v4920 = vpop.f32.mrb[0].mxu0
      %v4921 = vadd.f32 0.0, %v4920
      %v4922 = vpop.f32.mrb[0].mxu0
      %4923 = vmatprep.mubr.bf16.mxu0 0
      %4924 = vmatmul.mubr.bf16.gmra.mrb[0].mxu0 %v1097
      %v4925 = vpop.f32.mrb[0].mxu0
      %v4926 = vadd.f32 0.0, %v4925
      %v4927 = vpop.f32.mrb[0].mxu0
      %v4928 = vpop.f32.mrb[0].mxu0
      %v4929 = vadd.f32 0.0, %v4928
      %v4930 = vpop.f32.mrb[0].mxu0
      %4931 = vmatprep.mubr.bf16.mxu0 0
      %4932 = vmatmul.mubr.bf16.gmra.mrb[0].mxu0 %v1100
      %v4933 = vpop.f32.mrb[0].mxu0
      %v4934 = vadd.f32 0.0, %v4933
      %v4935 = vpop.f32.mrb[0].mxu0
      %v4936 = vpop.f32.mrb[0].mxu0
      %v4937 = vpop.f32.mrb[0].mxu0
      %4938 = vmatprep.mubr.bf16.mxu0 0
      %4939 = vmatmul.mubr.bf16.gmra.mrb[0].mxu0 %v1103
      %v4940 = vpop.f32.mrb[0].mxu0
      %v4941 = vadd.f32 0.0, %v4940
      %v4942 = vpop.f32.mrb[0].mxu0
      %v4943 = vpop.f32.mrb[0].mxu0
      %v4944 = vadd.f32 0.0, %v4943
      %v4945 = vpop.f32.mrb[0].mxu0
      %4946 = vmatprep.mubr.bf16.mxu0 0
      %4947 = vmatmul.mubr.bf16.gmra.mrb[0].mxu0 %v1106
      %v4948 = vpop.f32.mrb[0].mxu0
      %v4949 = vadd.f32 0.0, %v4948
      %v4950 = vpop.f32.mrb[0].mxu0
      %v4951 = vpop.f32.mrb[0].mxu0
      %v4952 = vadd.f32 0.0, %v4951
      %v4953 = vpop.f32.mrb[0].mxu0
      %4954 = vmatprep.mubr.bf16.mxu0 0
      %4955 = vmatmul.mubr.bf16.gmra.mrb[0].mxu0 %v1109
      %v4956 = vpop.f32.mrb[0].mxu0
      %v4957 = vadd.f32 0.0, %v4956
      %v4958 = vpop.f32.mrb[0].mxu0
      %v4959 = vpop.f32.mrb[0].mxu0
      %v4960 = vpop.f32.mrb[0].mxu0
      %4961 = vmatprep.mubr.bf16.mxu0 0
      %4962 = vmatmul.mubr.bf16.gmra.mrb[0].mxu0 %v1112
      %v4963 = vpop.f32.mrb[0].mxu0
      %v4964 = vadd.f32 0.0, %v4963
      %v4965 = vpop.f32.mrb[0].mxu0
      %v4966 = vpop.f32.mrb[0].mxu0
      %v4967 = vadd.f32 0.0, %v4966
      %v4968 = vpop.f32.mrb[0].mxu0
      %4969 = vmatprep.mubr.bf16.mxu0 0
      %4970 = vmatmul.mubr.bf16.gmra.mrb[0].mxu0 %v1115
      %v4971 = vpop.f32.mrb[0].mxu0
      %v4972 = vadd.f32 0.0, %v4971
      %v4973 = vpop.f32.mrb[0].mxu0
      %v4974 = vpop.f32.mrb[0].mxu0
      %v4975 = vadd.f32 0.0, %v4974
      %v4976 = vpop.f32.mrb[0].mxu0
      %4977 = vmatprep.mubr.bf16.mxu0 0
      %4978 = vmatmul.mubr.bf16.gmra.mrb[0].mxu0 %v1118
      %v4979 = vpop.f32.mrb[0].mxu0
      %v4980 = vadd.f32 0.0, %v4979
      %v4981 = vpop.f32.mrb[0].mxu0
      %v4982 = vpop.f32.mrb[0].mxu0
      %v4983 = vpop.f32.mrb[0].mxu0
      %4984 = vmatprep.mubr.bf16.mxu0 0
      %4985 = vmatmul.mubr.bf16.gmra.mrb[0].mxu0 %v1121
      %v4986 = vpop.f32.mrb[0].mxu0
      %v4987 = vadd.f32 0.0, %v4986
      %v4988 = vpop.f32.mrb[0].mxu0
      %v4989 = vpop.f32.mrb[0].mxu0
      %v4990 = vadd.f32 0.0, %v4989
      %v4991 = vpop.f32.mrb[0].mxu0
      %4992 = vmatprep.mubr.bf16.mxu0 0
      %4993 = vmatmul.mubr.bf16.gmra.mrb[0].mxu0 %v1124
      %v4994 = vpop.f32.mrb[0].mxu0
      %v4995 = vadd.f32 0.0, %v4994
      %v4996 = vpop.f32.mrb[0].mxu0
      %v4997 = vpop.f32.mrb[0].mxu0
      %v4998 = vadd.f32 0.0, %v4997
      %v4999 = vpop.f32.mrb[0].mxu0
      %5000 = vmatprep.mubr.bf16.mxu0 0
      %5001 = vmatmul.mubr.bf16.gmra.mrb[0].mxu0 %v1127
      %v5002 = vpop.f32.mrb[0].mxu0
      %v5003 = vadd.f32 0.0, %v5002
      %v5004 = vpop.f32.mrb[0].mxu0
      %v5005 = vpop.f32.mrb[0].mxu0
      %v5006 = vpop.f32.mrb[0].mxu0
      %5007 = vmatprep.mubr.bf16.mxu0 0
      %5008 = vmatmul.mubr.bf16.gmra.mrb[0].mxu0 %v1130
      %v5009 = vpop.f32.mrb[0].mxu0
      %v5010 = vadd.f32 0.0, %v5009
      %v5011 = vpop.f32.mrb[0].mxu0
      %v5012 = vpop.f32.mrb[0].mxu0
      %v5013 = vadd.f32 0.0, %v5012
      %v5014 = vpop.f32.mrb[0].mxu0
      %5015 = vmatprep.mubr.bf16.mxu0 0
      %5016 = vmatmul.mubr.bf16.gmra.mrb[0].mxu0 %v1133
      %v5017 = vpop.f32.mrb[0].mxu0
      %v5018 = vadd.f32 0.0, %v5017
      %v5019 = vpop.f32.mrb[0].mxu0
      %v5020 = vpop.f32.mrb[0].mxu0
      %v5021 = vadd.f32 0.0, %v5020
      %v5022 = vpop.f32.mrb[0].mxu0
      %5023 = vmatprep.mubr.bf16.mxu0 0
      %5024 = vmatmul.mubr.bf16.gmra.mrb[0].mxu0 %v1136
      %v5025 = vpop.f32.mrb[0].mxu0
      %v5026 = vadd.f32 0.0, %v5025
      %v5027 = vpop.f32.mrb[0].mxu0
      %v5028 = vpop.f32.mrb[0].mxu0
      %v5029 = vpop.f32.mrb[0].mxu0
      %5030 = vdwg.mxu0
      %v5032 = vsel %vm1138, %v4578, 0
      %5034 = vmatprep.subr.bf16.mxu0 0
      %5035 = vmatpush1.bf16.msra.mxu0 %v5032
      %5036 = vmatprep.subr.bf16.mxu0 0
      %5037 = vmatpush1.bf16.msra.mxu0 0
      %5038 = vmatprep.subr.bf16.mxu0 0
      %5039 = vmatpush1.bf16.msra.mxu0 0
      %5040 = vmatprep.subr.bf16.mxu0 0
      %5041 = vmatpush1.bf16.msra.mxu0 0
      %5042 = vmatprep.subr.bf16.mxu0 0
      %5043 = vmatpush1.bf16.msra.mxu0 0
      %5044 = vmatprep.subr.bf16.mxu0 0
      %5045 = vmatpush1.bf16.msra.mxu0 0
      %5046 = vmatprep.subr.bf16.mxu0 0
      %5047 = vmatpush1.bf16.msra.mxu0 0
      %5048 = vmatprep.subr.bf16.mxu0 0
      %5049 = vmatpush1.bf16.msra.mxu0 0
      %5050 = vmatprep.subr.bf16.mxu0 0
      %5051 = vmatpush1.bf16.msra.mxu0 0
      %5052 = vmatprep.subr.bf16.mxu0 0
      %5053 = vmatpush1.bf16.msra.mxu0 0
      %5054 = vmatprep.subr.bf16.mxu0 0
      %5055 = vmatpush1.bf16.msra.mxu0 0
      %5056 = vmatprep.subr.bf16.mxu0 0
      %5057 = vmatpush1.bf16.msra.mxu0 0
      %5058 = vmatprep.subr.bf16.mxu0 0
      %5059 = vmatpush1.bf16.msra.mxu0 0
      %5060 = vmatprep.subr.bf16.mxu0 0
      %5061 = vmatpush1.bf16.msra.mxu0 0
      %5062 = vmatprep.subr.bf16.mxu0 0
      %5063 = vmatpush1.bf16.msra.mxu0 0
      %5064 = vmatprep.subr.bf16.mxu0 0
      %5065 = vmatpush1.bf16.msra.mxu0 0
      %5066 = vmatprep.mubr.bf16.mxu0 0
      %5067 = vmatmul.mubr.bf16.gmra.mrb[0].mxu0 %v1572
      %v5068 = vpop.f32.mrb[0].mxu0
      %v5069 = vadd.f32 %v4619, %v5068
      %v5070 = vpop.f32.mrb[0].mxu0
      %v5071 = vpop.f32.mrb[0].mxu0
      %v5072 = vadd.f32 %v4622, %v5071
      %v5073 = vpop.f32.mrb[0].mxu0
      %5074 = vmatprep.mubr.bf16.mxu0 0
      %5075 = vmatmul.mubr.bf16.gmra.mrb[0].mxu0 %v1575
      %v5076 = vpop.f32.mrb[0].mxu0
      %v5077 = vadd.f32 %v4627, %v5076
      %v5078 = vpop.f32.mrb[0].mxu0
      %v5079 = vpop.f32.mrb[0].mxu0
      %v5080 = vadd.f32 %v4630, %v5079
      %v5081 = vpop.f32.mrb[0].mxu0
      %5082 = vmatprep.mubr.bf16.mxu0 0
      %5083 = vmatmul.mubr.bf16.gmra.mrb[0].mxu0 %v1578
      %v5084 = vpop.f32.mrb[0].mxu0
      %v5085 = vadd.f32 %v4635, %v5084
      %v5086 = vpop.f32.mrb[0].mxu0
      %v5087 = vpop.f32.mrb[0].mxu0
      %v5088 = vpop.f32.mrb[0].mxu0
      %5089 = vmatprep.mubr.bf16.mxu0 0
      %5090 = vmatmul.mubr.bf16.gmra.mrb[0].mxu0 %v977
      %v5091 = vpop.f32.mrb[0].mxu0
      %v5092 = vadd.f32 %v4642, %v5091
      %v5093 = vpop.f32.mrb[0].mxu0
      %v5094 = vpop.f32.mrb[0].mxu0
      %v5095 = vadd.f32 %v4645, %v5094
      %v5096 = vpop.f32.mrb[0].mxu0
      %5097 = vmatprep.mubr.bf16.mxu0 0
      %5098 = vmatmul.mubr.bf16.gmra.mrb[0].mxu0 %v980
      %v5099 = vpop.f32.mrb[0].mxu0
      %v5100 = vadd.f32 %v4650, %v5099
      %v5101 = vpop.f32.mrb[0].mxu0
      %v5102 = vpop.f32.mrb[0].mxu0
      %v5103 = vadd.f32 %v4653, %v5102
      %v5104 = vpop.f32.mrb[0].mxu0
      %5105 = vmatprep.mubr.bf16.mxu0 0
      %5106 = vmatmul.mubr.bf16.gmra.mrb[0].mxu0 %v983
      %v5107 = vpop.f32.mrb[0].mxu0
      %v5108 = vadd.f32 %v4658, %v5107
      %v5109 = vpop.f32.mrb[0].mxu0
      %v5110 = vpop.f32.mrb[0].mxu0
      %v5111 = vpop.f32.mrb[0].mxu0
      %5112 = vmatprep.mubr.bf16.mxu0 0
      %5113 = vmatmul.mubr.bf16.gmra.mrb[0].mxu0 %v986
      %v5114 = vpop.f32.mrb[0].mxu0
      %v5115 = vadd.f32 %v4665, %v5114
      %v5116 = vpop.f32.mrb[0].mxu0
      %v5117 = vpop.f32.mrb[0].mxu0
      %v5118 = vadd.f32 %v4668, %v5117
      %v5119 = vpop.f32.mrb[0].mxu0
      %5120 = vmatprep.mubr.bf16.mxu0 0
      %5121 = vmatmul.mubr.bf16.gmra.mrb[0].mxu0 %v989
      %v5122 = vpop.f32.mrb[0].mxu0
      %v5123 = vadd.f32 %v4673, %v5122
      %v5124 = vpop.f32.mrb[0].mxu0
      %v5125 = vpop.f32.mrb[0].mxu0
      %v5126 = vadd.f32 %v4676, %v5125
      %v5127 = vpop.f32.mrb[0].mxu0
      %5128 = vmatprep.mubr.bf16.mxu0 0
      %5129 = vmatmul.mubr.bf16.gmra.mrb[0].mxu0 %v992
      %v5130 = vpop.f32.mrb[0].mxu0
      %v5131 = vadd.f32 %v4681, %v5130
      %v5132 = vpop.f32.mrb[0].mxu0
      %v5133 = vpop.f32.mrb[0].mxu0
      %v5134 = vpop.f32.mrb[0].mxu0
      %5135 = vmatprep.mubr.bf16.mxu0 0
      %5136 = vmatmul.mubr.bf16.gmra.mrb[0].mxu0 %v995
      %v5137 = vpop.f32.mrb[0].mxu0
      %v5138 = vadd.f32 %v4688, %v5137
      %v5139 = vpop.f32.mrb[0].mxu0
      %v5140 = vpop.f32.mrb[0].mxu0
      %v5141 = vadd.f32 %v4691, %v5140
      %v5142 = vpop.f32.mrb[0].mxu0
      %5143 = vmatprep.mubr.bf16.mxu0 0
      %5144 = vmatmul.mubr.bf16.gmra.mrb[0].mxu0 %v998
      %v5145 = vpop.f32.mrb[0].mxu0
      %v5146 = vadd.f32 %v4696, %v5145
      %v5147 = vpop.f32.mrb[0].mxu0
      %v5148 = vpop.f32.mrb[0].mxu0
      %v5149 = vadd.f32 %v4699, %v5148
      %v5150 = vpop.f32.mrb[0].mxu0
      %5151 = vmatprep.mubr.bf16.mxu0 0
      %5152 = vmatmul.mubr.bf16.gmra.mrb[0].mxu0 %v1001
      %v5153 = vpop.f32.mrb[0].mxu0
      %v5154 = vadd.f32 %v4704, %v5153
      %v5155 = vpop.f32.mrb[0].mxu0
      %v5156 = vpop.f32.mrb[0].mxu0
      %v5157 = vpop.f32.mrb[0].mxu0
      %5158 = vmatprep.mubr.bf16.mxu0 0
      %5159 = vmatmul.mubr.bf16.gmra.mrb[0].mxu0 %v1004
      %v5160 = vpop.f32.mrb[0].mxu0
      %v5161 = vadd.f32 %v4711, %v5160
      %v5162 = vpop.f32.mrb[0].mxu0
      %v5163 = vpop.f32.mrb[0].mxu0
      %v5164 = vadd.f32 %v4714, %v5163
      %v5165 = vpop.f32.mrb[0].mxu0
      %5166 = vmatprep.mubr.bf16.mxu0 0
      %5167 = vmatmul.mubr.bf16.gmra.mrb[0].mxu0 %v1007
      %v5168 = vpop.f32.mrb[0].mxu0
      %v5169 = vadd.f32 %v4719, %v5168
      %v5170 = vpop.f32.mrb[0].mxu0
      %v5171 = vpop.f32.mrb[0].mxu0
      %v5172 = vadd.f32 %v4722, %v5171
      %v5173 = vpop.f32.mrb[0].mxu0
      %5174 = vmatprep.mubr.bf16.mxu0 0
      %5175 = vmatmul.mubr.bf16.gmra.mrb[0].mxu0 %v1010
      %v5176 = vpop.f32.mrb[0].mxu0
      %v5177 = vadd.f32 %v4727, %v5176
      %v5178 = vpop.f32.mrb[0].mxu0
      %v5179 = vpop.f32.mrb[0].mxu0
      %v5180 = vpop.f32.mrb[0].mxu0
      %5181 = vmatprep.mubr.bf16.mxu0 0
      %5182 = vmatmul.mubr.bf16.gmra.mrb[0].mxu0 %v1013
      %v5183 = vpop.f32.mrb[0].mxu0
      %v5184 = vadd.f32 %v4734, %v5183
      %v5185 = vpop.f32.mrb[0].mxu0
      %v5186 = vpop.f32.mrb[0].mxu0
      %v5187 = vadd.f32 %v4737, %v5186
      %v5188 = vpop.f32.mrb[0].mxu0
      %5189 = vmatprep.mubr.bf16.mxu0 0
      %5190 = vmatmul.mubr.bf16.gmra.mrb[0].mxu0 %v1016
      %v5191 = vpop.f32.mrb[0].mxu0
      %v5192 = vadd.f32 %v4742, %v5191
      %v5193 = vpop.f32.mrb[0].mxu0
      %v5194 = vpop.f32.mrb[0].mxu0
      %v5195 = vadd.f32 %v4745, %v5194
      %v5196 = vpop.f32.mrb[0].mxu0
      %5197 = vmatprep.mubr.bf16.mxu0 0
      %5198 = vmatmul.mubr.bf16.gmra.mrb[0].mxu0 %v1019
      %v5199 = vpop.f32.mrb[0].mxu0
      %v5200 = vadd.f32 %v4750, %v5199
      %v5201 = vpop.f32.mrb[0].mxu0
      %v5202 = vpop.f32.mrb[0].mxu0
      %v5203 = vpop.f32.mrb[0].mxu0
      %5204 = vmatprep.mubr.bf16.mxu0 0
      %5205 = vmatmul.mubr.bf16.gmra.mrb[0].mxu0 %v1022
      %v5206 = vpop.f32.mrb[0].mxu0
      %v5207 = vadd.f32 %v4757, %v5206
      %v5208 = vpop.f32.mrb[0].mxu0
      %v5209 = vpop.f32.mrb[0].mxu0
      %v5210 = vadd.f32 %v4760, %v5209
      %v5211 = vpop.f32.mrb[0].mxu0
      %5212 = vmatprep.mubr.bf16.mxu0 0
      %5213 = vmatmul.mubr.bf16.gmra.mrb[0].mxu0 %v1025
      %v5214 = vpop.f32.mrb[0].mxu0
      %v5215 = vadd.f32 %v4765, %v5214
      %v5216 = vpop.f32.mrb[0].mxu0
      %v5217 = vpop.f32.mrb[0].mxu0
      %v5218 = vadd.f32 %v4768, %v5217
      %v5219 = vpop.f32.mrb[0].mxu0
      %5220 = vmatprep.mubr.bf16.mxu0 0
      %5221 = vmatmul.mubr.bf16.gmra.mrb[0].mxu0 %v1028
      %v5222 = vpop.f32.mrb[0].mxu0
      %v5223 = vadd.f32 %v4773, %v5222
      %v5224 = vpop.f32.mrb[0].mxu0
      %v5225 = vpop.f32.mrb[0].mxu0
      %v5226 = vpop.f32.mrb[0].mxu0
      %5227 = vmatprep.mubr.bf16.mxu0 0
      %5228 = vmatmul.mubr.bf16.gmra.mrb[0].mxu0 %v1031
      %v5229 = vpop.f32.mrb[0].mxu0
      %v5230 = vadd.f32 %v4780, %v5229
      %v5231 = vpop.f32.mrb[0].mxu0
      %v5232 = vpop.f32.mrb[0].mxu0
      %v5233 = vadd.f32 %v4783, %v5232
      %v5234 = vpop.f32.mrb[0].mxu0
      %5235 = vmatprep.mubr.bf16.mxu0 0
      %5236 = vmatmul.mubr.bf16.gmra.mrb[0].mxu0 %v1034
      %v5237 = vpop.f32.mrb[0].mxu0
      %v5238 = vadd.f32 %v4788, %v5237
      %v5239 = vpop.f32.mrb[0].mxu0
      %v5240 = vpop.f32.mrb[0].mxu0
      %v5241 = vadd.f32 %v4791, %v5240
      %v5242 = vpop.f32.mrb[0].mxu0
      %5243 = vmatprep.mubr.bf16.mxu0 0
      %5244 = vmatmul.mubr.bf16.gmra.mrb[0].mxu0 %v1037
      %v5245 = vpop.f32.mrb[0].mxu0
      %v5246 = vadd.f32 %v4796, %v5245
      %v5247 = vpop.f32.mrb[0].mxu0
      %v5248 = vpop.f32.mrb[0].mxu0
      %v5249 = vpop.f32.mrb[0].mxu0
      %5250 = vmatprep.mubr.bf16.mxu0 0
      %5251 = vmatmul.mubr.bf16.gmra.mrb[0].mxu0 %v1040
      %v5252 = vpop.f32.mrb[0].mxu0
      %v5253 = vadd.f32 %v4803, %v5252
      %v5254 = vpop.f32.mrb[0].mxu0
      %v5255 = vpop.f32.mrb[0].mxu0
      %v5256 = vadd.f32 %v4806, %v5255
      %v5257 = vpop.f32.mrb[0].mxu0
      %5258 = vmatprep.mubr.bf16.mxu0 0
      %5259 = vmatmul.mubr.bf16.gmra.mrb[0].mxu0 %v1043
      %v5260 = vpop.f32.mrb[0].mxu0
      %v5261 = vadd.f32 %v4811, %v5260
      %v5262 = vpop.f32.mrb[0].mxu0
      %v5263 = vpop.f32.mrb[0].mxu0
      %v5264 = vadd.f32 %v4814, %v5263
      %v5265 = vpop.f32.mrb[0].mxu0
      %5266 = vmatprep.mubr.bf16.mxu0 0
      %5267 = vmatmul.mubr.bf16.gmra.mrb[0].mxu0 %v1046
      %v5268 = vpop.f32.mrb[0].mxu0
      %v5269 = vadd.f32 %v4819, %v5268
      %v5270 = vpop.f32.mrb[0].mxu0
      %v5271 = vpop.f32.mrb[0].mxu0
      %v5272 = vpop.f32.mrb[0].mxu0
      %5273 = vmatprep.mubr.bf16.mxu0 0
      %5274 = vmatmul.mubr.bf16.gmra.mrb[0].mxu0 %v1049
      %v5275 = vpop.f32.mrb[0].mxu0
      %v5276 = vadd.f32 %v4826, %v5275
      %v5277 = vpop.f32.mrb[0].mxu0
      %v5278 = vpop.f32.mrb[0].mxu0
      %v5279 = vadd.f32 %v4829, %v5278
      %v5280 = vpop.f32.mrb[0].mxu0
      %5281 = vmatprep.mubr.bf16.mxu0 0
      %5282 = vmatmul.mubr.bf16.gmra.mrb[0].mxu0 %v1052
      %v5283 = vpop.f32.mrb[0].mxu0
      %v5284 = vadd.f32 %v4834, %v5283
      %v5285 = vpop.f32.mrb[0].mxu0
      %v5286 = vpop.f32.mrb[0].mxu0
      %v5287 = vadd.f32 %v4837, %v5286
      %v5288 = vpop.f32.mrb[0].mxu0
      %5289 = vmatprep.mubr.bf16.mxu0 0
      %5290 = vmatmul.mubr.bf16.gmra.mrb[0].mxu0 %v1055
      %v5291 = vpop.f32.mrb[0].mxu0
      %v5292 = vadd.f32 %v4842, %v5291
      %v5293 = vpop.f32.mrb[0].mxu0
      %v5294 = vpop.f32.mrb[0].mxu0
      %v5295 = vpop.f32.mrb[0].mxu0
      %5296 = vmatprep.mubr.bf16.mxu0 0
      %5297 = vmatmul.mubr.bf16.gmra.mrb[0].mxu0 %v1058
      %v5298 = vpop.f32.mrb[0].mxu0
      %v5299 = vadd.f32 %v4849, %v5298
      %v5300 = vpop.f32.mrb[0].mxu0
      %v5301 = vpop.f32.mrb[0].mxu0
      %v5302 = vadd.f32 %v4852, %v5301
      %v5303 = vpop.f32.mrb[0].mxu0
      %5304 = vmatprep.mubr.bf16.mxu0 0
      %5305 = vmatmul.mubr.bf16.gmra.mrb[0].mxu0 %v1061
      %v5306 = vpop.f32.mrb[0].mxu0
      %v5307 = vadd.f32 %v4857, %v5306
      %v5308 = vpop.f32.mrb[0].mxu0
      %v5309 = vpop.f32.mrb[0].mxu0
      %v5310 = vadd.f32 %v4860, %v5309
      %v5311 = vpop.f32.mrb[0].mxu0
      %5312 = vmatprep.mubr.bf16.mxu0 0
      %5313 = vmatmul.mubr.bf16.gmra.mrb[0].mxu0 %v1064
      %v5314 = vpop.f32.mrb[0].mxu0
      %v5315 = vadd.f32 %v4865, %v5314
      %v5316 = vpop.f32.mrb[0].mxu0
      %v5317 = vpop.f32.mrb[0].mxu0
      %v5318 = vpop.f32.mrb[0].mxu0
      %5319 = vmatprep.mubr.bf16.mxu0 0
      %5320 = vmatmul.mubr.bf16.gmra.mrb[0].mxu0 %v1067
      %v5321 = vpop.f32.mrb[0].mxu0
      %v5322 = vadd.f32 %v4872, %v5321
      %v5323 = vpop.f32.mrb[0].mxu0
      %v5324 = vpop.f32.mrb[0].mxu0
      %v5325 = vadd.f32 %v4875, %v5324
      %v5326 = vpop.f32.mrb[0].mxu0
      %5327 = vmatprep.mubr.bf16.mxu0 0
      %5328 = vmatmul.mubr.bf16.gmra.mrb[0].mxu0 %v1070
      %v5329 = vpop.f32.mrb[0].mxu0
      %v5330 = vadd.f32 %v4880, %v5329
      %v5331 = vpop.f32.mrb[0].mxu0
      %v5332 = vpop.f32.mrb[0].mxu0
      %v5333 = vadd.f32 %v4883, %v5332
      %v5334 = vpop.f32.mrb[0].mxu0
      %5335 = vmatprep.mubr.bf16.mxu0 0
      %5336 = vmatmul.mubr.bf16.gmra.mrb[0].mxu0 %v1073
      %v5337 = vpop.f32.mrb[0].mxu0
      %v5338 = vadd.f32 %v4888, %v5337
      %v5339 = vpop.f32.mrb[0].mxu0
      %v5340 = vpop.f32.mrb[0].mxu0
      %v5341 = vpop.f32.mrb[0].mxu0
      %5342 = vmatprep.mubr.bf16.mxu0 0
      %5343 = vmatmul.mubr.bf16.gmra.mrb[0].mxu0 %v1076
      %v5344 = vpop.f32.mrb[0].mxu0
      %v5345 = vadd.f32 %v4895, %v5344
      %v5346 = vpop.f32.mrb[0].mxu0
      %v5347 = vpop.f32.mrb[0].mxu0
      %v5348 = vadd.f32 %v4898, %v5347
      %v5349 = vpop.f32.mrb[0].mxu0
      %5350 = vmatprep.mubr.bf16.mxu0 0
      %5351 = vmatmul.mubr.bf16.gmra.mrb[0].mxu0 %v1079
      %v5352 = vpop.f32.mrb[0].mxu0
      %v5353 = vadd.f32 %v4903, %v5352
      %v5354 = vpop.f32.mrb[0].mxu0
      %v5355 = vpop.f32.mrb[0].mxu0
      %v5356 = vadd.f32 %v4906, %v5355
      %v5357 = vpop.f32.mrb[0].mxu0
      %5358 = vmatprep.mubr.bf16.mxu0 0
      %5359 = vmatmul.mubr.bf16.gmra.mrb[0].mxu0 %v1082
      %v5360 = vpop.f32.mrb[0].mxu0
      %v5361 = vadd.f32 %v4911, %v5360
      %v5362 = vpop.f32.mrb[0].mxu0
      %v5363 = vpop.f32.mrb[0].mxu0
      %v5364 = vpop.f32.mrb[0].mxu0
      %5365 = vmatprep.mubr.bf16.mxu0 0
      %5366 = vmatmul.mubr.bf16.gmra.mrb[0].mxu0 %v1085
      %v5367 = vpop.f32.mrb[0].mxu0
      %v5368 = vadd.f32 %v4918, %v5367
      %v5369 = vpop.f32.mrb[0].mxu0
      %v5370 = vpop.f32.mrb[0].mxu0
      %v5371 = vadd.f32 %v4921, %v5370
      %v5372 = vpop.f32.mrb[0].mxu0
      %5373 = vmatprep.mubr.bf16.mxu0 0
      %5374 = vmatmul.mubr.bf16.gmra.mrb[0].mxu0 %v1088
      %v5375 = vpop.f32.mrb[0].mxu0
      %v5376 = vadd.f32 %v4926, %v5375
      %v5377 = vpop.f32.mrb[0].mxu0
      %v5378 = vpop.f32.mrb[0].mxu0
      %v5379 = vadd.f32 %v4929, %v5378
      %v5380 = vpop.f32.mrb[0].mxu0
      %5381 = vmatprep.mubr.bf16.mxu0 0
      %5382 = vmatmul.mubr.bf16.gmra.mrb[0].mxu0 %v1091
      %v5383 = vpop.f32.mrb[0].mxu0
      %v5384 = vadd.f32 %v4934, %v5383
      %v5385 = vpop.f32.mrb[0].mxu0
      %v5386 = vpop.f32.mrb[0].mxu0
      %v5387 = vpop.f32.mrb[0].mxu0
      %5388 = vmatprep.mubr.bf16.mxu0 0
      %5389 = vmatmul.mubr.bf16.gmra.mrb[0].mxu0 %v1094
      %v5390 = vpop.f32.mrb[0].mxu0
      %v5391 = vadd.f32 %v4941, %v5390
      %v5392 = vpop.f32.mrb[0].mxu0
      %v5393 = vpop.f32.mrb[0].mxu0
      %v5394 = vadd.f32 %v4944, %v5393
      %v5395 = vpop.f32.mrb[0].mxu0
      %5396 = vmatprep.mubr.bf16.mxu0 0
      %5397 = vmatmul.mubr.bf16.gmra.mrb[0].mxu0 %v1097
      %v5398 = vpop.f32.mrb[0].mxu0
      %v5399 = vadd.f32 %v4949, %v5398
      %v5400 = vpop.f32.mrb[0].mxu0
      %v5401 = vpop.f32.mrb[0].mxu0
      %v5402 = vadd.f32 %v4952, %v5401
      %v5403 = vpop.f32.mrb[0].mxu0
      %5404 = vmatprep.mubr.bf16.mxu0 0
      %5405 = vmatmul.mubr.bf16.gmra.mrb[0].mxu0 %v1100
      %v5406 = vpop.f32.mrb[0].mxu0
      %v5407 = vadd.f32 %v4957, %v5406
      %v5408 = vpop.f32.mrb[0].mxu0
      %v5409 = vpop.f32.mrb[0].mxu0
      %v5410 = vpop.f32.mrb[0].mxu0
      %5411 = vmatprep.mubr.bf16.mxu0 0
      %5412 = vmatmul.mubr.bf16.gmra.mrb[0].mxu0 %v1103
      %v5413 = vpop.f32.mrb[0].mxu0
      %v5414 = vadd.f32 %v4964, %v5413
      %v5415 = vpop.f32.mrb[0].mxu0
      %v5416 = vpop.f32.mrb[0].mxu0
      %v5417 = vadd.f32 %v4967, %v5416
      %v5418 = vpop.f32.mrb[0].mxu0
      %5419 = vmatprep.mubr.bf16.mxu0 0
      %5420 = vmatmul.mubr.bf16.gmra.mrb[0].mxu0 %v1106
      %v5421 = vpop.f32.mrb[0].mxu0
      %v5422 = vadd.f32 %v4972, %v5421
      %v5423 = vpop.f32.mrb[0].mxu0
      %v5424 = vpop.f32.mrb[0].mxu0
      %v5425 = vadd.f32 %v4975, %v5424
      %v5426 = vpop.f32.mrb[0].mxu0
      %5427 = vmatprep.mubr.bf16.mxu0 0
      %5428 = vmatmul.mubr.bf16.gmra.mrb[0].mxu0 %v1109
      %v5429 = vpop.f32.mrb[0].mxu0
      %v5430 = vadd.f32 %v4980, %v5429
      %v5431 = vpop.f32.mrb[0].mxu0
      %v5432 = vpop.f32.mrb[0].mxu0
      %v5433 = vpop.f32.mrb[0].mxu0
      %5434 = vmatprep.mubr.bf16.mxu0 0
      %5435 = vmatmul.mubr.bf16.gmra.mrb[0].mxu0 %v1112
      %v5436 = vpop.f32.mrb[0].mxu0
      %v5437 = vadd.f32 %v4987, %v5436
      %v5438 = vpop.f32.mrb[0].mxu0
      %v5439 = vpop.f32.mrb[0].mxu0
      %v5440 = vadd.f32 %v4990, %v5439
      %v5441 = vpop.f32.mrb[0].mxu0
      %5442 = vmatprep.mubr.bf16.mxu0 0
      %5443 = vmatmul.mubr.bf16.gmra.mrb[0].mxu0 %v1115
      %v5444 = vpop.f32.mrb[0].mxu0
      %v5445 = vadd.f32 %v4995, %v5444
      %v5446 = vpop.f32.mrb[0].mxu0
      %v5447 = vpop.f32.mrb[0].mxu0
      %v5448 = vadd.f32 %v4998, %v5447
      %v5449 = vpop.f32.mrb[0].mxu0
      %5450 = vmatprep.mubr.bf16.mxu0 0
      %5451 = vmatmul.mubr.bf16.gmra.mrb[0].mxu0 %v1118
      %v5452 = vpop.f32.mrb[0].mxu0
      %v5453 = vadd.f32 %v5003, %v5452
      %v5454 = vpop.f32.mrb[0].mxu0
      %v5455 = vpop.f32.mrb[0].mxu0
      %v5456 = vpop.f32.mrb[0].mxu0
      %5457 = vmatprep.mubr.bf16.mxu0 0
      %5458 = vmatmul.mubr.bf16.gmra.mrb[0].mxu0 %v1121
      %v5459 = vpop.f32.mrb[0].mxu0
      %v5460 = vadd.f32 %v5010, %v5459
      %v5461 = vpop.f32.mrb[0].mxu0
      %v5462 = vpop.f32.mrb[0].mxu0
      %v5463 = vadd.f32 %v5013, %v5462
      %v5464 = vpop.f32.mrb[0].mxu0
      %5465 = vmatprep.mubr.bf16.mxu0 0
      %5466 = vmatmul.mubr.bf16.gmra.mrb[0].mxu0 %v1124
      %v5467 = vpop.f32.mrb[0].mxu0
      %v5468 = vadd.f32 %v5018, %v5467
      %v5469 = vpop.f32.mrb[0].mxu0
      %v5470 = vpop.f32.mrb[0].mxu0
      %v5471 = vadd.f32 %v5021, %v5470
      %v5472 = vpop.f32.mrb[0].mxu0
      %5473 = vmatprep.mubr.bf16.mxu0 0
      %5474 = vmatmul.mubr.bf16.gmra.mrb[0].mxu0 %v1127
      %v5475 = vpop.f32.mrb[0].mxu0
      %v5476 = vadd.f32 %v5026, %v5475
      %v5477 = vpop.f32.mrb[0].mxu0
      %v5478 = vpop.f32.mrb[0].mxu0
      %v5479 = vpop.f32.mrb[0].mxu0
      %5480 = vdwg.mxu0
      %s5481 = scalar_lea.vmem %s2, 32
      %v5482 = vld [vmem:[%s5481] sm:$0xf]
      %v5484 = vsel %vm1138, %v5482, 0
      %5486 = vmatprep.subr.bf16.mxu0 0
      %5487 = vmatpush1.bf16.msra.mxu0 %v5484
      %5488 = vmatprep.subr.bf16.mxu0 0
      %5489 = vmatpush1.bf16.msra.mxu0 0
      %5490 = vmatprep.subr.bf16.mxu0 0
      %5491 = vmatpush1.bf16.msra.mxu0 0
      %5492 = vmatprep.subr.bf16.mxu0 0
      %5493 = vmatpush1.bf16.msra.mxu0 0
      %5494 = vmatprep.subr.bf16.mxu0 0
      %5495 = vmatpush1.bf16.msra.mxu0 0
      %5496 = vmatprep.subr.bf16.mxu0 0
      %5497 = vmatpush1.bf16.msra.mxu0 0
      %5498 = vmatprep.subr.bf16.mxu0 0
      %5499 = vmatpush1.bf16.msra.mxu0 0
      %5500 = vmatprep.subr.bf16.mxu0 0
      %5501 = vmatpush1.bf16.msra.mxu0 0
      %5502 = vmatprep.subr.bf16.mxu0 0
      %5503 = vmatpush1.bf16.msra.mxu0 0
      %5504 = vmatprep.subr.bf16.mxu0 0
      %5505 = vmatpush1.bf16.msra.mxu0 0
      %5506 = vmatprep.subr.bf16.mxu0 0
      %5507 = vmatpush1.bf16.msra.mxu0 0
      %5508 = vmatprep.subr.bf16.mxu0 0
      %5509 = vmatpush1.bf16.msra.mxu0 0
      %5510 = vmatprep.subr.bf16.mxu0 0
      %5511 = vmatpush1.bf16.msra.mxu0 0
      %5512 = vmatprep.subr.bf16.mxu0 0
      %5513 = vmatpush1.bf16.msra.mxu0 0
      %5514 = vmatprep.subr.bf16.mxu0 0
      %5515 = vmatpush1.bf16.msra.mxu0 0
      %5516 = vmatprep.subr.bf16.mxu0 0
      %5517 = vmatpush1.bf16.msra.mxu0 0
      %5518 = vmatprep.mubr.bf16.mxu0 0
      %5519 = vmatmul.mubr.bf16.gmra.mrb[0].mxu0 %v2069
      %v5520 = vpop.f32.mrb[0].mxu0
      %v5521 = vadd.f32 0.0, %v5520
      %v5522 = vpop.f32.mrb[0].mxu0
      %v5523 = vpop.f32.mrb[0].mxu0
      %v5524 = vadd.f32 0.0, %v5523
      %v5525 = vpop.f32.mrb[0].mxu0
      %5526 = vmatprep.mubr.bf16.mxu0 0
      %5527 = vmatmul.mubr.bf16.gmra.mrb[0].mxu0 %v2072
      %v5528 = vpop.f32.mrb[0].mxu0
      %v5529 = vadd.f32 0.0, %v5528
      %v5530 = vpop.f32.mrb[0].mxu0
      %v5531 = vpop.f32.mrb[0].mxu0
      %v5532 = vadd.f32 0.0, %v5531
      %v5533 = vpop.f32.mrb[0].mxu0
      %5534 = vmatprep.mubr.bf16.mxu0 0
      %5535 = vmatmul.mubr.bf16.gmra.mrb[0].mxu0 %v2075
      %v5536 = vpop.f32.mrb[0].mxu0
      %v5537 = vadd.f32 0.0, %v5536
      %v5538 = vpop.f32.mrb[0].mxu0
      %v5539 = vpop.f32.mrb[0].mxu0
      %v5540 = vpop.f32.mrb[0].mxu0
      %5541 = vmatprep.mubr.bf16.mxu0 0
      %5542 = vmatmul.mubr.bf16.gmra.mrb[0].mxu0 %v2078
      %v5543 = vpop.f32.mrb[0].mxu0
      %v5544 = vadd.f32 0.0, %v5543
      %v5545 = vpop.f32.mrb[0].mxu0
      %v5546 = vpop.f32.mrb[0].mxu0
      %v5547 = vadd.f32 0.0, %v5546
      %v5548 = vpop.f32.mrb[0].mxu0
      %5549 = vmatprep.mubr.bf16.mxu0 0
      %5550 = vmatmul.mubr.bf16.gmra.mrb[0].mxu0 %v2081
      %v5551 = vpop.f32.mrb[0].mxu0
      %v5552 = vadd.f32 0.0, %v5551
      %v5553 = vpop.f32.mrb[0].mxu0
      %v5554 = vpop.f32.mrb[0].mxu0
      %v5555 = vadd.f32 0.0, %v5554
      %v5556 = vpop.f32.mrb[0].mxu0
      %5557 = vmatprep.mubr.bf16.mxu0 0
      %5558 = vmatmul.mubr.bf16.gmra.mrb[0].mxu0 %v2084
      %v5559 = vpop.f32.mrb[0].mxu0
      %v5560 = vadd.f32 0.0, %v5559
      %v5561 = vpop.f32.mrb[0].mxu0
      %v5562 = vpop.f32.mrb[0].mxu0
      %v5563 = vpop.f32.mrb[0].mxu0
      %5564 = vmatprep.mubr.bf16.mxu0 0
      %5565 = vmatmul.mubr.bf16.gmra.mrb[0].mxu0 %v2087
      %v5566 = vpop.f32.mrb[0].mxu0
      %v5567 = vadd.f32 0.0, %v5566
      %v5568 = vpop.f32.mrb[0].mxu0
      %v5569 = vpop.f32.mrb[0].mxu0
      %v5570 = vadd.f32 0.0, %v5569
      %v5571 = vpop.f32.mrb[0].mxu0
      %5572 = vmatprep.mubr.bf16.mxu0 0
      %5573 = vmatmul.mubr.bf16.gmra.mrb[0].mxu0 %v2090
      %v5574 = vpop.f32.mrb[0].mxu0
      %v5575 = vadd.f32 0.0, %v5574
      %v5576 = vpop.f32.mrb[0].mxu0
      %v5577 = vpop.f32.mrb[0].mxu0
      %v5578 = vadd.f32 0.0, %v5577
      %v5579 = vpop.f32.mrb[0].mxu0
      %5580 = vmatprep.mubr.bf16.mxu0 0
      %5581 = vmatmul.mubr.bf16.gmra.mrb[0].mxu0 %v2093
      %v5582 = vpop.f32.mrb[0].mxu0
      %v5583 = vadd.f32 0.0, %v5582
      %v5584 = vpop.f32.mrb[0].mxu0
      %v5585 = vpop.f32.mrb[0].mxu0
      %v5586 = vpop.f32.mrb[0].mxu0
      %5587 = vmatprep.mubr.bf16.mxu0 0
      %5588 = vmatmul.mubr.bf16.gmra.mrb[0].mxu0 %v2096
      %v5589 = vpop.f32.mrb[0].mxu0
      %v5590 = vadd.f32 0.0, %v5589
      %v5591 = vpop.f32.mrb[0].mxu0
      %v5592 = vpop.f32.mrb[0].mxu0
      %v5593 = vadd.f32 0.0, %v5592
      %v5594 = vpop.f32.mrb[0].mxu0
      %5595 = vmatprep.mubr.bf16.mxu0 0
      %5596 = vmatmul.mubr.bf16.gmra.mrb[0].mxu0 %v2099
      %v5597 = vpop.f32.mrb[0].mxu0
      %v5598 = vadd.f32 0.0, %v5597
      %v5599 = vpop.f32.mrb[0].mxu0
      %v5600 = vpop.f32.mrb[0].mxu0
      %v5601 = vadd.f32 0.0, %v5600
      %v5602 = vpop.f32.mrb[0].mxu0
      %5603 = vmatprep.mubr.bf16.mxu0 0
      %5604 = vmatmul.mubr.bf16.gmra.mrb[0].mxu0 %v2102
      %v5605 = vpop.f32.mrb[0].mxu0
      %v5606 = vadd.f32 0.0, %v5605
      %v5607 = vpop.f32.mrb[0].mxu0
      %v5608 = vpop.f32.mrb[0].mxu0
      %v5609 = vpop.f32.mrb[0].mxu0
      %5610 = vmatprep.mubr.bf16.mxu0 0
      %5611 = vmatmul.mubr.bf16.gmra.mrb[0].mxu0 %v2105
      %v5612 = vpop.f32.mrb[0].mxu0
      %v5613 = vadd.f32 0.0, %v5612
      %v5614 = vpop.f32.mrb[0].mxu0
      %v5615 = vpop.f32.mrb[0].mxu0
      %v5616 = vadd.f32 0.0, %v5615
      %v5617 = vpop.f32.mrb[0].mxu0
      %5618 = vmatprep.mubr.bf16.mxu0 0
      %5619 = vmatmul.mubr.bf16.gmra.mrb[0].mxu0 %v2108
      %v5620 = vpop.f32.mrb[0].mxu0
      %v5621 = vadd.f32 0.0, %v5620
      %v5622 = vpop.f32.mrb[0].mxu0
      %v5623 = vpop.f32.mrb[0].mxu0
      %v5624 = vadd.f32 0.0, %v5623
      %v5625 = vpop.f32.mrb[0].mxu0
      %5626 = vmatprep.mubr.bf16.mxu0 0
      %5627 = vmatmul.mubr.bf16.gmra.mrb[0].mxu0 %v2111
      %v5628 = vpop.f32.mrb[0].mxu0
      %v5629 = vadd.f32 0.0, %v5628
      %v5630 = vpop.f32.mrb[0].mxu0
      %v5631 = vpop.f32.mrb[0].mxu0
      %v5632 = vpop.f32.mrb[0].mxu0
      %5633 = vmatprep.mubr.bf16.mxu0 0
      %5634 = vmatmul.mubr.bf16.gmra.mrb[0].mxu0 %v2114
      %v5635 = vpop.f32.mrb[0].mxu0
      %v5636 = vadd.f32 0.0, %v5635
      %v5637 = vpop.f32.mrb[0].mxu0
      %v5638 = vpop.f32.mrb[0].mxu0
      %v5639 = vadd.f32 0.0, %v5638
      %v5640 = vpop.f32.mrb[0].mxu0
      %5641 = vmatprep.mubr.bf16.mxu0 0
      %5642 = vmatmul.mubr.bf16.gmra.mrb[0].mxu0 %v2117
      %v5643 = vpop.f32.mrb[0].mxu0
      %v5644 = vadd.f32 0.0, %v5643
      %v5645 = vpop.f32.mrb[0].mxu0
      %v5646 = vpop.f32.mrb[0].mxu0
      %v5647 = vadd.f32 0.0, %v5646
      %v5648 = vpop.f32.mrb[0].mxu0
      %5649 = vmatprep.mubr.bf16.mxu0 0
      %5650 = vmatmul.mubr.bf16.gmra.mrb[0].mxu0 %v2120
      %v5651 = vpop.f32.mrb[0].mxu0
      %v5652 = vadd.f32 0.0, %v5651
      %v5653 = vpop.f32.mrb[0].mxu0
      %v5654 = vpop.f32.mrb[0].mxu0
      %v5655 = vpop.f32.mrb[0].mxu0
      %5656 = vmatprep.mubr.bf16.mxu0 0
      %5657 = vmatmul.mubr.bf16.gmra.mrb[0].mxu0 %v2123
      %v5658 = vpop.f32.mrb[0].mxu0
      %v5659 = vadd.f32 0.0, %v5658
      %v5660 = vpop.f32.mrb[0].mxu0
      %v5661 = vpop.f32.mrb[0].mxu0
      %v5662 = vadd.f32 0.0, %v5661
      %v5663 = vpop.f32.mrb[0].mxu0
      %5664 = vmatprep.mubr.bf16.mxu0 0
      %5665 = vmatmul.mubr.bf16.gmra.mrb[0].mxu0 %v2126
      %v5666 = vpop.f32.mrb[0].mxu0
      %v5667 = vadd.f32 0.0, %v5666
      %v5668 = vpop.f32.mrb[0].mxu0
      %v5669 = vpop.f32.mrb[0].mxu0
      %v5670 = vadd.f32 0.0, %v5669
      %v5671 = vpop.f32.mrb[0].mxu0
      %5672 = vmatprep.mubr.bf16.mxu0 0
      %5673 = vmatmul.mubr.bf16.gmra.mrb[0].mxu0 %v2129
      %v5674 = vpop.f32.mrb[0].mxu0
      %v5675 = vadd.f32 0.0, %v5674
      %v5676 = vpop.f32.mrb[0].mxu0
      %v5677 = vpop.f32.mrb[0].mxu0
      %v5678 = vpop.f32.mrb[0].mxu0
      %5679 = vmatprep.mubr.bf16.mxu0 0
      %5680 = vmatmul.mubr.bf16.gmra.mrb[0].mxu0 %v2132
      %v5681 = vpop.f32.mrb[0].mxu0
      %v5682 = vadd.f32 0.0, %v5681
      %v5683 = vpop.f32.mrb[0].mxu0
      %v5684 = vpop.f32.mrb[0].mxu0
      %v5685 = vadd.f32 0.0, %v5684
      %v5686 = vpop.f32.mrb[0].mxu0
      %5687 = vmatprep.mubr.bf16.mxu0 0
      %5688 = vmatmul.mubr.bf16.gmra.mrb[0].mxu0 %v2135
      %v5689 = vpop.f32.mrb[0].mxu0
      %v5690 = vadd.f32 0.0, %v5689
      %v5691 = vpop.f32.mrb[0].mxu0
      %v5692 = vpop.f32.mrb[0].mxu0
      %v5693 = vadd.f32 0.0, %v5692
      %v5694 = vpop.f32.mrb[0].mxu0
      %5695 = vmatprep.mubr.bf16.mxu0 0
      %5696 = vmatmul.mubr.bf16.gmra.mrb[0].mxu0 %v2138
      %v5697 = vpop.f32.mrb[0].mxu0
      %v5698 = vadd.f32 0.0, %v5697
      %v5699 = vpop.f32.mrb[0].mxu0
      %v5700 = vpop.f32.mrb[0].mxu0
      %v5701 = vpop.f32.mrb[0].mxu0
      %5702 = vmatprep.mubr.bf16.mxu0 0
      %5703 = vmatmul.mubr.bf16.gmra.mrb[0].mxu0 %v2141
      %v5704 = vpop.f32.mrb[0].mxu0
      %v5705 = vadd.f32 0.0, %v5704
      %v5706 = vpop.f32.mrb[0].mxu0
      %v5707 = vpop.f32.mrb[0].mxu0
      %v5708 = vadd.f32 0.0, %v5707
      %v5709 = vpop.f32.mrb[0].mxu0
      %5710 = vmatprep.mubr.bf16.mxu0 0
      %5711 = vmatmul.mubr.bf16.gmra.mrb[0].mxu0 %v2144
      %v5712 = vpop.f32.mrb[0].mxu0
      %v5713 = vadd.f32 0.0, %v5712
      %v5714 = vpop.f32.mrb[0].mxu0
      %v5715 = vpop.f32.mrb[0].mxu0
      %v5716 = vadd.f32 0.0, %v5715
      %v5717 = vpop.f32.mrb[0].mxu0
      %5718 = vmatprep.mubr.bf16.mxu0 0
      %5719 = vmatmul.mubr.bf16.gmra.mrb[0].mxu0 %v2147
      %v5720 = vpop.f32.mrb[0].mxu0
      %v5721 = vadd.f32 0.0, %v5720
      %v5722 = vpop.f32.mrb[0].mxu0
      %v5723 = vpop.f32.mrb[0].mxu0
      %v5724 = vpop.f32.mrb[0].mxu0
      %5725 = vmatprep.mubr.bf16.mxu0 0
      %5726 = vmatmul.mubr.bf16.gmra.mrb[0].mxu0 %v2150
      %v5727 = vpop.f32.mrb[0].mxu0
      %v5728 = vadd.f32 0.0, %v5727
      %v5729 = vpop.f32.mrb[0].mxu0
      %v5730 = vpop.f32.mrb[0].mxu0
      %v5731 = vadd.f32 0.0, %v5730
      %v5732 = vpop.f32.mrb[0].mxu0
      %5733 = vmatprep.mubr.bf16.mxu0 0
      %5734 = vmatmul.mubr.bf16.gmra.mrb[0].mxu0 %v2153
      %v5735 = vpop.f32.mrb[0].mxu0
      %v5736 = vadd.f32 0.0, %v5735
      %v5737 = vpop.f32.mrb[0].mxu0
      %v5738 = vpop.f32.mrb[0].mxu0
      %v5739 = vadd.f32 0.0, %v5738
      %v5740 = vpop.f32.mrb[0].mxu0
      %5741 = vmatprep.mubr.bf16.mxu0 0
      %5742 = vmatmul.mubr.bf16.gmra.mrb[0].mxu0 %v2156
      %v5743 = vpop.f32.mrb[0].mxu0
      %v5744 = vadd.f32 0.0, %v5743
      %v5745 = vpop.f32.mrb[0].mxu0
      %v5746 = vpop.f32.mrb[0].mxu0
      %v5747 = vpop.f32.mrb[0].mxu0
      %5748 = vmatprep.mubr.bf16.mxu0 0
      %5749 = vmatmul.mubr.bf16.gmra.mrb[0].mxu0 %v2159
      %v5750 = vpop.f32.mrb[0].mxu0
      %v5751 = vadd.f32 0.0, %v5750
      %v5752 = vpop.f32.mrb[0].mxu0
      %v5753 = vpop.f32.mrb[0].mxu0
      %v5754 = vadd.f32 0.0, %v5753
      %v5755 = vpop.f32.mrb[0].mxu0
      %5756 = vmatprep.mubr.bf16.mxu0 0
      %5757 = vmatmul.mubr.bf16.gmra.mrb[0].mxu0 %v2162
      %v5758 = vpop.f32.mrb[0].mxu0
      %v5759 = vadd.f32 0.0, %v5758
      %v5760 = vpop.f32.mrb[0].mxu0
      %v5761 = vpop.f32.mrb[0].mxu0
      %v5762 = vadd.f32 0.0, %v5761
      %v5763 = vpop.f32.mrb[0].mxu0
      %5764 = vmatprep.mubr.bf16.mxu0 0
      %5765 = vmatmul.mubr.bf16.gmra.mrb[0].mxu0 %v2165
      %v5766 = vpop.f32.mrb[0].mxu0
      %v5767 = vadd.f32 0.0, %v5766
      %v5768 = vpop.f32.mrb[0].mxu0
      %v5769 = vpop.f32.mrb[0].mxu0
      %v5770 = vpop.f32.mrb[0].mxu0
      %5771 = vmatprep.mubr.bf16.mxu0 0
      %5772 = vmatmul.mubr.bf16.gmra.mrb[0].mxu0 %v2168
      %v5773 = vpop.f32.mrb[0].mxu0
      %v5774 = vadd.f32 0.0, %v5773
      %v5775 = vpop.f32.mrb[0].mxu0
      %v5776 = vpop.f32.mrb[0].mxu0
      %v5777 = vadd.f32 0.0, %v5776
      %v5778 = vpop.f32.mrb[0].mxu0
      %5779 = vmatprep.mubr.bf16.mxu0 0
      %5780 = vmatmul.mubr.bf16.gmra.mrb[0].mxu0 %v2171
      %v5781 = vpop.f32.mrb[0].mxu0
      %v5782 = vadd.f32 0.0, %v5781
      %v5783 = vpop.f32.mrb[0].mxu0
      %v5784 = vpop.f32.mrb[0].mxu0
      %v5785 = vadd.f32 0.0, %v5784
      %v5786 = vpop.f32.mrb[0].mxu0
      %5787 = vmatprep.mubr.bf16.mxu0 0
      %5788 = vmatmul.mubr.bf16.gmra.mrb[0].mxu0 %v2174
      %v5789 = vpop.f32.mrb[0].mxu0
      %v5790 = vadd.f32 0.0, %v5789
      %v5791 = vpop.f32.mrb[0].mxu0
      %v5792 = vpop.f32.mrb[0].mxu0
      %v5793 = vpop.f32.mrb[0].mxu0
      %5794 = vmatprep.mubr.bf16.mxu0 0
      %5795 = vmatmul.mubr.bf16.gmra.mrb[0].mxu0 %v2177
      %v5796 = vpop.f32.mrb[0].mxu0
      %v5797 = vadd.f32 0.0, %v5796
      %v5798 = vpop.f32.mrb[0].mxu0
      %v5799 = vpop.f32.mrb[0].mxu0
      %v5800 = vadd.f32 0.0, %v5799
      %v5801 = vpop.f32.mrb[0].mxu0
      %5802 = vmatprep.mubr.bf16.mxu0 0
      %5803 = vmatmul.mubr.bf16.gmra.mrb[0].mxu0 %v2180
      %v5804 = vpop.f32.mrb[0].mxu0
      %v5805 = vadd.f32 0.0, %v5804
      %v5806 = vpop.f32.mrb[0].mxu0
      %v5807 = vpop.f32.mrb[0].mxu0
      %v5808 = vadd.f32 0.0, %v5807
      %v5809 = vpop.f32.mrb[0].mxu0
      %5810 = vmatprep.mubr.bf16.mxu0 0
      %5811 = vmatmul.mubr.bf16.gmra.mrb[0].mxu0 %v2183
      %v5812 = vpop.f32.mrb[0].mxu0
      %v5813 = vadd.f32 0.0, %v5812
      %v5814 = vpop.f32.mrb[0].mxu0
      %v5815 = vpop.f32.mrb[0].mxu0
      %v5816 = vpop.f32.mrb[0].mxu0
      %5817 = vmatprep.mubr.bf16.mxu0 0
      %5818 = vmatmul.mubr.bf16.gmra.mrb[0].mxu0 %v2186
      %v5819 = vpop.f32.mrb[0].mxu0
      %v5820 = vadd.f32 0.0, %v5819
      %v5821 = vpop.f32.mrb[0].mxu0
      %v5822 = vpop.f32.mrb[0].mxu0
      %v5823 = vadd.f32 0.0, %v5822
      %v5824 = vpop.f32.mrb[0].mxu0
      %5825 = vmatprep.mubr.bf16.mxu0 0
      %5826 = vmatmul.mubr.bf16.gmra.mrb[0].mxu0 %v2189
      %v5827 = vpop.f32.mrb[0].mxu0
      %v5828 = vadd.f32 0.0, %v5827
      %v5829 = vpop.f32.mrb[0].mxu0
      %v5830 = vpop.f32.mrb[0].mxu0
      %v5831 = vadd.f32 0.0, %v5830
      %v5832 = vpop.f32.mrb[0].mxu0
      %5833 = vmatprep.mubr.bf16.mxu0 0
      %5834 = vmatmul.mubr.bf16.gmra.mrb[0].mxu0 %v2192
      %v5835 = vpop.f32.mrb[0].mxu0
      %v5836 = vadd.f32 0.0, %v5835
      %v5837 = vpop.f32.mrb[0].mxu0
      %v5838 = vpop.f32.mrb[0].mxu0
      %v5839 = vpop.f32.mrb[0].mxu0
      %5840 = vmatprep.mubr.bf16.mxu0 0
      %5841 = vmatmul.mubr.bf16.gmra.mrb[0].mxu0 %v2195
      %v5842 = vpop.f32.mrb[0].mxu0
      %v5843 = vadd.f32 0.0, %v5842
      %v5844 = vpop.f32.mrb[0].mxu0
      %v5845 = vpop.f32.mrb[0].mxu0
      %v5846 = vadd.f32 0.0, %v5845
      %v5847 = vpop.f32.mrb[0].mxu0
      %5848 = vmatprep.mubr.bf16.mxu0 0
      %5849 = vmatmul.mubr.bf16.gmra.mrb[0].mxu0 %v2198
      %v5850 = vpop.f32.mrb[0].mxu0
      %v5851 = vadd.f32 0.0, %v5850
      %v5852 = vpop.f32.mrb[0].mxu0
      %v5853 = vpop.f32.mrb[0].mxu0
      %v5854 = vadd.f32 0.0, %v5853
      %v5855 = vpop.f32.mrb[0].mxu0
      %5856 = vmatprep.mubr.bf16.mxu0 0
      %5857 = vmatmul.mubr.bf16.gmra.mrb[0].mxu0 %v2201
      %v5858 = vpop.f32.mrb[0].mxu0
      %v5859 = vadd.f32 0.0, %v5858
      %v5860 = vpop.f32.mrb[0].mxu0
      %v5861 = vpop.f32.mrb[0].mxu0
      %v5862 = vpop.f32.mrb[0].mxu0
      %5863 = vmatprep.mubr.bf16.mxu0 0
      %5864 = vmatmul.mubr.bf16.gmra.mrb[0].mxu0 %v2204
      %v5865 = vpop.f32.mrb[0].mxu0
      %v5866 = vadd.f32 0.0, %v5865
      %v5867 = vpop.f32.mrb[0].mxu0
      %v5868 = vpop.f32.mrb[0].mxu0
      %v5869 = vadd.f32 0.0, %v5868
      %v5870 = vpop.f32.mrb[0].mxu0
      %5871 = vmatprep.mubr.bf16.mxu0 0
      %5872 = vmatmul.mubr.bf16.gmra.mrb[0].mxu0 %v2207
      %v5873 = vpop.f32.mrb[0].mxu0
      %v5874 = vadd.f32 0.0, %v5873
      %v5875 = vpop.f32.mrb[0].mxu0
      %v5876 = vpop.f32.mrb[0].mxu0
      %v5877 = vadd.f32 0.0, %v5876
      %v5878 = vpop.f32.mrb[0].mxu0
      %5879 = vmatprep.mubr.bf16.mxu0 0
      %5880 = vmatmul.mubr.bf16.gmra.mrb[0].mxu0 %v2210
      %v5881 = vpop.f32.mrb[0].mxu0
      %v5882 = vadd.f32 0.0, %v5881
      %v5883 = vpop.f32.mrb[0].mxu0
      %v5884 = vpop.f32.mrb[0].mxu0
      %v5885 = vpop.f32.mrb[0].mxu0
      %5886 = vmatprep.mubr.bf16.mxu0 0
      %5887 = vmatmul.mubr.bf16.gmra.mrb[0].mxu0 %v2213
      %v5888 = vpop.f32.mrb[0].mxu0
      %v5889 = vadd.f32 0.0, %v5888
      %v5890 = vpop.f32.mrb[0].mxu0
      %v5891 = vpop.f32.mrb[0].mxu0
      %v5892 = vadd.f32 0.0, %v5891
      %v5893 = vpop.f32.mrb[0].mxu0
      %5894 = vmatprep.mubr.bf16.mxu0 0
      %5895 = vmatmul.mubr.bf16.gmra.mrb[0].mxu0 %v2216
      %v5896 = vpop.f32.mrb[0].mxu0
      %v5897 = vadd.f32 0.0, %v5896
      %v5898 = vpop.f32.mrb[0].mxu0
      %v5899 = vpop.f32.mrb[0].mxu0
      %v5900 = vadd.f32 0.0, %v5899
      %v5901 = vpop.f32.mrb[0].mxu0
      %5902 = vmatprep.mubr.bf16.mxu0 0
      %5903 = vmatmul.mubr.bf16.gmra.mrb[0].mxu0 %v2219
      %v5904 = vpop.f32.mrb[0].mxu0
      %v5905 = vadd.f32 0.0, %v5904
      %v5906 = vpop.f32.mrb[0].mxu0
      %v5907 = vpop.f32.mrb[0].mxu0
      %v5908 = vpop.f32.mrb[0].mxu0
      %5909 = vmatprep.mubr.bf16.mxu0 0
      %5910 = vmatmul.mubr.bf16.gmra.mrb[0].mxu0 %v2222
      %v5911 = vpop.f32.mrb[0].mxu0
      %v5912 = vadd.f32 0.0, %v5911
      %v5913 = vpop.f32.mrb[0].mxu0
      %v5914 = vpop.f32.mrb[0].mxu0
      %v5915 = vadd.f32 0.0, %v5914
      %v5916 = vpop.f32.mrb[0].mxu0
      %5917 = vmatprep.mubr.bf16.mxu0 0
      %5918 = vmatmul.mubr.bf16.gmra.mrb[0].mxu0 %v2225
      %v5919 = vpop.f32.mrb[0].mxu0
      %v5920 = vadd.f32 0.0, %v5919
      %v5921 = vpop.f32.mrb[0].mxu0
      %v5922 = vpop.f32.mrb[0].mxu0
      %v5923 = vadd.f32 0.0, %v5922
      %v5924 = vpop.f32.mrb[0].mxu0
      %5925 = vmatprep.mubr.bf16.mxu0 0
      %5926 = vmatmul.mubr.bf16.gmra.mrb[0].mxu0 %v2228
      %v5927 = vpop.f32.mrb[0].mxu0
      %v5928 = vadd.f32 0.0, %v5927
      %v5929 = vpop.f32.mrb[0].mxu0
      %v5930 = vpop.f32.mrb[0].mxu0
      %v5931 = vpop.f32.mrb[0].mxu0
      %5932 = vdwg.mxu0
      %v5933 = vadd.f32 %v5069, %v5521
      %v5934 = vadd.f32 %v5072, %v5524
      %v5935 = vadd.f32 %v5077, %v5529
      %v5936 = vadd.f32 %v5080, %v5532
      %v5937 = vadd.f32 %v5085, %v5537
      %v5938 = vadd.f32 %v5092, %v5544
      %v5939 = vadd.f32 %v5095, %v5547
      %v5940 = vadd.f32 %v5100, %v5552
      %v5941 = vadd.f32 %v5103, %v5555
      %v5942 = vadd.f32 %v5108, %v5560
      %v5943 = vadd.f32 %v5115, %v5567
      %v5944 = vadd.f32 %v5118, %v5570
      %v5945 = vadd.f32 %v5123, %v5575
      %v5946 = vadd.f32 %v5126, %v5578
      %v5947 = vadd.f32 %v5131, %v5583
      %v5948 = vadd.f32 %v5138, %v5590
      %v5949 = vadd.f32 %v5141, %v5593
      %v5950 = vadd.f32 %v5146, %v5598
      %v5951 = vadd.f32 %v5149, %v5601
      %v5952 = vadd.f32 %v5154, %v5606
      %v5953 = vadd.f32 %v5161, %v5613
      %v5954 = vadd.f32 %v5164, %v5616
      %v5955 = vadd.f32 %v5169, %v5621
      %v5956 = vadd.f32 %v5172, %v5624
      %v5957 = vadd.f32 %v5177, %v5629
      %v5958 = vadd.f32 %v5184, %v5636
      %v5959 = vadd.f32 %v5187, %v5639
      %v5960 = vadd.f32 %v5192, %v5644
      %v5961 = vadd.f32 %v5195, %v5647
      %v5962 = vadd.f32 %v5200, %v5652
      %v5963 = vadd.f32 %v5207, %v5659
      %v5964 = vadd.f32 %v5210, %v5662
      %v5965 = vadd.f32 %v5215, %v5667
      %v5966 = vadd.f32 %v5218, %v5670
      %v5967 = vadd.f32 %v5223, %v5675
      %v5968 = vadd.f32 %v5230, %v5682
      %v5969 = vadd.f32 %v5233, %v5685
      %v5970 = vadd.f32 %v5238, %v5690
      %v5971 = vadd.f32 %v5241, %v5693
      %v5972 = vadd.f32 %v5246, %v5698
      %v5973 = vadd.f32 %v5253, %v5705
      %v5974 = vadd.f32 %v5256, %v5708
      %v5975 = vadd.f32 %v5261, %v5713
      %v5976 = vadd.f32 %v5264, %v5716
      %v5977 = vadd.f32 %v5269, %v5721
      %v5978 = vadd.f32 %v5276, %v5728
      %v5979 = vadd.f32 %v5279, %v5731
      %v5980 = vadd.f32 %v5284, %v5736
      %v5981 = vadd.f32 %v5287, %v5739
      %v5982 = vadd.f32 %v5292, %v5744
      %v5983 = vadd.f32 %v5299, %v5751
      %v5984 = vadd.f32 %v5302, %v5754
      %v5985 = vadd.f32 %v5307, %v5759
      %v5986 = vadd.f32 %v5310, %v5762
      %v5987 = vadd.f32 %v5315, %v5767
      %v5988 = vadd.f32 %v5322, %v5774
      %v5989 = vadd.f32 %v5325, %v5777
      %v5990 = vadd.f32 %v5330, %v5782
      %v5991 = vadd.f32 %v5333, %v5785
      %v5992 = vadd.f32 %v5338, %v5790
      %v5993 = vadd.f32 %v5345, %v5797
      %v5994 = vadd.f32 %v5348, %v5800
      %v5995 = vadd.f32 %v5353, %v5805
      %v5996 = vadd.f32 %v5356, %v5808
      %v5997 = vadd.f32 %v5361, %v5813
      %v5998 = vadd.f32 %v5368, %v5820
      %v5999 = vadd.f32 %v5371, %v5823
      %v6000 = vadd.f32 %v5376, %v5828
      %v6001 = vadd.f32 %v5379, %v5831
      %v6002 = vadd.f32 %v5384, %v5836
      %v6003 = vadd.f32 %v5391, %v5843
      %v6004 = vadd.f32 %v5394, %v5846
      %v6005 = vadd.f32 %v5399, %v5851
      %v6006 = vadd.f32 %v5402, %v5854
      %v6007 = vadd.f32 %v5407, %v5859
      %v6008 = vadd.f32 %v5414, %v5866
      %v6009 = vadd.f32 %v5417, %v5869
      %v6010 = vadd.f32 %v5422, %v5874
      %v6011 = vadd.f32 %v5425, %v5877
      %v6012 = vadd.f32 %v5430, %v5882
      %v6013 = vadd.f32 %v5437, %v5889
      %v6014 = vadd.f32 %v5440, %v5892
      %v6015 = vadd.f32 %v5445, %v5897
      %v6016 = vadd.f32 %v5448, %v5900
      %v6017 = vadd.f32 %v5453, %v5905
      %v6018 = vadd.f32 %v5460, %v5912
      %v6019 = vadd.f32 %v5463, %v5915
      %v6020 = vadd.f32 %v5468, %v5920
      %v6021 = vadd.f32 %v5471, %v5923
      %v6022 = vadd.f32 %v5476, %v5928
      %vm6113 = vcmask 1045504
      %v6114 = vrot.slane %v5933, 2
      %v6115 = vrot.slane %v5934, 2
      %v6116 = vsel %vm6113, %v6114, %v6115
      %v6117 = vrot.slane %v5935, 2
      %v6118 = vsel %vm6113, %v6115, %v6117
      %v6119 = vrot.slane %v5936, 2
      %v6120 = vsel %vm6113, %v6117, %v6119
      %v6121 = vrot.slane %v5937, 2
      %v6122 = vsel %vm6113, %v6119, %v6121
      %v6123 = vrot.slane %v5938, 2
      %v6124 = vrot.slane %v5939, 2
      %v6125 = vsel %vm6113, %v6123, %v6124
      %v6126 = vrot.slane %v5940, 2
      %v6127 = vsel %vm6113, %v6124, %v6126
      %v6128 = vrot.slane %v5941, 2
      %v6129 = vsel %vm6113, %v6126, %v6128
      %v6130 = vrot.slane %v5942, 2
      %v6131 = vsel %vm6113, %v6128, %v6130
      %v6132 = vrot.slane %v5943, 2
      %v6133 = vrot.slane %v5944, 2
      %v6134 = vsel %vm6113, %v6132, %v6133
      %v6135 = vrot.slane %v5945, 2
      %v6136 = vsel %vm6113, %v6133, %v6135
      %v6137 = vrot.slane %v5946, 2
      %v6138 = vsel %vm6113, %v6135, %v6137
      %v6139 = vrot.slane %v5947, 2
      %v6140 = vsel %vm6113, %v6137, %v6139
      %v6141 = vrot.slane %v5948, 2
      %v6142 = vrot.slane %v5949, 2
      %v6143 = vsel %vm6113, %v6141, %v6142
      %v6144 = vrot.slane %v5950, 2
      %v6145 = vsel %vm6113, %v6142, %v6144
      %v6146 = vrot.slane %v5951, 2
      %v6147 = vsel %vm6113, %v6144, %v6146
      %v6148 = vrot.slane %v5952, 2
      %v6149 = vsel %vm6113, %v6146, %v6148
      %v6150 = vrot.slane %v5953, 2
      %v6151 = vrot.slane %v5954, 2
      %v6152 = vsel %vm6113, %v6150, %v6151
      %v6153 = vrot.slane %v5955, 2
      %v6154 = vsel %vm6113, %v6151, %v6153
      %v6155 = vrot.slane %v5956, 2
      %v6156 = vsel %vm6113, %v6153, %v6155
      %v6157 = vrot.slane %v5957, 2
      %v6158 = vsel %vm6113, %v6155, %v6157
      %v6159 = vrot.slane %v5958, 2
      %v6160 = vrot.slane %v5959, 2
      %v6161 = vsel %vm6113, %v6159, %v6160
      %v6162 = vrot.slane %v5960, 2
      %v6163 = vsel %vm6113, %v6160, %v6162
      %v6164 = vrot.slane %v5961, 2
      %v6165 = vsel %vm6113, %v6162, %v6164
      %v6166 = vrot.slane %v5962, 2
      %v6167 = vsel %vm6113, %v6164, %v6166
      %v6168 = vrot.slane %v5963, 2
      %v6169 = vrot.slane %v5964, 2
      %v6170 = vsel %vm6113, %v6168, %v6169
      %v6171 = vrot.slane %v5965, 2
      %v6172 = vsel %vm6113, %v6169, %v6171
      %v6173 = vrot.slane %v5966, 2
      %v6174 = vsel %vm6113, %v6171, %v6173
      %v6175 = vrot.slane %v5967, 2
      %v6176 = vsel %vm6113, %v6173, %v6175
      %v6177 = vrot.slane %v5968, 2
      %v6178 = vrot.slane %v5969, 2
      %v6179 = vsel %vm6113, %v6177, %v6178
      %v6180 = vrot.slane %v5970, 2
      %v6181 = vsel %vm6113, %v6178, %v6180
      %v6182 = vrot.slane %v5971, 2
      %v6183 = vsel %vm6113, %v6180, %v6182
      %v6184 = vrot.slane %v5972, 2
      %v6185 = vsel %vm6113, %v6182, %v6184
      %v6186 = vrot.slane %v5973, 2
      %v6187 = vrot.slane %v5974, 2
      %v6188 = vsel %vm6113, %v6186, %v6187
      %v6189 = vrot.slane %v5975, 2
      %v6190 = vsel %vm6113, %v6187, %v6189
      %v6191 = vrot.slane %v5976, 2
      %v6192 = vsel %vm6113, %v6189, %v6191
      %v6193 = vrot.slane %v5977, 2
      %v6194 = vsel %vm6113, %v6191, %v6193
      %v6195 = vrot.slane %v5978, 2
      %v6196 = vrot.slane %v5979, 2
      %v6197 = vsel %vm6113, %v6195, %v6196
      %v6198 = vrot.slane %v5980, 2
      %v6199 = vsel %vm6113, %v6196, %v6198
      %v6200 = vrot.slane %v5981, 2
      %v6201 = vsel %vm6113, %v6198, %v6200
      %v6202 = vrot.slane %v5982, 2
      %v6203 = vsel %vm6113, %v6200, %v6202
      %v6204 = vrot.slane %v5983, 2
      %v6205 = vrot.slane %v5984, 2
      %v6206 = vsel %vm6113, %v6204, %v6205
      %v6207 = vrot.slane %v5985, 2
      %v6208 = vsel %vm6113, %v6205, %v6207
      %v6209 = vrot.slane %v5986, 2
      %v6210 = vsel %vm6113, %v6207, %v6209
      %v6211 = vrot.slane %v5987, 2
      %v6212 = vsel %vm6113, %v6209, %v6211
      %v6213 = vrot.slane %v5988, 2
      %v6214 = vrot.slane %v5989, 2
      %v6215 = vsel %vm6113, %v6213, %v6214
      %v6216 = vrot.slane %v5990, 2
      %v6217 = vsel %vm6113, %v6214, %v6216
      %v6218 = vrot.slane %v5991, 2
      %v6219 = vsel %vm6113, %v6216, %v6218
      %v6220 = vrot.slane %v5992, 2
      %v6221 = vsel %vm6113, %v6218, %v6220
      %v6222 = vrot.slane %v5993, 2
      %v6223 = vrot.slane %v5994, 2
      %v6224 = vsel %vm6113, %v6222, %v6223
      %v6225 = vrot.slane %v5995, 2
      %v6226 = vsel %vm6113, %v6223, %v6225
      %v6227 = vrot.slane %v5996, 2
      %v6228 = vsel %vm6113, %v6225, %v6227
      %v6229 = vrot.slane %v5997, 2
      %v6230 = vsel %vm6113, %v6227, %v6229
      %v6231 = vrot.slane %v5998, 2
      %v6232 = vrot.slane %v5999, 2
      %v6233 = vsel %vm6113, %v6231, %v6232
      %v6234 = vrot.slane %v6000, 2
      %v6235 = vsel %vm6113, %v6232, %v6234
      %v6236 = vrot.slane %v6001, 2
      %v6237 = vsel %vm6113, %v6234, %v6236
      %v6238 = vrot.slane %v6002, 2
      %v6239 = vsel %vm6113, %v6236, %v6238
      %v6240 = vrot.slane %v6003, 2
      %v6241 = vrot.slane %v6004, 2
      %v6242 = vsel %vm6113, %v6240, %v6241
      %v6243 = vrot.slane %v6005, 2
      %v6244 = vsel %vm6113, %v6241, %v6243
      %v6245 = vrot.slane %v6006, 2
      %v6246 = vsel %vm6113, %v6243, %v6245
      %v6247 = vrot.slane %v6007, 2
      %v6248 = vsel %vm6113, %v6245, %v6247
      %v6249 = vrot.slane %v6008, 2
      %v6250 = vrot.slane %v6009, 2
      %v6251 = vsel %vm6113, %v6249, %v6250
      %v6252 = vrot.slane %v6010, 2
      %v6253 = vsel %vm6113, %v6250, %v6252
      %v6254 = vrot.slane %v6011, 2
      %v6255 = vsel %vm6113, %v6252, %v6254
      %v6256 = vrot.slane %v6012, 2
      %v6257 = vsel %vm6113, %v6254, %v6256
      %v6258 = vrot.slane %v6013, 2
      %v6259 = vrot.slane %v6014, 2
      %v6260 = vsel %vm6113, %v6258, %v6259
      %v6261 = vrot.slane %v6015, 2
      %v6262 = vsel %vm6113, %v6259, %v6261
      %v6263 = vrot.slane %v6016, 2
      %v6264 = vsel %vm6113, %v6261, %v6263
      %v6265 = vrot.slane %v6017, 2
      %v6266 = vsel %vm6113, %v6263, %v6265
      %v6267 = vrot.slane %v6018, 2
      %v6268 = vrot.slane %v6019, 2
      %v6269 = vsel %vm6113, %v6267, %v6268
      %v6270 = vrot.slane %v6020, 2
      %v6271 = vsel %vm6113, %v6268, %v6270
      %v6272 = vrot.slane %v6021, 2
      %v6273 = vsel %vm6113, %v6270, %v6272
      %v6274 = vrot.slane %v6022, 2
      %v6275 = vsel %vm6113, %v6272, %v6274
      %v6348 = vadd.f32 %v4505, %v6116
      %v6349 = vadd.f32 %v4506, %v6118
      %v6350 = vadd.f32 %v4507, %v6120
      %v6351 = vadd.f32 %v4508, %v6122
      %v6352 = vadd.f32 %v4509, %v6125
      %v6353 = vadd.f32 %v4510, %v6127
      %v6354 = vadd.f32 %v4511, %v6129
      %v6355 = vadd.f32 %v4512, %v6131
      %v6356 = vadd.f32 %v4513, %v6134
      %v6357 = vadd.f32 %v4514, %v6136
      %v6358 = vadd.f32 %v4515, %v6138
      %v6359 = vadd.f32 %v4516, %v6140
      %v6360 = vadd.f32 %v4517, %v6143
      %v6361 = vadd.f32 %v4518, %v6145
      %v6362 = vadd.f32 %v4519, %v6147
      %v6363 = vadd.f32 %v4520, %v6149
      %v6364 = vadd.f32 %v4521, %v6152
      %v6365 = vadd.f32 %v4522, %v6154
      %v6366 = vadd.f32 %v4523, %v6156
      %v6367 = vadd.f32 %v4524, %v6158
      %v6368 = vadd.f32 %v4525, %v6161
      %v6369 = vadd.f32 %v4526, %v6163
      %v6370 = vadd.f32 %v4527, %v6165
      %v6371 = vadd.f32 %v4528, %v6167
      %v6372 = vadd.f32 %v4529, %v6170
      %v6373 = vadd.f32 %v4530, %v6172
      %v6374 = vadd.f32 %v4531, %v6174
      %v6375 = vadd.f32 %v4532, %v6176
      %v6376 = vadd.f32 %v4533, %v6179
      %v6377 = vadd.f32 %v4534, %v6181
      %v6378 = vadd.f32 %v4535, %v6183
      %v6379 = vadd.f32 %v4536, %v6185
      %v6380 = vadd.f32 %v4537, %v6188
      %v6381 = vadd.f32 %v4538, %v6190
      %v6382 = vadd.f32 %v4539, %v6192
      %v6383 = vadd.f32 %v4540, %v6194
      %v6384 = vadd.f32 %v4541, %v6197
      %v6385 = vadd.f32 %v4542, %v6199
      %v6386 = vadd.f32 %v4543, %v6201
      %v6387 = vadd.f32 %v4544, %v6203
      %v6388 = vadd.f32 %v4545, %v6206
      %v6389 = vadd.f32 %v4546, %v6208
      %v6390 = vadd.f32 %v4547, %v6210
      %v6391 = vadd.f32 %v4548, %v6212
      %v6392 = vadd.f32 %v4549, %v6215
      %v6393 = vadd.f32 %v4550, %v6217
      %v6394 = vadd.f32 %v4551, %v6219
      %v6395 = vadd.f32 %v4552, %v6221
      %v6396 = vadd.f32 %v4553, %v6224
      %v6397 = vadd.f32 %v4554, %v6226
      %v6398 = vadd.f32 %v4555, %v6228
      %v6399 = vadd.f32 %v4556, %v6230
      %v6400 = vadd.f32 %v4557, %v6233
      %v6401 = vadd.f32 %v4558, %v6235
      %v6402 = vadd.f32 %v4559, %v6237
      %v6403 = vadd.f32 %v4560, %v6239
      %v6404 = vadd.f32 %v4561, %v6242
      %v6405 = vadd.f32 %v4562, %v6244
      %v6406 = vadd.f32 %v4563, %v6246
      %v6407 = vadd.f32 %v4564, %v6248
      %v6408 = vadd.f32 %v4565, %v6251
      %v6409 = vadd.f32 %v4566, %v6253
      %v6410 = vadd.f32 %v4567, %v6255
      %v6411 = vadd.f32 %v4568, %v6257
      %v6412 = vadd.f32 %v4569, %v6260
      %v6413 = vadd.f32 %v4570, %v6262
      %v6414 = vadd.f32 %v4571, %v6264
      %v6415 = vadd.f32 %v4572, %v6266
      %v6416 = vadd.f32 %v4573, %v6269
      %v6417 = vadd.f32 %v4574, %v6271
      %v6418 = vadd.f32 %v4575, %v6273
      %v6419 = vadd.f32 %v4576, %v6275
      %v6420 = vlaneseq
      %v6421 = vshrl.u32 %v6420, 7
      %v6422 = vadd.s32 %v6421, 8
      %v6423 = vadd.s32 %v6421, 16
      %v6424 = vadd.s32 %v6421, 24
      %s6425 = smul.u32 %s22, 16
      %v6426 = vstv %s6425
      %v6427 = vadd.s32 %v6426, 2
      %v6428 = vadd.s32 %v6426, 3
      %v6429 = vadd.s32 %v6426, 4
      %v6430 = vadd.s32 %v6426, 5
      %v6431 = vadd.s32 %v6426, 6
      %v6432 = vadd.s32 %v6426, 7
      %v6433 = vadd.s32 %v6426, 8
      %v6434 = vadd.s32 %v6426, 9
      %v6435 = vadd.s32 %v6426, 10
      %v6436 = vadd.s32 %v6426, 11
      %v6437 = vadd.s32 %v6426, 12
      %v6438 = vadd.s32 %v6426, 13
      %v6439 = vadd.s32 %v6426, 14
      %v6440 = vadd.s32 %v6426, 15
      %v6441 = vadd.s32 %v6426, 16
      %v6442 = vadd.s32 %v6426, 17
      %v6443 = vsub.s32 %v6426, 1
      %v6444 = vsub.s32 %v6427, 1
      %v6445 = vsub.s32 %v6428, 1
      %v6446 = vsub.s32 %v6429, 1
      %v6447 = vsub.s32 %v6430, 1
      %v6448 = vsub.s32 %v6431, 1
      %v6449 = vsub.s32 %v6432, 1
      %v6450 = vsub.s32 %v6433, 1
      %v6451 = vsub.s32 %v6434, 1
      %v6452 = vsub.s32 %v6435, 1
      %v6453 = vsub.s32 %v6436, 1
      %v6454 = vsub.s32 %v6437, 1
      %v6455 = vsub.s32 %v6438, 1
      %v6456 = vsub.s32 %v6439, 1
      %v6457 = vsub.s32 %v6440, 1
      %v6458 = vsub.s32 %v6441, 1
      %v6459 = vsub.s32 %v6442, 1
      %vm6460 = vcmp.ge.s32.totalorder %v6421, 1
      %vm6461 = vcmp.ge.s32.totalorder %v6422, 1
      %vm6462 = vcmp.ge.s32.totalorder %v6423, 1
      %vm6463 = vcmp.ge.s32.totalorder %v6424, 1
      %vm6464 = vcmp.le.s32.totalorder %v6421, 16
      %vm6465 = vcmp.le.s32.totalorder %v6422, 16
      %vm6466 = vcmp.le.s32.totalorder %v6423, 16
      %vm6467 = vcmp.le.s32.totalorder %v6424, 16
      %vm6468 = vmand %vm6460, %vm6464
      %vm6469 = vmand %vm6461, %vm6465
      %vm6470 = vmand %vm6462, %vm6466
      %vm6471 = vmand %vm6463, %vm6467
      %vm6472 = vcmp.ge.s32.totalorder %v6443, 0
      %vm6473 = vcmp.ge.s32.totalorder %v6426, 0
      %vm6474 = vcmp.ge.s32.totalorder %v6444, 0
      %vm6475 = vcmp.ge.s32.totalorder %v6445, 0
      %vm6476 = vcmp.ge.s32.totalorder %v6446, 0
      %vm6477 = vcmp.ge.s32.totalorder %v6447, 0
      %vm6478 = vcmp.ge.s32.totalorder %v6448, 0
      %vm6479 = vcmp.ge.s32.totalorder %v6449, 0
      %vm6480 = vcmp.ge.s32.totalorder %v6450, 0
      %vm6481 = vcmp.ge.s32.totalorder %v6451, 0
      %vm6482 = vcmp.ge.s32.totalorder %v6452, 0
      %vm6483 = vcmp.ge.s32.totalorder %v6453, 0
      %vm6484 = vcmp.ge.s32.totalorder %v6454, 0
      %vm6485 = vcmp.ge.s32.totalorder %v6455, 0
      %vm6486 = vcmp.ge.s32.totalorder %v6456, 0
      %vm6487 = vcmp.ge.s32.totalorder %v6457, 0
      %vm6488 = vcmp.ge.s32.totalorder %v6458, 0
      %vm6489 = vcmp.ge.s32.totalorder %v6459, 0
      %vm6490 = vmand %vm6468, %vm6472
      %vm6491 = vmand %vm6469, %vm6472
      %vm6492 = vmand %vm6470, %vm6472
      %vm6493 = vmand %vm6471, %vm6472
      %vm6494 = vmand %vm6468, %vm6473
      %vm6495 = vmand %vm6469, %vm6473
      %vm6496 = vmand %vm6470, %vm6473
      %vm6497 = vmand %vm6471, %vm6473
      %vm6498 = vmand %vm6468, %vm6474
      %vm6499 = vmand %vm6469, %vm6474
      %vm6500 = vmand %vm6470, %vm6474
      %vm6501 = vmand %vm6471, %vm6474
      %vm6502 = vmand %vm6468, %vm6475
      %vm6503 = vmand %vm6469, %vm6475
      %vm6504 = vmand %vm6470, %vm6475
      %vm6505 = vmand %vm6471, %vm6475
      %vm6506 = vmand %vm6468, %vm6476
      %vm6507 = vmand %vm6469, %vm6476
      %vm6508 = vmand %vm6470, %vm6476
      %vm6509 = vmand %vm6471, %vm6476
      %vm6510 = vmand %vm6468, %vm6477
      %vm6511 = vmand %vm6469, %vm6477
      %vm6512 = vmand %vm6470, %vm6477
      %vm6513 = vmand %vm6471, %vm6477
      %vm6514 = vmand %vm6468, %vm6478
      %vm6515 = vmand %vm6469, %vm6478
      %vm6516 = vmand %vm6470, %vm6478
      %vm6517 = vmand %vm6471, %vm6478
      %vm6518 = vmand %vm6468, %vm6479
      %vm6519 = vmand %vm6469, %vm6479
      %vm6520 = vmand %vm6470, %vm6479
      %vm6521 = vmand %vm6471, %vm6479
      %vm6522 = vmand %vm6468, %vm6480
      %vm6523 = vmand %vm6469, %vm6480
      %vm6524 = vmand %vm6470, %vm6480
      %vm6525 = vmand %vm6471, %vm6480
      %vm6526 = vmand %vm6468, %vm6481
      %vm6527 = vmand %vm6469, %vm6481
      %vm6528 = vmand %vm6470, %vm6481
      %vm6529 = vmand %vm6471, %vm6481
      %vm6530 = vmand %vm6468, %vm6482
      %vm6531 = vmand %vm6469, %vm6482
      %vm6532 = vmand %vm6470, %vm6482
      %vm6533 = vmand %vm6471, %vm6482
      %vm6534 = vmand %vm6468, %vm6483
      %vm6535 = vmand %vm6469, %vm6483
      %vm6536 = vmand %vm6470, %vm6483
      %vm6537 = vmand %vm6471, %vm6483
      %vm6538 = vmand %vm6468, %vm6484
      %vm6539 = vmand %vm6469, %vm6484
      %vm6540 = vmand %vm6470, %vm6484
      %vm6541 = vmand %vm6471, %vm6484
      %vm6542 = vmand %vm6468, %vm6485
      %vm6543 = vmand %vm6469, %vm6485
      %vm6544 = vmand %vm6470, %vm6485
      %vm6545 = vmand %vm6471, %vm6485
      %vm6546 = vmand %vm6468, %vm6486
      %vm6547 = vmand %vm6469, %vm6486
      %vm6548 = vmand %vm6470, %vm6486
      %vm6549 = vmand %vm6471, %vm6486
      %vm6550 = vmand %vm6468, %vm6487
      %vm6551 = vmand %vm6469, %vm6487
      %vm6552 = vmand %vm6470, %vm6487
      %vm6553 = vmand %vm6471, %vm6487
      %vm6554 = vmand %vm6468, %vm6488
      %vm6555 = vmand %vm6469, %vm6488
      %vm6556 = vmand %vm6470, %vm6488
      %vm6557 = vmand %vm6471, %vm6488
      %vm6558 = vmand %vm6468, %vm6489
      %vm6559 = vmand %vm6469, %vm6489
      %vm6560 = vmand %vm6470, %vm6489
      %vm6561 = vmand %vm6471, %vm6489
      %vm6562 = vcmp.lt.s32.totalorder %v6443, 16
      %vm6563 = vcmp.lt.s32.totalorder %v6426, 16
      %vm6564 = vcmp.lt.s32.totalorder %v6444, 16
      %vm6565 = vcmp.lt.s32.totalorder %v6445, 16
      %vm6566 = vcmp.lt.s32.totalorder %v6446, 16
      %vm6567 = vcmp.lt.s32.totalorder %v6447, 16
      %vm6568 = vcmp.lt.s32.totalorder %v6448, 16
      %vm6569 = vcmp.lt.s32.totalorder %v6449, 16
      %vm6570 = vcmp.lt.s32.totalorder %v6450, 16
      %vm6571 = vcmp.lt.s32.totalorder %v6451, 16
      %vm6572 = vcmp.lt.s32.totalorder %v6452, 16
      %vm6573 = vcmp.lt.s32.totalorder %v6453, 16
      %vm6574 = vcmp.lt.s32.totalorder %v6454, 16
      %vm6575 = vcmp.lt.s32.totalorder %v6455, 16
      %vm6576 = vcmp.lt.s32.totalorder %v6456, 16
      %vm6577 = vcmp.lt.s32.totalorder %v6457, 16
      %vm6578 = vcmp.lt.s32.totalorder %v6458, 16
      %vm6579 = vcmp.lt.s32.totalorder %v6459, 16
      %vm6580 = vmand %vm6490, %vm6562
      %vm6581 = vmand %vm6491, %vm6562
      %vm6582 = vmand %vm6492, %vm6562
      %vm6583 = vmand %vm6493, %vm6562
      %vm6584 = vmand %vm6494, %vm6563
      %vm6585 = vmand %vm6495, %vm6563
      %vm6586 = vmand %vm6496, %vm6563
      %vm6587 = vmand %vm6497, %vm6563
      %vm6588 = vmand %vm6498, %vm6564
      %vm6589 = vmand %vm6499, %vm6564
      %vm6590 = vmand %vm6500, %vm6564
      %vm6591 = vmand %vm6501, %vm6564
      %vm6592 = vmand %vm6502, %vm6565
      %vm6593 = vmand %vm6503, %vm6565
      %vm6594 = vmand %vm6504, %vm6565
      %vm6595 = vmand %vm6505, %vm6565
      %vm6596 = vmand %vm6506, %vm6566
      %vm6597 = vmand %vm6507, %vm6566
      %vm6598 = vmand %vm6508, %vm6566
      %vm6599 = vmand %vm6509, %vm6566
      %vm6600 = vmand %vm6510, %vm6567
      %vm6601 = vmand %vm6511, %vm6567
      %vm6602 = vmand %vm6512, %vm6567
      %vm6603 = vmand %vm6513, %vm6567
      %vm6604 = vmand %vm6514, %vm6568
      %vm6605 = vmand %vm6515, %vm6568
      %vm6606 = vmand %vm6516, %vm6568
      %vm6607 = vmand %vm6517, %vm6568
      %vm6608 = vmand %vm6518, %vm6569
      %vm6609 = vmand %vm6519, %vm6569
      %vm6610 = vmand %vm6520, %vm6569
      %vm6611 = vmand %vm6521, %vm6569
      %vm6612 = vmand %vm6522, %vm6570
      %vm6613 = vmand %vm6523, %vm6570
      %vm6614 = vmand %vm6524, %vm6570
      %vm6615 = vmand %vm6525, %vm6570
      %vm6616 = vmand %vm6526, %vm6571
      %vm6617 = vmand %vm6527, %vm6571
      %vm6618 = vmand %vm6528, %vm6571
      %vm6619 = vmand %vm6529, %vm6571
      %vm6620 = vmand %vm6530, %vm6572
      %vm6621 = vmand %vm6531, %vm6572
      %vm6622 = vmand %vm6532, %vm6572
      %vm6623 = vmand %vm6533, %vm6572
      %vm6624 = vmand %vm6534, %vm6573
      %vm6625 = vmand %vm6535, %vm6573
      %vm6626 = vmand %vm6536, %vm6573
      %vm6627 = vmand %vm6537, %vm6573
      %vm6628 = vmand %vm6538, %vm6574
      %vm6629 = vmand %vm6539, %vm6574
      %vm6630 = vmand %vm6540, %vm6574
      %vm6631 = vmand %vm6541, %vm6574
      %vm6632 = vmand %vm6542, %vm6575
      %vm6633 = vmand %vm6543, %vm6575
      %vm6634 = vmand %vm6544, %vm6575
      %vm6635 = vmand %vm6545, %vm6575
      %vm6636 = vmand %vm6546, %vm6576
      %vm6637 = vmand %vm6547, %vm6576
      %vm6638 = vmand %vm6548, %vm6576
      %vm6639 = vmand %vm6549, %vm6576
      %vm6640 = vmand %vm6550, %vm6577
      %vm6641 = vmand %vm6551, %vm6577
      %vm6642 = vmand %vm6552, %vm6577
      %vm6643 = vmand %vm6553, %vm6577
      %vm6644 = vmand %vm6554, %vm6578
      %vm6645 = vmand %vm6555, %vm6578
      %vm6646 = vmand %vm6556, %vm6578
      %vm6647 = vmand %vm6557, %vm6578
      %vm6648 = vmand %vm6558, %vm6579
      %vm6649 = vmand %vm6559, %vm6579
      %vm6650 = vmand %vm6560, %vm6579
      %vm6651 = vmand %vm6561, %vm6579
      %v6652 = vld [vmem:[%s4] sm:$0x1]
      %v6654 = vlaneseq
      %v6655 = vshrl.u32 %v6654, 7
      %v6656 = vsub.s32 0, %v6655
      %v6657 = vrot.slane %v6652, %v6656
      %v6659 = vadd.f32 %v6348, %v6657
      %v6660 = vadd.f32 %v6349, %v6657
      %v6661 = vadd.f32 %v6350, %v6657
      %v6662 = vadd.f32 %v6351, %v6657
      %v6663 = vadd.f32 %v6352, %v6657
      %v6664 = vadd.f32 %v6353, %v6657
      %v6665 = vadd.f32 %v6354, %v6657
      %v6666 = vadd.f32 %v6355, %v6657
      %v6667 = vadd.f32 %v6356, %v6657
      %v6668 = vadd.f32 %v6357, %v6657
      %v6669 = vadd.f32 %v6358, %v6657
      %v6670 = vadd.f32 %v6359, %v6657
      %v6671 = vadd.f32 %v6360, %v6657
      %v6672 = vadd.f32 %v6361, %v6657
      %v6673 = vadd.f32 %v6362, %v6657
      %v6674 = vadd.f32 %v6363, %v6657
      %v6675 = vadd.f32 %v6364, %v6657
      %v6676 = vadd.f32 %v6365, %v6657
      %v6677 = vadd.f32 %v6366, %v6657
      %v6678 = vadd.f32 %v6367, %v6657
      %v6679 = vadd.f32 %v6368, %v6657
      %v6680 = vadd.f32 %v6369, %v6657
      %v6681 = vadd.f32 %v6370, %v6657
      %v6682 = vadd.f32 %v6371, %v6657
      %v6683 = vadd.f32 %v6372, %v6657
      %v6684 = vadd.f32 %v6373, %v6657
      %v6685 = vadd.f32 %v6374, %v6657
      %v6686 = vadd.f32 %v6375, %v6657
      %v6687 = vadd.f32 %v6376, %v6657
      %v6688 = vadd.f32 %v6377, %v6657
      %v6689 = vadd.f32 %v6378, %v6657
      %v6690 = vadd.f32 %v6379, %v6657
      %v6691 = vadd.f32 %v6380, %v6657
      %v6692 = vadd.f32 %v6381, %v6657
      %v6693 = vadd.f32 %v6382, %v6657
      %v6694 = vadd.f32 %v6383, %v6657
      %v6695 = vadd.f32 %v6384, %v6657
      %v6696 = vadd.f32 %v6385, %v6657
      %v6697 = vadd.f32 %v6386, %v6657
      %v6698 = vadd.f32 %v6387, %v6657
      %v6699 = vadd.f32 %v6388, %v6657
      %v6700 = vadd.f32 %v6389, %v6657
      %v6701 = vadd.f32 %v6390, %v6657
      %v6702 = vadd.f32 %v6391, %v6657
      %v6703 = vadd.f32 %v6392, %v6657
      %v6704 = vadd.f32 %v6393, %v6657
      %v6705 = vadd.f32 %v6394, %v6657
      %v6706 = vadd.f32 %v6395, %v6657
      %v6707 = vadd.f32 %v6396, %v6657
      %v6708 = vadd.f32 %v6397, %v6657
      %v6709 = vadd.f32 %v6398, %v6657
      %v6710 = vadd.f32 %v6399, %v6657
      %v6711 = vadd.f32 %v6400, %v6657
      %v6712 = vadd.f32 %v6401, %v6657
      %v6713 = vadd.f32 %v6402, %v6657
      %v6714 = vadd.f32 %v6403, %v6657
      %v6715 = vadd.f32 %v6404, %v6657
      %v6716 = vadd.f32 %v6405, %v6657
      %v6717 = vadd.f32 %v6406, %v6657
      %v6718 = vadd.f32 %v6407, %v6657
      %v6719 = vadd.f32 %v6408, %v6657
      %v6720 = vadd.f32 %v6409, %v6657
      %v6721 = vadd.f32 %v6410, %v6657
      %v6722 = vadd.f32 %v6411, %v6657
      %v6723 = vadd.f32 %v6412, %v6657
      %v6724 = vadd.f32 %v6413, %v6657
      %v6725 = vadd.f32 %v6414, %v6657
      %v6726 = vadd.f32 %v6415, %v6657
      %v6727 = vadd.f32 %v6416, %v6657
      %v6728 = vadd.f32 %v6417, %v6657
      %v6729 = vadd.f32 %v6418, %v6657
      %v6730 = vadd.f32 %v6419, %v6657
      %v6731 = vmax.f32 %v6659, 0.0
      %v6732 = vmax.f32 %v6660, 0.0
      %v6733 = vmax.f32 %v6661, 0.0
      %v6734 = vmax.f32 %v6662, 0.0
      %v6735 = vmax.f32 %v6663, 0.0
      %v6736 = vmax.f32 %v6664, 0.0
      %v6737 = vmax.f32 %v6665, 0.0
      %v6738 = vmax.f32 %v6666, 0.0
      %v6739 = vmax.f32 %v6667, 0.0
      %v6740 = vmax.f32 %v6668, 0.0
      %v6741 = vmax.f32 %v6669, 0.0
      %v6742 = vmax.f32 %v6670, 0.0
      %v6743 = vmax.f32 %v6671, 0.0
      %v6744 = vmax.f32 %v6672, 0.0
      %v6745 = vmax.f32 %v6673, 0.0
      %v6746 = vmax.f32 %v6674, 0.0
      %v6747 = vmax.f32 %v6675, 0.0
      %v6748 = vmax.f32 %v6676, 0.0
      %v6749 = vmax.f32 %v6677, 0.0
      %v6750 = vmax.f32 %v6678, 0.0
      %v6751 = vmax.f32 %v6679, 0.0
      %v6752 = vmax.f32 %v6680, 0.0
      %v6753 = vmax.f32 %v6681, 0.0
      %v6754 = vmax.f32 %v6682, 0.0
      %v6755 = vmax.f32 %v6683, 0.0
      %v6756 = vmax.f32 %v6684, 0.0
      %v6757 = vmax.f32 %v6685, 0.0
      %v6758 = vmax.f32 %v6686, 0.0
      %v6759 = vmax.f32 %v6687, 0.0
      %v6760 = vmax.f32 %v6688, 0.0
      %v6761 = vmax.f32 %v6689, 0.0
      %v6762 = vmax.f32 %v6690, 0.0
      %v6763 = vmax.f32 %v6691, 0.0
      %v6764 = vmax.f32 %v6692, 0.0
      %v6765 = vmax.f32 %v6693, 0.0
      %v6766 = vmax.f32 %v6694, 0.0
      %v6767 = vmax.f32 %v6695, 0.0
      %v6768 = vmax.f32 %v6696, 0.0
      %v6769 = vmax.f32 %v6697, 0.0
      %v6770 = vmax.f32 %v6698, 0.0
      %v6771 = vmax.f32 %v6699, 0.0
      %v6772 = vmax.f32 %v6700, 0.0
      %v6773 = vmax.f32 %v6701, 0.0
      %v6774 = vmax.f32 %v6702, 0.0
      %v6775 = vmax.f32 %v6703, 0.0
      %v6776 = vmax.f32 %v6704, 0.0
      %v6777 = vmax.f32 %v6705, 0.0
      %v6778 = vmax.f32 %v6706, 0.0
      %v6779 = vmax.f32 %v6707, 0.0
      %v6780 = vmax.f32 %v6708, 0.0
      %v6781 = vmax.f32 %v6709, 0.0
      %v6782 = vmax.f32 %v6710, 0.0
      %v6783 = vmax.f32 %v6711, 0.0
      %v6784 = vmax.f32 %v6712, 0.0
      %v6785 = vmax.f32 %v6713, 0.0
      %v6786 = vmax.f32 %v6714, 0.0
      %v6787 = vmax.f32 %v6715, 0.0
      %v6788 = vmax.f32 %v6716, 0.0
      %v6789 = vmax.f32 %v6717, 0.0
      %v6790 = vmax.f32 %v6718, 0.0
      %v6791 = vmax.f32 %v6719, 0.0
      %v6792 = vmax.f32 %v6720, 0.0
      %v6793 = vmax.f32 %v6721, 0.0
      %v6794 = vmax.f32 %v6722, 0.0
      %v6795 = vmax.f32 %v6723, 0.0
      %v6796 = vmax.f32 %v6724, 0.0
      %v6797 = vmax.f32 %v6725, 0.0
      %v6798 = vmax.f32 %v6726, 0.0
      %v6799 = vmax.f32 %v6727, 0.0
      %v6800 = vmax.f32 %v6728, 0.0
      %v6801 = vmax.f32 %v6729, 0.0
      %v6802 = vmax.f32 %v6730, 0.0
      %v6803 = vsel %vm6580, 1, 0
      %v6804 = vsel %vm6581, 1, 0
      %v6805 = vsel %vm6582, 1, 0
      %v6806 = vsel %vm6583, 1, 0
      %v6807 = vsel %vm6584, 1, 0
      %v6808 = vsel %vm6585, 1, 0
      %v6809 = vsel %vm6586, 1, 0
      %v6810 = vsel %vm6587, 1, 0
      %v6811 = vsel %vm6588, 1, 0
      %v6812 = vsel %vm6589, 1, 0
      %v6813 = vsel %vm6590, 1, 0
      %v6814 = vsel %vm6591, 1, 0
      %v6815 = vsel %vm6592, 1, 0
      %v6816 = vsel %vm6593, 1, 0
      %v6817 = vsel %vm6594, 1, 0
      %v6818 = vsel %vm6595, 1, 0
      %v6819 = vsel %vm6596, 1, 0
      %v6820 = vsel %vm6597, 1, 0
      %v6821 = vsel %vm6598, 1, 0
      %v6822 = vsel %vm6599, 1, 0
      %v6823 = vsel %vm6600, 1, 0
      %v6824 = vsel %vm6601, 1, 0
      %v6825 = vsel %vm6602, 1, 0
      %v6826 = vsel %vm6603, 1, 0
      %v6827 = vsel %vm6604, 1, 0
      %v6828 = vsel %vm6605, 1, 0
      %v6829 = vsel %vm6606, 1, 0
      %v6830 = vsel %vm6607, 1, 0
      %v6831 = vsel %vm6608, 1, 0
      %v6832 = vsel %vm6609, 1, 0
      %v6833 = vsel %vm6610, 1, 0
      %v6834 = vsel %vm6611, 1, 0
      %v6835 = vsel %vm6612, 1, 0
      %v6836 = vsel %vm6613, 1, 0
      %v6837 = vsel %vm6614, 1, 0
      %v6838 = vsel %vm6615, 1, 0
      %v6839 = vsel %vm6616, 1, 0
      %v6840 = vsel %vm6617, 1, 0
      %v6841 = vsel %vm6618, 1, 0
      %v6842 = vsel %vm6619, 1, 0
      %v6843 = vsel %vm6620, 1, 0
      %v6844 = vsel %vm6621, 1, 0
      %v6845 = vsel %vm6622, 1, 0
      %v6846 = vsel %vm6623, 1, 0
      %v6847 = vsel %vm6624, 1, 0
      %v6848 = vsel %vm6625, 1, 0
      %v6849 = vsel %vm6626, 1, 0
      %v6850 = vsel %vm6627, 1, 0
      %v6851 = vsel %vm6628, 1, 0
      %v6852 = vsel %vm6629, 1, 0
      %v6853 = vsel %vm6630, 1, 0
      %v6854 = vsel %vm6631, 1, 0
      %v6855 = vsel %vm6632, 1, 0
      %v6856 = vsel %vm6633, 1, 0
      %v6857 = vsel %vm6634, 1, 0
      %v6858 = vsel %vm6635, 1, 0
      %v6859 = vsel %vm6636, 1, 0
      %v6860 = vsel %vm6637, 1, 0
      %v6861 = vsel %vm6638, 1, 0
      %v6862 = vsel %vm6639, 1, 0
      %v6863 = vsel %vm6640, 1, 0
      %v6864 = vsel %vm6641, 1, 0
      %v6865 = vsel %vm6642, 1, 0
      %v6866 = vsel %vm6643, 1, 0
      %v6867 = vsel %vm6644, 1, 0
      %v6868 = vsel %vm6645, 1, 0
      %v6869 = vsel %vm6646, 1, 0
      %v6870 = vsel %vm6647, 1, 0
      %v6871 = vsel %vm6648, 1, 0
      %v6872 = vsel %vm6649, 1, 0
      %v6873 = vsel %vm6650, 1, 0
      %v6874 = vsel %vm6651, 1, 0
      %vm6875 = vcmp.eq.s32.totalorder %v6803, 1
      %vm6876 = vcmp.eq.s32.totalorder %v6804, 1
      %vm6877 = vcmp.eq.s32.totalorder %v6805, 1
      %vm6878 = vcmp.eq.s32.totalorder %v6806, 1
      %vm6879 = vcmp.eq.s32.totalorder %v6807, 1
      %vm6880 = vcmp.eq.s32.totalorder %v6808, 1
      %vm6881 = vcmp.eq.s32.totalorder %v6809, 1
      %vm6882 = vcmp.eq.s32.totalorder %v6810, 1
      %vm6883 = vcmp.eq.s32.totalorder %v6811, 1
      %vm6884 = vcmp.eq.s32.totalorder %v6812, 1
      %vm6885 = vcmp.eq.s32.totalorder %v6813, 1
      %vm6886 = vcmp.eq.s32.totalorder %v6814, 1
      %vm6887 = vcmp.eq.s32.totalorder %v6815, 1
      %vm6888 = vcmp.eq.s32.totalorder %v6816, 1
      %vm6889 = vcmp.eq.s32.totalorder %v6817, 1
      %vm6890 = vcmp.eq.s32.totalorder %v6818, 1
      %vm6891 = vcmp.eq.s32.totalorder %v6819, 1
      %vm6892 = vcmp.eq.s32.totalorder %v6820, 1
      %vm6893 = vcmp.eq.s32.totalorder %v6821, 1
      %vm6894 = vcmp.eq.s32.totalorder %v6822, 1
      %vm6895 = vcmp.eq.s32.totalorder %v6823, 1
      %vm6896 = vcmp.eq.s32.totalorder %v6824, 1
      %vm6897 = vcmp.eq.s32.totalorder %v6825, 1
      %vm6898 = vcmp.eq.s32.totalorder %v6826, 1
      %vm6899 = vcmp.eq.s32.totalorder %v6827, 1
      %vm6900 = vcmp.eq.s32.totalorder %v6828, 1
      %vm6901 = vcmp.eq.s32.totalorder %v6829, 1
      %vm6902 = vcmp.eq.s32.totalorder %v6830, 1
      %vm6903 = vcmp.eq.s32.totalorder %v6831, 1
      %vm6904 = vcmp.eq.s32.totalorder %v6832, 1
      %vm6905 = vcmp.eq.s32.totalorder %v6833, 1
      %vm6906 = vcmp.eq.s32.totalorder %v6834, 1
      %vm6907 = vcmp.eq.s32.totalorder %v6835, 1
      %vm6908 = vcmp.eq.s32.totalorder %v6836, 1
      %vm6909 = vcmp.eq.s32.totalorder %v6837, 1
      %vm6910 = vcmp.eq.s32.totalorder %v6838, 1
      %vm6911 = vcmp.eq.s32.totalorder %v6839, 1
      %vm6912 = vcmp.eq.s32.totalorder %v6840, 1
      %vm6913 = vcmp.eq.s32.totalorder %v6841, 1
      %vm6914 = vcmp.eq.s32.totalorder %v6842, 1
      %vm6915 = vcmp.eq.s32.totalorder %v6843, 1
      %vm6916 = vcmp.eq.s32.totalorder %v6844, 1
      %vm6917 = vcmp.eq.s32.totalorder %v6845, 1
      %vm6918 = vcmp.eq.s32.totalorder %v6846, 1
      %vm6919 = vcmp.eq.s32.totalorder %v6847, 1
      %vm6920 = vcmp.eq.s32.totalorder %v6848, 1
      %vm6921 = vcmp.eq.s32.totalorder %v6849, 1
      %vm6922 = vcmp.eq.s32.totalorder %v6850, 1
      %vm6923 = vcmp.eq.s32.totalorder %v6851, 1
      %vm6924 = vcmp.eq.s32.totalorder %v6852, 1
      %vm6925 = vcmp.eq.s32.totalorder %v6853, 1
      %vm6926 = vcmp.eq.s32.totalorder %v6854, 1
      %vm6927 = vcmp.eq.s32.totalorder %v6855, 1
      %vm6928 = vcmp.eq.s32.totalorder %v6856, 1
      %vm6929 = vcmp.eq.s32.totalorder %v6857, 1
      %vm6930 = vcmp.eq.s32.totalorder %v6858, 1
      %vm6931 = vcmp.eq.s32.totalorder %v6859, 1
      %vm6932 = vcmp.eq.s32.totalorder %v6860, 1
      %vm6933 = vcmp.eq.s32.totalorder %v6861, 1
      %vm6934 = vcmp.eq.s32.totalorder %v6862, 1
      %vm6935 = vcmp.eq.s32.totalorder %v6863, 1
      %vm6936 = vcmp.eq.s32.totalorder %v6864, 1
      %vm6937 = vcmp.eq.s32.totalorder %v6865, 1
      %vm6938 = vcmp.eq.s32.totalorder %v6866, 1
      %vm6939 = vcmp.eq.s32.totalorder %v6867, 1
      %vm6940 = vcmp.eq.s32.totalorder %v6868, 1
      %vm6941 = vcmp.eq.s32.totalorder %v6869, 1
      %vm6942 = vcmp.eq.s32.totalorder %v6870, 1
      %vm6943 = vcmp.eq.s32.totalorder %v6871, 1
      %vm6944 = vcmp.eq.s32.totalorder %v6872, 1
      %vm6945 = vcmp.eq.s32.totalorder %v6873, 1
      %vm6946 = vcmp.eq.s32.totalorder %v6874, 1
      %v6947 = vsel %vm6875, %v6731, 0.0
      %v6948 = vsel %vm6876, %v6732, 0.0
      %v6949 = vsel %vm6877, %v6733, 0.0
      %v6950 = vsel %vm6878, %v6734, 0.0
      %v6951 = vsel %vm6879, %v6735, 0.0
      %v6952 = vsel %vm6880, %v6736, 0.0
      %v6953 = vsel %vm6881, %v6737, 0.0
      %v6954 = vsel %vm6882, %v6738, 0.0
      %v6955 = vsel %vm6883, %v6739, 0.0
      %v6956 = vsel %vm6884, %v6740, 0.0
      %v6957 = vsel %vm6885, %v6741, 0.0
      %v6958 = vsel %vm6886, %v6742, 0.0
      %v6959 = vsel %vm6887, %v6743, 0.0
      %v6960 = vsel %vm6888, %v6744, 0.0
      %v6961 = vsel %vm6889, %v6745, 0.0
      %v6962 = vsel %vm6890, %v6746, 0.0
      %v6963 = vsel %vm6891, %v6747, 0.0
      %v6964 = vsel %vm6892, %v6748, 0.0
      %v6965 = vsel %vm6893, %v6749, 0.0
      %v6966 = vsel %vm6894, %v6750, 0.0
      %v6967 = vsel %vm6895, %v6751, 0.0
      %v6968 = vsel %vm6896, %v6752, 0.0
      %v6969 = vsel %vm6897, %v6753, 0.0
      %v6970 = vsel %vm6898, %v6754, 0.0
      %v6971 = vsel %vm6899, %v6755, 0.0
      %v6972 = vsel %vm6900, %v6756, 0.0
      %v6973 = vsel %vm6901, %v6757, 0.0
      %v6974 = vsel %vm6902, %v6758, 0.0
      %v6975 = vsel %vm6903, %v6759, 0.0
      %v6976 = vsel %vm6904, %v6760, 0.0
      %v6977 = vsel %vm6905, %v6761, 0.0
      %v6978 = vsel %vm6906, %v6762, 0.0
      %v6979 = vsel %vm6907, %v6763, 0.0
      %v6980 = vsel %vm6908, %v6764, 0.0
      %v6981 = vsel %vm6909, %v6765, 0.0
      %v6982 = vsel %vm6910, %v6766, 0.0
      %v6983 = vsel %vm6911, %v6767, 0.0
      %v6984 = vsel %vm6912, %v6768, 0.0
      %v6985 = vsel %vm6913, %v6769, 0.0
      %v6986 = vsel %vm6914, %v6770, 0.0
      %v6987 = vsel %vm6915, %v6771, 0.0
      %v6988 = vsel %vm6916, %v6772, 0.0
      %v6989 = vsel %vm6917, %v6773, 0.0
      %v6990 = vsel %vm6918, %v6774, 0.0
      %v6991 = vsel %vm6919, %v6775, 0.0
      %v6992 = vsel %vm6920, %v6776, 0.0
      %v6993 = vsel %vm6921, %v6777, 0.0
      %v6994 = vsel %vm6922, %v6778, 0.0
      %v6995 = vsel %vm6923, %v6779, 0.0
      %v6996 = vsel %vm6924, %v6780, 0.0
      %v6997 = vsel %vm6925, %v6781, 0.0
      %v6998 = vsel %vm6926, %v6782, 0.0
      %v6999 = vsel %vm6927, %v6783, 0.0
      %v7000 = vsel %vm6928, %v6784, 0.0
      %v7001 = vsel %vm6929, %v6785, 0.0
      %v7002 = vsel %vm6930, %v6786, 0.0
      %v7003 = vsel %vm6931, %v6787, 0.0
      %v7004 = vsel %vm6932, %v6788, 0.0
      %v7005 = vsel %vm6933, %v6789, 0.0
      %v7006 = vsel %vm6934, %v6790, 0.0
      %v7007 = vsel %vm6935, %v6791, 0.0
      %v7008 = vsel %vm6936, %v6792, 0.0
      %v7009 = vsel %vm6937, %v6793, 0.0
      %v7010 = vsel %vm6938, %v6794, 0.0
      %v7011 = vsel %vm6939, %v6795, 0.0
      %v7012 = vsel %vm6940, %v6796, 0.0
      %v7013 = vsel %vm6941, %v6797, 0.0
      %v7014 = vsel %vm6942, %v6798, 0.0
      %v7015 = vsel %vm6943, %v6799, 0.0
      %v7016 = vsel %vm6944, %v6800, 0.0
      %v7017 = vsel %vm6945, %v6801, 0.0
      %v7018 = vsel %vm6946, %v6802, 0.0
      %v7019 = vpack.c.bf16 %v6948, %v6947
      %v7020 = vpack.c.bf16 %v6950, %v6949
      %v7021 = vpack.c.bf16 %v6952, %v6951
      %v7022 = vpack.c.bf16 %v6954, %v6953
      %v7023 = vpack.c.bf16 %v6956, %v6955
      %v7024 = vpack.c.bf16 %v6958, %v6957
      %v7025 = vpack.c.bf16 %v6960, %v6959
      %v7026 = vpack.c.bf16 %v6962, %v6961
      %v7027 = vpack.c.bf16 %v6964, %v6963
      %v7028 = vpack.c.bf16 %v6966, %v6965
      %v7029 = vpack.c.bf16 %v6968, %v6967
      %v7030 = vpack.c.bf16 %v6970, %v6969
      %v7031 = vpack.c.bf16 %v6972, %v6971
      %v7032 = vpack.c.bf16 %v6974, %v6973
      %v7033 = vpack.c.bf16 %v6976, %v6975
      %v7034 = vpack.c.bf16 %v6978, %v6977
      %v7035 = vpack.c.bf16 %v6980, %v6979
      %v7036 = vpack.c.bf16 %v6982, %v6981
      %v7037 = vpack.c.bf16 %v6984, %v6983
      %v7038 = vpack.c.bf16 %v6986, %v6985
      %v7039 = vpack.c.bf16 %v6988, %v6987
      %v7040 = vpack.c.bf16 %v6990, %v6989
      %v7041 = vpack.c.bf16 %v6992, %v6991
      %v7042 = vpack.c.bf16 %v6994, %v6993
      %v7043 = vpack.c.bf16 %v6996, %v6995
      %v7044 = vpack.c.bf16 %v6998, %v6997
      %v7045 = vpack.c.bf16 %v7000, %v6999
      %v7046 = vpack.c.bf16 %v7002, %v7001
      %v7047 = vpack.c.bf16 %v7004, %v7003
      %v7048 = vpack.c.bf16 %v7006, %v7005
      %v7049 = vpack.c.bf16 %v7008, %v7007
      %v7050 = vpack.c.bf16 %v7010, %v7009
      %v7051 = vpack.c.bf16 %v7012, %v7011
      %v7052 = vpack.c.bf16 %v7014, %v7013
      %v7053 = vpack.c.bf16 %v7016, %v7015
      %v7054 = vpack.c.bf16 %v7018, %v7017
      %v7055 = vld [vmem:[%s3] sm:$0x3]
      %s7056 = scalar_lea.vmem %s3, 6
      %v7057 = vld [vmem:[%s7056] sm:$0x3]
      %vm7058 = vcmask 31744
      %v7060 = vsel %vm7058, %v7021, 0
      %v7063 = vsel %vm7058, %v7022, 0
      %v7066 = vsel %vm7058, %v7023, 0
      %v7069 = vsel %vm7058, %v7024, 0
      %v7072 = vsel %vm7058, %v7025, 0
      %v7075 = vsel %vm7058, %v7026, 0
      %v7078 = vsel %vm7058, %v7027, 0
      %v7081 = vsel %vm7058, %v7028, 0
      %v7084 = vsel %vm7058, %v7029, 0
      %v7087 = vsel %vm7058, %v7030, 0
      %v7090 = vsel %vm7058, %v7031, 0
      %v7093 = vsel %vm7058, %v7032, 0
      %v7096 = vsel %vm7058, %v7033, 0
      %v7099 = vsel %vm7058, %v7034, 0
      %v7102 = vsel %vm7058, %v7035, 0
      %v7105 = vsel %vm7058, %v7036, 0
      %v7108 = vsel %vm7058, %v7037, 0
      %v7111 = vsel %vm7058, %v7038, 0
      %v7114 = vsel %vm7058, %v7039, 0
      %v7117 = vsel %vm7058, %v7040, 0
      %v7120 = vsel %vm7058, %v7041, 0
      %v7123 = vsel %vm7058, %v7042, 0
      %v7126 = vsel %vm7058, %v7043, 0
      %v7129 = vsel %vm7058, %v7044, 0
      %v7132 = vsel %vm7058, %v7045, 0
      %v7135 = vsel %vm7058, %v7046, 0
      %v7138 = vsel %vm7058, %v7047, 0
      %v7141 = vsel %vm7058, %v7048, 0
      %v7144 = vsel %vm7058, %v7049, 0
      %v7147 = vsel %vm7058, %v7050, 0
      %v7150 = vsel %vm7058, %v7051, 0
      %v7153 = vsel %vm7058, %v7052, 0
      %vm7155 = vcmask 1041408
      %v7157 = vsel %vm7155, %v7057, 0
      %7159 = vmatprep.subr.bf16.mxu0 0
      %7160 = vmatpush1.bf16.msra.mxu0 %v7157
      %7161 = vmatprep.subr.bf16.mxu0 0
      %7162 = vmatpush1.bf16.msra.mxu0 0
      %7163 = vmatprep.subr.bf16.mxu0 0
      %7164 = vmatpush1.bf16.msra.mxu0 0
      %7165 = vmatprep.subr.bf16.mxu0 0
      %7166 = vmatpush1.bf16.msra.mxu0 0
      %7167 = vmatprep.subr.bf16.mxu0 0
      %7168 = vmatpush1.bf16.msra.mxu0 0
      %7169 = vmatprep.subr.bf16.mxu0 0
      %7170 = vmatpush1.bf16.msra.mxu0 0
      %7171 = vmatprep.subr.bf16.mxu0 0
      %7172 = vmatpush1.bf16.msra.mxu0 0
      %7173 = vmatprep.subr.bf16.mxu0 0
      %7174 = vmatpush1.bf16.msra.mxu0 0
      %7175 = vmatprep.subr.bf16.mxu0 0
      %7176 = vmatpush1.bf16.msra.mxu0 0
      %7177 = vmatprep.subr.bf16.mxu0 0
      %7178 = vmatpush1.bf16.msra.mxu0 0
      %7179 = vmatprep.subr.bf16.mxu0 0
      %7180 = vmatpush1.bf16.msra.mxu0 0
      %7181 = vmatprep.subr.bf16.mxu0 0
      %7182 = vmatpush1.bf16.msra.mxu0 0
      %7183 = vmatprep.subr.bf16.mxu0 0
      %7184 = vmatpush1.bf16.msra.mxu0 0
      %7185 = vmatprep.subr.bf16.mxu0 0
      %7186 = vmatpush1.bf16.msra.mxu0 0
      %7187 = vmatprep.subr.bf16.mxu0 0
      %7188 = vmatpush1.bf16.msra.mxu0 0
      %7189 = vmatprep.subr.bf16.mxu0 0
      %7190 = vmatpush1.bf16.msra.mxu0 0
      %7191 = vmatprep.mubr.bf16.mxu0 0
      %7192 = vmatmul.mubr.bf16.gmra.mrb[0].mxu0 %v7060
      %v7193 = vpop.f32.mrb[0].mxu0
      %v7194 = vadd.f32 0.0, %v7193
      %v7195 = vpop.f32.mrb[0].mxu0
      %v7196 = vpop.f32.mrb[0].mxu0
      %v7197 = vadd.f32 0.0, %v7196
      %v7198 = vpop.f32.mrb[0].mxu0
      %7199 = vmatprep.mubr.bf16.mxu0 0
      %7200 = vmatmul.mubr.bf16.gmra.mrb[0].mxu0 %v7063
      %v7201 = vpop.f32.mrb[0].mxu0
      %v7202 = vpop.f32.mrb[0].mxu0
      %v7203 = vpop.f32.mrb[0].mxu0
      %v7204 = vpop.f32.mrb[0].mxu0
      %7205 = vmatprep.mubr.bf16.mxu0 0
      %7206 = vmatmul.mubr.bf16.gmra.mrb[0].mxu0 %v7066
      %v7207 = vpop.f32.mrb[0].mxu0
      %v7208 = vadd.f32 0.0, %v7207
      %v7209 = vpop.f32.mrb[0].mxu0
      %v7210 = vpop.f32.mrb[0].mxu0
      %v7211 = vadd.f32 0.0, %v7210
      %v7212 = vpop.f32.mrb[0].mxu0
      %7213 = vmatprep.mubr.bf16.mxu0 0
      %7214 = vmatmul.mubr.bf16.gmra.mrb[0].mxu0 %v7069
      %v7215 = vpop.f32.mrb[0].mxu0
      %v7216 = vpop.f32.mrb[0].mxu0
      %v7217 = vpop.f32.mrb[0].mxu0
      %v7218 = vpop.f32.mrb[0].mxu0
      %7219 = vmatprep.mubr.bf16.mxu0 0
      %7220 = vmatmul.mubr.bf16.gmra.mrb[0].mxu0 %v7072
      %v7221 = vpop.f32.mrb[0].mxu0
      %v7222 = vadd.f32 0.0, %v7221
      %v7223 = vpop.f32.mrb[0].mxu0
      %v7224 = vpop.f32.mrb[0].mxu0
      %v7225 = vadd.f32 0.0, %v7224
      %v7226 = vpop.f32.mrb[0].mxu0
      %7227 = vmatprep.mubr.bf16.mxu0 0
      %7228 = vmatmul.mubr.bf16.gmra.mrb[0].mxu0 %v7075
      %v7229 = vpop.f32.mrb[0].mxu0
      %v7230 = vpop.f32.mrb[0].mxu0
      %v7231 = vpop.f32.mrb[0].mxu0
      %v7232 = vpop.f32.mrb[0].mxu0
      %7233 = vmatprep.mubr.bf16.mxu0 0
      %7234 = vmatmul.mubr.bf16.gmra.mrb[0].mxu0 %v7078
      %v7235 = vpop.f32.mrb[0].mxu0
      %v7236 = vadd.f32 0.0, %v7235
      %v7237 = vpop.f32.mrb[0].mxu0
      %v7238 = vpop.f32.mrb[0].mxu0
      %v7239 = vadd.f32 0.0, %v7238
      %v7240 = vpop.f32.mrb[0].mxu0
      %7241 = vmatprep.mubr.bf16.mxu0 0
      %7242 = vmatmul.mubr.bf16.gmra.mrb[0].mxu0 %v7081
      %v7243 = vpop.f32.mrb[0].mxu0
      %v7244 = vpop.f32.mrb[0].mxu0
      %v7245 = vpop.f32.mrb[0].mxu0
      %v7246 = vpop.f32.mrb[0].mxu0
      %7247 = vmatprep.mubr.bf16.mxu0 0
      %7248 = vmatmul.mubr.bf16.gmra.mrb[0].mxu0 %v7084
      %v7249 = vpop.f32.mrb[0].mxu0
      %v7250 = vadd.f32 0.0, %v7249
      %v7251 = vpop.f32.mrb[0].mxu0
      %v7252 = vpop.f32.mrb[0].mxu0
      %v7253 = vadd.f32 0.0, %v7252
      %v7254 = vpop.f32.mrb[0].mxu0
      %7255 = vmatprep.mubr.bf16.mxu0 0
      %7256 = vmatmul.mubr.bf16.gmra.mrb[0].mxu0 %v7087
      %v7257 = vpop.f32.mrb[0].mxu0
      %v7258 = vpop.f32.mrb[0].mxu0
      %v7259 = vpop.f32.mrb[0].mxu0
      %v7260 = vpop.f32.mrb[0].mxu0
      %7261 = vmatprep.mubr.bf16.mxu0 0
      %7262 = vmatmul.mubr.bf16.gmra.mrb[0].mxu0 %v7090
      %v7263 = vpop.f32.mrb[0].mxu0
      %v7264 = vadd.f32 0.0, %v7263
      %v7265 = vpop.f32.mrb[0].mxu0
      %v7266 = vpop.f32.mrb[0].mxu0
      %v7267 = vadd.f32 0.0, %v7266
      %v7268 = vpop.f32.mrb[0].mxu0
      %7269 = vmatprep.mubr.bf16.mxu0 0
      %7270 = vmatmul.mubr.bf16.gmra.mrb[0].mxu0 %v7093
      %v7271 = vpop.f32.mrb[0].mxu0
      %v7272 = vpop.f32.mrb[0].mxu0
      %v7273 = vpop.f32.mrb[0].mxu0
      %v7274 = vpop.f32.mrb[0].mxu0
      %7275 = vmatprep.mubr.bf16.mxu0 0
      %7276 = vmatmul.mubr.bf16.gmra.mrb[0].mxu0 %v7096
      %v7277 = vpop.f32.mrb[0].mxu0
      %v7278 = vadd.f32 0.0, %v7277
      %v7279 = vpop.f32.mrb[0].mxu0
      %v7280 = vpop.f32.mrb[0].mxu0
      %v7281 = vadd.f32 0.0, %v7280
      %v7282 = vpop.f32.mrb[0].mxu0
      %7283 = vmatprep.mubr.bf16.mxu0 0
      %7284 = vmatmul.mubr.bf16.gmra.mrb[0].mxu0 %v7099
      %v7285 = vpop.f32.mrb[0].mxu0
      %v7286 = vpop.f32.mrb[0].mxu0
      %v7287 = vpop.f32.mrb[0].mxu0
      %v7288 = vpop.f32.mrb[0].mxu0
      %7289 = vmatprep.mubr.bf16.mxu0 0
      %7290 = vmatmul.mubr.bf16.gmra.mrb[0].mxu0 %v7102
      %v7291 = vpop.f32.mrb[0].mxu0
      %v7292 = vadd.f32 0.0, %v7291
      %v7293 = vpop.f32.mrb[0].mxu0
      %v7294 = vpop.f32.mrb[0].mxu0
      %v7295 = vadd.f32 0.0, %v7294
      %v7296 = vpop.f32.mrb[0].mxu0
      %7297 = vmatprep.mubr.bf16.mxu0 0
      %7298 = vmatmul.mubr.bf16.gmra.mrb[0].mxu0 %v7105
      %v7299 = vpop.f32.mrb[0].mxu0
      %v7300 = vpop.f32.mrb[0].mxu0
      %v7301 = vpop.f32.mrb[0].mxu0
      %v7302 = vpop.f32.mrb[0].mxu0
      %7303 = vmatprep.mubr.bf16.mxu0 0
      %7304 = vmatmul.mubr.bf16.gmra.mrb[0].mxu0 %v7108
      %v7305 = vpop.f32.mrb[0].mxu0
      %v7306 = vadd.f32 0.0, %v7305
      %v7307 = vpop.f32.mrb[0].mxu0
      %v7308 = vpop.f32.mrb[0].mxu0
      %v7309 = vadd.f32 0.0, %v7308
      %v7310 = vpop.f32.mrb[0].mxu0
      %7311 = vmatprep.mubr.bf16.mxu0 0
      %7312 = vmatmul.mubr.bf16.gmra.mrb[0].mxu0 %v7111
      %v7313 = vpop.f32.mrb[0].mxu0
      %v7314 = vpop.f32.mrb[0].mxu0
      %v7315 = vpop.f32.mrb[0].mxu0
      %v7316 = vpop.f32.mrb[0].mxu0
      %7317 = vmatprep.mubr.bf16.mxu0 0
      %7318 = vmatmul.mubr.bf16.gmra.mrb[0].mxu0 %v7114
      %v7319 = vpop.f32.mrb[0].mxu0
      %v7320 = vadd.f32 0.0, %v7319
      %v7321 = vpop.f32.mrb[0].mxu0
      %v7322 = vpop.f32.mrb[0].mxu0
      %v7323 = vadd.f32 0.0, %v7322
      %v7324 = vpop.f32.mrb[0].mxu0
      %7325 = vmatprep.mubr.bf16.mxu0 0
      %7326 = vmatmul.mubr.bf16.gmra.mrb[0].mxu0 %v7117
      %v7327 = vpop.f32.mrb[0].mxu0
      %v7328 = vpop.f32.mrb[0].mxu0
      %v7329 = vpop.f32.mrb[0].mxu0
      %v7330 = vpop.f32.mrb[0].mxu0
      %7331 = vmatprep.mubr.bf16.mxu0 0
      %7332 = vmatmul.mubr.bf16.gmra.mrb[0].mxu0 %v7120
      %v7333 = vpop.f32.mrb[0].mxu0
      %v7334 = vadd.f32 0.0, %v7333
      %v7335 = vpop.f32.mrb[0].mxu0
      %v7336 = vpop.f32.mrb[0].mxu0
      %v7337 = vadd.f32 0.0, %v7336
      %v7338 = vpop.f32.mrb[0].mxu0
      %7339 = vmatprep.mubr.bf16.mxu0 0
      %7340 = vmatmul.mubr.bf16.gmra.mrb[0].mxu0 %v7123
      %v7341 = vpop.f32.mrb[0].mxu0
      %v7342 = vpop.f32.mrb[0].mxu0
      %v7343 = vpop.f32.mrb[0].mxu0
      %v7344 = vpop.f32.mrb[0].mxu0
      %7345 = vmatprep.mubr.bf16.mxu0 0
      %7346 = vmatmul.mubr.bf16.gmra.mrb[0].mxu0 %v7126
      %v7347 = vpop.f32.mrb[0].mxu0
      %v7348 = vadd.f32 0.0, %v7347
      %v7349 = vpop.f32.mrb[0].mxu0
      %v7350 = vpop.f32.mrb[0].mxu0
      %v7351 = vadd.f32 0.0, %v7350
      %v7352 = vpop.f32.mrb[0].mxu0
      %7353 = vmatprep.mubr.bf16.mxu0 0
      %7354 = vmatmul.mubr.bf16.gmra.mrb[0].mxu0 %v7129
      %v7355 = vpop.f32.mrb[0].mxu0
      %v7356 = vpop.f32.mrb[0].mxu0
      %v7357 = vpop.f32.mrb[0].mxu0
      %v7358 = vpop.f32.mrb[0].mxu0
      %7359 = vmatprep.mubr.bf16.mxu0 0
      %7360 = vmatmul.mubr.bf16.gmra.mrb[0].mxu0 %v7132
      %v7361 = vpop.f32.mrb[0].mxu0
      %v7362 = vadd.f32 0.0, %v7361
      %v7363 = vpop.f32.mrb[0].mxu0
      %v7364 = vpop.f32.mrb[0].mxu0
      %v7365 = vadd.f32 0.0, %v7364
      %v7366 = vpop.f32.mrb[0].mxu0
      %7367 = vmatprep.mubr.bf16.mxu0 0
      %7368 = vmatmul.mubr.bf16.gmra.mrb[0].mxu0 %v7135
      %v7369 = vpop.f32.mrb[0].mxu0
      %v7370 = vpop.f32.mrb[0].mxu0
      %v7371 = vpop.f32.mrb[0].mxu0
      %v7372 = vpop.f32.mrb[0].mxu0
      %7373 = vmatprep.mubr.bf16.mxu0 0
      %7374 = vmatmul.mubr.bf16.gmra.mrb[0].mxu0 %v7138
      %v7375 = vpop.f32.mrb[0].mxu0
      %v7376 = vadd.f32 0.0, %v7375
      %v7377 = vpop.f32.mrb[0].mxu0
      %v7378 = vpop.f32.mrb[0].mxu0
      %v7379 = vadd.f32 0.0, %v7378
      %v7380 = vpop.f32.mrb[0].mxu0
      %7381 = vmatprep.mubr.bf16.mxu0 0
      %7382 = vmatmul.mubr.bf16.gmra.mrb[0].mxu0 %v7141
      %v7383 = vpop.f32.mrb[0].mxu0
      %v7384 = vpop.f32.mrb[0].mxu0
      %v7385 = vpop.f32.mrb[0].mxu0
      %v7386 = vpop.f32.mrb[0].mxu0
      %7387 = vmatprep.mubr.bf16.mxu0 0
      %7388 = vmatmul.mubr.bf16.gmra.mrb[0].mxu0 %v7144
      %v7389 = vpop.f32.mrb[0].mxu0
      %v7390 = vadd.f32 0.0, %v7389
      %v7391 = vpop.f32.mrb[0].mxu0
      %v7392 = vpop.f32.mrb[0].mxu0
      %v7393 = vadd.f32 0.0, %v7392
      %v7394 = vpop.f32.mrb[0].mxu0
      %7395 = vmatprep.mubr.bf16.mxu0 0
      %7396 = vmatmul.mubr.bf16.gmra.mrb[0].mxu0 %v7147
      %v7397 = vpop.f32.mrb[0].mxu0
      %v7398 = vpop.f32.mrb[0].mxu0
      %v7399 = vpop.f32.mrb[0].mxu0
      %v7400 = vpop.f32.mrb[0].mxu0
      %7401 = vmatprep.mubr.bf16.mxu0 0
      %7402 = vmatmul.mubr.bf16.gmra.mrb[0].mxu0 %v7150
      %v7403 = vpop.f32.mrb[0].mxu0
      %v7404 = vadd.f32 0.0, %v7403
      %v7405 = vpop.f32.mrb[0].mxu0
      %v7406 = vpop.f32.mrb[0].mxu0
      %v7407 = vadd.f32 0.0, %v7406
      %v7408 = vpop.f32.mrb[0].mxu0
      %7409 = vmatprep.mubr.bf16.mxu0 0
      %7410 = vmatmul.mubr.bf16.gmra.mrb[0].mxu0 %v7153
      %v7411 = vpop.f32.mrb[0].mxu0
      %v7412 = vpop.f32.mrb[0].mxu0
      %v7413 = vpop.f32.mrb[0].mxu0
      %v7414 = vpop.f32.mrb[0].mxu0
      %7415 = vdwg.mxu0
      %v7417 = vsel %vm7058, %v7019, 0
      %v7420 = vsel %vm7058, %v7020, 0
      %v7423 = vsel %vm7155, %v7055, 0
      %7425 = vmatprep.subr.bf16.mxu0 0
      %7426 = vmatpush1.bf16.msra.mxu0 %v7423
      %7427 = vmatprep.subr.bf16.mxu0 0
      %7428 = vmatpush1.bf16.msra.mxu0 0
      %7429 = vmatprep.subr.bf16.mxu0 0
      %7430 = vmatpush1.bf16.msra.mxu0 0
      %7431 = vmatprep.subr.bf16.mxu0 0
      %7432 = vmatpush1.bf16.msra.mxu0 0
      %7433 = vmatprep.subr.bf16.mxu0 0
      %7434 = vmatpush1.bf16.msra.mxu0 0
      %7435 = vmatprep.subr.bf16.mxu0 0
      %7436 = vmatpush1.bf16.msra.mxu0 0
      %7437 = vmatprep.subr.bf16.mxu0 0
      %7438 = vmatpush1.bf16.msra.mxu0 0
      %7439 = vmatprep.subr.bf16.mxu0 0
      %7440 = vmatpush1.bf16.msra.mxu0 0
      %7441 = vmatprep.subr.bf16.mxu0 0
      %7442 = vmatpush1.bf16.msra.mxu0 0
      %7443 = vmatprep.subr.bf16.mxu0 0
      %7444 = vmatpush1.bf16.msra.mxu0 0
      %7445 = vmatprep.subr.bf16.mxu0 0
      %7446 = vmatpush1.bf16.msra.mxu0 0
      %7447 = vmatprep.subr.bf16.mxu0 0
      %7448 = vmatpush1.bf16.msra.mxu0 0
      %7449 = vmatprep.subr.bf16.mxu0 0
      %7450 = vmatpush1.bf16.msra.mxu0 0
      %7451 = vmatprep.subr.bf16.mxu0 0
      %7452 = vmatpush1.bf16.msra.mxu0 0
      %7453 = vmatprep.subr.bf16.mxu0 0
      %7454 = vmatpush1.bf16.msra.mxu0 0
      %7455 = vmatprep.subr.bf16.mxu0 0
      %7456 = vmatpush1.bf16.msra.mxu0 0
      %7457 = vmatprep.mubr.bf16.mxu0 0
      %7458 = vmatmul.mubr.bf16.gmra.mrb[0].mxu0 %v7417
      %v7459 = vpop.f32.mrb[0].mxu0
      %v7460 = vadd.f32 %v7194, %v7459
      %v7461 = vpop.f32.mrb[0].mxu0
      %v7462 = vpop.f32.mrb[0].mxu0
      %v7463 = vadd.f32 %v7197, %v7462
      %v7464 = vpop.f32.mrb[0].mxu0
      %7465 = vmatprep.mubr.bf16.mxu0 0
      %7466 = vmatmul.mubr.bf16.gmra.mrb[0].mxu0 %v7420
      %v7467 = vpop.f32.mrb[0].mxu0
      %v7468 = vpop.f32.mrb[0].mxu0
      %v7469 = vpop.f32.mrb[0].mxu0
      %v7470 = vpop.f32.mrb[0].mxu0
      %7471 = vmatprep.mubr.bf16.mxu0 0
      %7472 = vmatmul.mubr.bf16.gmra.mrb[0].mxu0 %v7060
      %v7473 = vpop.f32.mrb[0].mxu0
      %v7474 = vadd.f32 %v7208, %v7473
      %v7475 = vpop.f32.mrb[0].mxu0
      %v7476 = vpop.f32.mrb[0].mxu0
      %v7477 = vadd.f32 %v7211, %v7476
      %v7478 = vpop.f32.mrb[0].mxu0
      %7479 = vmatprep.mubr.bf16.mxu0 0
      %7480 = vmatmul.mubr.bf16.gmra.mrb[0].mxu0 %v7063
      %v7481 = vpop.f32.mrb[0].mxu0
      %v7482 = vpop.f32.mrb[0].mxu0
      %v7483 = vpop.f32.mrb[0].mxu0
      %v7484 = vpop.f32.mrb[0].mxu0
      %7485 = vmatprep.mubr.bf16.mxu0 0
      %7486 = vmatmul.mubr.bf16.gmra.mrb[0].mxu0 %v7066
      %v7487 = vpop.f32.mrb[0].mxu0
      %v7488 = vadd.f32 %v7222, %v7487
      %v7489 = vpop.f32.mrb[0].mxu0
      %v7490 = vpop.f32.mrb[0].mxu0
      %v7491 = vadd.f32 %v7225, %v7490
      %v7492 = vpop.f32.mrb[0].mxu0
      %7493 = vmatprep.mubr.bf16.mxu0 0
      %7494 = vmatmul.mubr.bf16.gmra.mrb[0].mxu0 %v7069
      %v7495 = vpop.f32.mrb[0].mxu0
      %v7496 = vpop.f32.mrb[0].mxu0
      %v7497 = vpop.f32.mrb[0].mxu0
      %v7498 = vpop.f32.mrb[0].mxu0
      %7499 = vmatprep.mubr.bf16.mxu0 0
      %7500 = vmatmul.mubr.bf16.gmra.mrb[0].mxu0 %v7072
      %v7501 = vpop.f32.mrb[0].mxu0
      %v7502 = vadd.f32 %v7236, %v7501
      %v7503 = vpop.f32.mrb[0].mxu0
      %v7504 = vpop.f32.mrb[0].mxu0
      %v7505 = vadd.f32 %v7239, %v7504
      %v7506 = vpop.f32.mrb[0].mxu0
      %7507 = vmatprep.mubr.bf16.mxu0 0
      %7508 = vmatmul.mubr.bf16.gmra.mrb[0].mxu0 %v7075
      %v7509 = vpop.f32.mrb[0].mxu0
      %v7510 = vpop.f32.mrb[0].mxu0
      %v7511 = vpop.f32.mrb[0].mxu0
      %v7512 = vpop.f32.mrb[0].mxu0
      %7513 = vmatprep.mubr.bf16.mxu0 0
      %7514 = vmatmul.mubr.bf16.gmra.mrb[0].mxu0 %v7078
      %v7515 = vpop.f32.mrb[0].mxu0
      %v7516 = vadd.f32 %v7250, %v7515
      %v7517 = vpop.f32.mrb[0].mxu0
      %v7518 = vpop.f32.mrb[0].mxu0
      %v7519 = vadd.f32 %v7253, %v7518
      %v7520 = vpop.f32.mrb[0].mxu0
      %7521 = vmatprep.mubr.bf16.mxu0 0
      %7522 = vmatmul.mubr.bf16.gmra.mrb[0].mxu0 %v7081
      %v7523 = vpop.f32.mrb[0].mxu0
      %v7524 = vpop.f32.mrb[0].mxu0
      %v7525 = vpop.f32.mrb[0].mxu0
      %v7526 = vpop.f32.mrb[0].mxu0
      %7527 = vmatprep.mubr.bf16.mxu0 0
      %7528 = vmatmul.mubr.bf16.gmra.mrb[0].mxu0 %v7084
      %v7529 = vpop.f32.mrb[0].mxu0
      %v7530 = vadd.f32 %v7264, %v7529
      %v7531 = vpop.f32.mrb[0].mxu0
      %v7532 = vpop.f32.mrb[0].mxu0
      %v7533 = vadd.f32 %v7267, %v7532
      %v7534 = vpop.f32.mrb[0].mxu0
      %7535 = vmatprep.mubr.bf16.mxu0 0
      %7536 = vmatmul.mubr.bf16.gmra.mrb[0].mxu0 %v7087
      %v7537 = vpop.f32.mrb[0].mxu0
      %v7538 = vpop.f32.mrb[0].mxu0
      %v7539 = vpop.f32.mrb[0].mxu0
      %v7540 = vpop.f32.mrb[0].mxu0
      %7541 = vmatprep.mubr.bf16.mxu0 0
      %7542 = vmatmul.mubr.bf16.gmra.mrb[0].mxu0 %v7090
      %v7543 = vpop.f32.mrb[0].mxu0
      %v7544 = vadd.f32 %v7278, %v7543
      %v7545 = vpop.f32.mrb[0].mxu0
      %v7546 = vpop.f32.mrb[0].mxu0
      %v7547 = vadd.f32 %v7281, %v7546
      %v7548 = vpop.f32.mrb[0].mxu0
      %7549 = vmatprep.mubr.bf16.mxu0 0
      %7550 = vmatmul.mubr.bf16.gmra.mrb[0].mxu0 %v7093
      %v7551 = vpop.f32.mrb[0].mxu0
      %v7552 = vpop.f32.mrb[0].mxu0
      %v7553 = vpop.f32.mrb[0].mxu0
      %v7554 = vpop.f32.mrb[0].mxu0
      %7555 = vmatprep.mubr.bf16.mxu0 0
      %7556 = vmatmul.mubr.bf16.gmra.mrb[0].mxu0 %v7096
      %v7557 = vpop.f32.mrb[0].mxu0
      %v7558 = vadd.f32 %v7292, %v7557
      %v7559 = vpop.f32.mrb[0].mxu0
      %v7560 = vpop.f32.mrb[0].mxu0
      %v7561 = vadd.f32 %v7295, %v7560
      %v7562 = vpop.f32.mrb[0].mxu0
      %7563 = vmatprep.mubr.bf16.mxu0 0
      %7564 = vmatmul.mubr.bf16.gmra.mrb[0].mxu0 %v7099
      %v7565 = vpop.f32.mrb[0].mxu0
      %v7566 = vpop.f32.mrb[0].mxu0
      %v7567 = vpop.f32.mrb[0].mxu0
      %v7568 = vpop.f32.mrb[0].mxu0
      %7569 = vmatprep.mubr.bf16.mxu0 0
      %7570 = vmatmul.mubr.bf16.gmra.mrb[0].mxu0 %v7102
      %v7571 = vpop.f32.mrb[0].mxu0
      %v7572 = vadd.f32 %v7306, %v7571
      %v7573 = vpop.f32.mrb[0].mxu0
      %v7574 = vpop.f32.mrb[0].mxu0
      %v7575 = vadd.f32 %v7309, %v7574
      %v7576 = vpop.f32.mrb[0].mxu0
      %7577 = vmatprep.mubr.bf16.mxu0 0
      %7578 = vmatmul.mubr.bf16.gmra.mrb[0].mxu0 %v7105
      %v7579 = vpop.f32.mrb[0].mxu0
      %v7580 = vpop.f32.mrb[0].mxu0
      %v7581 = vpop.f32.mrb[0].mxu0
      %v7582 = vpop.f32.mrb[0].mxu0
      %7583 = vmatprep.mubr.bf16.mxu0 0
      %7584 = vmatmul.mubr.bf16.gmra.mrb[0].mxu0 %v7108
      %v7585 = vpop.f32.mrb[0].mxu0
      %v7586 = vadd.f32 %v7320, %v7585
      %v7587 = vpop.f32.mrb[0].mxu0
      %v7588 = vpop.f32.mrb[0].mxu0
      %v7589 = vadd.f32 %v7323, %v7588
      %v7590 = vpop.f32.mrb[0].mxu0
      %7591 = vmatprep.mubr.bf16.mxu0 0
      %7592 = vmatmul.mubr.bf16.gmra.mrb[0].mxu0 %v7111
      %v7593 = vpop.f32.mrb[0].mxu0
      %v7594 = vpop.f32.mrb[0].mxu0
      %v7595 = vpop.f32.mrb[0].mxu0
      %v7596 = vpop.f32.mrb[0].mxu0
      %7597 = vmatprep.mubr.bf16.mxu0 0
      %7598 = vmatmul.mubr.bf16.gmra.mrb[0].mxu0 %v7114
      %v7599 = vpop.f32.mrb[0].mxu0
      %v7600 = vadd.f32 %v7334, %v7599
      %v7601 = vpop.f32.mrb[0].mxu0
      %v7602 = vpop.f32.mrb[0].mxu0
      %v7603 = vadd.f32 %v7337, %v7602
      %v7604 = vpop.f32.mrb[0].mxu0
      %7605 = vmatprep.mubr.bf16.mxu0 0
      %7606 = vmatmul.mubr.bf16.gmra.mrb[0].mxu0 %v7117
      %v7607 = vpop.f32.mrb[0].mxu0
      %v7608 = vpop.f32.mrb[0].mxu0
      %v7609 = vpop.f32.mrb[0].mxu0
      %v7610 = vpop.f32.mrb[0].mxu0
      %7611 = vmatprep.mubr.bf16.mxu0 0
      %7612 = vmatmul.mubr.bf16.gmra.mrb[0].mxu0 %v7120
      %v7613 = vpop.f32.mrb[0].mxu0
      %v7614 = vadd.f32 %v7348, %v7613
      %v7615 = vpop.f32.mrb[0].mxu0
      %v7616 = vpop.f32.mrb[0].mxu0
      %v7617 = vadd.f32 %v7351, %v7616
      %v7618 = vpop.f32.mrb[0].mxu0
      %7619 = vmatprep.mubr.bf16.mxu0 0
      %7620 = vmatmul.mubr.bf16.gmra.mrb[0].mxu0 %v7123
      %v7621 = vpop.f32.mrb[0].mxu0
      %v7622 = vpop.f32.mrb[0].mxu0
      %v7623 = vpop.f32.mrb[0].mxu0
      %v7624 = vpop.f32.mrb[0].mxu0
      %7625 = vmatprep.mubr.bf16.mxu0 0
      %7626 = vmatmul.mubr.bf16.gmra.mrb[0].mxu0 %v7126
      %v7627 = vpop.f32.mrb[0].mxu0
      %v7628 = vadd.f32 %v7362, %v7627
      %v7629 = vpop.f32.mrb[0].mxu0
      %v7630 = vpop.f32.mrb[0].mxu0
      %v7631 = vadd.f32 %v7365, %v7630
      %v7632 = vpop.f32.mrb[0].mxu0
      %7633 = vmatprep.mubr.bf16.mxu0 0
      %7634 = vmatmul.mubr.bf16.gmra.mrb[0].mxu0 %v7129
      %v7635 = vpop.f32.mrb[0].mxu0
      %v7636 = vpop.f32.mrb[0].mxu0
      %v7637 = vpop.f32.mrb[0].mxu0
      %v7638 = vpop.f32.mrb[0].mxu0
      %7639 = vmatprep.mubr.bf16.mxu0 0
      %7640 = vmatmul.mubr.bf16.gmra.mrb[0].mxu0 %v7132
      %v7641 = vpop.f32.mrb[0].mxu0
      %v7642 = vadd.f32 %v7376, %v7641
      %v7643 = vpop.f32.mrb[0].mxu0
      %v7644 = vpop.f32.mrb[0].mxu0
      %v7645 = vadd.f32 %v7379, %v7644
      %v7646 = vpop.f32.mrb[0].mxu0
      %7647 = vmatprep.mubr.bf16.mxu0 0
      %7648 = vmatmul.mubr.bf16.gmra.mrb[0].mxu0 %v7135
      %v7649 = vpop.f32.mrb[0].mxu0
      %v7650 = vpop.f32.mrb[0].mxu0
      %v7651 = vpop.f32.mrb[0].mxu0
      %v7652 = vpop.f32.mrb[0].mxu0
      %7653 = vmatprep.mubr.bf16.mxu0 0
      %7654 = vmatmul.mubr.bf16.gmra.mrb[0].mxu0 %v7138
      %v7655 = vpop.f32.mrb[0].mxu0
      %v7656 = vadd.f32 %v7390, %v7655
      %v7657 = vpop.f32.mrb[0].mxu0
      %v7658 = vpop.f32.mrb[0].mxu0
      %v7659 = vadd.f32 %v7393, %v7658
      %v7660 = vpop.f32.mrb[0].mxu0
      %7661 = vmatprep.mubr.bf16.mxu0 0
      %7662 = vmatmul.mubr.bf16.gmra.mrb[0].mxu0 %v7141
      %v7663 = vpop.f32.mrb[0].mxu0
      %v7664 = vpop.f32.mrb[0].mxu0
      %v7665 = vpop.f32.mrb[0].mxu0
      %v7666 = vpop.f32.mrb[0].mxu0
      %7667 = vmatprep.mubr.bf16.mxu0 0
      %7668 = vmatmul.mubr.bf16.gmra.mrb[0].mxu0 %v7144
      %v7669 = vpop.f32.mrb[0].mxu0
      %v7670 = vadd.f32 %v7404, %v7669
      %v7671 = vpop.f32.mrb[0].mxu0
      %v7672 = vpop.f32.mrb[0].mxu0
      %v7673 = vadd.f32 %v7407, %v7672
      %v7674 = vpop.f32.mrb[0].mxu0
      %7675 = vmatprep.mubr.bf16.mxu0 0
      %7676 = vmatmul.mubr.bf16.gmra.mrb[0].mxu0 %v7147
      %v7677 = vpop.f32.mrb[0].mxu0
      %v7678 = vpop.f32.mrb[0].mxu0
      %v7679 = vpop.f32.mrb[0].mxu0
      %v7680 = vpop.f32.mrb[0].mxu0
      %7681 = vdwg.mxu0
      %s7682 = scalar_lea.vmem %s3, 12
      %v7683 = vld [vmem:[%s7682] sm:$0x3]
      %v7685 = vsel %vm7058, %v7053, 0
      %v7688 = vsel %vm7058, %v7054, 0
      %v7691 = vsel %vm7155, %v7683, 0
      %7693 = vmatprep.subr.bf16.mxu0 0
      %7694 = vmatpush1.bf16.msra.mxu0 %v7691
      %7695 = vmatprep.subr.bf16.mxu0 0
      %7696 = vmatpush1.bf16.msra.mxu0 0
      %7697 = vmatprep.subr.bf16.mxu0 0
      %7698 = vmatpush1.bf16.msra.mxu0 0
      %7699 = vmatprep.subr.bf16.mxu0 0
      %7700 = vmatpush1.bf16.msra.mxu0 0
      %7701 = vmatprep.subr.bf16.mxu0 0
      %7702 = vmatpush1.bf16.msra.mxu0 0
      %7703 = vmatprep.subr.bf16.mxu0 0
      %7704 = vmatpush1.bf16.msra.mxu0 0
      %7705 = vmatprep.subr.bf16.mxu0 0
      %7706 = vmatpush1.bf16.msra.mxu0 0
      %7707 = vmatprep.subr.bf16.mxu0 0
      %7708 = vmatpush1.bf16.msra.mxu0 0
      %7709 = vmatprep.subr.bf16.mxu0 0
      %7710 = vmatpush1.bf16.msra.mxu0 0
      %7711 = vmatprep.subr.bf16.mxu0 0
      %7712 = vmatpush1.bf16.msra.mxu0 0
      %7713 = vmatprep.subr.bf16.mxu0 0
      %7714 = vmatpush1.bf16.msra.mxu0 0
      %7715 = vmatprep.subr.bf16.mxu0 0
      %7716 = vmatpush1.bf16.msra.mxu0 0
      %7717 = vmatprep.subr.bf16.mxu0 0
      %7718 = vmatpush1.bf16.msra.mxu0 0
      %7719 = vmatprep.subr.bf16.mxu0 0
      %7720 = vmatpush1.bf16.msra.mxu0 0
      %7721 = vmatprep.subr.bf16.mxu0 0
      %7722 = vmatpush1.bf16.msra.mxu0 0
      %7723 = vmatprep.subr.bf16.mxu0 0
      %7724 = vmatpush1.bf16.msra.mxu0 0
      %7725 = vmatprep.mubr.bf16.mxu0 0
      %7726 = vmatmul.mubr.bf16.gmra.mrb[0].mxu0 %v7066
      %v7727 = vpop.f32.mrb[0].mxu0
      %v7728 = vadd.f32 0.0, %v7727
      %v7729 = vpop.f32.mrb[0].mxu0
      %v7730 = vpop.f32.mrb[0].mxu0
      %v7731 = vadd.f32 0.0, %v7730
      %v7732 = vpop.f32.mrb[0].mxu0
      %7733 = vmatprep.mubr.bf16.mxu0 0
      %7734 = vmatmul.mubr.bf16.gmra.mrb[0].mxu0 %v7069
      %v7735 = vpop.f32.mrb[0].mxu0
      %v7736 = vpop.f32.mrb[0].mxu0
      %v7737 = vpop.f32.mrb[0].mxu0
      %v7738 = vpop.f32.mrb[0].mxu0
      %7739 = vmatprep.mubr.bf16.mxu0 0
      %7740 = vmatmul.mubr.bf16.gmra.mrb[0].mxu0 %v7072
      %v7741 = vpop.f32.mrb[0].mxu0
      %v7742 = vadd.f32 0.0, %v7741
      %v7743 = vpop.f32.mrb[0].mxu0
      %v7744 = vpop.f32.mrb[0].mxu0
      %v7745 = vadd.f32 0.0, %v7744
      %v7746 = vpop.f32.mrb[0].mxu0
      %7747 = vmatprep.mubr.bf16.mxu0 0
      %7748 = vmatmul.mubr.bf16.gmra.mrb[0].mxu0 %v7075
      %v7749 = vpop.f32.mrb[0].mxu0
      %v7750 = vpop.f32.mrb[0].mxu0
      %v7751 = vpop.f32.mrb[0].mxu0
      %v7752 = vpop.f32.mrb[0].mxu0
      %7753 = vmatprep.mubr.bf16.mxu0 0
      %7754 = vmatmul.mubr.bf16.gmra.mrb[0].mxu0 %v7078
      %v7755 = vpop.f32.mrb[0].mxu0
      %v7756 = vadd.f32 0.0, %v7755
      %v7757 = vpop.f32.mrb[0].mxu0
      %v7758 = vpop.f32.mrb[0].mxu0
      %v7759 = vadd.f32 0.0, %v7758
      %v7760 = vpop.f32.mrb[0].mxu0
      %7761 = vmatprep.mubr.bf16.mxu0 0
      %7762 = vmatmul.mubr.bf16.gmra.mrb[0].mxu0 %v7081
      %v7763 = vpop.f32.mrb[0].mxu0
      %v7764 = vpop.f32.mrb[0].mxu0
      %v7765 = vpop.f32.mrb[0].mxu0
      %v7766 = vpop.f32.mrb[0].mxu0
      %7767 = vmatprep.mubr.bf16.mxu0 0
      %7768 = vmatmul.mubr.bf16.gmra.mrb[0].mxu0 %v7084
      %v7769 = vpop.f32.mrb[0].mxu0
      %v7770 = vadd.f32 0.0, %v7769
      %v7771 = vpop.f32.mrb[0].mxu0
      %v7772 = vpop.f32.mrb[0].mxu0
      %v7773 = vadd.f32 0.0, %v7772
      %v7774 = vpop.f32.mrb[0].mxu0
      %7775 = vmatprep.mubr.bf16.mxu0 0
      %7776 = vmatmul.mubr.bf16.gmra.mrb[0].mxu0 %v7087
      %v7777 = vpop.f32.mrb[0].mxu0
      %v7778 = vpop.f32.mrb[0].mxu0
      %v7779 = vpop.f32.mrb[0].mxu0
      %v7780 = vpop.f32.mrb[0].mxu0
      %7781 = vmatprep.mubr.bf16.mxu0 0
      %7782 = vmatmul.mubr.bf16.gmra.mrb[0].mxu0 %v7090
      %v7783 = vpop.f32.mrb[0].mxu0
      %v7784 = vadd.f32 0.0, %v7783
      %v7785 = vpop.f32.mrb[0].mxu0
      %v7786 = vpop.f32.mrb[0].mxu0
      %v7787 = vadd.f32 0.0, %v7786
      %v7788 = vpop.f32.mrb[0].mxu0
      %7789 = vmatprep.mubr.bf16.mxu0 0
      %7790 = vmatmul.mubr.bf16.gmra.mrb[0].mxu0 %v7093
      %v7791 = vpop.f32.mrb[0].mxu0
      %v7792 = vpop.f32.mrb[0].mxu0
      %v7793 = vpop.f32.mrb[0].mxu0
      %v7794 = vpop.f32.mrb[0].mxu0
      %7795 = vmatprep.mubr.bf16.mxu0 0
      %7796 = vmatmul.mubr.bf16.gmra.mrb[0].mxu0 %v7096
      %v7797 = vpop.f32.mrb[0].mxu0
      %v7798 = vadd.f32 0.0, %v7797
      %v7799 = vpop.f32.mrb[0].mxu0
      %v7800 = vpop.f32.mrb[0].mxu0
      %v7801 = vadd.f32 0.0, %v7800
      %v7802 = vpop.f32.mrb[0].mxu0
      %7803 = vmatprep.mubr.bf16.mxu0 0
      %7804 = vmatmul.mubr.bf16.gmra.mrb[0].mxu0 %v7099
      %v7805 = vpop.f32.mrb[0].mxu0
      %v7806 = vpop.f32.mrb[0].mxu0
      %v7807 = vpop.f32.mrb[0].mxu0
      %v7808 = vpop.f32.mrb[0].mxu0
      %7809 = vmatprep.mubr.bf16.mxu0 0
      %7810 = vmatmul.mubr.bf16.gmra.mrb[0].mxu0 %v7102
      %v7811 = vpop.f32.mrb[0].mxu0
      %v7812 = vadd.f32 0.0, %v7811
      %v7813 = vpop.f32.mrb[0].mxu0
      %v7814 = vpop.f32.mrb[0].mxu0
      %v7815 = vadd.f32 0.0, %v7814
      %v7816 = vpop.f32.mrb[0].mxu0
      %7817 = vmatprep.mubr.bf16.mxu0 0
      %7818 = vmatmul.mubr.bf16.gmra.mrb[0].mxu0 %v7105
      %v7819 = vpop.f32.mrb[0].mxu0
      %v7820 = vpop.f32.mrb[0].mxu0
      %v7821 = vpop.f32.mrb[0].mxu0
      %v7822 = vpop.f32.mrb[0].mxu0
      %7823 = vmatprep.mubr.bf16.mxu0 0
      %7824 = vmatmul.mubr.bf16.gmra.mrb[0].mxu0 %v7108
      %v7825 = vpop.f32.mrb[0].mxu0
      %v7826 = vadd.f32 0.0, %v7825
      %v7827 = vpop.f32.mrb[0].mxu0
      %v7828 = vpop.f32.mrb[0].mxu0
      %v7829 = vadd.f32 0.0, %v7828
      %v7830 = vpop.f32.mrb[0].mxu0
      %7831 = vmatprep.mubr.bf16.mxu0 0
      %7832 = vmatmul.mubr.bf16.gmra.mrb[0].mxu0 %v7111
      %v7833 = vpop.f32.mrb[0].mxu0
      %v7834 = vpop.f32.mrb[0].mxu0
      %v7835 = vpop.f32.mrb[0].mxu0
      %v7836 = vpop.f32.mrb[0].mxu0
      %7837 = vmatprep.mubr.bf16.mxu0 0
      %7838 = vmatmul.mubr.bf16.gmra.mrb[0].mxu0 %v7114
      %v7839 = vpop.f32.mrb[0].mxu0
      %v7840 = vadd.f32 0.0, %v7839
      %v7841 = vpop.f32.mrb[0].mxu0
      %v7842 = vpop.f32.mrb[0].mxu0
      %v7843 = vadd.f32 0.0, %v7842
      %v7844 = vpop.f32.mrb[0].mxu0
      %7845 = vmatprep.mubr.bf16.mxu0 0
      %7846 = vmatmul.mubr.bf16.gmra.mrb[0].mxu0 %v7117
      %v7847 = vpop.f32.mrb[0].mxu0
      %v7848 = vpop.f32.mrb[0].mxu0
      %v7849 = vpop.f32.mrb[0].mxu0
      %v7850 = vpop.f32.mrb[0].mxu0
      %7851 = vmatprep.mubr.bf16.mxu0 0
      %7852 = vmatmul.mubr.bf16.gmra.mrb[0].mxu0 %v7120
      %v7853 = vpop.f32.mrb[0].mxu0
      %v7854 = vadd.f32 0.0, %v7853
      %v7855 = vpop.f32.mrb[0].mxu0
      %v7856 = vpop.f32.mrb[0].mxu0
      %v7857 = vadd.f32 0.0, %v7856
      %v7858 = vpop.f32.mrb[0].mxu0
      %7859 = vmatprep.mubr.bf16.mxu0 0
      %7860 = vmatmul.mubr.bf16.gmra.mrb[0].mxu0 %v7123
      %v7861 = vpop.f32.mrb[0].mxu0
      %v7862 = vpop.f32.mrb[0].mxu0
      %v7863 = vpop.f32.mrb[0].mxu0
      %v7864 = vpop.f32.mrb[0].mxu0
      %7865 = vmatprep.mubr.bf16.mxu0 0
      %7866 = vmatmul.mubr.bf16.gmra.mrb[0].mxu0 %v7126
      %v7867 = vpop.f32.mrb[0].mxu0
      %v7868 = vadd.f32 0.0, %v7867
      %v7869 = vpop.f32.mrb[0].mxu0
      %v7870 = vpop.f32.mrb[0].mxu0
      %v7871 = vadd.f32 0.0, %v7870
      %v7872 = vpop.f32.mrb[0].mxu0
      %7873 = vmatprep.mubr.bf16.mxu0 0
      %7874 = vmatmul.mubr.bf16.gmra.mrb[0].mxu0 %v7129
      %v7875 = vpop.f32.mrb[0].mxu0
      %v7876 = vpop.f32.mrb[0].mxu0
      %v7877 = vpop.f32.mrb[0].mxu0
      %v7878 = vpop.f32.mrb[0].mxu0
      %7879 = vmatprep.mubr.bf16.mxu0 0
      %7880 = vmatmul.mubr.bf16.gmra.mrb[0].mxu0 %v7132
      %v7881 = vpop.f32.mrb[0].mxu0
      %v7882 = vadd.f32 0.0, %v7881
      %v7883 = vpop.f32.mrb[0].mxu0
      %v7884 = vpop.f32.mrb[0].mxu0
      %v7885 = vadd.f32 0.0, %v7884
      %v7886 = vpop.f32.mrb[0].mxu0
      %7887 = vmatprep.mubr.bf16.mxu0 0
      %7888 = vmatmul.mubr.bf16.gmra.mrb[0].mxu0 %v7135
      %v7889 = vpop.f32.mrb[0].mxu0
      %v7890 = vpop.f32.mrb[0].mxu0
      %v7891 = vpop.f32.mrb[0].mxu0
      %v7892 = vpop.f32.mrb[0].mxu0
      %7893 = vmatprep.mubr.bf16.mxu0 0
      %7894 = vmatmul.mubr.bf16.gmra.mrb[0].mxu0 %v7138
      %v7895 = vpop.f32.mrb[0].mxu0
      %v7896 = vadd.f32 0.0, %v7895
      %v7897 = vpop.f32.mrb[0].mxu0
      %v7898 = vpop.f32.mrb[0].mxu0
      %v7899 = vadd.f32 0.0, %v7898
      %v7900 = vpop.f32.mrb[0].mxu0
      %7901 = vmatprep.mubr.bf16.mxu0 0
      %7902 = vmatmul.mubr.bf16.gmra.mrb[0].mxu0 %v7141
      %v7903 = vpop.f32.mrb[0].mxu0
      %v7904 = vpop.f32.mrb[0].mxu0
      %v7905 = vpop.f32.mrb[0].mxu0
      %v7906 = vpop.f32.mrb[0].mxu0
      %7907 = vmatprep.mubr.bf16.mxu0 0
      %7908 = vmatmul.mubr.bf16.gmra.mrb[0].mxu0 %v7144
      %v7909 = vpop.f32.mrb[0].mxu0
      %v7910 = vadd.f32 0.0, %v7909
      %v7911 = vpop.f32.mrb[0].mxu0
      %v7912 = vpop.f32.mrb[0].mxu0
      %v7913 = vadd.f32 0.0, %v7912
      %v7914 = vpop.f32.mrb[0].mxu0
      %7915 = vmatprep.mubr.bf16.mxu0 0
      %7916 = vmatmul.mubr.bf16.gmra.mrb[0].mxu0 %v7147
      %v7917 = vpop.f32.mrb[0].mxu0
      %v7918 = vpop.f32.mrb[0].mxu0
      %v7919 = vpop.f32.mrb[0].mxu0
      %v7920 = vpop.f32.mrb[0].mxu0
      %7921 = vmatprep.mubr.bf16.mxu0 0
      %7922 = vmatmul.mubr.bf16.gmra.mrb[0].mxu0 %v7150
      %v7923 = vpop.f32.mrb[0].mxu0
      %v7924 = vadd.f32 0.0, %v7923
      %v7925 = vpop.f32.mrb[0].mxu0
      %v7926 = vpop.f32.mrb[0].mxu0
      %v7927 = vadd.f32 0.0, %v7926
      %v7928 = vpop.f32.mrb[0].mxu0
      %7929 = vmatprep.mubr.bf16.mxu0 0
      %7930 = vmatmul.mubr.bf16.gmra.mrb[0].mxu0 %v7153
      %v7931 = vpop.f32.mrb[0].mxu0
      %v7932 = vpop.f32.mrb[0].mxu0
      %v7933 = vpop.f32.mrb[0].mxu0
      %v7934 = vpop.f32.mrb[0].mxu0
      %7935 = vmatprep.mubr.bf16.mxu0 0
      %7936 = vmatmul.mubr.bf16.gmra.mrb[0].mxu0 %v7685
      %v7937 = vpop.f32.mrb[0].mxu0
      %v7938 = vadd.f32 0.0, %v7937
      %v7939 = vpop.f32.mrb[0].mxu0
      %v7940 = vpop.f32.mrb[0].mxu0
      %v7941 = vadd.f32 0.0, %v7940
      %v7942 = vpop.f32.mrb[0].mxu0
      %7943 = vmatprep.mubr.bf16.mxu0 0
      %7944 = vmatmul.mubr.bf16.gmra.mrb[0].mxu0 %v7688
      %v7945 = vpop.f32.mrb[0].mxu0
      %v7946 = vpop.f32.mrb[0].mxu0
      %v7947 = vpop.f32.mrb[0].mxu0
      %v7948 = vpop.f32.mrb[0].mxu0
      %7949 = vdwg.mxu0
      %v7950 = vadd.f32 %v7460, %v7728
      %v7951 = vadd.f32 %v7463, %v7731
      %v7952 = vadd.f32 %v7474, %v7742
      %v7953 = vadd.f32 %v7477, %v7745
      %v7954 = vadd.f32 %v7488, %v7756
      %v7955 = vadd.f32 %v7491, %v7759
      %v7956 = vadd.f32 %v7502, %v7770
      %v7957 = vadd.f32 %v7505, %v7773
      %v7958 = vadd.f32 %v7516, %v7784
      %v7959 = vadd.f32 %v7519, %v7787
      %v7960 = vadd.f32 %v7530, %v7798
      %v7961 = vadd.f32 %v7533, %v7801
      %v7962 = vadd.f32 %v7544, %v7812
      %v7963 = vadd.f32 %v7547, %v7815
      %v7964 = vadd.f32 %v7558, %v7826
      %v7965 = vadd.f32 %v7561, %v7829
      %v7966 = vadd.f32 %v7572, %v7840
      %v7967 = vadd.f32 %v7575, %v7843
      %v7968 = vadd.f32 %v7586, %v7854
      %v7969 = vadd.f32 %v7589, %v7857
      %v7970 = vadd.f32 %v7600, %v7868
      %v7971 = vadd.f32 %v7603, %v7871
      %v7972 = vadd.f32 %v7614, %v7882
      %v7973 = vadd.f32 %v7617, %v7885
      %v7974 = vadd.f32 %v7628, %v7896
      %v7975 = vadd.f32 %v7631, %v7899
      %v7976 = vadd.f32 %v7642, %v7910
      %v7977 = vadd.f32 %v7645, %v7913
      %v7978 = vadd.f32 %v7656, %v7924
      %v7979 = vadd.f32 %v7659, %v7927
      %v7980 = vadd.f32 %v7670, %v7938
      %v7981 = vadd.f32 %v7673, %v7941
      %s7982 = scalar_lea.vmem %s3, 2
      %v7983 = vld [vmem:[%s7982] sm:$0x3]
      %s7984 = scalar_lea.vmem %s3, 8
      %v7985 = vld [vmem:[%s7984] sm:$0x3]
      %v7987 = vsel %vm7155, %v7985, 0
      %7989 = vmatprep.subr.bf16.mxu0 0
      %7990 = vmatpush1.bf16.msra.mxu0 %v7987
      %7991 = vmatprep.subr.bf16.mxu0 0
      %7992 = vmatpush1.bf16.msra.mxu0 0
      %7993 = vmatprep.subr.bf16.mxu0 0
      %7994 = vmatpush1.bf16.msra.mxu0 0
      %7995 = vmatprep.subr.bf16.mxu0 0
      %7996 = vmatpush1.bf16.msra.mxu0 0
      %7997 = vmatprep.subr.bf16.mxu0 0
      %7998 = vmatpush1.bf16.msra.mxu0 0
      %7999 = vmatprep.subr.bf16.mxu0 0
      %8000 = vmatpush1.bf16.msra.mxu0 0
      %8001 = vmatprep.subr.bf16.mxu0 0
      %8002 = vmatpush1.bf16.msra.mxu0 0
      %8003 = vmatprep.subr.bf16.mxu0 0
      %8004 = vmatpush1.bf16.msra.mxu0 0
      %8005 = vmatprep.subr.bf16.mxu0 0
      %8006 = vmatpush1.bf16.msra.mxu0 0
      %8007 = vmatprep.subr.bf16.mxu0 0
      %8008 = vmatpush1.bf16.msra.mxu0 0
      %8009 = vmatprep.subr.bf16.mxu0 0
      %8010 = vmatpush1.bf16.msra.mxu0 0
      %8011 = vmatprep.subr.bf16.mxu0 0
      %8012 = vmatpush1.bf16.msra.mxu0 0
      %8013 = vmatprep.subr.bf16.mxu0 0
      %8014 = vmatpush1.bf16.msra.mxu0 0
      %8015 = vmatprep.subr.bf16.mxu0 0
      %8016 = vmatpush1.bf16.msra.mxu0 0
      %8017 = vmatprep.subr.bf16.mxu0 0
      %8018 = vmatpush1.bf16.msra.mxu0 0
      %8019 = vmatprep.subr.bf16.mxu0 0
      %8020 = vmatpush1.bf16.msra.mxu0 0
      %8021 = vmatprep.mubr.bf16.mxu0 0
      %8022 = vmatmul.mubr.bf16.gmra.mrb[0].mxu0 %v7060
      %v8023 = vpop.f32.mrb[0].mxu0
      %v8024 = vadd.f32 0.0, %v8023
      %v8025 = vpop.f32.mrb[0].mxu0
      %v8026 = vpop.f32.mrb[0].mxu0
      %v8027 = vadd.f32 0.0, %v8026
      %v8028 = vpop.f32.mrb[0].mxu0
      %8029 = vmatprep.mubr.bf16.mxu0 0
      %8030 = vmatmul.mubr.bf16.gmra.mrb[0].mxu0 %v7063
      %v8031 = vpop.f32.mrb[0].mxu0
      %v8032 = vadd.f32 0.0, %v8031
      %v8033 = vpop.f32.mrb[0].mxu0
      %v8034 = vpop.f32.mrb[0].mxu0
      %v8035 = vpop.f32.mrb[0].mxu0
      %8036 = vmatprep.mubr.bf16.mxu0 0
      %8037 = vmatmul.mubr.bf16.gmra.mrb[0].mxu0 %v7066
      %v8038 = vpop.f32.mrb[0].mxu0
      %v8039 = vadd.f32 0.0, %v8038
      %v8040 = vpop.f32.mrb[0].mxu0
      %v8041 = vpop.f32.mrb[0].mxu0
      %v8042 = vadd.f32 0.0, %v8041
      %v8043 = vpop.f32.mrb[0].mxu0
      %8044 = vmatprep.mubr.bf16.mxu0 0
      %8045 = vmatmul.mubr.bf16.gmra.mrb[0].mxu0 %v7069
      %v8046 = vpop.f32.mrb[0].mxu0
      %v8047 = vadd.f32 0.0, %v8046
      %v8048 = vpop.f32.mrb[0].mxu0
      %v8049 = vpop.f32.mrb[0].mxu0
      %v8050 = vpop.f32.mrb[0].mxu0
      %8051 = vmatprep.mubr.bf16.mxu0 0
      %8052 = vmatmul.mubr.bf16.gmra.mrb[0].mxu0 %v7072
      %v8053 = vpop.f32.mrb[0].mxu0
      %v8054 = vadd.f32 0.0, %v8053
      %v8055 = vpop.f32.mrb[0].mxu0
      %v8056 = vpop.f32.mrb[0].mxu0
      %v8057 = vadd.f32 0.0, %v8056
      %v8058 = vpop.f32.mrb[0].mxu0
      %8059 = vmatprep.mubr.bf16.mxu0 0
      %8060 = vmatmul.mubr.bf16.gmra.mrb[0].mxu0 %v7075
      %v8061 = vpop.f32.mrb[0].mxu0
      %v8062 = vadd.f32 0.0, %v8061
      %v8063 = vpop.f32.mrb[0].mxu0
      %v8064 = vpop.f32.mrb[0].mxu0
      %v8065 = vpop.f32.mrb[0].mxu0
      %8066 = vmatprep.mubr.bf16.mxu0 0
      %8067 = vmatmul.mubr.bf16.gmra.mrb[0].mxu0 %v7078
      %v8068 = vpop.f32.mrb[0].mxu0
      %v8069 = vadd.f32 0.0, %v8068
      %v8070 = vpop.f32.mrb[0].mxu0
      %v8071 = vpop.f32.mrb[0].mxu0
      %v8072 = vadd.f32 0.0, %v8071
      %v8073 = vpop.f32.mrb[0].mxu0
      %8074 = vmatprep.mubr.bf16.mxu0 0
      %8075 = vmatmul.mubr.bf16.gmra.mrb[0].mxu0 %v7081
      %v8076 = vpop.f32.mrb[0].mxu0
      %v8077 = vadd.f32 0.0, %v8076
      %v8078 = vpop.f32.mrb[0].mxu0
      %v8079 = vpop.f32.mrb[0].mxu0
      %v8080 = vpop.f32.mrb[0].mxu0
      %8081 = vmatprep.mubr.bf16.mxu0 0
      %8082 = vmatmul.mubr.bf16.gmra.mrb[0].mxu0 %v7084
      %v8083 = vpop.f32.mrb[0].mxu0
      %v8084 = vadd.f32 0.0, %v8083
      %v8085 = vpop.f32.mrb[0].mxu0
      %v8086 = vpop.f32.mrb[0].mxu0
      %v8087 = vadd.f32 0.0, %v8086
      %v8088 = vpop.f32.mrb[0].mxu0
      %8089 = vmatprep.mubr.bf16.mxu0 0
      %8090 = vmatmul.mubr.bf16.gmra.mrb[0].mxu0 %v7087
      %v8091 = vpop.f32.mrb[0].mxu0
      %v8092 = vadd.f32 0.0, %v8091
      %v8093 = vpop.f32.mrb[0].mxu0
      %v8094 = vpop.f32.mrb[0].mxu0
      %v8095 = vpop.f32.mrb[0].mxu0
      %8096 = vmatprep.mubr.bf16.mxu0 0
      %8097 = vmatmul.mubr.bf16.gmra.mrb[0].mxu0 %v7090
      %v8098 = vpop.f32.mrb[0].mxu0
      %v8099 = vadd.f32 0.0, %v8098
      %v8100 = vpop.f32.mrb[0].mxu0
      %v8101 = vpop.f32.mrb[0].mxu0
      %v8102 = vadd.f32 0.0, %v8101
      %v8103 = vpop.f32.mrb[0].mxu0
      %8104 = vmatprep.mubr.bf16.mxu0 0
      %8105 = vmatmul.mubr.bf16.gmra.mrb[0].mxu0 %v7093
      %v8106 = vpop.f32.mrb[0].mxu0
      %v8107 = vadd.f32 0.0, %v8106
      %v8108 = vpop.f32.mrb[0].mxu0
      %v8109 = vpop.f32.mrb[0].mxu0
      %v8110 = vpop.f32.mrb[0].mxu0
      %8111 = vmatprep.mubr.bf16.mxu0 0
      %8112 = vmatmul.mubr.bf16.gmra.mrb[0].mxu0 %v7096
      %v8113 = vpop.f32.mrb[0].mxu0
      %v8114 = vadd.f32 0.0, %v8113
      %v8115 = vpop.f32.mrb[0].mxu0
      %v8116 = vpop.f32.mrb[0].mxu0
      %v8117 = vadd.f32 0.0, %v8116
      %v8118 = vpop.f32.mrb[0].mxu0
      %8119 = vmatprep.mubr.bf16.mxu0 0
      %8120 = vmatmul.mubr.bf16.gmra.mrb[0].mxu0 %v7099
      %v8121 = vpop.f32.mrb[0].mxu0
      %v8122 = vadd.f32 0.0, %v8121
      %v8123 = vpop.f32.mrb[0].mxu0
      %v8124 = vpop.f32.mrb[0].mxu0
      %v8125 = vpop.f32.mrb[0].mxu0
      %8126 = vmatprep.mubr.bf16.mxu0 0
      %8127 = vmatmul.mubr.bf16.gmra.mrb[0].mxu0 %v7102
      %v8128 = vpop.f32.mrb[0].mxu0
      %v8129 = vadd.f32 0.0, %v8128
      %v8130 = vpop.f32.mrb[0].mxu0
      %v8131 = vpop.f32.mrb[0].mxu0
      %v8132 = vadd.f32 0.0, %v8131
      %v8133 = vpop.f32.mrb[0].mxu0
      %8134 = vmatprep.mubr.bf16.mxu0 0
      %8135 = vmatmul.mubr.bf16.gmra.mrb[0].mxu0 %v7105
      %v8136 = vpop.f32.mrb[0].mxu0
      %v8137 = vadd.f32 0.0, %v8136
      %v8138 = vpop.f32.mrb[0].mxu0
      %v8139 = vpop.f32.mrb[0].mxu0
      %v8140 = vpop.f32.mrb[0].mxu0
      %8141 = vmatprep.mubr.bf16.mxu0 0
      %8142 = vmatmul.mubr.bf16.gmra.mrb[0].mxu0 %v7108
      %v8143 = vpop.f32.mrb[0].mxu0
      %v8144 = vadd.f32 0.0, %v8143
      %v8145 = vpop.f32.mrb[0].mxu0
      %v8146 = vpop.f32.mrb[0].mxu0
      %v8147 = vadd.f32 0.0, %v8146
      %v8148 = vpop.f32.mrb[0].mxu0
      %8149 = vmatprep.mubr.bf16.mxu0 0
      %8150 = vmatmul.mubr.bf16.gmra.mrb[0].mxu0 %v7111
      %v8151 = vpop.f32.mrb[0].mxu0
      %v8152 = vadd.f32 0.0, %v8151
      %v8153 = vpop.f32.mrb[0].mxu0
      %v8154 = vpop.f32.mrb[0].mxu0
      %v8155 = vpop.f32.mrb[0].mxu0
      %8156 = vmatprep.mubr.bf16.mxu0 0
      %8157 = vmatmul.mubr.bf16.gmra.mrb[0].mxu0 %v7114
      %v8158 = vpop.f32.mrb[0].mxu0
      %v8159 = vadd.f32 0.0, %v8158
      %v8160 = vpop.f32.mrb[0].mxu0
      %v8161 = vpop.f32.mrb[0].mxu0
      %v8162 = vadd.f32 0.0, %v8161
      %v8163 = vpop.f32.mrb[0].mxu0
      %8164 = vmatprep.mubr.bf16.mxu0 0
      %8165 = vmatmul.mubr.bf16.gmra.mrb[0].mxu0 %v7117
      %v8166 = vpop.f32.mrb[0].mxu0
      %v8167 = vadd.f32 0.0, %v8166
      %v8168 = vpop.f32.mrb[0].mxu0
      %v8169 = vpop.f32.mrb[0].mxu0
      %v8170 = vpop.f32.mrb[0].mxu0
      %8171 = vmatprep.mubr.bf16.mxu0 0
      %8172 = vmatmul.mubr.bf16.gmra.mrb[0].mxu0 %v7120
      %v8173 = vpop.f32.mrb[0].mxu0
      %v8174 = vadd.f32 0.0, %v8173
      %v8175 = vpop.f32.mrb[0].mxu0
      %v8176 = vpop.f32.mrb[0].mxu0
      %v8177 = vadd.f32 0.0, %v8176
      %v8178 = vpop.f32.mrb[0].mxu0
      %8179 = vmatprep.mubr.bf16.mxu0 0
      %8180 = vmatmul.mubr.bf16.gmra.mrb[0].mxu0 %v7123
      %v8181 = vpop.f32.mrb[0].mxu0
      %v8182 = vadd.f32 0.0, %v8181
      %v8183 = vpop.f32.mrb[0].mxu0
      %v8184 = vpop.f32.mrb[0].mxu0
      %v8185 = vpop.f32.mrb[0].mxu0
      %8186 = vmatprep.mubr.bf16.mxu0 0
      %8187 = vmatmul.mubr.bf16.gmra.mrb[0].mxu0 %v7126
      %v8188 = vpop.f32.mrb[0].mxu0
      %v8189 = vadd.f32 0.0, %v8188
      %v8190 = vpop.f32.mrb[0].mxu0
      %v8191 = vpop.f32.mrb[0].mxu0
      %v8192 = vadd.f32 0.0, %v8191
      %v8193 = vpop.f32.mrb[0].mxu0
      %8194 = vmatprep.mubr.bf16.mxu0 0
      %8195 = vmatmul.mubr.bf16.gmra.mrb[0].mxu0 %v7129
      %v8196 = vpop.f32.mrb[0].mxu0
      %v8197 = vadd.f32 0.0, %v8196
      %v8198 = vpop.f32.mrb[0].mxu0
      %v8199 = vpop.f32.mrb[0].mxu0
      %v8200 = vpop.f32.mrb[0].mxu0
      %8201 = vmatprep.mubr.bf16.mxu0 0
      %8202 = vmatmul.mubr.bf16.gmra.mrb[0].mxu0 %v7132
      %v8203 = vpop.f32.mrb[0].mxu0
      %v8204 = vadd.f32 0.0, %v8203
      %v8205 = vpop.f32.mrb[0].mxu0
      %v8206 = vpop.f32.mrb[0].mxu0
      %v8207 = vadd.f32 0.0, %v8206
      %v8208 = vpop.f32.mrb[0].mxu0
      %8209 = vmatprep.mubr.bf16.mxu0 0
      %8210 = vmatmul.mubr.bf16.gmra.mrb[0].mxu0 %v7135
      %v8211 = vpop.f32.mrb[0].mxu0
      %v8212 = vadd.f32 0.0, %v8211
      %v8213 = vpop.f32.mrb[0].mxu0
      %v8214 = vpop.f32.mrb[0].mxu0
      %v8215 = vpop.f32.mrb[0].mxu0
      %8216 = vmatprep.mubr.bf16.mxu0 0
      %8217 = vmatmul.mubr.bf16.gmra.mrb[0].mxu0 %v7138
      %v8218 = vpop.f32.mrb[0].mxu0
      %v8219 = vadd.f32 0.0, %v8218
      %v8220 = vpop.f32.mrb[0].mxu0
      %v8221 = vpop.f32.mrb[0].mxu0
      %v8222 = vadd.f32 0.0, %v8221
      %v8223 = vpop.f32.mrb[0].mxu0
      %8224 = vmatprep.mubr.bf16.mxu0 0
      %8225 = vmatmul.mubr.bf16.gmra.mrb[0].mxu0 %v7141
      %v8226 = vpop.f32.mrb[0].mxu0
      %v8227 = vadd.f32 0.0, %v8226
      %v8228 = vpop.f32.mrb[0].mxu0
      %v8229 = vpop.f32.mrb[0].mxu0
      %v8230 = vpop.f32.mrb[0].mxu0
      %8231 = vmatprep.mubr.bf16.mxu0 0
      %8232 = vmatmul.mubr.bf16.gmra.mrb[0].mxu0 %v7144
      %v8233 = vpop.f32.mrb[0].mxu0
      %v8234 = vadd.f32 0.0, %v8233
      %v8235 = vpop.f32.mrb[0].mxu0
      %v8236 = vpop.f32.mrb[0].mxu0
      %v8237 = vadd.f32 0.0, %v8236
      %v8238 = vpop.f32.mrb[0].mxu0
      %8239 = vmatprep.mubr.bf16.mxu0 0
      %8240 = vmatmul.mubr.bf16.gmra.mrb[0].mxu0 %v7147
      %v8241 = vpop.f32.mrb[0].mxu0
      %v8242 = vadd.f32 0.0, %v8241
      %v8243 = vpop.f32.mrb[0].mxu0
      %v8244 = vpop.f32.mrb[0].mxu0
      %v8245 = vpop.f32.mrb[0].mxu0
      %8246 = vmatprep.mubr.bf16.mxu0 0
      %8247 = vmatmul.mubr.bf16.gmra.mrb[0].mxu0 %v7150
      %v8248 = vpop.f32.mrb[0].mxu0
      %v8249 = vadd.f32 0.0, %v8248
      %v8250 = vpop.f32.mrb[0].mxu0
      %v8251 = vpop.f32.mrb[0].mxu0
      %v8252 = vadd.f32 0.0, %v8251
      %v8253 = vpop.f32.mrb[0].mxu0
      %8254 = vmatprep.mubr.bf16.mxu0 0
      %8255 = vmatmul.mubr.bf16.gmra.mrb[0].mxu0 %v7153
      %v8256 = vpop.f32.mrb[0].mxu0
      %v8257 = vadd.f32 0.0, %v8256
      %v8258 = vpop.f32.mrb[0].mxu0
      %v8259 = vpop.f32.mrb[0].mxu0
      %v8260 = vpop.f32.mrb[0].mxu0
      %8261 = vdwg.mxu0
      %v8263 = vsel %vm7155, %v7983, 0
      %8265 = vmatprep.subr.bf16.mxu0 0
      %8266 = vmatpush1.bf16.msra.mxu0 %v8263
      %8267 = vmatprep.subr.bf16.mxu0 0
      %8268 = vmatpush1.bf16.msra.mxu0 0
      %8269 = vmatprep.subr.bf16.mxu0 0
      %8270 = vmatpush1.bf16.msra.mxu0 0
      %8271 = vmatprep.subr.bf16.mxu0 0
      %8272 = vmatpush1.bf16.msra.mxu0 0
      %8273 = vmatprep.subr.bf16.mxu0 0
      %8274 = vmatpush1.bf16.msra.mxu0 0
      %8275 = vmatprep.subr.bf16.mxu0 0
      %8276 = vmatpush1.bf16.msra.mxu0 0
      %8277 = vmatprep.subr.bf16.mxu0 0
      %8278 = vmatpush1.bf16.msra.mxu0 0
      %8279 = vmatprep.subr.bf16.mxu0 0
      %8280 = vmatpush1.bf16.msra.mxu0 0
      %8281 = vmatprep.subr.bf16.mxu0 0
      %8282 = vmatpush1.bf16.msra.mxu0 0
      %8283 = vmatprep.subr.bf16.mxu0 0
      %8284 = vmatpush1.bf16.msra.mxu0 0
      %8285 = vmatprep.subr.bf16.mxu0 0
      %8286 = vmatpush1.bf16.msra.mxu0 0
      %8287 = vmatprep.subr.bf16.mxu0 0
      %8288 = vmatpush1.bf16.msra.mxu0 0
      %8289 = vmatprep.subr.bf16.mxu0 0
      %8290 = vmatpush1.bf16.msra.mxu0 0
      %8291 = vmatprep.subr.bf16.mxu0 0
      %8292 = vmatpush1.bf16.msra.mxu0 0
      %8293 = vmatprep.subr.bf16.mxu0 0
      %8294 = vmatpush1.bf16.msra.mxu0 0
      %8295 = vmatprep.subr.bf16.mxu0 0
      %8296 = vmatpush1.bf16.msra.mxu0 0
      %8297 = vmatprep.mubr.bf16.mxu0 0
      %8298 = vmatmul.mubr.bf16.gmra.mrb[0].mxu0 %v7417
      %v8299 = vpop.f32.mrb[0].mxu0
      %v8300 = vadd.f32 %v8024, %v8299
      %v8301 = vpop.f32.mrb[0].mxu0
      %v8302 = vpop.f32.mrb[0].mxu0
      %v8303 = vadd.f32 %v8027, %v8302
      %v8304 = vpop.f32.mrb[0].mxu0
      %8305 = vmatprep.mubr.bf16.mxu0 0
      %8306 = vmatmul.mubr.bf16.gmra.mrb[0].mxu0 %v7420
      %v8307 = vpop.f32.mrb[0].mxu0
      %v8308 = vadd.f32 %v8032, %v8307
      %v8309 = vpop.f32.mrb[0].mxu0
      %v8310 = vpop.f32.mrb[0].mxu0
      %v8311 = vpop.f32.mrb[0].mxu0
      %8312 = vmatprep.mubr.bf16.mxu0 0
      %8313 = vmatmul.mubr.bf16.gmra.mrb[0].mxu0 %v7060
      %v8314 = vpop.f32.mrb[0].mxu0
      %v8315 = vadd.f32 %v8039, %v8314
      %v8316 = vpop.f32.mrb[0].mxu0
      %v8317 = vpop.f32.mrb[0].mxu0
      %v8318 = vadd.f32 %v8042, %v8317
      %v8319 = vpop.f32.mrb[0].mxu0
      %8320 = vmatprep.mubr.bf16.mxu0 0
      %8321 = vmatmul.mubr.bf16.gmra.mrb[0].mxu0 %v7063
      %v8322 = vpop.f32.mrb[0].mxu0
      %v8323 = vadd.f32 %v8047, %v8322
      %v8324 = vpop.f32.mrb[0].mxu0
      %v8325 = vpop.f32.mrb[0].mxu0
      %v8326 = vpop.f32.mrb[0].mxu0
      %8327 = vmatprep.mubr.bf16.mxu0 0
      %8328 = vmatmul.mubr.bf16.gmra.mrb[0].mxu0 %v7066
      %v8329 = vpop.f32.mrb[0].mxu0
      %v8330 = vadd.f32 %v8054, %v8329
      %v8331 = vpop.f32.mrb[0].mxu0
      %v8332 = vpop.f32.mrb[0].mxu0
      %v8333 = vadd.f32 %v8057, %v8332
      %v8334 = vpop.f32.mrb[0].mxu0
      %8335 = vmatprep.mubr.bf16.mxu0 0
      %8336 = vmatmul.mubr.bf16.gmra.mrb[0].mxu0 %v7069
      %v8337 = vpop.f32.mrb[0].mxu0
      %v8338 = vadd.f32 %v8062, %v8337
      %v8339 = vpop.f32.mrb[0].mxu0
      %v8340 = vpop.f32.mrb[0].mxu0
      %v8341 = vpop.f32.mrb[0].mxu0
      %8342 = vmatprep.mubr.bf16.mxu0 0
      %8343 = vmatmul.mubr.bf16.gmra.mrb[0].mxu0 %v7072
      %v8344 = vpop.f32.mrb[0].mxu0
      %v8345 = vadd.f32 %v8069, %v8344
      %v8346 = vpop.f32.mrb[0].mxu0
      %v8347 = vpop.f32.mrb[0].mxu0
      %v8348 = vadd.f32 %v8072, %v8347
      %v8349 = vpop.f32.mrb[0].mxu0
      %8350 = vmatprep.mubr.bf16.mxu0 0
      %8351 = vmatmul.mubr.bf16.gmra.mrb[0].mxu0 %v7075
      %v8352 = vpop.f32.mrb[0].mxu0
      %v8353 = vadd.f32 %v8077, %v8352
      %v8354 = vpop.f32.mrb[0].mxu0
      %v8355 = vpop.f32.mrb[0].mxu0
      %v8356 = vpop.f32.mrb[0].mxu0
      %8357 = vmatprep.mubr.bf16.mxu0 0
      %8358 = vmatmul.mubr.bf16.gmra.mrb[0].mxu0 %v7078
      %v8359 = vpop.f32.mrb[0].mxu0
      %v8360 = vadd.f32 %v8084, %v8359
      %v8361 = vpop.f32.mrb[0].mxu0
      %v8362 = vpop.f32.mrb[0].mxu0
      %v8363 = vadd.f32 %v8087, %v8362
      %v8364 = vpop.f32.mrb[0].mxu0
      %8365 = vmatprep.mubr.bf16.mxu0 0
      %8366 = vmatmul.mubr.bf16.gmra.mrb[0].mxu0 %v7081
      %v8367 = vpop.f32.mrb[0].mxu0
      %v8368 = vadd.f32 %v8092, %v8367
      %v8369 = vpop.f32.mrb[0].mxu0
      %v8370 = vpop.f32.mrb[0].mxu0
      %v8371 = vpop.f32.mrb[0].mxu0
      %8372 = vmatprep.mubr.bf16.mxu0 0
      %8373 = vmatmul.mubr.bf16.gmra.mrb[0].mxu0 %v7084
      %v8374 = vpop.f32.mrb[0].mxu0
      %v8375 = vadd.f32 %v8099, %v8374
      %v8376 = vpop.f32.mrb[0].mxu0
      %v8377 = vpop.f32.mrb[0].mxu0
      %v8378 = vadd.f32 %v8102, %v8377
      %v8379 = vpop.f32.mrb[0].mxu0
      %8380 = vmatprep.mubr.bf16.mxu0 0
      %8381 = vmatmul.mubr.bf16.gmra.mrb[0].mxu0 %v7087
      %v8382 = vpop.f32.mrb[0].mxu0
      %v8383 = vadd.f32 %v8107, %v8382
      %v8384 = vpop.f32.mrb[0].mxu0
      %v8385 = vpop.f32.mrb[0].mxu0
      %v8386 = vpop.f32.mrb[0].mxu0
      %8387 = vmatprep.mubr.bf16.mxu0 0
      %8388 = vmatmul.mubr.bf16.gmra.mrb[0].mxu0 %v7090
      %v8389 = vpop.f32.mrb[0].mxu0
      %v8390 = vadd.f32 %v8114, %v8389
      %v8391 = vpop.f32.mrb[0].mxu0
      %v8392 = vpop.f32.mrb[0].mxu0
      %v8393 = vadd.f32 %v8117, %v8392
      %v8394 = vpop.f32.mrb[0].mxu0
      %8395 = vmatprep.mubr.bf16.mxu0 0
      %8396 = vmatmul.mubr.bf16.gmra.mrb[0].mxu0 %v7093
      %v8397 = vpop.f32.mrb[0].mxu0
      %v8398 = vadd.f32 %v8122, %v8397
      %v8399 = vpop.f32.mrb[0].mxu0
      %v8400 = vpop.f32.mrb[0].mxu0
      %v8401 = vpop.f32.mrb[0].mxu0
      %8402 = vmatprep.mubr.bf16.mxu0 0
      %8403 = vmatmul.mubr.bf16.gmra.mrb[0].mxu0 %v7096
      %v8404 = vpop.f32.mrb[0].mxu0
      %v8405 = vadd.f32 %v8129, %v8404
      %v8406 = vpop.f32.mrb[0].mxu0
      %v8407 = vpop.f32.mrb[0].mxu0
      %v8408 = vadd.f32 %v8132, %v8407
      %v8409 = vpop.f32.mrb[0].mxu0
      %8410 = vmatprep.mubr.bf16.mxu0 0
      %8411 = vmatmul.mubr.bf16.gmra.mrb[0].mxu0 %v7099
      %v8412 = vpop.f32.mrb[0].mxu0
      %v8413 = vadd.f32 %v8137, %v8412
      %v8414 = vpop.f32.mrb[0].mxu0
      %v8415 = vpop.f32.mrb[0].mxu0
      %v8416 = vpop.f32.mrb[0].mxu0
      %8417 = vmatprep.mubr.bf16.mxu0 0
      %8418 = vmatmul.mubr.bf16.gmra.mrb[0].mxu0 %v7102
      %v8419 = vpop.f32.mrb[0].mxu0
      %v8420 = vadd.f32 %v8144, %v8419
      %v8421 = vpop.f32.mrb[0].mxu0
      %v8422 = vpop.f32.mrb[0].mxu0
      %v8423 = vadd.f32 %v8147, %v8422
      %v8424 = vpop.f32.mrb[0].mxu0
      %8425 = vmatprep.mubr.bf16.mxu0 0
      %8426 = vmatmul.mubr.bf16.gmra.mrb[0].mxu0 %v7105
      %v8427 = vpop.f32.mrb[0].mxu0
      %v8428 = vadd.f32 %v8152, %v8427
      %v8429 = vpop.f32.mrb[0].mxu0
      %v8430 = vpop.f32.mrb[0].mxu0
      %v8431 = vpop.f32.mrb[0].mxu0
      %8432 = vmatprep.mubr.bf16.mxu0 0
      %8433 = vmatmul.mubr.bf16.gmra.mrb[0].mxu0 %v7108
      %v8434 = vpop.f32.mrb[0].mxu0
      %v8435 = vadd.f32 %v8159, %v8434
      %v8436 = vpop.f32.mrb[0].mxu0
      %v8437 = vpop.f32.mrb[0].mxu0
      %v8438 = vadd.f32 %v8162, %v8437
      %v8439 = vpop.f32.mrb[0].mxu0
      %8440 = vmatprep.mubr.bf16.mxu0 0
      %8441 = vmatmul.mubr.bf16.gmra.mrb[0].mxu0 %v7111
      %v8442 = vpop.f32.mrb[0].mxu0
      %v8443 = vadd.f32 %v8167, %v8442
      %v8444 = vpop.f32.mrb[0].mxu0
      %v8445 = vpop.f32.mrb[0].mxu0
      %v8446 = vpop.f32.mrb[0].mxu0
      %8447 = vmatprep.mubr.bf16.mxu0 0
      %8448 = vmatmul.mubr.bf16.gmra.mrb[0].mxu0 %v7114
      %v8449 = vpop.f32.mrb[0].mxu0
      %v8450 = vadd.f32 %v8174, %v8449
      %v8451 = vpop.f32.mrb[0].mxu0
      %v8452 = vpop.f32.mrb[0].mxu0
      %v8453 = vadd.f32 %v8177, %v8452
      %v8454 = vpop.f32.mrb[0].mxu0
      %8455 = vmatprep.mubr.bf16.mxu0 0
      %8456 = vmatmul.mubr.bf16.gmra.mrb[0].mxu0 %v7117
      %v8457 = vpop.f32.mrb[0].mxu0
      %v8458 = vadd.f32 %v8182, %v8457
      %v8459 = vpop.f32.mrb[0].mxu0
      %v8460 = vpop.f32.mrb[0].mxu0
      %v8461 = vpop.f32.mrb[0].mxu0
      %8462 = vmatprep.mubr.bf16.mxu0 0
      %8463 = vmatmul.mubr.bf16.gmra.mrb[0].mxu0 %v7120
      %v8464 = vpop.f32.mrb[0].mxu0
      %v8465 = vadd.f32 %v8189, %v8464
      %v8466 = vpop.f32.mrb[0].mxu0
      %v8467 = vpop.f32.mrb[0].mxu0
      %v8468 = vadd.f32 %v8192, %v8467
      %v8469 = vpop.f32.mrb[0].mxu0
      %8470 = vmatprep.mubr.bf16.mxu0 0
      %8471 = vmatmul.mubr.bf16.gmra.mrb[0].mxu0 %v7123
      %v8472 = vpop.f32.mrb[0].mxu0
      %v8473 = vadd.f32 %v8197, %v8472
      %v8474 = vpop.f32.mrb[0].mxu0
      %v8475 = vpop.f32.mrb[0].mxu0
      %v8476 = vpop.f32.mrb[0].mxu0
      %8477 = vmatprep.mubr.bf16.mxu0 0
      %8478 = vmatmul.mubr.bf16.gmra.mrb[0].mxu0 %v7126
      %v8479 = vpop.f32.mrb[0].mxu0
      %v8480 = vadd.f32 %v8204, %v8479
      %v8481 = vpop.f32.mrb[0].mxu0
      %v8482 = vpop.f32.mrb[0].mxu0
      %v8483 = vadd.f32 %v8207, %v8482
      %v8484 = vpop.f32.mrb[0].mxu0
      %8485 = vmatprep.mubr.bf16.mxu0 0
      %8486 = vmatmul.mubr.bf16.gmra.mrb[0].mxu0 %v7129
      %v8487 = vpop.f32.mrb[0].mxu0
      %v8488 = vadd.f32 %v8212, %v8487
      %v8489 = vpop.f32.mrb[0].mxu0
      %v8490 = vpop.f32.mrb[0].mxu0
      %v8491 = vpop.f32.mrb[0].mxu0
      %8492 = vmatprep.mubr.bf16.mxu0 0
      %8493 = vmatmul.mubr.bf16.gmra.mrb[0].mxu0 %v7132
      %v8494 = vpop.f32.mrb[0].mxu0
      %v8495 = vadd.f32 %v8219, %v8494
      %v8496 = vpop.f32.mrb[0].mxu0
      %v8497 = vpop.f32.mrb[0].mxu0
      %v8498 = vadd.f32 %v8222, %v8497
      %v8499 = vpop.f32.mrb[0].mxu0
      %8500 = vmatprep.mubr.bf16.mxu0 0
      %8501 = vmatmul.mubr.bf16.gmra.mrb[0].mxu0 %v7135
      %v8502 = vpop.f32.mrb[0].mxu0
      %v8503 = vadd.f32 %v8227, %v8502
      %v8504 = vpop.f32.mrb[0].mxu0
      %v8505 = vpop.f32.mrb[0].mxu0
      %v8506 = vpop.f32.mrb[0].mxu0
      %8507 = vmatprep.mubr.bf16.mxu0 0
      %8508 = vmatmul.mubr.bf16.gmra.mrb[0].mxu0 %v7138
      %v8509 = vpop.f32.mrb[0].mxu0
      %v8510 = vadd.f32 %v8234, %v8509
      %v8511 = vpop.f32.mrb[0].mxu0
      %v8512 = vpop.f32.mrb[0].mxu0
      %v8513 = vadd.f32 %v8237, %v8512
      %v8514 = vpop.f32.mrb[0].mxu0
      %8515 = vmatprep.mubr.bf16.mxu0 0
      %8516 = vmatmul.mubr.bf16.gmra.mrb[0].mxu0 %v7141
      %v8517 = vpop.f32.mrb[0].mxu0
      %v8518 = vadd.f32 %v8242, %v8517
      %v8519 = vpop.f32.mrb[0].mxu0
      %v8520 = vpop.f32.mrb[0].mxu0
      %v8521 = vpop.f32.mrb[0].mxu0
      %8522 = vmatprep.mubr.bf16.mxu0 0
      %8523 = vmatmul.mubr.bf16.gmra.mrb[0].mxu0 %v7144
      %v8524 = vpop.f32.mrb[0].mxu0
      %v8525 = vadd.f32 %v8249, %v8524
      %v8526 = vpop.f32.mrb[0].mxu0
      %v8527 = vpop.f32.mrb[0].mxu0
      %v8528 = vadd.f32 %v8252, %v8527
      %v8529 = vpop.f32.mrb[0].mxu0
      %8530 = vmatprep.mubr.bf16.mxu0 0
      %8531 = vmatmul.mubr.bf16.gmra.mrb[0].mxu0 %v7147
      %v8532 = vpop.f32.mrb[0].mxu0
      %v8533 = vadd.f32 %v8257, %v8532
      %v8534 = vpop.f32.mrb[0].mxu0
      %v8535 = vpop.f32.mrb[0].mxu0
      %v8536 = vpop.f32.mrb[0].mxu0
      %8537 = vdwg.mxu0
      %s8538 = scalar_lea.vmem %s3, 14
      %v8539 = vld [vmem:[%s8538] sm:$0x3]
      %v8541 = vsel %vm7155, %v8539, 0
      %8543 = vmatprep.subr.bf16.mxu0 0
      %8544 = vmatpush1.bf16.msra.mxu0 %v8541
      %8545 = vmatprep.subr.bf16.mxu0 0
      %8546 = vmatpush1.bf16.msra.mxu0 0
      %8547 = vmatprep.subr.bf16.mxu0 0
      %8548 = vmatpush1.bf16.msra.mxu0 0
      %8549 = vmatprep.subr.bf16.mxu0 0
      %8550 = vmatpush1.bf16.msra.mxu0 0
      %8551 = vmatprep.subr.bf16.mxu0 0
      %8552 = vmatpush1.bf16.msra.mxu0 0
      %8553 = vmatprep.subr.bf16.mxu0 0
      %8554 = vmatpush1.bf16.msra.mxu0 0
      %8555 = vmatprep.subr.bf16.mxu0 0
      %8556 = vmatpush1.bf16.msra.mxu0 0
      %8557 = vmatprep.subr.bf16.mxu0 0
      %8558 = vmatpush1.bf16.msra.mxu0 0
      %8559 = vmatprep.subr.bf16.mxu0 0
      %8560 = vmatpush1.bf16.msra.mxu0 0
      %8561 = vmatprep.subr.bf16.mxu0 0
      %8562 = vmatpush1.bf16.msra.mxu0 0
      %8563 = vmatprep.subr.bf16.mxu0 0
      %8564 = vmatpush1.bf16.msra.mxu0 0
      %8565 = vmatprep.subr.bf16.mxu0 0
      %8566 = vmatpush1.bf16.msra.mxu0 0
      %8567 = vmatprep.subr.bf16.mxu0 0
      %8568 = vmatpush1.bf16.msra.mxu0 0
      %8569 = vmatprep.subr.bf16.mxu0 0
      %8570 = vmatpush1.bf16.msra.mxu0 0
      %8571 = vmatprep.subr.bf16.mxu0 0
      %8572 = vmatpush1.bf16.msra.mxu0 0
      %8573 = vmatprep.subr.bf16.mxu0 0
      %8574 = vmatpush1.bf16.msra.mxu0 0
      %8575 = vmatprep.mubr.bf16.mxu0 0
      %8576 = vmatmul.mubr.bf16.gmra.mrb[0].mxu0 %v7066
      %v8577 = vpop.f32.mrb[0].mxu0
      %v8578 = vadd.f32 0.0, %v8577
      %v8579 = vpop.f32.mrb[0].mxu0
      %v8580 = vpop.f32.mrb[0].mxu0
      %v8581 = vadd.f32 0.0, %v8580
      %v8582 = vpop.f32.mrb[0].mxu0
      %8583 = vmatprep.mubr.bf16.mxu0 0
      %8584 = vmatmul.mubr.bf16.gmra.mrb[0].mxu0 %v7069
      %v8585 = vpop.f32.mrb[0].mxu0
      %v8586 = vadd.f32 0.0, %v8585
      %v8587 = vpop.f32.mrb[0].mxu0
      %v8588 = vpop.f32.mrb[0].mxu0
      %v8589 = vpop.f32.mrb[0].mxu0
      %8590 = vmatprep.mubr.bf16.mxu0 0
      %8591 = vmatmul.mubr.bf16.gmra.mrb[0].mxu0 %v7072
      %v8592 = vpop.f32.mrb[0].mxu0
      %v8593 = vadd.f32 0.0, %v8592
      %v8594 = vpop.f32.mrb[0].mxu0
      %v8595 = vpop.f32.mrb[0].mxu0
      %v8596 = vadd.f32 0.0, %v8595
      %v8597 = vpop.f32.mrb[0].mxu0
      %8598 = vmatprep.mubr.bf16.mxu0 0
      %8599 = vmatmul.mubr.bf16.gmra.mrb[0].mxu0 %v7075
      %v8600 = vpop.f32.mrb[0].mxu0
      %v8601 = vadd.f32 0.0, %v8600
      %v8602 = vpop.f32.mrb[0].mxu0
      %v8603 = vpop.f32.mrb[0].mxu0
      %v8604 = vpop.f32.mrb[0].mxu0
      %8605 = vmatprep.mubr.bf16.mxu0 0
      %8606 = vmatmul.mubr.bf16.gmra.mrb[0].mxu0 %v7078
      %v8607 = vpop.f32.mrb[0].mxu0
      %v8608 = vadd.f32 0.0, %v8607
      %v8609 = vpop.f32.mrb[0].mxu0
      %v8610 = vpop.f32.mrb[0].mxu0
      %v8611 = vadd.f32 0.0, %v8610
      %v8612 = vpop.f32.mrb[0].mxu0
      %8613 = vmatprep.mubr.bf16.mxu0 0
      %8614 = vmatmul.mubr.bf16.gmra.mrb[0].mxu0 %v7081
      %v8615 = vpop.f32.mrb[0].mxu0
      %v8616 = vadd.f32 0.0, %v8615
      %v8617 = vpop.f32.mrb[0].mxu0
      %v8618 = vpop.f32.mrb[0].mxu0
      %v8619 = vpop.f32.mrb[0].mxu0
      %8620 = vmatprep.mubr.bf16.mxu0 0
      %8621 = vmatmul.mubr.bf16.gmra.mrb[0].mxu0 %v7084
      %v8622 = vpop.f32.mrb[0].mxu0
      %v8623 = vadd.f32 0.0, %v8622
      %v8624 = vpop.f32.mrb[0].mxu0
      %v8625 = vpop.f32.mrb[0].mxu0
      %v8626 = vadd.f32 0.0, %v8625
      %v8627 = vpop.f32.mrb[0].mxu0
      %8628 = vmatprep.mubr.bf16.mxu0 0
      %8629 = vmatmul.mubr.bf16.gmra.mrb[0].mxu0 %v7087
      %v8630 = vpop.f32.mrb[0].mxu0
      %v8631 = vadd.f32 0.0, %v8630
      %v8632 = vpop.f32.mrb[0].mxu0
      %v8633 = vpop.f32.mrb[0].mxu0
      %v8634 = vpop.f32.mrb[0].mxu0
      %8635 = vmatprep.mubr.bf16.mxu0 0
      %8636 = vmatmul.mubr.bf16.gmra.mrb[0].mxu0 %v7090
      %v8637 = vpop.f32.mrb[0].mxu0
      %v8638 = vadd.f32 0.0, %v8637
      %v8639 = vpop.f32.mrb[0].mxu0
      %v8640 = vpop.f32.mrb[0].mxu0
      %v8641 = vadd.f32 0.0, %v8640
      %v8642 = vpop.f32.mrb[0].mxu0
      %8643 = vmatprep.mubr.bf16.mxu0 0
      %8644 = vmatmul.mubr.bf16.gmra.mrb[0].mxu0 %v7093
      %v8645 = vpop.f32.mrb[0].mxu0
      %v8646 = vadd.f32 0.0, %v8645
      %v8647 = vpop.f32.mrb[0].mxu0
      %v8648 = vpop.f32.mrb[0].mxu0
      %v8649 = vpop.f32.mrb[0].mxu0
      %8650 = vmatprep.mubr.bf16.mxu0 0
      %8651 = vmatmul.mubr.bf16.gmra.mrb[0].mxu0 %v7096
      %v8652 = vpop.f32.mrb[0].mxu0
      %v8653 = vadd.f32 0.0, %v8652
      %v8654 = vpop.f32.mrb[0].mxu0
      %v8655 = vpop.f32.mrb[0].mxu0
      %v8656 = vadd.f32 0.0, %v8655
      %v8657 = vpop.f32.mrb[0].mxu0
      %8658 = vmatprep.mubr.bf16.mxu0 0
      %8659 = vmatmul.mubr.bf16.gmra.mrb[0].mxu0 %v7099
      %v8660 = vpop.f32.mrb[0].mxu0
      %v8661 = vadd.f32 0.0, %v8660
      %v8662 = vpop.f32.mrb[0].mxu0
      %v8663 = vpop.f32.mrb[0].mxu0
      %v8664 = vpop.f32.mrb[0].mxu0
      %8665 = vmatprep.mubr.bf16.mxu0 0
      %8666 = vmatmul.mubr.bf16.gmra.mrb[0].mxu0 %v7102
      %v8667 = vpop.f32.mrb[0].mxu0
      %v8668 = vadd.f32 0.0, %v8667
      %v8669 = vpop.f32.mrb[0].mxu0
      %v8670 = vpop.f32.mrb[0].mxu0
      %v8671 = vadd.f32 0.0, %v8670
      %v8672 = vpop.f32.mrb[0].mxu0
      %8673 = vmatprep.mubr.bf16.mxu0 0
      %8674 = vmatmul.mubr.bf16.gmra.mrb[0].mxu0 %v7105
      %v8675 = vpop.f32.mrb[0].mxu0
      %v8676 = vadd.f32 0.0, %v8675
      %v8677 = vpop.f32.mrb[0].mxu0
      %v8678 = vpop.f32.mrb[0].mxu0
      %v8679 = vpop.f32.mrb[0].mxu0
      %8680 = vmatprep.mubr.bf16.mxu0 0
      %8681 = vmatmul.mubr.bf16.gmra.mrb[0].mxu0 %v7108
      %v8682 = vpop.f32.mrb[0].mxu0
      %v8683 = vadd.f32 0.0, %v8682
      %v8684 = vpop.f32.mrb[0].mxu0
      %v8685 = vpop.f32.mrb[0].mxu0
      %v8686 = vadd.f32 0.0, %v8685
      %v8687 = vpop.f32.mrb[0].mxu0
      %8688 = vmatprep.mubr.bf16.mxu0 0
      %8689 = vmatmul.mubr.bf16.gmra.mrb[0].mxu0 %v7111
      %v8690 = vpop.f32.mrb[0].mxu0
      %v8691 = vadd.f32 0.0, %v8690
      %v8692 = vpop.f32.mrb[0].mxu0
      %v8693 = vpop.f32.mrb[0].mxu0
      %v8694 = vpop.f32.mrb[0].mxu0
      %8695 = vmatprep.mubr.bf16.mxu0 0
      %8696 = vmatmul.mubr.bf16.gmra.mrb[0].mxu0 %v7114
      %v8697 = vpop.f32.mrb[0].mxu0
      %v8698 = vadd.f32 0.0, %v8697
      %v8699 = vpop.f32.mrb[0].mxu0
      %v8700 = vpop.f32.mrb[0].mxu0
      %v8701 = vadd.f32 0.0, %v8700
      %v8702 = vpop.f32.mrb[0].mxu0
      %8703 = vmatprep.mubr.bf16.mxu0 0
      %8704 = vmatmul.mubr.bf16.gmra.mrb[0].mxu0 %v7117
      %v8705 = vpop.f32.mrb[0].mxu0
      %v8706 = vadd.f32 0.0, %v8705
      %v8707 = vpop.f32.mrb[0].mxu0
      %v8708 = vpop.f32.mrb[0].mxu0
      %v8709 = vpop.f32.mrb[0].mxu0
      %8710 = vmatprep.mubr.bf16.mxu0 0
      %8711 = vmatmul.mubr.bf16.gmra.mrb[0].mxu0 %v7120
      %v8712 = vpop.f32.mrb[0].mxu0
      %v8713 = vadd.f32 0.0, %v8712
      %v8714 = vpop.f32.mrb[0].mxu0
      %v8715 = vpop.f32.mrb[0].mxu0
      %v8716 = vadd.f32 0.0, %v8715
      %v8717 = vpop.f32.mrb[0].mxu0
      %8718 = vmatprep.mubr.bf16.mxu0 0
      %8719 = vmatmul.mubr.bf16.gmra.mrb[0].mxu0 %v7123
      %v8720 = vpop.f32.mrb[0].mxu0
      %v8721 = vadd.f32 0.0, %v8720
      %v8722 = vpop.f32.mrb[0].mxu0
      %v8723 = vpop.f32.mrb[0].mxu0
      %v8724 = vpop.f32.mrb[0].mxu0
      %8725 = vmatprep.mubr.bf16.mxu0 0
      %8726 = vmatmul.mubr.bf16.gmra.mrb[0].mxu0 %v7126
      %v8727 = vpop.f32.mrb[0].mxu0
      %v8728 = vadd.f32 0.0, %v8727
      %v8729 = vpop.f32.mrb[0].mxu0
      %v8730 = vpop.f32.mrb[0].mxu0
      %v8731 = vadd.f32 0.0, %v8730
      %v8732 = vpop.f32.mrb[0].mxu0
      %8733 = vmatprep.mubr.bf16.mxu0 0
      %8734 = vmatmul.mubr.bf16.gmra.mrb[0].mxu0 %v7129
      %v8735 = vpop.f32.mrb[0].mxu0
      %v8736 = vadd.f32 0.0, %v8735
      %v8737 = vpop.f32.mrb[0].mxu0
      %v8738 = vpop.f32.mrb[0].mxu0
      %v8739 = vpop.f32.mrb[0].mxu0
      %8740 = vmatprep.mubr.bf16.mxu0 0
      %8741 = vmatmul.mubr.bf16.gmra.mrb[0].mxu0 %v7132
      %v8742 = vpop.f32.mrb[0].mxu0
      %v8743 = vadd.f32 0.0, %v8742
      %v8744 = vpop.f32.mrb[0].mxu0
      %v8745 = vpop.f32.mrb[0].mxu0
      %v8746 = vadd.f32 0.0, %v8745
      %v8747 = vpop.f32.mrb[0].mxu0
      %8748 = vmatprep.mubr.bf16.mxu0 0
      %8749 = vmatmul.mubr.bf16.gmra.mrb[0].mxu0 %v7135
      %v8750 = vpop.f32.mrb[0].mxu0
      %v8751 = vadd.f32 0.0, %v8750
      %v8752 = vpop.f32.mrb[0].mxu0
      %v8753 = vpop.f32.mrb[0].mxu0
      %v8754 = vpop.f32.mrb[0].mxu0
      %8755 = vmatprep.mubr.bf16.mxu0 0
      %8756 = vmatmul.mubr.bf16.gmra.mrb[0].mxu0 %v7138
      %v8757 = vpop.f32.mrb[0].mxu0
      %v8758 = vadd.f32 0.0, %v8757
      %v8759 = vpop.f32.mrb[0].mxu0
      %v8760 = vpop.f32.mrb[0].mxu0
      %v8761 = vadd.f32 0.0, %v8760
      %v8762 = vpop.f32.mrb[0].mxu0
      %8763 = vmatprep.mubr.bf16.mxu0 0
      %8764 = vmatmul.mubr.bf16.gmra.mrb[0].mxu0 %v7141
      %v8765 = vpop.f32.mrb[0].mxu0
      %v8766 = vadd.f32 0.0, %v8765
      %v8767 = vpop.f32.mrb[0].mxu0
      %v8768 = vpop.f32.mrb[0].mxu0
      %v8769 = vpop.f32.mrb[0].mxu0
      %8770 = vmatprep.mubr.bf16.mxu0 0
      %8771 = vmatmul.mubr.bf16.gmra.mrb[0].mxu0 %v7144
      %v8772 = vpop.f32.mrb[0].mxu0
      %v8773 = vadd.f32 0.0, %v8772
      %v8774 = vpop.f32.mrb[0].mxu0
      %v8775 = vpop.f32.mrb[0].mxu0
      %v8776 = vadd.f32 0.0, %v8775
      %v8777 = vpop.f32.mrb[0].mxu0
      %8778 = vmatprep.mubr.bf16.mxu0 0
      %8779 = vmatmul.mubr.bf16.gmra.mrb[0].mxu0 %v7147
      %v8780 = vpop.f32.mrb[0].mxu0
      %v8781 = vadd.f32 0.0, %v8780
      %v8782 = vpop.f32.mrb[0].mxu0
      %v8783 = vpop.f32.mrb[0].mxu0
      %v8784 = vpop.f32.mrb[0].mxu0
      %8785 = vmatprep.mubr.bf16.mxu0 0
      %8786 = vmatmul.mubr.bf16.gmra.mrb[0].mxu0 %v7150
      %v8787 = vpop.f32.mrb[0].mxu0
      %v8788 = vadd.f32 0.0, %v8787
      %v8789 = vpop.f32.mrb[0].mxu0
      %v8790 = vpop.f32.mrb[0].mxu0
      %v8791 = vadd.f32 0.0, %v8790
      %v8792 = vpop.f32.mrb[0].mxu0
      %8793 = vmatprep.mubr.bf16.mxu0 0
      %8794 = vmatmul.mubr.bf16.gmra.mrb[0].mxu0 %v7153
      %v8795 = vpop.f32.mrb[0].mxu0
      %v8796 = vadd.f32 0.0, %v8795
      %v8797 = vpop.f32.mrb[0].mxu0
      %v8798 = vpop.f32.mrb[0].mxu0
      %v8799 = vpop.f32.mrb[0].mxu0
      %8800 = vmatprep.mubr.bf16.mxu0 0
      %8801 = vmatmul.mubr.bf16.gmra.mrb[0].mxu0 %v7685
      %v8802 = vpop.f32.mrb[0].mxu0
      %v8803 = vadd.f32 0.0, %v8802
      %v8804 = vpop.f32.mrb[0].mxu0
      %v8805 = vpop.f32.mrb[0].mxu0
      %v8806 = vadd.f32 0.0, %v8805
      %v8807 = vpop.f32.mrb[0].mxu0
      %8808 = vmatprep.mubr.bf16.mxu0 0
      %8809 = vmatmul.mubr.bf16.gmra.mrb[0].mxu0 %v7688
      %v8810 = vpop.f32.mrb[0].mxu0
      %v8811 = vadd.f32 0.0, %v8810
      %v8812 = vpop.f32.mrb[0].mxu0
      %v8813 = vpop.f32.mrb[0].mxu0
      %v8814 = vpop.f32.mrb[0].mxu0
      %8815 = vdwg.mxu0
      %v8816 = vadd.f32 %v8300, %v8578
      %v8817 = vadd.f32 %v8303, %v8581
      %v8818 = vadd.f32 %v8308, %v8586
      %v8819 = vadd.f32 %v8315, %v8593
      %v8820 = vadd.f32 %v8318, %v8596
      %v8821 = vadd.f32 %v8323, %v8601
      %v8822 = vadd.f32 %v8330, %v8608
      %v8823 = vadd.f32 %v8333, %v8611
      %v8824 = vadd.f32 %v8338, %v8616
      %v8825 = vadd.f32 %v8345, %v8623
      %v8826 = vadd.f32 %v8348, %v8626
      %v8827 = vadd.f32 %v8353, %v8631
      %v8828 = vadd.f32 %v8360, %v8638
      %v8829 = vadd.f32 %v8363, %v8641
      %v8830 = vadd.f32 %v8368, %v8646
      %v8831 = vadd.f32 %v8375, %v8653
      %v8832 = vadd.f32 %v8378, %v8656
      %v8833 = vadd.f32 %v8383, %v8661
      %v8834 = vadd.f32 %v8390, %v8668
      %v8835 = vadd.f32 %v8393, %v8671
      %v8836 = vadd.f32 %v8398, %v8676
      %v8837 = vadd.f32 %v8405, %v8683
      %v8838 = vadd.f32 %v8408, %v8686
      %v8839 = vadd.f32 %v8413, %v8691
      %v8840 = vadd.f32 %v8420, %v8698
      %v8841 = vadd.f32 %v8423, %v8701
      %v8842 = vadd.f32 %v8428, %v8706
      %v8843 = vadd.f32 %v8435, %v8713
      %v8844 = vadd.f32 %v8438, %v8716
      %v8845 = vadd.f32 %v8443, %v8721
      %v8846 = vadd.f32 %v8450, %v8728
      %v8847 = vadd.f32 %v8453, %v8731
      %v8848 = vadd.f32 %v8458, %v8736
      %v8849 = vadd.f32 %v8465, %v8743
      %v8850 = vadd.f32 %v8468, %v8746
      %v8851 = vadd.f32 %v8473, %v8751
      %v8852 = vadd.f32 %v8480, %v8758
      %v8853 = vadd.f32 %v8483, %v8761
      %v8854 = vadd.f32 %v8488, %v8766
      %v8855 = vadd.f32 %v8495, %v8773
      %v8856 = vadd.f32 %v8498, %v8776
      %v8857 = vadd.f32 %v8503, %v8781
      %v8858 = vadd.f32 %v8510, %v8788
      %v8859 = vadd.f32 %v8513, %v8791
      %v8860 = vadd.f32 %v8518, %v8796
      %v8861 = vadd.f32 %v8525, %v8803
      %v8862 = vadd.f32 %v8528, %v8806
      %v8863 = vadd.f32 %v8533, %v8811
      %v8912 = vrot.slane %v8816, 1
      %v8913 = vrot.slane %v8817, 1
      %v8914 = vsel %vm4270, %v8912, %v8913
      %v8915 = vrot.slane %v8818, 1
      %v8916 = vsel %vm4270, %v8913, %v8915
      %v8917 = vrot.slane %v8819, 1
      %v8918 = vrot.slane %v8820, 1
      %v8919 = vsel %vm4270, %v8917, %v8918
      %v8920 = vrot.slane %v8821, 1
      %v8921 = vsel %vm4270, %v8918, %v8920
      %v8922 = vrot.slane %v8822, 1
      %v8923 = vrot.slane %v8823, 1
      %v8924 = vsel %vm4270, %v8922, %v8923
      %v8925 = vrot.slane %v8824, 1
      %v8926 = vsel %vm4270, %v8923, %v8925
      %v8927 = vrot.slane %v8825, 1
      %v8928 = vrot.slane %v8826, 1
      %v8929 = vsel %vm4270, %v8927, %v8928
      %v8930 = vrot.slane %v8827, 1
      %v8931 = vsel %vm4270, %v8928, %v8930
      %v8932 = vrot.slane %v8828, 1
      %v8933 = vrot.slane %v8829, 1
      %v8934 = vsel %vm4270, %v8932, %v8933
      %v8935 = vrot.slane %v8830, 1
      %v8936 = vsel %vm4270, %v8933, %v8935
      %v8937 = vrot.slane %v8831, 1
      %v8938 = vrot.slane %v8832, 1
      %v8939 = vsel %vm4270, %v8937, %v8938
      %v8940 = vrot.slane %v8833, 1
      %v8941 = vsel %vm4270, %v8938, %v8940
      %v8942 = vrot.slane %v8834, 1
      %v8943 = vrot.slane %v8835, 1
      %v8944 = vsel %vm4270, %v8942, %v8943
      %v8945 = vrot.slane %v8836, 1
      %v8946 = vsel %vm4270, %v8943, %v8945
      %v8947 = vrot.slane %v8837, 1
      %v8948 = vrot.slane %v8838, 1
      %v8949 = vsel %vm4270, %v8947, %v8948
      %v8950 = vrot.slane %v8839, 1
      %v8951 = vsel %vm4270, %v8948, %v8950
      %v8952 = vrot.slane %v8840, 1
      %v8953 = vrot.slane %v8841, 1
      %v8954 = vsel %vm4270, %v8952, %v8953
      %v8955 = vrot.slane %v8842, 1
      %v8956 = vsel %vm4270, %v8953, %v8955
      %v8957 = vrot.slane %v8843, 1
      %v8958 = vrot.slane %v8844, 1
      %v8959 = vsel %vm4270, %v8957, %v8958
      %v8960 = vrot.slane %v8845, 1
      %v8961 = vsel %vm4270, %v8958, %v8960
      %v8962 = vrot.slane %v8846, 1
      %v8963 = vrot.slane %v8847, 1
      %v8964 = vsel %vm4270, %v8962, %v8963
      %v8965 = vrot.slane %v8848, 1
      %v8966 = vsel %vm4270, %v8963, %v8965
      %v8967 = vrot.slane %v8849, 1
      %v8968 = vrot.slane %v8850, 1
      %v8969 = vsel %vm4270, %v8967, %v8968
      %v8970 = vrot.slane %v8851, 1
      %v8971 = vsel %vm4270, %v8968, %v8970
      %v8972 = vrot.slane %v8852, 1
      %v8973 = vrot.slane %v8853, 1
      %v8974 = vsel %vm4270, %v8972, %v8973
      %v8975 = vrot.slane %v8854, 1
      %v8976 = vsel %vm4270, %v8973, %v8975
      %v8977 = vrot.slane %v8855, 1
      %v8978 = vrot.slane %v8856, 1
      %v8979 = vsel %vm4270, %v8977, %v8978
      %v8980 = vrot.slane %v8857, 1
      %v8981 = vsel %vm4270, %v8978, %v8980
      %v8982 = vrot.slane %v8858, 1
      %v8983 = vrot.slane %v8859, 1
      %v8984 = vsel %vm4270, %v8982, %v8983
      %v8985 = vrot.slane %v8860, 1
      %v8986 = vsel %vm4270, %v8983, %v8985
      %v8987 = vrot.slane %v8861, 1
      %v8988 = vrot.slane %v8862, 1
      %v8989 = vsel %vm4270, %v8987, %v8988
      %v8990 = vrot.slane %v8863, 1
      %v8991 = vsel %vm4270, %v8988, %v8990
      %v9024 = vadd.f32 %v7950, %v8914
      %v9025 = vadd.f32 %v7951, %v8916
      %v9026 = vadd.f32 %v7952, %v8919
      %v9027 = vadd.f32 %v7953, %v8921
      %v9028 = vadd.f32 %v7954, %v8924
      %v9029 = vadd.f32 %v7955, %v8926
      %v9030 = vadd.f32 %v7956, %v8929
      %v9031 = vadd.f32 %v7957, %v8931
      %v9032 = vadd.f32 %v7958, %v8934
      %v9033 = vadd.f32 %v7959, %v8936
      %v9034 = vadd.f32 %v7960, %v8939
      %v9035 = vadd.f32 %v7961, %v8941
      %v9036 = vadd.f32 %v7962, %v8944
      %v9037 = vadd.f32 %v7963, %v8946
      %v9038 = vadd.f32 %v7964, %v8949
      %v9039 = vadd.f32 %v7965, %v8951
      %v9040 = vadd.f32 %v7966, %v8954
      %v9041 = vadd.f32 %v7967, %v8956
      %v9042 = vadd.f32 %v7968, %v8959
      %v9043 = vadd.f32 %v7969, %v8961
      %v9044 = vadd.f32 %v7970, %v8964
      %v9045 = vadd.f32 %v7971, %v8966
      %v9046 = vadd.f32 %v7972, %v8969
      %v9047 = vadd.f32 %v7973, %v8971
      %v9048 = vadd.f32 %v7974, %v8974
      %v9049 = vadd.f32 %v7975, %v8976
      %v9050 = vadd.f32 %v7976, %v8979
      %v9051 = vadd.f32 %v7977, %v8981
      %v9052 = vadd.f32 %v7978, %v8984
      %v9053 = vadd.f32 %v7979, %v8986
      %v9054 = vadd.f32 %v7980, %v8989
      %v9055 = vadd.f32 %v7981, %v8991
      %s9056 = scalar_lea.vmem %s3, 4
      %v9057 = vld [vmem:[%s9056] sm:$0x3]
      %s9058 = scalar_lea.vmem %s3, 10
      %v9059 = vld [vmem:[%s9058] sm:$0x3]
      %v9061 = vsel %vm7155, %v9059, 0
      %9063 = vmatprep.subr.bf16.mxu0 0
      %9064 = vmatpush1.bf16.msra.mxu0 %v9061
      %9065 = vmatprep.subr.bf16.mxu0 0
      %9066 = vmatpush1.bf16.msra.mxu0 0
      %9067 = vmatprep.subr.bf16.mxu0 0
      %9068 = vmatpush1.bf16.msra.mxu0 0
      %9069 = vmatprep.subr.bf16.mxu0 0
      %9070 = vmatpush1.bf16.msra.mxu0 0
      %9071 = vmatprep.subr.bf16.mxu0 0
      %9072 = vmatpush1.bf16.msra.mxu0 0
      %9073 = vmatprep.subr.bf16.mxu0 0
      %9074 = vmatpush1.bf16.msra.mxu0 0
      %9075 = vmatprep.subr.bf16.mxu0 0
      %9076 = vmatpush1.bf16.msra.mxu0 0
      %9077 = vmatprep.subr.bf16.mxu0 0
      %9078 = vmatpush1.bf16.msra.mxu0 0
      %9079 = vmatprep.subr.bf16.mxu0 0
      %9080 = vmatpush1.bf16.msra.mxu0 0
      %9081 = vmatprep.subr.bf16.mxu0 0
      %9082 = vmatpush1.bf16.msra.mxu0 0
      %9083 = vmatprep.subr.bf16.mxu0 0
      %9084 = vmatpush1.bf16.msra.mxu0 0
      %9085 = vmatprep.subr.bf16.mxu0 0
      %9086 = vmatpush1.bf16.msra.mxu0 0
      %9087 = vmatprep.subr.bf16.mxu0 0
      %9088 = vmatpush1.bf16.msra.mxu0 0
      %9089 = vmatprep.subr.bf16.mxu0 0
      %9090 = vmatpush1.bf16.msra.mxu0 0
      %9091 = vmatprep.subr.bf16.mxu0 0
      %9092 = vmatpush1.bf16.msra.mxu0 0
      %9093 = vmatprep.subr.bf16.mxu0 0
      %9094 = vmatpush1.bf16.msra.mxu0 0
      %9095 = vmatprep.mubr.bf16.mxu0 0
      %9096 = vmatmul.mubr.bf16.gmra.mrb[0].mxu0 %v7060
      %v9097 = vpop.f32.mrb[0].mxu0
      %v9098 = vadd.f32 0.0, %v9097
      %v9099 = vpop.f32.mrb[0].mxu0
      %v9100 = vpop.f32.mrb[0].mxu0
      %v9101 = vadd.f32 0.0, %v9100
      %v9102 = vpop.f32.mrb[0].mxu0
      %9103 = vmatprep.mubr.bf16.mxu0 0
      %9104 = vmatmul.mubr.bf16.gmra.mrb[0].mxu0 %v7063
      %v9105 = vpop.f32.mrb[0].mxu0
      %v9106 = vadd.f32 0.0, %v9105
      %v9107 = vpop.f32.mrb[0].mxu0
      %v9108 = vpop.f32.mrb[0].mxu0
      %v9109 = vpop.f32.mrb[0].mxu0
      %9110 = vmatprep.mubr.bf16.mxu0 0
      %9111 = vmatmul.mubr.bf16.gmra.mrb[0].mxu0 %v7066
      %v9112 = vpop.f32.mrb[0].mxu0
      %v9113 = vadd.f32 0.0, %v9112
      %v9114 = vpop.f32.mrb[0].mxu0
      %v9115 = vpop.f32.mrb[0].mxu0
      %v9116 = vadd.f32 0.0, %v9115
      %v9117 = vpop.f32.mrb[0].mxu0
      %9118 = vmatprep.mubr.bf16.mxu0 0
      %9119 = vmatmul.mubr.bf16.gmra.mrb[0].mxu0 %v7069
      %v9120 = vpop.f32.mrb[0].mxu0
      %v9121 = vadd.f32 0.0, %v9120
      %v9122 = vpop.f32.mrb[0].mxu0
      %v9123 = vpop.f32.mrb[0].mxu0
      %v9124 = vpop.f32.mrb[0].mxu0
      %9125 = vmatprep.mubr.bf16.mxu0 0
      %9126 = vmatmul.mubr.bf16.gmra.mrb[0].mxu0 %v7072
      %v9127 = vpop.f32.mrb[0].mxu0
      %v9128 = vadd.f32 0.0, %v9127
      %v9129 = vpop.f32.mrb[0].mxu0
      %v9130 = vpop.f32.mrb[0].mxu0
      %v9131 = vadd.f32 0.0, %v9130
      %v9132 = vpop.f32.mrb[0].mxu0
      %9133 = vmatprep.mubr.bf16.mxu0 0
      %9134 = vmatmul.mubr.bf16.gmra.mrb[0].mxu0 %v7075
      %v9135 = vpop.f32.mrb[0].mxu0
      %v9136 = vadd.f32 0.0, %v9135
      %v9137 = vpop.f32.mrb[0].mxu0
      %v9138 = vpop.f32.mrb[0].mxu0
      %v9139 = vpop.f32.mrb[0].mxu0
      %9140 = vmatprep.mubr.bf16.mxu0 0
      %9141 = vmatmul.mubr.bf16.gmra.mrb[0].mxu0 %v7078
      %v9142 = vpop.f32.mrb[0].mxu0
      %v9143 = vadd.f32 0.0, %v9142
      %v9144 = vpop.f32.mrb[0].mxu0
      %v9145 = vpop.f32.mrb[0].mxu0
      %v9146 = vadd.f32 0.0, %v9145
      %v9147 = vpop.f32.mrb[0].mxu0
      %9148 = vmatprep.mubr.bf16.mxu0 0
      %9149 = vmatmul.mubr.bf16.gmra.mrb[0].mxu0 %v7081
      %v9150 = vpop.f32.mrb[0].mxu0
      %v9151 = vadd.f32 0.0, %v9150
      %v9152 = vpop.f32.mrb[0].mxu0
      %v9153 = vpop.f32.mrb[0].mxu0
      %v9154 = vpop.f32.mrb[0].mxu0
      %9155 = vmatprep.mubr.bf16.mxu0 0
      %9156 = vmatmul.mubr.bf16.gmra.mrb[0].mxu0 %v7084
      %v9157 = vpop.f32.mrb[0].mxu0
      %v9158 = vadd.f32 0.0, %v9157
      %v9159 = vpop.f32.mrb[0].mxu0
      %v9160 = vpop.f32.mrb[0].mxu0
      %v9161 = vadd.f32 0.0, %v9160
      %v9162 = vpop.f32.mrb[0].mxu0
      %9163 = vmatprep.mubr.bf16.mxu0 0
      %9164 = vmatmul.mubr.bf16.gmra.mrb[0].mxu0 %v7087
      %v9165 = vpop.f32.mrb[0].mxu0
      %v9166 = vadd.f32 0.0, %v9165
      %v9167 = vpop.f32.mrb[0].mxu0
      %v9168 = vpop.f32.mrb[0].mxu0
      %v9169 = vpop.f32.mrb[0].mxu0
      %9170 = vmatprep.mubr.bf16.mxu0 0
      %9171 = vmatmul.mubr.bf16.gmra.mrb[0].mxu0 %v7090
      %v9172 = vpop.f32.mrb[0].mxu0
      %v9173 = vadd.f32 0.0, %v9172
      %v9174 = vpop.f32.mrb[0].mxu0
      %v9175 = vpop.f32.mrb[0].mxu0
      %v9176 = vadd.f32 0.0, %v9175
      %v9177 = vpop.f32.mrb[0].mxu0
      %9178 = vmatprep.mubr.bf16.mxu0 0
      %9179 = vmatmul.mubr.bf16.gmra.mrb[0].mxu0 %v7093
      %v9180 = vpop.f32.mrb[0].mxu0
      %v9181 = vadd.f32 0.0, %v9180
      %v9182 = vpop.f32.mrb[0].mxu0
      %v9183 = vpop.f32.mrb[0].mxu0
      %v9184 = vpop.f32.mrb[0].mxu0
      %9185 = vmatprep.mubr.bf16.mxu0 0
      %9186 = vmatmul.mubr.bf16.gmra.mrb[0].mxu0 %v7096
      %v9187 = vpop.f32.mrb[0].mxu0
      %v9188 = vadd.f32 0.0, %v9187
      %v9189 = vpop.f32.mrb[0].mxu0
      %v9190 = vpop.f32.mrb[0].mxu0
      %v9191 = vadd.f32 0.0, %v9190
      %v9192 = vpop.f32.mrb[0].mxu0
      %9193 = vmatprep.mubr.bf16.mxu0 0
      %9194 = vmatmul.mubr.bf16.gmra.mrb[0].mxu0 %v7099
      %v9195 = vpop.f32.mrb[0].mxu0
      %v9196 = vadd.f32 0.0, %v9195
      %v9197 = vpop.f32.mrb[0].mxu0
      %v9198 = vpop.f32.mrb[0].mxu0
      %v9199 = vpop.f32.mrb[0].mxu0
      %9200 = vmatprep.mubr.bf16.mxu0 0
      %9201 = vmatmul.mubr.bf16.gmra.mrb[0].mxu0 %v7102
      %v9202 = vpop.f32.mrb[0].mxu0
      %v9203 = vadd.f32 0.0, %v9202
      %v9204 = vpop.f32.mrb[0].mxu0
      %v9205 = vpop.f32.mrb[0].mxu0
      %v9206 = vadd.f32 0.0, %v9205
      %v9207 = vpop.f32.mrb[0].mxu0
      %9208 = vmatprep.mubr.bf16.mxu0 0
      %9209 = vmatmul.mubr.bf16.gmra.mrb[0].mxu0 %v7105
      %v9210 = vpop.f32.mrb[0].mxu0
      %v9211 = vadd.f32 0.0, %v9210
      %v9212 = vpop.f32.mrb[0].mxu0
      %v9213 = vpop.f32.mrb[0].mxu0
      %v9214 = vpop.f32.mrb[0].mxu0
      %9215 = vmatprep.mubr.bf16.mxu0 0
      %9216 = vmatmul.mubr.bf16.gmra.mrb[0].mxu0 %v7108
      %v9217 = vpop.f32.mrb[0].mxu0
      %v9218 = vadd.f32 0.0, %v9217
      %v9219 = vpop.f32.mrb[0].mxu0
      %v9220 = vpop.f32.mrb[0].mxu0
      %v9221 = vadd.f32 0.0, %v9220
      %v9222 = vpop.f32.mrb[0].mxu0
      %9223 = vmatprep.mubr.bf16.mxu0 0
      %9224 = vmatmul.mubr.bf16.gmra.mrb[0].mxu0 %v7111
      %v9225 = vpop.f32.mrb[0].mxu0
      %v9226 = vadd.f32 0.0, %v9225
      %v9227 = vpop.f32.mrb[0].mxu0
      %v9228 = vpop.f32.mrb[0].mxu0
      %v9229 = vpop.f32.mrb[0].mxu0
      %9230 = vmatprep.mubr.bf16.mxu0 0
      %9231 = vmatmul.mubr.bf16.gmra.mrb[0].mxu0 %v7114
      %v9232 = vpop.f32.mrb[0].mxu0
      %v9233 = vadd.f32 0.0, %v9232
      %v9234 = vpop.f32.mrb[0].mxu0
      %v9235 = vpop.f32.mrb[0].mxu0
      %v9236 = vadd.f32 0.0, %v9235
      %v9237 = vpop.f32.mrb[0].mxu0
      %9238 = vmatprep.mubr.bf16.mxu0 0
      %9239 = vmatmul.mubr.bf16.gmra.mrb[0].mxu0 %v7117
      %v9240 = vpop.f32.mrb[0].mxu0
      %v9241 = vadd.f32 0.0, %v9240
      %v9242 = vpop.f32.mrb[0].mxu0
      %v9243 = vpop.f32.mrb[0].mxu0
      %v9244 = vpop.f32.mrb[0].mxu0
      %9245 = vmatprep.mubr.bf16.mxu0 0
      %9246 = vmatmul.mubr.bf16.gmra.mrb[0].mxu0 %v7120
      %v9247 = vpop.f32.mrb[0].mxu0
      %v9248 = vadd.f32 0.0, %v9247
      %v9249 = vpop.f32.mrb[0].mxu0
      %v9250 = vpop.f32.mrb[0].mxu0
      %v9251 = vadd.f32 0.0, %v9250
      %v9252 = vpop.f32.mrb[0].mxu0
      %9253 = vmatprep.mubr.bf16.mxu0 0
      %9254 = vmatmul.mubr.bf16.gmra.mrb[0].mxu0 %v7123
      %v9255 = vpop.f32.mrb[0].mxu0
      %v9256 = vadd.f32 0.0, %v9255
      %v9257 = vpop.f32.mrb[0].mxu0
      %v9258 = vpop.f32.mrb[0].mxu0
      %v9259 = vpop.f32.mrb[0].mxu0
      %9260 = vmatprep.mubr.bf16.mxu0 0
      %9261 = vmatmul.mubr.bf16.gmra.mrb[0].mxu0 %v7126
      %v9262 = vpop.f32.mrb[0].mxu0
      %v9263 = vadd.f32 0.0, %v9262
      %v9264 = vpop.f32.mrb[0].mxu0
      %v9265 = vpop.f32.mrb[0].mxu0
      %v9266 = vadd.f32 0.0, %v9265
      %v9267 = vpop.f32.mrb[0].mxu0
      %9268 = vmatprep.mubr.bf16.mxu0 0
      %9269 = vmatmul.mubr.bf16.gmra.mrb[0].mxu0 %v7129
      %v9270 = vpop.f32.mrb[0].mxu0
      %v9271 = vadd.f32 0.0, %v9270
      %v9272 = vpop.f32.mrb[0].mxu0
      %v9273 = vpop.f32.mrb[0].mxu0
      %v9274 = vpop.f32.mrb[0].mxu0
      %9275 = vmatprep.mubr.bf16.mxu0 0
      %9276 = vmatmul.mubr.bf16.gmra.mrb[0].mxu0 %v7132
      %v9277 = vpop.f32.mrb[0].mxu0
      %v9278 = vadd.f32 0.0, %v9277
      %v9279 = vpop.f32.mrb[0].mxu0
      %v9280 = vpop.f32.mrb[0].mxu0
      %v9281 = vadd.f32 0.0, %v9280
      %v9282 = vpop.f32.mrb[0].mxu0
      %9283 = vmatprep.mubr.bf16.mxu0 0
      %9284 = vmatmul.mubr.bf16.gmra.mrb[0].mxu0 %v7135
      %v9285 = vpop.f32.mrb[0].mxu0
      %v9286 = vadd.f32 0.0, %v9285
      %v9287 = vpop.f32.mrb[0].mxu0
      %v9288 = vpop.f32.mrb[0].mxu0
      %v9289 = vpop.f32.mrb[0].mxu0
      %9290 = vmatprep.mubr.bf16.mxu0 0
      %9291 = vmatmul.mubr.bf16.gmra.mrb[0].mxu0 %v7138
      %v9292 = vpop.f32.mrb[0].mxu0
      %v9293 = vadd.f32 0.0, %v9292
      %v9294 = vpop.f32.mrb[0].mxu0
      %v9295 = vpop.f32.mrb[0].mxu0
      %v9296 = vadd.f32 0.0, %v9295
      %v9297 = vpop.f32.mrb[0].mxu0
      %9298 = vmatprep.mubr.bf16.mxu0 0
      %9299 = vmatmul.mubr.bf16.gmra.mrb[0].mxu0 %v7141
      %v9300 = vpop.f32.mrb[0].mxu0
      %v9301 = vadd.f32 0.0, %v9300
      %v9302 = vpop.f32.mrb[0].mxu0
      %v9303 = vpop.f32.mrb[0].mxu0
      %v9304 = vpop.f32.mrb[0].mxu0
      %9305 = vmatprep.mubr.bf16.mxu0 0
      %9306 = vmatmul.mubr.bf16.gmra.mrb[0].mxu0 %v7144
      %v9307 = vpop.f32.mrb[0].mxu0
      %v9308 = vadd.f32 0.0, %v9307
      %v9309 = vpop.f32.mrb[0].mxu0
      %v9310 = vpop.f32.mrb[0].mxu0
      %v9311 = vadd.f32 0.0, %v9310
      %v9312 = vpop.f32.mrb[0].mxu0
      %9313 = vmatprep.mubr.bf16.mxu0 0
      %9314 = vmatmul.mubr.bf16.gmra.mrb[0].mxu0 %v7147
      %v9315 = vpop.f32.mrb[0].mxu0
      %v9316 = vadd.f32 0.0, %v9315
      %v9317 = vpop.f32.mrb[0].mxu0
      %v9318 = vpop.f32.mrb[0].mxu0
      %v9319 = vpop.f32.mrb[0].mxu0
      %9320 = vmatprep.mubr.bf16.mxu0 0
      %9321 = vmatmul.mubr.bf16.gmra.mrb[0].mxu0 %v7150
      %v9322 = vpop.f32.mrb[0].mxu0
      %v9323 = vadd.f32 0.0, %v9322
      %v9324 = vpop.f32.mrb[0].mxu0
      %v9325 = vpop.f32.mrb[0].mxu0
      %v9326 = vadd.f32 0.0, %v9325
      %v9327 = vpop.f32.mrb[0].mxu0
      %9328 = vmatprep.mubr.bf16.mxu0 0
      %9329 = vmatmul.mubr.bf16.gmra.mrb[0].mxu0 %v7153
      %v9330 = vpop.f32.mrb[0].mxu0
      %v9331 = vadd.f32 0.0, %v9330
      %v9332 = vpop.f32.mrb[0].mxu0
      %v9333 = vpop.f32.mrb[0].mxu0
      %v9334 = vpop.f32.mrb[0].mxu0
      %9335 = vdwg.mxu0
      %v9337 = vsel %vm7155, %v9057, 0
      %9339 = vmatprep.subr.bf16.mxu0 0
      %9340 = vmatpush1.bf16.msra.mxu0 %v9337
      %9341 = vmatprep.subr.bf16.mxu0 0
      %9342 = vmatpush1.bf16.msra.mxu0 0
      %9343 = vmatprep.subr.bf16.mxu0 0
      %9344 = vmatpush1.bf16.msra.mxu0 0
      %9345 = vmatprep.subr.bf16.mxu0 0
      %9346 = vmatpush1.bf16.msra.mxu0 0
      %9347 = vmatprep.subr.bf16.mxu0 0
      %9348 = vmatpush1.bf16.msra.mxu0 0
      %9349 = vmatprep.subr.bf16.mxu0 0
      %9350 = vmatpush1.bf16.msra.mxu0 0
      %9351 = vmatprep.subr.bf16.mxu0 0
      %9352 = vmatpush1.bf16.msra.mxu0 0
      %9353 = vmatprep.subr.bf16.mxu0 0
      %9354 = vmatpush1.bf16.msra.mxu0 0
      %9355 = vmatprep.subr.bf16.mxu0 0
      %9356 = vmatpush1.bf16.msra.mxu0 0
      %9357 = vmatprep.subr.bf16.mxu0 0
      %9358 = vmatpush1.bf16.msra.mxu0 0
      %9359 = vmatprep.subr.bf16.mxu0 0
      %9360 = vmatpush1.bf16.msra.mxu0 0
      %9361 = vmatprep.subr.bf16.mxu0 0
      %9362 = vmatpush1.bf16.msra.mxu0 0
      %9363 = vmatprep.subr.bf16.mxu0 0
      %9364 = vmatpush1.bf16.msra.mxu0 0
      %9365 = vmatprep.subr.bf16.mxu0 0
      %9366 = vmatpush1.bf16.msra.mxu0 0
      %9367 = vmatprep.subr.bf16.mxu0 0
      %9368 = vmatpush1.bf16.msra.mxu0 0
      %9369 = vmatprep.subr.bf16.mxu0 0
      %9370 = vmatpush1.bf16.msra.mxu0 0
      %9371 = vmatprep.mubr.bf16.mxu0 0
      %9372 = vmatmul.mubr.bf16.gmra.mrb[0].mxu0 %v7417
      %v9373 = vpop.f32.mrb[0].mxu0
      %v9374 = vadd.f32 %v9098, %v9373
      %v9375 = vpop.f32.mrb[0].mxu0
      %v9376 = vpop.f32.mrb[0].mxu0
      %v9377 = vadd.f32 %v9101, %v9376
      %v9378 = vpop.f32.mrb[0].mxu0
      %9379 = vmatprep.mubr.bf16.mxu0 0
      %9380 = vmatmul.mubr.bf16.gmra.mrb[0].mxu0 %v7420
      %v9381 = vpop.f32.mrb[0].mxu0
      %v9382 = vadd.f32 %v9106, %v9381
      %v9383 = vpop.f32.mrb[0].mxu0
      %v9384 = vpop.f32.mrb[0].mxu0
      %v9385 = vpop.f32.mrb[0].mxu0
      %9386 = vmatprep.mubr.bf16.mxu0 0
      %9387 = vmatmul.mubr.bf16.gmra.mrb[0].mxu0 %v7060
      %v9388 = vpop.f32.mrb[0].mxu0
      %v9389 = vadd.f32 %v9113, %v9388
      %v9390 = vpop.f32.mrb[0].mxu0
      %v9391 = vpop.f32.mrb[0].mxu0
      %v9392 = vadd.f32 %v9116, %v9391
      %v9393 = vpop.f32.mrb[0].mxu0
      %9394 = vmatprep.mubr.bf16.mxu0 0
      %9395 = vmatmul.mubr.bf16.gmra.mrb[0].mxu0 %v7063
      %v9396 = vpop.f32.mrb[0].mxu0
      %v9397 = vadd.f32 %v9121, %v9396
      %v9398 = vpop.f32.mrb[0].mxu0
      %v9399 = vpop.f32.mrb[0].mxu0
      %v9400 = vpop.f32.mrb[0].mxu0
      %9401 = vmatprep.mubr.bf16.mxu0 0
      %9402 = vmatmul.mubr.bf16.gmra.mrb[0].mxu0 %v7066
      %v9403 = vpop.f32.mrb[0].mxu0
      %v9404 = vadd.f32 %v9128, %v9403
      %v9405 = vpop.f32.mrb[0].mxu0
      %v9406 = vpop.f32.mrb[0].mxu0
      %v9407 = vadd.f32 %v9131, %v9406
      %v9408 = vpop.f32.mrb[0].mxu0
      %9409 = vmatprep.mubr.bf16.mxu0 0
      %9410 = vmatmul.mubr.bf16.gmra.mrb[0].mxu0 %v7069
      %v9411 = vpop.f32.mrb[0].mxu0
      %v9412 = vadd.f32 %v9136, %v9411
      %v9413 = vpop.f32.mrb[0].mxu0
      %v9414 = vpop.f32.mrb[0].mxu0
      %v9415 = vpop.f32.mrb[0].mxu0
      %9416 = vmatprep.mubr.bf16.mxu0 0
      %9417 = vmatmul.mubr.bf16.gmra.mrb[0].mxu0 %v7072
      %v9418 = vpop.f32.mrb[0].mxu0
      %v9419 = vadd.f32 %v9143, %v9418
      %v9420 = vpop.f32.mrb[0].mxu0
      %v9421 = vpop.f32.mrb[0].mxu0
      %v9422 = vadd.f32 %v9146, %v9421
      %v9423 = vpop.f32.mrb[0].mxu0
      %9424 = vmatprep.mubr.bf16.mxu0 0
      %9425 = vmatmul.mubr.bf16.gmra.mrb[0].mxu0 %v7075
      %v9426 = vpop.f32.mrb[0].mxu0
      %v9427 = vadd.f32 %v9151, %v9426
      %v9428 = vpop.f32.mrb[0].mxu0
      %v9429 = vpop.f32.mrb[0].mxu0
      %v9430 = vpop.f32.mrb[0].mxu0
      %9431 = vmatprep.mubr.bf16.mxu0 0
      %9432 = vmatmul.mubr.bf16.gmra.mrb[0].mxu0 %v7078
      %v9433 = vpop.f32.mrb[0].mxu0
      %v9434 = vadd.f32 %v9158, %v9433
      %v9435 = vpop.f32.mrb[0].mxu0
      %v9436 = vpop.f32.mrb[0].mxu0
      %v9437 = vadd.f32 %v9161, %v9436
      %v9438 = vpop.f32.mrb[0].mxu0
      %9439 = vmatprep.mubr.bf16.mxu0 0
      %9440 = vmatmul.mubr.bf16.gmra.mrb[0].mxu0 %v7081
      %v9441 = vpop.f32.mrb[0].mxu0
      %v9442 = vadd.f32 %v9166, %v9441
      %v9443 = vpop.f32.mrb[0].mxu0
      %v9444 = vpop.f32.mrb[0].mxu0
      %v9445 = vpop.f32.mrb[0].mxu0
      %9446 = vmatprep.mubr.bf16.mxu0 0
      %9447 = vmatmul.mubr.bf16.gmra.mrb[0].mxu0 %v7084
      %v9448 = vpop.f32.mrb[0].mxu0
      %v9449 = vadd.f32 %v9173, %v9448
      %v9450 = vpop.f32.mrb[0].mxu0
      %v9451 = vpop.f32.mrb[0].mxu0
      %v9452 = vadd.f32 %v9176, %v9451
      %v9453 = vpop.f32.mrb[0].mxu0
      %9454 = vmatprep.mubr.bf16.mxu0 0
      %9455 = vmatmul.mubr.bf16.gmra.mrb[0].mxu0 %v7087
      %v9456 = vpop.f32.mrb[0].mxu0
      %v9457 = vadd.f32 %v9181, %v9456
      %v9458 = vpop.f32.mrb[0].mxu0
      %v9459 = vpop.f32.mrb[0].mxu0
      %v9460 = vpop.f32.mrb[0].mxu0
      %9461 = vmatprep.mubr.bf16.mxu0 0
      %9462 = vmatmul.mubr.bf16.gmra.mrb[0].mxu0 %v7090
      %v9463 = vpop.f32.mrb[0].mxu0
      %v9464 = vadd.f32 %v9188, %v9463
      %v9465 = vpop.f32.mrb[0].mxu0
      %v9466 = vpop.f32.mrb[0].mxu0
      %v9467 = vadd.f32 %v9191, %v9466
      %v9468 = vpop.f32.mrb[0].mxu0
      %9469 = vmatprep.mubr.bf16.mxu0 0
      %9470 = vmatmul.mubr.bf16.gmra.mrb[0].mxu0 %v7093
      %v9471 = vpop.f32.mrb[0].mxu0
      %v9472 = vadd.f32 %v9196, %v9471
      %v9473 = vpop.f32.mrb[0].mxu0
      %v9474 = vpop.f32.mrb[0].mxu0
      %v9475 = vpop.f32.mrb[0].mxu0
      %9476 = vmatprep.mubr.bf16.mxu0 0
      %9477 = vmatmul.mubr.bf16.gmra.mrb[0].mxu0 %v7096
      %v9478 = vpop.f32.mrb[0].mxu0
      %v9479 = vadd.f32 %v9203, %v9478
      %v9480 = vpop.f32.mrb[0].mxu0
      %v9481 = vpop.f32.mrb[0].mxu0
      %v9482 = vadd.f32 %v9206, %v9481
      %v9483 = vpop.f32.mrb[0].mxu0
      %9484 = vmatprep.mubr.bf16.mxu0 0
      %9485 = vmatmul.mubr.bf16.gmra.mrb[0].mxu0 %v7099
      %v9486 = vpop.f32.mrb[0].mxu0
      %v9487 = vadd.f32 %v9211, %v9486
      %v9488 = vpop.f32.mrb[0].mxu0
      %v9489 = vpop.f32.mrb[0].mxu0
      %v9490 = vpop.f32.mrb[0].mxu0
      %9491 = vmatprep.mubr.bf16.mxu0 0
      %9492 = vmatmul.mubr.bf16.gmra.mrb[0].mxu0 %v7102
      %v9493 = vpop.f32.mrb[0].mxu0
      %v9494 = vadd.f32 %v9218, %v9493
      %v9495 = vpop.f32.mrb[0].mxu0
      %v9496 = vpop.f32.mrb[0].mxu0
      %v9497 = vadd.f32 %v9221, %v9496
      %v9498 = vpop.f32.mrb[0].mxu0
      %9499 = vmatprep.mubr.bf16.mxu0 0
      %9500 = vmatmul.mubr.bf16.gmra.mrb[0].mxu0 %v7105
      %v9501 = vpop.f32.mrb[0].mxu0
      %v9502 = vadd.f32 %v9226, %v9501
      %v9503 = vpop.f32.mrb[0].mxu0
      %v9504 = vpop.f32.mrb[0].mxu0
      %v9505 = vpop.f32.mrb[0].mxu0
      %9506 = vmatprep.mubr.bf16.mxu0 0
      %9507 = vmatmul.mubr.bf16.gmra.mrb[0].mxu0 %v7108
      %v9508 = vpop.f32.mrb[0].mxu0
      %v9509 = vadd.f32 %v9233, %v9508
      %v9510 = vpop.f32.mrb[0].mxu0
      %v9511 = vpop.f32.mrb[0].mxu0
      %v9512 = vadd.f32 %v9236, %v9511
      %v9513 = vpop.f32.mrb[0].mxu0
      %9514 = vmatprep.mubr.bf16.mxu0 0
      %9515 = vmatmul.mubr.bf16.gmra.mrb[0].mxu0 %v7111
      %v9516 = vpop.f32.mrb[0].mxu0
      %v9517 = vadd.f32 %v9241, %v9516
      %v9518 = vpop.f32.mrb[0].mxu0
      %v9519 = vpop.f32.mrb[0].mxu0
      %v9520 = vpop.f32.mrb[0].mxu0
      %9521 = vmatprep.mubr.bf16.mxu0 0
      %9522 = vmatmul.mubr.bf16.gmra.mrb[0].mxu0 %v7114
      %v9523 = vpop.f32.mrb[0].mxu0
      %v9524 = vadd.f32 %v9248, %v9523
      %v9525 = vpop.f32.mrb[0].mxu0
      %v9526 = vpop.f32.mrb[0].mxu0
      %v9527 = vadd.f32 %v9251, %v9526
      %v9528 = vpop.f32.mrb[0].mxu0
      %9529 = vmatprep.mubr.bf16.mxu0 0
      %9530 = vmatmul.mubr.bf16.gmra.mrb[0].mxu0 %v7117
      %v9531 = vpop.f32.mrb[0].mxu0
      %v9532 = vadd.f32 %v9256, %v9531
      %v9533 = vpop.f32.mrb[0].mxu0
      %v9534 = vpop.f32.mrb[0].mxu0
      %v9535 = vpop.f32.mrb[0].mxu0
      %9536 = vmatprep.mubr.bf16.mxu0 0
      %9537 = vmatmul.mubr.bf16.gmra.mrb[0].mxu0 %v7120
      %v9538 = vpop.f32.mrb[0].mxu0
      %v9539 = vadd.f32 %v9263, %v9538
      %v9540 = vpop.f32.mrb[0].mxu0
      %v9541 = vpop.f32.mrb[0].mxu0
      %v9542 = vadd.f32 %v9266, %v9541
      %v9543 = vpop.f32.mrb[0].mxu0
      %9544 = vmatprep.mubr.bf16.mxu0 0
      %9545 = vmatmul.mubr.bf16.gmra.mrb[0].mxu0 %v7123
      %v9546 = vpop.f32.mrb[0].mxu0
      %v9547 = vadd.f32 %v9271, %v9546
      %v9548 = vpop.f32.mrb[0].mxu0
      %v9549 = vpop.f32.mrb[0].mxu0
      %v9550 = vpop.f32.mrb[0].mxu0
      %9551 = vmatprep.mubr.bf16.mxu0 0
      %9552 = vmatmul.mubr.bf16.gmra.mrb[0].mxu0 %v7126
      %v9553 = vpop.f32.mrb[0].mxu0
      %v9554 = vadd.f32 %v9278, %v9553
      %v9555 = vpop.f32.mrb[0].mxu0
      %v9556 = vpop.f32.mrb[0].mxu0
      %v9557 = vadd.f32 %v9281, %v9556
      %v9558 = vpop.f32.mrb[0].mxu0
      %9559 = vmatprep.mubr.bf16.mxu0 0
      %9560 = vmatmul.mubr.bf16.gmra.mrb[0].mxu0 %v7129
      %v9561 = vpop.f32.mrb[0].mxu0
      %v9562 = vadd.f32 %v9286, %v9561
      %v9563 = vpop.f32.mrb[0].mxu0
      %v9564 = vpop.f32.mrb[0].mxu0
      %v9565 = vpop.f32.mrb[0].mxu0
      %9566 = vmatprep.mubr.bf16.mxu0 0
      %9567 = vmatmul.mubr.bf16.gmra.mrb[0].mxu0 %v7132
      %v9568 = vpop.f32.mrb[0].mxu0
      %v9569 = vadd.f32 %v9293, %v9568
      %v9570 = vpop.f32.mrb[0].mxu0
      %v9571 = vpop.f32.mrb[0].mxu0
      %v9572 = vadd.f32 %v9296, %v9571
      %v9573 = vpop.f32.mrb[0].mxu0
      %9574 = vmatprep.mubr.bf16.mxu0 0
      %9575 = vmatmul.mubr.bf16.gmra.mrb[0].mxu0 %v7135
      %v9576 = vpop.f32.mrb[0].mxu0
      %v9577 = vadd.f32 %v9301, %v9576
      %v9578 = vpop.f32.mrb[0].mxu0
      %v9579 = vpop.f32.mrb[0].mxu0
      %v9580 = vpop.f32.mrb[0].mxu0
      %9581 = vmatprep.mubr.bf16.mxu0 0
      %9582 = vmatmul.mubr.bf16.gmra.mrb[0].mxu0 %v7138
      %v9583 = vpop.f32.mrb[0].mxu0
      %v9584 = vadd.f32 %v9308, %v9583
      %v9585 = vpop.f32.mrb[0].mxu0
      %v9586 = vpop.f32.mrb[0].mxu0
      %v9587 = vadd.f32 %v9311, %v9586
      %v9588 = vpop.f32.mrb[0].mxu0
      %9589 = vmatprep.mubr.bf16.mxu0 0
      %9590 = vmatmul.mubr.bf16.gmra.mrb[0].mxu0 %v7141
      %v9591 = vpop.f32.mrb[0].mxu0
      %v9592 = vadd.f32 %v9316, %v9591
      %v9593 = vpop.f32.mrb[0].mxu0
      %v9594 = vpop.f32.mrb[0].mxu0
      %v9595 = vpop.f32.mrb[0].mxu0
      %9596 = vmatprep.mubr.bf16.mxu0 0
      %9597 = vmatmul.mubr.bf16.gmra.mrb[0].mxu0 %v7144
      %v9598 = vpop.f32.mrb[0].mxu0
      %v9599 = vadd.f32 %v9323, %v9598
      %v9600 = vpop.f32.mrb[0].mxu0
      %v9601 = vpop.f32.mrb[0].mxu0
      %v9602 = vadd.f32 %v9326, %v9601
      %v9603 = vpop.f32.mrb[0].mxu0
      %9604 = vmatprep.mubr.bf16.mxu0 0
      %9605 = vmatmul.mubr.bf16.gmra.mrb[0].mxu0 %v7147
      %v9606 = vpop.f32.mrb[0].mxu0
      %v9607 = vadd.f32 %v9331, %v9606
      %v9608 = vpop.f32.mrb[0].mxu0
      %v9609 = vpop.f32.mrb[0].mxu0
      %v9610 = vpop.f32.mrb[0].mxu0
      %9611 = vdwg.mxu0
      %s9612 = scalar_lea.vmem %s3, 16
      %v9613 = vld [vmem:[%s9612] sm:$0x3]
      %v9615 = vsel %vm7155, %v9613, 0
      %9617 = vmatprep.subr.bf16.mxu0 0
      %9618 = vmatpush1.bf16.msra.mxu0 %v9615
      %9619 = vmatprep.subr.bf16.mxu0 0
      %9620 = vmatpush1.bf16.msra.mxu0 0
      %9621 = vmatprep.subr.bf16.mxu0 0
      %9622 = vmatpush1.bf16.msra.mxu0 0
      %9623 = vmatprep.subr.bf16.mxu0 0
      %9624 = vmatpush1.bf16.msra.mxu0 0
      %9625 = vmatprep.subr.bf16.mxu0 0
      %9626 = vmatpush1.bf16.msra.mxu0 0
      %9627 = vmatprep.subr.bf16.mxu0 0
      %9628 = vmatpush1.bf16.msra.mxu0 0
      %9629 = vmatprep.subr.bf16.mxu0 0
      %9630 = vmatpush1.bf16.msra.mxu0 0
      %9631 = vmatprep.subr.bf16.mxu0 0
      %9632 = vmatpush1.bf16.msra.mxu0 0
      %9633 = vmatprep.subr.bf16.mxu0 0
      %9634 = vmatpush1.bf16.msra.mxu0 0
      %9635 = vmatprep.subr.bf16.mxu0 0
      %9636 = vmatpush1.bf16.msra.mxu0 0
      %9637 = vmatprep.subr.bf16.mxu0 0
      %9638 = vmatpush1.bf16.msra.mxu0 0
      %9639 = vmatprep.subr.bf16.mxu0 0
      %9640 = vmatpush1.bf16.msra.mxu0 0
      %9641 = vmatprep.subr.bf16.mxu0 0
      %9642 = vmatpush1.bf16.msra.mxu0 0
      %9643 = vmatprep.subr.bf16.mxu0 0
      %9644 = vmatpush1.bf16.msra.mxu0 0
      %9645 = vmatprep.subr.bf16.mxu0 0
      %9646 = vmatpush1.bf16.msra.mxu0 0
      %9647 = vmatprep.subr.bf16.mxu0 0
      %9648 = vmatpush1.bf16.msra.mxu0 0
      %9649 = vmatprep.mubr.bf16.mxu0 0
      %9650 = vmatmul.mubr.bf16.gmra.mrb[0].mxu0 %v7066
      %v9651 = vpop.f32.mrb[0].mxu0
      %v9652 = vadd.f32 0.0, %v9651
      %v9653 = vpop.f32.mrb[0].mxu0
      %v9654 = vpop.f32.mrb[0].mxu0
      %v9655 = vadd.f32 0.0, %v9654
      %v9656 = vpop.f32.mrb[0].mxu0
      %9657 = vmatprep.mubr.bf16.mxu0 0
      %9658 = vmatmul.mubr.bf16.gmra.mrb[0].mxu0 %v7069
      %v9659 = vpop.f32.mrb[0].mxu0
      %v9660 = vadd.f32 0.0, %v9659
      %v9661 = vpop.f32.mrb[0].mxu0
      %v9662 = vpop.f32.mrb[0].mxu0
      %v9663 = vpop.f32.mrb[0].mxu0
      %9664 = vmatprep.mubr.bf16.mxu0 0
      %9665 = vmatmul.mubr.bf16.gmra.mrb[0].mxu0 %v7072
      %v9666 = vpop.f32.mrb[0].mxu0
      %v9667 = vadd.f32 0.0, %v9666
      %v9668 = vpop.f32.mrb[0].mxu0
      %v9669 = vpop.f32.mrb[0].mxu0
      %v9670 = vadd.f32 0.0, %v9669
      %v9671 = vpop.f32.mrb[0].mxu0
      %9672 = vmatprep.mubr.bf16.mxu0 0
      %9673 = vmatmul.mubr.bf16.gmra.mrb[0].mxu0 %v7075
      %v9674 = vpop.f32.mrb[0].mxu0
      %v9675 = vadd.f32 0.0, %v9674
      %v9676 = vpop.f32.mrb[0].mxu0
      %v9677 = vpop.f32.mrb[0].mxu0
      %v9678 = vpop.f32.mrb[0].mxu0
      %9679 = vmatprep.mubr.bf16.mxu0 0
      %9680 = vmatmul.mubr.bf16.gmra.mrb[0].mxu0 %v7078
      %v9681 = vpop.f32.mrb[0].mxu0
      %v9682 = vadd.f32 0.0, %v9681
      %v9683 = vpop.f32.mrb[0].mxu0
      %v9684 = vpop.f32.mrb[0].mxu0
      %v9685 = vadd.f32 0.0, %v9684
      %v9686 = vpop.f32.mrb[0].mxu0
      %9687 = vmatprep.mubr.bf16.mxu0 0
      %9688 = vmatmul.mubr.bf16.gmra.mrb[0].mxu0 %v7081
      %v9689 = vpop.f32.mrb[0].mxu0
      %v9690 = vadd.f32 0.0, %v9689
      %v9691 = vpop.f32.mrb[0].mxu0
      %v9692 = vpop.f32.mrb[0].mxu0
      %v9693 = vpop.f32.mrb[0].mxu0
      %9694 = vmatprep.mubr.bf16.mxu0 0
      %9695 = vmatmul.mubr.bf16.gmra.mrb[0].mxu0 %v7084
      %v9696 = vpop.f32.mrb[0].mxu0
      %v9697 = vadd.f32 0.0, %v9696
      %v9698 = vpop.f32.mrb[0].mxu0
      %v9699 = vpop.f32.mrb[0].mxu0
      %v9700 = vadd.f32 0.0, %v9699
      %v9701 = vpop.f32.mrb[0].mxu0
      %9702 = vmatprep.mubr.bf16.mxu0 0
      %9703 = vmatmul.mubr.bf16.gmra.mrb[0].mxu0 %v7087
      %v9704 = vpop.f32.mrb[0].mxu0
      %v9705 = vadd.f32 0.0, %v9704
      %v9706 = vpop.f32.mrb[0].mxu0
      %v9707 = vpop.f32.mrb[0].mxu0
      %v9708 = vpop.f32.mrb[0].mxu0
      %9709 = vmatprep.mubr.bf16.mxu0 0
      %9710 = vmatmul.mubr.bf16.gmra.mrb[0].mxu0 %v7090
      %v9711 = vpop.f32.mrb[0].mxu0
      %v9712 = vadd.f32 0.0, %v9711
      %v9713 = vpop.f32.mrb[0].mxu0
      %v9714 = vpop.f32.mrb[0].mxu0
      %v9715 = vadd.f32 0.0, %v9714
      %v9716 = vpop.f32.mrb[0].mxu0
      %9717 = vmatprep.mubr.bf16.mxu0 0
      %9718 = vmatmul.mubr.bf16.gmra.mrb[0].mxu0 %v7093
      %v9719 = vpop.f32.mrb[0].mxu0
      %v9720 = vadd.f32 0.0, %v9719
      %v9721 = vpop.f32.mrb[0].mxu0
      %v9722 = vpop.f32.mrb[0].mxu0
      %v9723 = vpop.f32.mrb[0].mxu0
      %9724 = vmatprep.mubr.bf16.mxu0 0
      %9725 = vmatmul.mubr.bf16.gmra.mrb[0].mxu0 %v7096
      %v9726 = vpop.f32.mrb[0].mxu0
      %v9727 = vadd.f32 0.0, %v9726
      %v9728 = vpop.f32.mrb[0].mxu0
      %v9729 = vpop.f32.mrb[0].mxu0
      %v9730 = vadd.f32 0.0, %v9729
      %v9731 = vpop.f32.mrb[0].mxu0
      %9732 = vmatprep.mubr.bf16.mxu0 0
      %9733 = vmatmul.mubr.bf16.gmra.mrb[0].mxu0 %v7099
      %v9734 = vpop.f32.mrb[0].mxu0
      %v9735 = vadd.f32 0.0, %v9734
      %v9736 = vpop.f32.mrb[0].mxu0
      %v9737 = vpop.f32.mrb[0].mxu0
      %v9738 = vpop.f32.mrb[0].mxu0
      %9739 = vmatprep.mubr.bf16.mxu0 0
      %9740 = vmatmul.mubr.bf16.gmra.mrb[0].mxu0 %v7102
      %v9741 = vpop.f32.mrb[0].mxu0
      %v9742 = vadd.f32 0.0, %v9741
      %v9743 = vpop.f32.mrb[0].mxu0
      %v9744 = vpop.f32.mrb[0].mxu0
      %v9745 = vadd.f32 0.0, %v9744
      %v9746 = vpop.f32.mrb[0].mxu0
      %9747 = vmatprep.mubr.bf16.mxu0 0
      %9748 = vmatmul.mubr.bf16.gmra.mrb[0].mxu0 %v7105
      %v9749 = vpop.f32.mrb[0].mxu0
      %v9750 = vadd.f32 0.0, %v9749
      %v9751 = vpop.f32.mrb[0].mxu0
      %v9752 = vpop.f32.mrb[0].mxu0
      %v9753 = vpop.f32.mrb[0].mxu0
      %9754 = vmatprep.mubr.bf16.mxu0 0
      %9755 = vmatmul.mubr.bf16.gmra.mrb[0].mxu0 %v7108
      %v9756 = vpop.f32.mrb[0].mxu0
      %v9757 = vadd.f32 0.0, %v9756
      %v9758 = vpop.f32.mrb[0].mxu0
      %v9759 = vpop.f32.mrb[0].mxu0
      %v9760 = vadd.f32 0.0, %v9759
      %v9761 = vpop.f32.mrb[0].mxu0
      %9762 = vmatprep.mubr.bf16.mxu0 0
      %9763 = vmatmul.mubr.bf16.gmra.mrb[0].mxu0 %v7111
      %v9764 = vpop.f32.mrb[0].mxu0
      %v9765 = vadd.f32 0.0, %v9764
      %v9766 = vpop.f32.mrb[0].mxu0
      %v9767 = vpop.f32.mrb[0].mxu0
      %v9768 = vpop.f32.mrb[0].mxu0
      %9769 = vmatprep.mubr.bf16.mxu0 0
      %9770 = vmatmul.mubr.bf16.gmra.mrb[0].mxu0 %v7114
      %v9771 = vpop.f32.mrb[0].mxu0
      %v9772 = vadd.f32 0.0, %v9771
      %v9773 = vpop.f32.mrb[0].mxu0
      %v9774 = vpop.f32.mrb[0].mxu0
      %v9775 = vadd.f32 0.0, %v9774
      %v9776 = vpop.f32.mrb[0].mxu0
      %9777 = vmatprep.mubr.bf16.mxu0 0
      %9778 = vmatmul.mubr.bf16.gmra.mrb[0].mxu0 %v7117
      %v9779 = vpop.f32.mrb[0].mxu0
      %v9780 = vadd.f32 0.0, %v9779
      %v9781 = vpop.f32.mrb[0].mxu0
      %v9782 = vpop.f32.mrb[0].mxu0
      %v9783 = vpop.f32.mrb[0].mxu0
      %9784 = vmatprep.mubr.bf16.mxu0 0
      %9785 = vmatmul.mubr.bf16.gmra.mrb[0].mxu0 %v7120
      %v9786 = vpop.f32.mrb[0].mxu0
      %v9787 = vadd.f32 0.0, %v9786
      %v9788 = vpop.f32.mrb[0].mxu0
      %v9789 = vpop.f32.mrb[0].mxu0
      %v9790 = vadd.f32 0.0, %v9789
      %v9791 = vpop.f32.mrb[0].mxu0
      %9792 = vmatprep.mubr.bf16.mxu0 0
      %9793 = vmatmul.mubr.bf16.gmra.mrb[0].mxu0 %v7123
      %v9794 = vpop.f32.mrb[0].mxu0
      %v9795 = vadd.f32 0.0, %v9794
      %v9796 = vpop.f32.mrb[0].mxu0
      %v9797 = vpop.f32.mrb[0].mxu0
      %v9798 = vpop.f32.mrb[0].mxu0
      %9799 = vmatprep.mubr.bf16.mxu0 0
      %9800 = vmatmul.mubr.bf16.gmra.mrb[0].mxu0 %v7126
      %v9801 = vpop.f32.mrb[0].mxu0
      %v9802 = vadd.f32 0.0, %v9801
      %v9803 = vpop.f32.mrb[0].mxu0
      %v9804 = vpop.f32.mrb[0].mxu0
      %v9805 = vadd.f32 0.0, %v9804
      %v9806 = vpop.f32.mrb[0].mxu0
      %9807 = vmatprep.mubr.bf16.mxu0 0
      %9808 = vmatmul.mubr.bf16.gmra.mrb[0].mxu0 %v7129
      %v9809 = vpop.f32.mrb[0].mxu0
      %v9810 = vadd.f32 0.0, %v9809
      %v9811 = vpop.f32.mrb[0].mxu0
      %v9812 = vpop.f32.mrb[0].mxu0
      %v9813 = vpop.f32.mrb[0].mxu0
      %9814 = vmatprep.mubr.bf16.mxu0 0
      %9815 = vmatmul.mubr.bf16.gmra.mrb[0].mxu0 %v7132
      %v9816 = vpop.f32.mrb[0].mxu0
      %v9817 = vadd.f32 0.0, %v9816
      %v9818 = vpop.f32.mrb[0].mxu0
      %v9819 = vpop.f32.mrb[0].mxu0
      %v9820 = vadd.f32 0.0, %v9819
      %v9821 = vpop.f32.mrb[0].mxu0
      %9822 = vmatprep.mubr.bf16.mxu0 0
      %9823 = vmatmul.mubr.bf16.gmra.mrb[0].mxu0 %v7135
      %v9824 = vpop.f32.mrb[0].mxu0
      %v9825 = vadd.f32 0.0, %v9824
      %v9826 = vpop.f32.mrb[0].mxu0
      %v9827 = vpop.f32.mrb[0].mxu0
      %v9828 = vpop.f32.mrb[0].mxu0
      %9829 = vmatprep.mubr.bf16.mxu0 0
      %9830 = vmatmul.mubr.bf16.gmra.mrb[0].mxu0 %v7138
      %v9831 = vpop.f32.mrb[0].mxu0
      %v9832 = vadd.f32 0.0, %v9831
      %v9833 = vpop.f32.mrb[0].mxu0
      %v9834 = vpop.f32.mrb[0].mxu0
      %v9835 = vadd.f32 0.0, %v9834
      %v9836 = vpop.f32.mrb[0].mxu0
      %9837 = vmatprep.mubr.bf16.mxu0 0
      %9838 = vmatmul.mubr.bf16.gmra.mrb[0].mxu0 %v7141
      %v9839 = vpop.f32.mrb[0].mxu0
      %v9840 = vadd.f32 0.0, %v9839
      %v9841 = vpop.f32.mrb[0].mxu0
      %v9842 = vpop.f32.mrb[0].mxu0
      %v9843 = vpop.f32.mrb[0].mxu0
      %9844 = vmatprep.mubr.bf16.mxu0 0
      %9845 = vmatmul.mubr.bf16.gmra.mrb[0].mxu0 %v7144
      %v9846 = vpop.f32.mrb[0].mxu0
      %v9847 = vadd.f32 0.0, %v9846
      %v9848 = vpop.f32.mrb[0].mxu0
      %v9849 = vpop.f32.mrb[0].mxu0
      %v9850 = vadd.f32 0.0, %v9849
      %v9851 = vpop.f32.mrb[0].mxu0
      %9852 = vmatprep.mubr.bf16.mxu0 0
      %9853 = vmatmul.mubr.bf16.gmra.mrb[0].mxu0 %v7147
      %v9854 = vpop.f32.mrb[0].mxu0
      %v9855 = vadd.f32 0.0, %v9854
      %v9856 = vpop.f32.mrb[0].mxu0
      %v9857 = vpop.f32.mrb[0].mxu0
      %v9858 = vpop.f32.mrb[0].mxu0
      %9859 = vmatprep.mubr.bf16.mxu0 0
      %9860 = vmatmul.mubr.bf16.gmra.mrb[0].mxu0 %v7150
      %v9861 = vpop.f32.mrb[0].mxu0
      %v9862 = vadd.f32 0.0, %v9861
      %v9863 = vpop.f32.mrb[0].mxu0
      %v9864 = vpop.f32.mrb[0].mxu0
      %v9865 = vadd.f32 0.0, %v9864
      %v9866 = vpop.f32.mrb[0].mxu0
      %9867 = vmatprep.mubr.bf16.mxu0 0
      %9868 = vmatmul.mubr.bf16.gmra.mrb[0].mxu0 %v7153
      %v9869 = vpop.f32.mrb[0].mxu0
      %v9870 = vadd.f32 0.0, %v9869
      %v9871 = vpop.f32.mrb[0].mxu0
      %v9872 = vpop.f32.mrb[0].mxu0
      %v9873 = vpop.f32.mrb[0].mxu0
      %9874 = vmatprep.mubr.bf16.mxu0 0
      %9875 = vmatmul.mubr.bf16.gmra.mrb[0].mxu0 %v7685
      %v9876 = vpop.f32.mrb[0].mxu0
      %v9877 = vadd.f32 0.0, %v9876
      %v9878 = vpop.f32.mrb[0].mxu0
      %v9879 = vpop.f32.mrb[0].mxu0
      %v9880 = vadd.f32 0.0, %v9879
      %v9881 = vpop.f32.mrb[0].mxu0
      %9882 = vmatprep.mubr.bf16.mxu0 0
      %9883 = vmatmul.mubr.bf16.gmra.mrb[0].mxu0 %v7688
      %v9884 = vpop.f32.mrb[0].mxu0
      %v9885 = vadd.f32 0.0, %v9884
      %v9886 = vpop.f32.mrb[0].mxu0
      %v9887 = vpop.f32.mrb[0].mxu0
      %v9888 = vpop.f32.mrb[0].mxu0
      %9889 = vdwg.mxu0
      %v9890 = vadd.f32 %v9374, %v9652
      %v9891 = vadd.f32 %v9377, %v9655
      %v9892 = vadd.f32 %v9382, %v9660
      %v9893 = vadd.f32 %v9389, %v9667
      %v9894 = vadd.f32 %v9392, %v9670
      %v9895 = vadd.f32 %v9397, %v9675
      %v9896 = vadd.f32 %v9404, %v9682
      %v9897 = vadd.f32 %v9407, %v9685
      %v9898 = vadd.f32 %v9412, %v9690
      %v9899 = vadd.f32 %v9419, %v9697
      %v9900 = vadd.f32 %v9422, %v9700
      %v9901 = vadd.f32 %v9427, %v9705
      %v9902 = vadd.f32 %v9434, %v9712
      %v9903 = vadd.f32 %v9437, %v9715
      %v9904 = vadd.f32 %v9442, %v9720
      %v9905 = vadd.f32 %v9449, %v9727
      %v9906 = vadd.f32 %v9452, %v9730
      %v9907 = vadd.f32 %v9457, %v9735
      %v9908 = vadd.f32 %v9464, %v9742
      %v9909 = vadd.f32 %v9467, %v9745
      %v9910 = vadd.f32 %v9472, %v9750
      %v9911 = vadd.f32 %v9479, %v9757
      %v9912 = vadd.f32 %v9482, %v9760
      %v9913 = vadd.f32 %v9487, %v9765
      %v9914 = vadd.f32 %v9494, %v9772
      %v9915 = vadd.f32 %v9497, %v9775
      %v9916 = vadd.f32 %v9502, %v9780
      %v9917 = vadd.f32 %v9509, %v9787
      %v9918 = vadd.f32 %v9512, %v9790
      %v9919 = vadd.f32 %v9517, %v9795
      %v9920 = vadd.f32 %v9524, %v9802
      %v9921 = vadd.f32 %v9527, %v9805
      %v9922 = vadd.f32 %v9532, %v9810
      %v9923 = vadd.f32 %v9539, %v9817
      %v9924 = vadd.f32 %v9542, %v9820
      %v9925 = vadd.f32 %v9547, %v9825
      %v9926 = vadd.f32 %v9554, %v9832
      %v9927 = vadd.f32 %v9557, %v9835
      %v9928 = vadd.f32 %v9562, %v9840
      %v9929 = vadd.f32 %v9569, %v9847
      %v9930 = vadd.f32 %v9572, %v9850
      %v9931 = vadd.f32 %v9577, %v9855
      %v9932 = vadd.f32 %v9584, %v9862
      %v9933 = vadd.f32 %v9587, %v9865
      %v9934 = vadd.f32 %v9592, %v9870
      %v9935 = vadd.f32 %v9599, %v9877
      %v9936 = vadd.f32 %v9602, %v9880
      %v9937 = vadd.f32 %v9607, %v9885
      %v9986 = vrot.slane %v9890, 2
      %v9987 = vrot.slane %v9891, 2
      %v9988 = vsel %vm6113, %v9986, %v9987
      %v9989 = vrot.slane %v9892, 2
      %v9990 = vsel %vm6113, %v9987, %v9989
      %v9991 = vrot.slane %v9893, 2
      %v9992 = vrot.slane %v9894, 2
      %v9993 = vsel %vm6113, %v9991, %v9992
      %v9994 = vrot.slane %v9895, 2
      %v9995 = vsel %vm6113, %v9992, %v9994
      %v9996 = vrot.slane %v9896, 2
      %v9997 = vrot.slane %v9897, 2
      %v9998 = vsel %vm6113, %v9996, %v9997
      %v9999 = vrot.slane %v9898, 2
      %v10000 = vsel %vm6113, %v9997, %v9999
      %v10001 = vrot.slane %v9899, 2
      %v10002 = vrot.slane %v9900, 2
      %v10003 = vsel %vm6113, %v10001, %v10002
      %v10004 = vrot.slane %v9901, 2
      %v10005 = vsel %vm6113, %v10002, %v10004
      %v10006 = vrot.slane %v9902, 2
      %v10007 = vrot.slane %v9903, 2
      %v10008 = vsel %vm6113, %v10006, %v10007
      %v10009 = vrot.slane %v9904, 2
      %v10010 = vsel %vm6113, %v10007, %v10009
      %v10011 = vrot.slane %v9905, 2
      %v10012 = vrot.slane %v9906, 2
      %v10013 = vsel %vm6113, %v10011, %v10012
      %v10014 = vrot.slane %v9907, 2
      %v10015 = vsel %vm6113, %v10012, %v10014
      %v10016 = vrot.slane %v9908, 2
      %v10017 = vrot.slane %v9909, 2
      %v10018 = vsel %vm6113, %v10016, %v10017
      %v10019 = vrot.slane %v9910, 2
      %v10020 = vsel %vm6113, %v10017, %v10019
      %v10021 = vrot.slane %v9911, 2
      %v10022 = vrot.slane %v9912, 2
      %v10023 = vsel %vm6113, %v10021, %v10022
      %v10024 = vrot.slane %v9913, 2
      %v10025 = vsel %vm6113, %v10022, %v10024
      %v10026 = vrot.slane %v9914, 2
      %v10027 = vrot.slane %v9915, 2
      %v10028 = vsel %vm6113, %v10026, %v10027
      %v10029 = vrot.slane %v9916, 2
      %v10030 = vsel %vm6113, %v10027, %v10029
      %v10031 = vrot.slane %v9917, 2
      %v10032 = vrot.slane %v9918, 2
      %v10033 = vsel %vm6113, %v10031, %v10032
      %v10034 = vrot.slane %v9919, 2
      %v10035 = vsel %vm6113, %v10032, %v10034
      %v10036 = vrot.slane %v9920, 2
      %v10037 = vrot.slane %v9921, 2
      %v10038 = vsel %vm6113, %v10036, %v10037
      %v10039 = vrot.slane %v9922, 2
      %v10040 = vsel %vm6113, %v10037, %v10039
      %v10041 = vrot.slane %v9923, 2
      %v10042 = vrot.slane %v9924, 2
      %v10043 = vsel %vm6113, %v10041, %v10042
      %v10044 = vrot.slane %v9925, 2
      %v10045 = vsel %vm6113, %v10042, %v10044
      %v10046 = vrot.slane %v9926, 2
      %v10047 = vrot.slane %v9927, 2
      %v10048 = vsel %vm6113, %v10046, %v10047
      %v10049 = vrot.slane %v9928, 2
      %v10050 = vsel %vm6113, %v10047, %v10049
      %v10051 = vrot.slane %v9929, 2
      %v10052 = vrot.slane %v9930, 2
      %v10053 = vsel %vm6113, %v10051, %v10052
      %v10054 = vrot.slane %v9931, 2
      %v10055 = vsel %vm6113, %v10052, %v10054
      %v10056 = vrot.slane %v9932, 2
      %v10057 = vrot.slane %v9933, 2
      %v10058 = vsel %vm6113, %v10056, %v10057
      %v10059 = vrot.slane %v9934, 2
      %v10060 = vsel %vm6113, %v10057, %v10059
      %v10061 = vrot.slane %v9935, 2
      %v10062 = vrot.slane %v9936, 2
      %v10063 = vsel %vm6113, %v10061, %v10062
      %v10064 = vrot.slane %v9937, 2
      %v10065 = vsel %vm6113, %v10062, %v10064
      %v10098 = vadd.f32 %v9024, %v9988
      %v10099 = vadd.f32 %v9025, %v9990
      %v10100 = vadd.f32 %v9026, %v9993
      %v10101 = vadd.f32 %v9027, %v9995
      %v10102 = vadd.f32 %v9028, %v9998
      %v10103 = vadd.f32 %v9029, %v10000
      %v10104 = vadd.f32 %v9030, %v10003
      %v10105 = vadd.f32 %v9031, %v10005
      %v10106 = vadd.f32 %v9032, %v10008
      %v10107 = vadd.f32 %v9033, %v10010
      %v10108 = vadd.f32 %v9034, %v10013
      %v10109 = vadd.f32 %v9035, %v10015
      %v10110 = vadd.f32 %v9036, %v10018
      %v10111 = vadd.f32 %v9037, %v10020
      %v10112 = vadd.f32 %v9038, %v10023
      %v10113 = vadd.f32 %v9039, %v10025
      %v10114 = vadd.f32 %v9040, %v10028
      %v10115 = vadd.f32 %v9041, %v10030
      %v10116 = vadd.f32 %v9042, %v10033
      %v10117 = vadd.f32 %v9043, %v10035
      %v10118 = vadd.f32 %v9044, %v10038
      %v10119 = vadd.f32 %v9045, %v10040
      %v10120 = vadd.f32 %v9046, %v10043
      %v10121 = vadd.f32 %v9047, %v10045
      %v10122 = vadd.f32 %v9048, %v10048
      %v10123 = vadd.f32 %v9049, %v10050
      %v10124 = vadd.f32 %v9050, %v10053
      %v10125 = vadd.f32 %v9051, %v10055
      %v10126 = vadd.f32 %v9052, %v10058
      %v10127 = vadd.f32 %v9053, %v10060
      %v10128 = vadd.f32 %v9054, %v10063
      %v10129 = vadd.f32 %v9055, %v10065
      %v10130 = vld [vmem:[%s5] sm:$0x1]
      %v10132 = vlaneseq
      %v10133 = vshrl.u32 %v10132, 7
      %v10134 = vsub.s32 0, %v10133
      %v10135 = vrot.slane %v10130, %v10134
      %v10137 = vadd.f32 %v10098, %v10135
      %v10138 = vadd.f32 %v10099, %v10135
      %v10139 = vadd.f32 %v10100, %v10135
      %v10140 = vadd.f32 %v10101, %v10135
      %v10141 = vadd.f32 %v10102, %v10135
      %v10142 = vadd.f32 %v10103, %v10135
      %v10143 = vadd.f32 %v10104, %v10135
      %v10144 = vadd.f32 %v10105, %v10135
      %v10145 = vadd.f32 %v10106, %v10135
      %v10146 = vadd.f32 %v10107, %v10135
      %v10147 = vadd.f32 %v10108, %v10135
      %v10148 = vadd.f32 %v10109, %v10135
      %v10149 = vadd.f32 %v10110, %v10135
      %v10150 = vadd.f32 %v10111, %v10135
      %v10151 = vadd.f32 %v10112, %v10135
      %v10152 = vadd.f32 %v10113, %v10135
      %v10153 = vadd.f32 %v10114, %v10135
      %v10154 = vadd.f32 %v10115, %v10135
      %v10155 = vadd.f32 %v10116, %v10135
      %v10156 = vadd.f32 %v10117, %v10135
      %v10157 = vadd.f32 %v10118, %v10135
      %v10158 = vadd.f32 %v10119, %v10135
      %v10159 = vadd.f32 %v10120, %v10135
      %v10160 = vadd.f32 %v10121, %v10135
      %v10161 = vadd.f32 %v10122, %v10135
      %v10162 = vadd.f32 %v10123, %v10135
      %v10163 = vadd.f32 %v10124, %v10135
      %v10164 = vadd.f32 %v10125, %v10135
      %v10165 = vadd.f32 %v10126, %v10135
      %v10166 = vadd.f32 %v10127, %v10135
      %v10167 = vadd.f32 %v10128, %v10135
      %v10168 = vadd.f32 %v10129, %v10135
      %v10169 = vmax.f32 %v10137, 0.0
      %v10170 = vmax.f32 %v10138, 0.0
      %v10171 = vmax.f32 %v10139, 0.0
      %v10172 = vmax.f32 %v10140, 0.0
      %v10173 = vmax.f32 %v10141, 0.0
      %v10174 = vmax.f32 %v10142, 0.0
      %v10175 = vmax.f32 %v10143, 0.0
      %v10176 = vmax.f32 %v10144, 0.0
      %v10177 = vmax.f32 %v10145, 0.0
      %v10178 = vmax.f32 %v10146, 0.0
      %v10179 = vmax.f32 %v10147, 0.0
      %v10180 = vmax.f32 %v10148, 0.0
      %v10181 = vmax.f32 %v10149, 0.0
      %v10182 = vmax.f32 %v10150, 0.0
      %v10183 = vmax.f32 %v10151, 0.0
      %v10184 = vmax.f32 %v10152, 0.0
      %v10185 = vmax.f32 %v10153, 0.0
      %v10186 = vmax.f32 %v10154, 0.0
      %v10187 = vmax.f32 %v10155, 0.0
      %v10188 = vmax.f32 %v10156, 0.0
      %v10189 = vmax.f32 %v10157, 0.0
      %v10190 = vmax.f32 %v10158, 0.0
      %v10191 = vmax.f32 %v10159, 0.0
      %v10192 = vmax.f32 %v10160, 0.0
      %v10193 = vmax.f32 %v10161, 0.0
      %v10194 = vmax.f32 %v10162, 0.0
      %v10195 = vmax.f32 %v10163, 0.0
      %v10196 = vmax.f32 %v10164, 0.0
      %v10197 = vmax.f32 %v10165, 0.0
      %v10198 = vmax.f32 %v10166, 0.0
      %v10199 = vmax.f32 %v10167, 0.0
      %v10200 = vmax.f32 %v10168, 0.0
      %10201 = vst.msk [vmem:[%s372] sm:$0xff] %vm7058, %v10169
      %10202 = vst.msk [vmem:[%s372 + $0x8] sm:$0xff] %vm7058, %v10170
      %10203 = vst.msk [vmem:[%s372 + $0x10] sm:$0xff] %vm7058, %v10171
      %10204 = vst.msk [vmem:[%s372 + $0x18] sm:$0xff] %vm7058, %v10172
      %10205 = vst.msk [vmem:[%s372 + $0x20] sm:$0xff] %vm7058, %v10173
      %10206 = vst.msk [vmem:[%s372 + $0x28] sm:$0xff] %vm7058, %v10174
      %10207 = vst.msk [vmem:[%s372 + $0x30] sm:$0xff] %vm7058, %v10175
      %10208 = vst.msk [vmem:[%s372 + $0x38] sm:$0xff] %vm7058, %v10176
      %10209 = vst.msk [vmem:[%s372 + $0x40] sm:$0xff] %vm7058, %v10177
      %10210 = vst.msk [vmem:[%s372 + $0x48] sm:$0xff] %vm7058, %v10178
      %10211 = vst.msk [vmem:[%s372 + $0x50] sm:$0xff] %vm7058, %v10179
      %10212 = vst.msk [vmem:[%s372 + $0x58] sm:$0xff] %vm7058, %v10180
      %10213 = vst.msk [vmem:[%s372 + $0x60] sm:$0xff] %vm7058, %v10181
      %10214 = vst.msk [vmem:[%s372 + $0x68] sm:$0xff] %vm7058, %v10182
      %10215 = vst.msk [vmem:[%s372 + $0x70] sm:$0xff] %vm7058, %v10183
      %10216 = vst.msk [vmem:[%s372 + $0x78] sm:$0xff] %vm7058, %v10184
      %10217 = vst.msk [vmem:[%s372 + $0x80] sm:$0xff] %vm7058, %v10185
      %10218 = vst.msk [vmem:[%s372 + $0x88] sm:$0xff] %vm7058, %v10186
      %10219 = vst.msk [vmem:[%s372 + $0x90] sm:$0xff] %vm7058, %v10187
      %10220 = vst.msk [vmem:[%s372 + $0x98] sm:$0xff] %vm7058, %v10188
      %10221 = vst.msk [vmem:[%s372 + $0xa0] sm:$0xff] %vm7058, %v10189
      %10222 = vst.msk [vmem:[%s372 + $0xa8] sm:$0xff] %vm7058, %v10190
      %10223 = vst.msk [vmem:[%s372 + $0xb0] sm:$0xff] %vm7058, %v10191
      %10224 = vst.msk [vmem:[%s372 + $0xb8] sm:$0xff] %vm7058, %v10192
      %10225 = vst.msk [vmem:[%s372 + $0xc0] sm:$0xff] %vm7058, %v10193
      %10226 = vst.msk [vmem:[%s372 + $0xc8] sm:$0xff] %vm7058, %v10194
      %10227 = vst.msk [vmem:[%s372 + $0xd0] sm:$0xff] %vm7058, %v10195
      %10228 = vst.msk [vmem:[%s372 + $0xd8] sm:$0xff] %vm7058, %v10196
      %10229 = vst.msk [vmem:[%s372 + $0xe0] sm:$0xff] %vm7058, %v10197
      %10230 = vst.msk [vmem:[%s372 + $0xe8] sm:$0xff] %vm7058, %v10198
      %10231 = vst.msk [vmem:[%s372 + $0xf0] sm:$0xff] %vm7058, %v10199
      %10232 = vst.msk [vmem:[%s372 + $0xf8] sm:$0xff] %vm7058, %v10200
      %s10233 = smul.u32 16, %s22
      %p10234 = scmp.lt.s32.totalorder %s21, 1
      %s10235 = scalar_select %p10234, %s21, 1
      %p10236 = scmp.lt.s32.totalorder %s10233, 15
      %s10237 = scalar_select %p10236, %s10233, 15
      %s10238 = smul.addr %s10237, 2
      %s10239 = smul.addr %s10235, 32
      %s10240 = sadd.s32 %s10238, %s10239
      %s10241 = smul.addr %s10240, 8
      %s10242 = scalar_lea.vmem %s6, %s10241
      // Predicated region
      $region45: #{up_forward.1} parent=43 // pred_check
        %p10243 = pneg %p193
      $region46: #{up_forward.1} parent=43 // pred_check_branch
        %10245 = sbr.rel (%p10243) target = $region48
      $region47: #{up_forward.1} parent=43 // pred_region
        %s10246 = smul.u32 16, %s22
      $region48: #{up_forward.1} parent=43 // pred_fallthru
        _
    $region44: #{up_forward.1} parent=5 // pred_fallthru
      _
    %p10247 = scmp.le.s32.totalorder 2, %s12
    // Predicated region
    $region49: #{up_forward.1} parent=5 // pred_check
      %p10248 = pneg %p10247
    $region50: #{up_forward.1} parent=5 // pred_check_branch
      %10250 = sbr.rel (%p10248) target = $region52
    $region51: #{up_forward.1} parent=5 // pred_region
      %s10251 = ssub.s32 %s12, 2
      // Predicated region
      $region53: #{up_forward.1} parent=51 // pred_check
        %p10252 = pneg %p199
      $region54: #{up_forward.1} parent=51 // pred_check_branch
        %10254 = sbr.rel (%p10252) target = $region56
      $region55: #{up_forward.1} parent=51 // pred_region
        %s10255 = smul.u32 16, %s24
        %p10256 = scmp.lt.s32.totalorder %s23, 1
        %s10257 = scalar_select %p10256, %s23, 1
        %p10258 = scmp.lt.s32.totalorder %s10255, 15
        %s10259 = scalar_select %p10258, %s10255, 15
        %s10260 = smul.addr %s10259, 2
        %s10261 = smul.addr %s10257, 32
        %s10262 = sadd.s32 %s10260, %s10261
        %s10263 = smul.addr %s10262, 8
        %s10264 = scalar_lea.vmem %s6, %s10263
      $region56: #{up_forward.1} parent=51 // pred_fallthru
        _
    $region52: #{up_forward.1} parent=5 // pred_fallthru
      _
  $region6: #{up_forward.1} parent=0 // loop_footer
    %s16 = sadd.s32 1, %s12
  $region7: #{up_forward.1} parent=0 // loop_footer_branch
    %11 = sbr.rel target = $region3
  $region8: #{up_forward.1} parent=0 // loop_exit
    _

</llo_original>
